<compile_context>
chip_gen: v6e
topology: v6e:2x2x1
jax: 0.10.0
libtpu: 0.0.40
codegen_flags: <defaults>
</compile_context>

<pallas_src>
import jax
import jax.numpy as jnp
from jax.experimental import pallas as pl
from jax.experimental.pallas import tpu as pltpu

IN_DIM = 512 * 4 * 4      # 8192
HID_DIM = 512
OUT_DIM = 2
OUT_PAD = 128             # lane-dense padded fc2 output; sliced in the wrapper
TM_MAX = 128              # batch tile cap (VMEM-friendly; both v7x TCs engage at B>128)
VMEM_LIMIT_BYTES = 48 * 1024 * 1024  # > v5e's 16 MiB scoped default, < v7x 64 MiB/TC


def _round_up(a, m):
    return ((a + m - 1) // m) * m


def _cdiv(a, b):
    return -(-a // b)


def _mlp_kernel(x_ref, w1_ref, b1_ref, w2_ref, b2_ref, out_ref):
    """Grid = (batch_tiles,). W1/W2/biases have constant block indices, so they
    are DMA'd into VMEM exactly once and stay resident across all batch tiles.

    x arrives f32 and is cast to bf16 on the VPU right before the MXU dot
    (free filler in an HBM-bound kernel); both matmuls accumulate in f32.
    """
    xb = x_ref[...].astype(jnp.bfloat16)
    h = jnp.dot(xb, w1_ref[...], preferred_element_type=jnp.float32)
    h = jnp.maximum(h + b1_ref[...], 0.0)                       # fc1 bias + ReLU (f32)
    logits = jnp.dot(h.astype(jnp.bfloat16), w2_ref[...],
                     preferred_element_type=jnp.float32)
    out_ref[...] = (logits + b2_ref[...]).astype(out_ref.dtype)


@jax.jit
def pedestrian_classifier(x, w1_bf16, b1r, w2p_bf16, b2p):
    """x: (B, 8192) f32. Params must come from prepare_params().

    Returns (B, 2) f32 logits.
    """
    B = x.shape[0]
    # Balanced batch tiling (static under jit): never pads more than one
    # sublane-rounded tile's worth of rows.
    n_b = max(1, _cdiv(B, TM_MAX))
    TM = max(8, _round_up(_cdiv(B, n_b), 8))
    Bp = n_b * TM

    xp = x
    if Bp != B:
        xp = jnp.pad(x, ((0, Bp - B), (0, 0)))

    cost = pl.CostEstimate(
        flops=2 * Bp * IN_DIM * HID_DIM + 2 * Bp * HID_DIM * OUT_PAD,
        transcendentals=0,
        bytes_accessed=(
            xp.size * 4                 # x (f32), streamed per batch tile
            + w1_bf16.size * 2          # W1 (bf16), fetched ONCE (resident)
            + b1r.size * 4 + w2p_bf16.size * 2 + b2p.size * 4
            + Bp * OUT_PAD * 4          # padded output
        ),
    )

    out_padded = pl.pallas_call(
        _mlp_kernel,
        out_shape=jax.ShapeDtypeStruct((Bp, OUT_PAD), jnp.float32),
        grid_spec=pltpu.PrefetchScalarGridSpec(
            num_scalar_prefetch=0,
            grid=(n_b,),
            in_specs=[
                pl.BlockSpec((TM, IN_DIM), lambda i: (i, 0)),          # x tile (f32)
                pl.BlockSpec((IN_DIM, HID_DIM), lambda i: (0, 0)),     # W1 resident (bf16)
                pl.BlockSpec((1, HID_DIM), lambda i: (0, 0)),          # b1 (f32)
                pl.BlockSpec((HID_DIM, OUT_PAD), lambda i: (0, 0)),    # W2 padded (bf16)
                pl.BlockSpec((1, OUT_PAD), lambda i: (0, 0)),          # b2 padded (f32)
            ],
            out_specs=pl.BlockSpec((TM, OUT_PAD), lambda i: (i, 0)),
        ),
        compiler_params=pltpu.CompilerParams(
            dimension_semantics=("parallel",),       # batch tiles shard across TCs
            vmem_limit_bytes=VMEM_LIMIT_BYTES,
        ),
        cost_estimate=cost,
    )(xp, w1_bf16, b1r, w2p_bf16, b2p)

    return out_padded[:B, :OUT_DIM]


def init_params(key):
    """Deterministic synthetic parameters with PyTorch-Linear-style init bounds.

    Stored as (in, out) = transpose of PyTorch's (out, in). Plain f32.
    """
    k1, k2, k3, k4 = jax.random.split(key, 4)
    bound1 = 1.0 / jnp.sqrt(IN_DIM)
    bound2 = 1.0 / jnp.sqrt(HID_DIM)
    w1 = jax.random.uniform(k1, (IN_DIM, HID_DIM), jnp.float32, -bound1, bound1)
    b1 = jax.random.uniform(k2, (HID_DIM,), jnp.float32, -bound1, bound1)
    w2 = jax.random.uniform(k3, (HID_DIM, OUT_DIM), jnp.float32, -bound2, bound2)
    b2 = jax.random.uniform(k4, (OUT_DIM,), jnp.float32, -bound2, bound2)
    return w1, b1, w2, b2


def prepare_params(w1, b1, w2, b2):
    """One-time conversion to kernel layout (hoisted out of the per-call path).

    W1 -> bf16 (halves the one-shot weight DMA), b1 -> (1, H) f32,
    fc2 weight zero-padded to a 128-lane slab in bf16, fc2 bias padded f32.
    """
    w1_bf = w1.astype(jnp.bfloat16)
    b1r = b1.reshape(1, HID_DIM).astype(jnp.float32)
    w2p = (jnp.zeros((HID_DIM, OUT_PAD), jnp.float32)
           .at[:, :OUT_DIM].set(w2)).astype(jnp.bfloat16)
    b2p = jnp.zeros((1, OUT_PAD), jnp.float32).at[:, :OUT_DIM].set(b2)
    return w1_bf, b1r, w2p, b2p


if __name__ == "__main__":
    key = jax.random.PRNGKey(0)
    k_x, k_p = jax.random.split(key)

    B = 2
    x = jax.random.normal(k_x, (B, IN_DIM), jnp.float32)
    w1, b1, w2, b2 = init_params(k_p)
    w1_bf, b1r, w2p, b2p = prepare_params(w1, b1, w2, b2)

    out = pedestrian_classifier(x, w1_bf, b1r, w2p, b2p)
    out = jax.block_until_ready(out)

    # Pure-JAX reference with matching numerics (bf16 inputs, f32 accumulation,
    # bf16 h and bf16 W2 for fc2).
    xb = x.astype(jnp.bfloat16).astype(jnp.float32)
    w1f = w1.astype(jnp.bfloat16).astype(jnp.float32)
    h_ref = jnp.maximum(
        jax.lax.dot(xb, w1f, precision=jax.lax.Precision.HIGHEST) + b1, 0.0
    )
    hb = h_ref.astype(jnp.bfloat16).astype(jnp.float32)
    w2f = w2.astype(jnp.bfloat16).astype(jnp.float32)
    ref = jax.lax.dot(hb, w2f, precision=jax.lax.Precision.HIGHEST) + b2

    assert out.shape == (B, OUT_DIM), out.shape
    max_err = float(jnp.max(jnp.abs(out - ref)))
    assert jnp.allclose(out, ref, atol=1e-2, rtol=1e-2), max_err

    print("KERNEL_OK")
</pallas_src>

<mosaic_0001>
module attributes {stable_mosaic.version = 11 : i64} {
  func.func @_mlp_kernel(%arg0: i32, %arg1: memref<8x8192xf32, #tpu.memory_space<vmem>>, %arg2: memref<8192x512xbf16, #tpu.memory_space<vmem>>, %arg3: memref<1x512xf32, #tpu.memory_space<vmem>>, %arg4: memref<512x128xbf16, #tpu.memory_space<vmem>>, %arg5: memref<1x128xf32, #tpu.memory_space<vmem>>, %arg6: memref<8x128xf32, #tpu.memory_space<vmem>>) attributes {dimension_semantics = [#tpu.dimension_semantics<parallel>], iteration_bounds = array<i64: 1>, scalar_prefetch = 0 : i64, scratch_operands = 0 : i64, tpu.core_type = #tpu.core_type<tc>, window_params = [{transform_indices = @transform_0, window_bounds = array<i64: 8, 8192>}, {pipeline_mode = #tpu.pipeline_mode<synchronous>, transform_indices = @transform_1, window_bounds = array<i64: 8192, 512>}, {pipeline_mode = #tpu.pipeline_mode<synchronous>, transform_indices = @transform_2, window_bounds = array<i64: 1, 512>}, {pipeline_mode = #tpu.pipeline_mode<synchronous>, transform_indices = @transform_3, window_bounds = array<i64: 512, 128>}, {pipeline_mode = #tpu.pipeline_mode<synchronous>, transform_indices = @transform_4, window_bounds = array<i64: 1, 128>}, {transform_indices = @transform_5, window_bounds = array<i64: 8, 128>}]} {
    %c0 = arith.constant 0 : index
    %c0_0 = arith.constant 0 : index
    %0 = vector.load %arg1[%c0, %c0_0] : memref<8x8192xf32, #tpu.memory_space<vmem>>, vector<8x8192xf32>
    %1 = arith.truncf %0 : vector<8x8192xf32> to vector<8x8192xbf16>
    %c0_1 = arith.constant 0 : index
    %c0_2 = arith.constant 0 : index
    %2 = vector.load %arg2[%c0_1, %c0_2] : memref<8192x512xbf16, #tpu.memory_space<vmem>>, vector<8192x512xbf16>
    %cst = arith.constant dense<0.000000e+00> : vector<8x512xf32>
    %3 = tpu.matmul %1, %2, %cst {dimension_numbers = #tpu.dot_dimension_numbers<[1], [0], [0], [1], [0, 0, 1, 1], [], []>} : vector<8x8192xbf16>, vector<8192x512xbf16>, vector<8x512xf32> -> vector<8x512xf32>
    %c0_3 = arith.constant 0 : index
    %c0_4 = arith.constant 0 : index
    %4 = vector.load %arg3[%c0_3, %c0_4] : memref<1x512xf32, #tpu.memory_space<vmem>>, vector<1x512xf32>
    %5 = vector.broadcast %4 : vector<1x512xf32> to vector<8x512xf32>
    %6 = arith.addf %3, %5 : vector<8x512xf32>
    %cst_5 = arith.constant 0.000000e+00 : f32
    %7 = vector.broadcast %cst_5 : f32 to vector<8x512xf32>
    %8 = arith.maximumf %6, %7 : vector<8x512xf32>
    %9 = arith.truncf %8 : vector<8x512xf32> to vector<8x512xbf16>
    %c0_6 = arith.constant 0 : index
    %c0_7 = arith.constant 0 : index
    %10 = vector.load %arg4[%c0_6, %c0_7] : memref<512x128xbf16, #tpu.memory_space<vmem>>, vector<512x128xbf16>
    %cst_8 = arith.constant dense<0.000000e+00> : vector<8x128xf32>
    %11 = tpu.matmul %9, %10, %cst_8 {dimension_numbers = #tpu.dot_dimension_numbers<[1], [0], [0], [1], [0, 0, 1, 1], [], []>} : vector<8x512xbf16>, vector<512x128xbf16>, vector<8x128xf32> -> vector<8x128xf32>
    %c0_9 = arith.constant 0 : index
    %c0_10 = arith.constant 0 : index
    %12 = vector.load %arg5[%c0_9, %c0_10] : memref<1x128xf32, #tpu.memory_space<vmem>>, vector<1x128xf32>
    %13 = vector.broadcast %12 : vector<1x128xf32> to vector<8x128xf32>
    %14 = arith.addf %11, %13 : vector<8x128xf32>
    %c0_11 = arith.constant 0 : index
    %c0_12 = arith.constant 0 : index
    %15 = vector.load %arg6[%c0_11, %c0_12] : memref<8x128xf32, #tpu.memory_space<vmem>>, vector<8x128xf32>
    tpu.vector_store %arg6[%c0_11, %c0_12], %14 {strides = array<i32>} : memref<8x128xf32, #tpu.memory_space<vmem>>, vector<8x128xf32>,
    return
  }
  func.func @transform_0(%arg0: i32) -> (i32, i32) {
    %c0_i32 = arith.constant 0 : i32
    %c0_i32_0 = arith.constant 0 : i32
    return %arg0, %c0_i32 : i32, i32
  }
  func.func @transform_1(%arg0: i32) -> (i32, i32) {
    %c0_i32 = arith.constant 0 : i32
    %c0_i32_0 = arith.constant 0 : i32
    %c0_i32_1 = arith.constant 0 : i32
    return %c0_i32, %c0_i32_0 : i32, i32
  }
  func.func @transform_2(%arg0: i32) -> (i32, i32) {
    %c0_i32 = arith.constant 0 : i32
    %c0_i32_0 = arith.constant 0 : i32
    %c0_i32_1 = arith.constant 0 : i32
    return %c0_i32, %c0_i32_0 : i32, i32
  }
  func.func @transform_3(%arg0: i32) -> (i32, i32) {
    %c0_i32 = arith.constant 0 : i32
    %c0_i32_0 = arith.constant 0 : i32
    %c0_i32_1 = arith.constant 0 : i32
    return %c0_i32, %c0_i32_0 : i32, i32
  }
  func.func @transform_4(%arg0: i32) -> (i32, i32) {
    %c0_i32 = arith.constant 0 : i32
    %c0_i32_0 = arith.constant 0 : i32
    %c0_i32_1 = arith.constant 0 : i32
    return %c0_i32, %c0_i32_0 : i32, i32
  }
  func.func @transform_5(%arg0: i32) -> (i32, i32) {
    %c0_i32 = arith.constant 0 : i32
    %c0_i32_0 = arith.constant 0 : i32
    return %arg0, %c0_i32 : i32, i32
  }
}

</mosaic_0001>

<llo_original>
// kernel: pedestrian_classifier.1
$region0: #{pedestrian_classifier.1}
  #allocation0 [shape = 'u32[]', space=smem, size = 0x4, offset = 0x4, fixed_abs, tag = 'smem constant byte address 0x4 - core index']
  #allocation1 [shape = 'u32[144,128]{1,0:T(1,128)}', space=vmem, size = 0x12000, scoped, tag = 'internal scratch']
  %s0 = inlined_call_operand.vmem [shape: f32[8,8192], index: 0, kind: input, shape index: {}]
  %s1 = inlined_call_operand.hbm [shape: bf16[8192,512], index: 1, kind: input, shape index: {}]
  %s2 = inlined_call_operand.hbm [shape: f32[1,512], index: 2, kind: input, shape index: {}]
  %s3 = inlined_call_operand.hbm [shape: bf16[512,128], index: 3, kind: input, shape index: {}]
  %s4 = inlined_call_operand.hbm [shape: f32[1,128], index: 4, kind: input, shape index: {}]
  %s5 = inlined_call_operand.vmem [shape: f32[8,128], index: 5, kind: output, shape index: {}]
  %s6 = sld [smem:[#allocation0]]
  $region46: #{pedestrian_classifier.1} parent=0
    _
  %s8 = ssub.s32 1, %s6
  %s9 = scalar_select 0, %s8, %s6
  $region1: #{pedestrian_classifier.1} parent=0
    #allocation2 [shape = 'u8[8388608]{0}', space=vmem, size = 0x800000, scoped, tag = 'input window, operand 1, single buffered']
    #allocation3 [shape = 's32[1]{0}', space=sflag, size = 0x4, scoped, tag = 'scoped memory for pedestrian_classifier.1']
    #allocation4 [shape = 'u8[2048]{0}', space=vmem, size = 0x800, scoped, tag = 'input window, operand 2, single buffered']
    #allocation5 [shape = 's32[1]{0}', space=sflag, size = 0x4, scoped, tag = 'scoped memory for pedestrian_classifier.1']
    #allocation6 [shape = 'u8[131072]{0}', space=vmem, size = 0x20000, scoped, tag = 'input window, operand 3, single buffered']
    #allocation7 [shape = 'u8[512]{0}', space=vmem, size = 0x400, scoped, tag = 'input window, operand 4, single buffered']
    #allocation8 [shape = 's32[1]{0}', space=sflag, size = 0x4, scoped, tag = 'scoped memory for pedestrian_classifier.1']
    %10 = vsyncpa [#allocation3], 0
    %11 = vsyncpa [#allocation5], 0
    %12 = vsyncpa [#allocation8], 0
    // Predicated region
    $region2: #{pedestrian_classifier.1} parent=1 // pred_check
      _
    $region3: #{pedestrian_classifier.1} parent=1 // pred_check_branch
      %14 = sbr.rel (0) target = $region5
    $region4: #{pedestrian_classifier.1} parent=1 // pred_region
      _
    $region5: #{pedestrian_classifier.1} parent=1 // pred_fallthru
      _
    // Predicated region
    $region6: #{pedestrian_classifier.1} parent=1 // pred_check
      _
    $region7: #{pedestrian_classifier.1} parent=1 // pred_check_branch
      %16 = sbr.rel (0) target = $region9
    $region8: #{pedestrian_classifier.1} parent=1 // pred_region
      %s18 = ssub.s32 262144, 262144
      %19 = vsyncadd [#allocation3], %s18
      %s20 = sshll.u32 [#allocation2], 4
      %s21 = int_to_ptr.vmem [resolvable:$true] %s20
      %26 = dma.hbm_to_vmem [thread:$0]  %s1, 262144, %s21, [#allocation3], 256, 256, 16
    $region9: #{pedestrian_classifier.1} parent=1 // pred_fallthru
      _
    // Predicated region
    $region10: #{pedestrian_classifier.1} parent=1 // pred_check
      _
    $region11: #{pedestrian_classifier.1} parent=1 // pred_check_branch
      %28 = sbr.rel (0) target = $region13
    $region12: #{pedestrian_classifier.1} parent=1 // pred_region
      %s30 = ssub.s32 64, 64
      %31 = vsyncadd [#allocation5], %s30
      %s33 = sshll.u32 [#allocation4], 4
      %s34 = int_to_ptr.vmem [resolvable:$true] %s33
      %36 = dma.hbm_to_vmem [thread:$0]  %s2, 64, %s34, [#allocation5]
    $region13: #{pedestrian_classifier.1} parent=1 // pred_fallthru
      _
    // Predicated region
    $region14: #{pedestrian_classifier.1} parent=1 // pred_check
      _
    $region15: #{pedestrian_classifier.1} parent=1 // pred_check_branch
      %38 = sbr.rel (0) target = $region17
    $region16: #{pedestrian_classifier.1} parent=1 // pred_region
      %s40 = ssub.s32 4096, 4096
      %41 = vsyncadd [#allocation5], %s40
      %s42 = sshll.u32 [#allocation6], 4
      %s43 = int_to_ptr.vmem [resolvable:$true] %s42
      %48 = dma.hbm_to_vmem [thread:$0]  %s3, 4096, %s43, [#allocation5], 64, 64, 4
    $region17: #{pedestrian_classifier.1} parent=1 // pred_fallthru
      _
    // Predicated region
    $region18: #{pedestrian_classifier.1} parent=1 // pred_check
      _
    $region19: #{pedestrian_classifier.1} parent=1 // pred_check_branch
      %50 = sbr.rel (0) target = $region21
    $region20: #{pedestrian_classifier.1} parent=1 // pred_region
      %s52 = ssub.s32 16, 16
      %53 = vsyncadd [#allocation8], %s52
      %s55 = sshll.u32 [#allocation7], 4
      %s56 = int_to_ptr.vmem [resolvable:$true] %s55
      %58 = dma.hbm_to_vmem [thread:$0]  %s4, 16, %s56, [#allocation8]
    $region21: #{pedestrian_classifier.1} parent=1 // pred_fallthru
      _
    // Predicated region
    $region22: #{pedestrian_classifier.1} parent=1 // pred_check
      _
    $region23: #{pedestrian_classifier.1} parent=1 // pred_check_branch
      %60 = sbr.rel (0) target = $region25
    $region24: #{pedestrian_classifier.1} parent=1 // pred_region
      %61 = dma.done [#allocation3], 262144
    $region25: #{pedestrian_classifier.1} parent=1 // pred_fallthru
      _
    // Predicated region
    $region26: #{pedestrian_classifier.1} parent=1 // pred_check
      _
    $region27: #{pedestrian_classifier.1} parent=1 // pred_check_branch
      %63 = sbr.rel (0) target = $region29
    $region28: #{pedestrian_classifier.1} parent=1 // pred_region
      %64 = dma.done [#allocation5], 64
    $region29: #{pedestrian_classifier.1} parent=1 // pred_fallthru
      _
    // Predicated region
    $region30: #{pedestrian_classifier.1} parent=1 // pred_check
      _
    $region31: #{pedestrian_classifier.1} parent=1 // pred_check_branch
      %66 = sbr.rel (0) target = $region33
    $region32: #{pedestrian_classifier.1} parent=1 // pred_region
      %67 = dma.done [#allocation5], 4096
    $region33: #{pedestrian_classifier.1} parent=1 // pred_fallthru
      _
    // Predicated region
    $region34: #{pedestrian_classifier.1} parent=1 // pred_check
      _
    $region35: #{pedestrian_classifier.1} parent=1 // pred_check_branch
      %69 = sbr.rel (0) target = $region37
    $region36: #{pedestrian_classifier.1} parent=1 // pred_region
      %70 = dma.done [#allocation8], 16
    $region37: #{pedestrian_classifier.1} parent=1 // pred_fallthru
      _
    %v72 = vld [vmem:[%s0] sm:$0xff]
    %v73 = vld [vmem:[%s0 + $0x8] sm:$0xff]
    %v74 = vld [vmem:[%s0 + $0x10] sm:$0xff]
    %v75 = vld [vmem:[%s0 + $0x18] sm:$0xff]
    %v76 = vld [vmem:[%s0 + $0x20] sm:$0xff]
    %v77 = vld [vmem:[%s0 + $0x28] sm:$0xff]
    %v78 = vld [vmem:[%s0 + $0x30] sm:$0xff]
    %v79 = vld [vmem:[%s0 + $0x38] sm:$0xff]
    %v80 = vld [vmem:[%s0 + $0x40] sm:$0xff]
    %v81 = vld [vmem:[%s0 + $0x48] sm:$0xff]
    %v82 = vld [vmem:[%s0 + $0x50] sm:$0xff]
    %v83 = vld [vmem:[%s0 + $0x58] sm:$0xff]
    %v84 = vld [vmem:[%s0 + $0x60] sm:$0xff]
    %v85 = vld [vmem:[%s0 + $0x68] sm:$0xff]
    %v86 = vld [vmem:[%s0 + $0x70] sm:$0xff]
    %v87 = vld [vmem:[%s0 + $0x78] sm:$0xff]
    %v88 = vld [vmem:[%s0 + $0x80] sm:$0xff]
    %v89 = vld [vmem:[%s0 + $0x88] sm:$0xff]
    %v90 = vld [vmem:[%s0 + $0x90] sm:$0xff]
    %v91 = vld [vmem:[%s0 + $0x98] sm:$0xff]
    %v92 = vld [vmem:[%s0 + $0xa0] sm:$0xff]
    %v93 = vld [vmem:[%s0 + $0xa8] sm:$0xff]
    %v94 = vld [vmem:[%s0 + $0xb0] sm:$0xff]
    %v95 = vld [vmem:[%s0 + $0xb8] sm:$0xff]
    %v96 = vld [vmem:[%s0 + $0xc0] sm:$0xff]
    %v97 = vld [vmem:[%s0 + $0xc8] sm:$0xff]
    %v98 = vld [vmem:[%s0 + $0xd0] sm:$0xff]
    %v99 = vld [vmem:[%s0 + $0xd8] sm:$0xff]
    %v100 = vld [vmem:[%s0 + $0xe0] sm:$0xff]
    %v101 = vld [vmem:[%s0 + $0xe8] sm:$0xff]
    %v102 = vld [vmem:[%s0 + $0xf0] sm:$0xff]
    %v103 = vld [vmem:[%s0 + $0xf8] sm:$0xff]
    %v104 = vld [vmem:[%s0 + $0x100] sm:$0xff]
    %v105 = vld [vmem:[%s0 + $0x108] sm:$0xff]
    %v106 = vld [vmem:[%s0 + $0x110] sm:$0xff]
    %v107 = vld [vmem:[%s0 + $0x118] sm:$0xff]
    %v108 = vld [vmem:[%s0 + $0x120] sm:$0xff]
    %v109 = vld [vmem:[%s0 + $0x128] sm:$0xff]
    %v110 = vld [vmem:[%s0 + $0x130] sm:$0xff]
    %v111 = vld [vmem:[%s0 + $0x138] sm:$0xff]
    %v112 = vld [vmem:[%s0 + $0x140] sm:$0xff]
    %v113 = vld [vmem:[%s0 + $0x148] sm:$0xff]
    %v114 = vld [vmem:[%s0 + $0x150] sm:$0xff]
    %v115 = vld [vmem:[%s0 + $0x158] sm:$0xff]
    %v116 = vld [vmem:[%s0 + $0x160] sm:$0xff]
    %v117 = vld [vmem:[%s0 + $0x168] sm:$0xff]
    %v118 = vld [vmem:[%s0 + $0x170] sm:$0xff]
    %v119 = vld [vmem:[%s0 + $0x178] sm:$0xff]
    %v120 = vld [vmem:[%s0 + $0x180] sm:$0xff]
    %v121 = vld [vmem:[%s0 + $0x188] sm:$0xff]
    %v122 = vld [vmem:[%s0 + $0x190] sm:$0xff]
    %v123 = vld [vmem:[%s0 + $0x198] sm:$0xff]
    %v124 = vld [vmem:[%s0 + $0x1a0] sm:$0xff]
    %v125 = vld [vmem:[%s0 + $0x1a8] sm:$0xff]
    %v126 = vld [vmem:[%s0 + $0x1b0] sm:$0xff]
    %v127 = vld [vmem:[%s0 + $0x1b8] sm:$0xff]
    %v128 = vld [vmem:[%s0 + $0x1c0] sm:$0xff]
    %v129 = vld [vmem:[%s0 + $0x1c8] sm:$0xff]
    %v130 = vld [vmem:[%s0 + $0x1d0] sm:$0xff]
    %v131 = vld [vmem:[%s0 + $0x1d8] sm:$0xff]
    %v132 = vld [vmem:[%s0 + $0x1e0] sm:$0xff]
    %v133 = vld [vmem:[%s0 + $0x1e8] sm:$0xff]
    %v134 = vld [vmem:[%s0 + $0x1f0] sm:$0xff]
    %v135 = vld [vmem:[%s0 + $0x1f8] sm:$0xff]
    %v136 = vpack.c.bf16 %v72, %v72
    %v137 = vpack.c.bf16 %v73, %v73
    %v138 = vpack.c.bf16 %v74, %v74
    %v139 = vpack.c.bf16 %v75, %v75
    %v140 = vpack.c.bf16 %v76, %v76
    %v141 = vpack.c.bf16 %v77, %v77
    %v142 = vpack.c.bf16 %v78, %v78
    %v143 = vpack.c.bf16 %v79, %v79
    %v144 = vpack.c.bf16 %v80, %v80
    %v145 = vpack.c.bf16 %v81, %v81
    %v146 = vpack.c.bf16 %v82, %v82
    %v147 = vpack.c.bf16 %v83, %v83
    %v148 = vpack.c.bf16 %v84, %v84
    %v149 = vpack.c.bf16 %v85, %v85
    %v150 = vpack.c.bf16 %v86, %v86
    %v151 = vpack.c.bf16 %v87, %v87
    %v152 = vpack.c.bf16 %v88, %v88
    %v153 = vpack.c.bf16 %v89, %v89
    %v154 = vpack.c.bf16 %v90, %v90
    %v155 = vpack.c.bf16 %v91, %v91
    %v156 = vpack.c.bf16 %v92, %v92
    %v157 = vpack.c.bf16 %v93, %v93
    %v158 = vpack.c.bf16 %v94, %v94
    %v159 = vpack.c.bf16 %v95, %v95
    %v160 = vpack.c.bf16 %v96, %v96
    %v161 = vpack.c.bf16 %v97, %v97
    %v162 = vpack.c.bf16 %v98, %v98
    %v163 = vpack.c.bf16 %v99, %v99
    %v164 = vpack.c.bf16 %v100, %v100
    %v165 = vpack.c.bf16 %v101, %v101
    %v166 = vpack.c.bf16 %v102, %v102
    %v167 = vpack.c.bf16 %v103, %v103
    %v168 = vpack.c.bf16 %v104, %v104
    %v169 = vpack.c.bf16 %v105, %v105
    %v170 = vpack.c.bf16 %v106, %v106
    %v171 = vpack.c.bf16 %v107, %v107
    %v172 = vpack.c.bf16 %v108, %v108
    %v173 = vpack.c.bf16 %v109, %v109
    %v174 = vpack.c.bf16 %v110, %v110
    %v175 = vpack.c.bf16 %v111, %v111
    %v176 = vpack.c.bf16 %v112, %v112
    %v177 = vpack.c.bf16 %v113, %v113
    %v178 = vpack.c.bf16 %v114, %v114
    %v179 = vpack.c.bf16 %v115, %v115
    %v180 = vpack.c.bf16 %v116, %v116
    %v181 = vpack.c.bf16 %v117, %v117
    %v182 = vpack.c.bf16 %v118, %v118
    %v183 = vpack.c.bf16 %v119, %v119
    %v184 = vpack.c.bf16 %v120, %v120
    %v185 = vpack.c.bf16 %v121, %v121
    %v186 = vpack.c.bf16 %v122, %v122
    %v187 = vpack.c.bf16 %v123, %v123
    %v188 = vpack.c.bf16 %v124, %v124
    %v189 = vpack.c.bf16 %v125, %v125
    %v190 = vpack.c.bf16 %v126, %v126
    %v191 = vpack.c.bf16 %v127, %v127
    %v192 = vpack.c.bf16 %v128, %v128
    %v193 = vpack.c.bf16 %v129, %v129
    %v194 = vpack.c.bf16 %v130, %v130
    %v195 = vpack.c.bf16 %v131, %v131
    %v196 = vpack.c.bf16 %v132, %v132
    %v197 = vpack.c.bf16 %v133, %v133
    %v198 = vpack.c.bf16 %v134, %v134
    %v199 = vpack.c.bf16 %v135, %v135
    %v200 = vld [vmem:[#allocation2] sm:$0xff]
    %v201 = vld [vmem:[#allocation2 + $0x8] sm:$0xff]
    %v202 = vld [vmem:[#allocation2 + $0x10] sm:$0xff]
    %v203 = vld [vmem:[#allocation2 + $0x18] sm:$0xff]
    %v204 = vld [vmem:[#allocation2 + $0x20] sm:$0xff]
    %v205 = vld [vmem:[#allocation2 + $0x28] sm:$0xff]
    %v206 = vld [vmem:[#allocation2 + $0x30] sm:$0xff]
    %v207 = vld [vmem:[#allocation2 + $0x38] sm:$0xff]
    %v208 = vld [vmem:[#allocation2 + $0x40] sm:$0xff]
    %v209 = vld [vmem:[#allocation2 + $0x48] sm:$0xff]
    %v210 = vld [vmem:[#allocation2 + $0x50] sm:$0xff]
    %v211 = vld [vmem:[#allocation2 + $0x58] sm:$0xff]
    %v212 = vld [vmem:[#allocation2 + $0x60] sm:$0xff]
    %v213 = vld [vmem:[#allocation2 + $0x68] sm:$0xff]
    %v214 = vld [vmem:[#allocation2 + $0x70] sm:$0xff]
    %v215 = vld [vmem:[#allocation2 + $0x78] sm:$0xff]
    %v216 = vld [vmem:[#allocation2 + $0x80] sm:$0xff]
    %v217 = vld [vmem:[#allocation2 + $0x88] sm:$0xff]
    %v218 = vld [vmem:[#allocation2 + $0x90] sm:$0xff]
    %v219 = vld [vmem:[#allocation2 + $0x98] sm:$0xff]
    %v220 = vld [vmem:[#allocation2 + $0xa0] sm:$0xff]
    %v221 = vld [vmem:[#allocation2 + $0xa8] sm:$0xff]
    %v222 = vld [vmem:[#allocation2 + $0xb0] sm:$0xff]
    %v223 = vld [vmem:[#allocation2 + $0xb8] sm:$0xff]
    %v224 = vld [vmem:[#allocation2 + $0xc0] sm:$0xff]
    %v225 = vld [vmem:[#allocation2 + $0xc8] sm:$0xff]
    %v226 = vld [vmem:[#allocation2 + $0xd0] sm:$0xff]
    %v227 = vld [vmem:[#allocation2 + $0xd8] sm:$0xff]
    %v228 = vld [vmem:[#allocation2 + $0xe0] sm:$0xff]
    %v229 = vld [vmem:[#allocation2 + $0xe8] sm:$0xff]
    %v230 = vld [vmem:[#allocation2 + $0xf0] sm:$0xff]
    %v231 = vld [vmem:[#allocation2 + $0xf8] sm:$0xff]
    %v232 = vld [vmem:[#allocation2 + $0x100] sm:$0xff]
    %v233 = vld [vmem:[#allocation2 + $0x108] sm:$0xff]
    %v234 = vld [vmem:[#allocation2 + $0x110] sm:$0xff]
    %v235 = vld [vmem:[#allocation2 + $0x118] sm:$0xff]
    %v236 = vld [vmem:[#allocation2 + $0x120] sm:$0xff]
    %v237 = vld [vmem:[#allocation2 + $0x128] sm:$0xff]
    %v238 = vld [vmem:[#allocation2 + $0x130] sm:$0xff]
    %v239 = vld [vmem:[#allocation2 + $0x138] sm:$0xff]
    %v240 = vld [vmem:[#allocation2 + $0x140] sm:$0xff]
    %v241 = vld [vmem:[#allocation2 + $0x148] sm:$0xff]
    %v242 = vld [vmem:[#allocation2 + $0x150] sm:$0xff]
    %v243 = vld [vmem:[#allocation2 + $0x158] sm:$0xff]
    %v244 = vld [vmem:[#allocation2 + $0x160] sm:$0xff]
    %v245 = vld [vmem:[#allocation2 + $0x168] sm:$0xff]
    %v246 = vld [vmem:[#allocation2 + $0x170] sm:$0xff]
    %v247 = vld [vmem:[#allocation2 + $0x178] sm:$0xff]
    %v248 = vld [vmem:[#allocation2 + $0x180] sm:$0xff]
    %v249 = vld [vmem:[#allocation2 + $0x188] sm:$0xff]
    %v250 = vld [vmem:[#allocation2 + $0x190] sm:$0xff]
    %v251 = vld [vmem:[#allocation2 + $0x198] sm:$0xff]
    %v252 = vld [vmem:[#allocation2 + $0x1a0] sm:$0xff]
    %v253 = vld [vmem:[#allocation2 + $0x1a8] sm:$0xff]
    %v254 = vld [vmem:[#allocation2 + $0x1b0] sm:$0xff]
    %v255 = vld [vmem:[#allocation2 + $0x1b8] sm:$0xff]
    %v256 = vld [vmem:[#allocation2 + $0x1c0] sm:$0xff]
    %v257 = vld [vmem:[#allocation2 + $0x1c8] sm:$0xff]
    %v258 = vld [vmem:[#allocation2 + $0x1d0] sm:$0xff]
    %v259 = vld [vmem:[#allocation2 + $0x1d8] sm:$0xff]
    %v260 = vld [vmem:[#allocation2 + $0x1e0] sm:$0xff]
    %v261 = vld [vmem:[#allocation2 + $0x1e8] sm:$0xff]
    %v262 = vld [vmem:[#allocation2 + $0x1f0] sm:$0xff]
    %v263 = vld [vmem:[#allocation2 + $0x1f8] sm:$0xff]
    %v264 = vld [vmem:[#allocation2 + $0x200] sm:$0xff]
    %v265 = vld [vmem:[#allocation2 + $0x208] sm:$0xff]
    %v266 = vld [vmem:[#allocation2 + $0x210] sm:$0xff]
    %v267 = vld [vmem:[#allocation2 + $0x218] sm:$0xff]
    %v268 = vld [vmem:[#allocation2 + $0x220] sm:$0xff]
    %v269 = vld [vmem:[#allocation2 + $0x228] sm:$0xff]
    %v270 = vld [vmem:[#allocation2 + $0x230] sm:$0xff]
    %v271 = vld [vmem:[#allocation2 + $0x238] sm:$0xff]
    %v272 = vld [vmem:[#allocation2 + $0x240] sm:$0xff]
    %v273 = vld [vmem:[#allocation2 + $0x248] sm:$0xff]
    %v274 = vld [vmem:[#allocation2 + $0x250] sm:$0xff]
    %v275 = vld [vmem:[#allocation2 + $0x258] sm:$0xff]
    %v276 = vld [vmem:[#allocation2 + $0x260] sm:$0xff]
    %v277 = vld [vmem:[#allocation2 + $0x268] sm:$0xff]
    %v278 = vld [vmem:[#allocation2 + $0x270] sm:$0xff]
    %v279 = vld [vmem:[#allocation2 + $0x278] sm:$0xff]
    %v280 = vld [vmem:[#allocation2 + $0x280] sm:$0xff]
    %v281 = vld [vmem:[#allocation2 + $0x288] sm:$0xff]
    %v282 = vld [vmem:[#allocation2 + $0x290] sm:$0xff]
    %v283 = vld [vmem:[#allocation2 + $0x298] sm:$0xff]
    %v284 = vld [vmem:[#allocation2 + $0x2a0] sm:$0xff]
    %v285 = vld [vmem:[#allocation2 + $0x2a8] sm:$0xff]
    %v286 = vld [vmem:[#allocation2 + $0x2b0] sm:$0xff]
    %v287 = vld [vmem:[#allocation2 + $0x2b8] sm:$0xff]
    %v288 = vld [vmem:[#allocation2 + $0x2c0] sm:$0xff]
    %v289 = vld [vmem:[#allocation2 + $0x2c8] sm:$0xff]
    %v290 = vld [vmem:[#allocation2 + $0x2d0] sm:$0xff]
    %v291 = vld [vmem:[#allocation2 + $0x2d8] sm:$0xff]
    %v292 = vld [vmem:[#allocation2 + $0x2e0] sm:$0xff]
    %v293 = vld [vmem:[#allocation2 + $0x2e8] sm:$0xff]
    %v294 = vld [vmem:[#allocation2 + $0x2f0] sm:$0xff]
    %v295 = vld [vmem:[#allocation2 + $0x2f8] sm:$0xff]
    %v296 = vld [vmem:[#allocation2 + $0x300] sm:$0xff]
    %v297 = vld [vmem:[#allocation2 + $0x308] sm:$0xff]
    %v298 = vld [vmem:[#allocation2 + $0x310] sm:$0xff]
    %v299 = vld [vmem:[#allocation2 + $0x318] sm:$0xff]
    %v300 = vld [vmem:[#allocation2 + $0x320] sm:$0xff]
    %v301 = vld [vmem:[#allocation2 + $0x328] sm:$0xff]
    %v302 = vld [vmem:[#allocation2 + $0x330] sm:$0xff]
    %v303 = vld [vmem:[#allocation2 + $0x338] sm:$0xff]
    %v304 = vld [vmem:[#allocation2 + $0x340] sm:$0xff]
    %v305 = vld [vmem:[#allocation2 + $0x348] sm:$0xff]
    %v306 = vld [vmem:[#allocation2 + $0x350] sm:$0xff]
    %v307 = vld [vmem:[#allocation2 + $0x358] sm:$0xff]
    %v308 = vld [vmem:[#allocation2 + $0x360] sm:$0xff]
    %v309 = vld [vmem:[#allocation2 + $0x368] sm:$0xff]
    %v310 = vld [vmem:[#allocation2 + $0x370] sm:$0xff]
    %v311 = vld [vmem:[#allocation2 + $0x378] sm:$0xff]
    %v312 = vld [vmem:[#allocation2 + $0x380] sm:$0xff]
    %v313 = vld [vmem:[#allocation2 + $0x388] sm:$0xff]
    %v314 = vld [vmem:[#allocation2 + $0x390] sm:$0xff]
    %v315 = vld [vmem:[#allocation2 + $0x398] sm:$0xff]
    %v316 = vld [vmem:[#allocation2 + $0x3a0] sm:$0xff]
    %v317 = vld [vmem:[#allocation2 + $0x3a8] sm:$0xff]
    %v318 = vld [vmem:[#allocation2 + $0x3b0] sm:$0xff]
    %v319 = vld [vmem:[#allocation2 + $0x3b8] sm:$0xff]
    %v320 = vld [vmem:[#allocation2 + $0x3c0] sm:$0xff]
    %v321 = vld [vmem:[#allocation2 + $0x3c8] sm:$0xff]
    %v322 = vld [vmem:[#allocation2 + $0x3d0] sm:$0xff]
    %v323 = vld [vmem:[#allocation2 + $0x3d8] sm:$0xff]
    %v324 = vld [vmem:[#allocation2 + $0x3e0] sm:$0xff]
    %v325 = vld [vmem:[#allocation2 + $0x3e8] sm:$0xff]
    %v326 = vld [vmem:[#allocation2 + $0x3f0] sm:$0xff]
    %v327 = vld [vmem:[#allocation2 + $0x3f8] sm:$0xff]
    %v328 = vld [vmem:[#allocation2 + $0x400] sm:$0xff]
    %v329 = vld [vmem:[#allocation2 + $0x408] sm:$0xff]
    %v330 = vld [vmem:[#allocation2 + $0x410] sm:$0xff]
    %v331 = vld [vmem:[#allocation2 + $0x418] sm:$0xff]
    %v332 = vld [vmem:[#allocation2 + $0x420] sm:$0xff]
    %v333 = vld [vmem:[#allocation2 + $0x428] sm:$0xff]
    %v334 = vld [vmem:[#allocation2 + $0x430] sm:$0xff]
    %v335 = vld [vmem:[#allocation2 + $0x438] sm:$0xff]
    %v336 = vld [vmem:[#allocation2 + $0x440] sm:$0xff]
    %v337 = vld [vmem:[#allocation2 + $0x448] sm:$0xff]
    %v338 = vld [vmem:[#allocation2 + $0x450] sm:$0xff]
    %v339 = vld [vmem:[#allocation2 + $0x458] sm:$0xff]
    %v340 = vld [vmem:[#allocation2 + $0x460] sm:$0xff]
    %v341 = vld [vmem:[#allocation2 + $0x468] sm:$0xff]
    %v342 = vld [vmem:[#allocation2 + $0x470] sm:$0xff]
    %v343 = vld [vmem:[#allocation2 + $0x478] sm:$0xff]
    %v344 = vld [vmem:[#allocation2 + $0x480] sm:$0xff]
    %v345 = vld [vmem:[#allocation2 + $0x488] sm:$0xff]
    %v346 = vld [vmem:[#allocation2 + $0x490] sm:$0xff]
    %v347 = vld [vmem:[#allocation2 + $0x498] sm:$0xff]
    %v348 = vld [vmem:[#allocation2 + $0x4a0] sm:$0xff]
    %v349 = vld [vmem:[#allocation2 + $0x4a8] sm:$0xff]
    %v350 = vld [vmem:[#allocation2 + $0x4b0] sm:$0xff]
    %v351 = vld [vmem:[#allocation2 + $0x4b8] sm:$0xff]
    %v352 = vld [vmem:[#allocation2 + $0x4c0] sm:$0xff]
    %v353 = vld [vmem:[#allocation2 + $0x4c8] sm:$0xff]
    %v354 = vld [vmem:[#allocation2 + $0x4d0] sm:$0xff]
    %v355 = vld [vmem:[#allocation2 + $0x4d8] sm:$0xff]
    %v356 = vld [vmem:[#allocation2 + $0x4e0] sm:$0xff]
    %v357 = vld [vmem:[#allocation2 + $0x4e8] sm:$0xff]
    %v358 = vld [vmem:[#allocation2 + $0x4f0] sm:$0xff]
    %v359 = vld [vmem:[#allocation2 + $0x4f8] sm:$0xff]
    %v360 = vld [vmem:[#allocation2 + $0x500] sm:$0xff]
    %v361 = vld [vmem:[#allocation2 + $0x508] sm:$0xff]
    %v362 = vld [vmem:[#allocation2 + $0x510] sm:$0xff]
    %v363 = vld [vmem:[#allocation2 + $0x518] sm:$0xff]
    %v364 = vld [vmem:[#allocation2 + $0x520] sm:$0xff]
    %v365 = vld [vmem:[#allocation2 + $0x528] sm:$0xff]
    %v366 = vld [vmem:[#allocation2 + $0x530] sm:$0xff]
    %v367 = vld [vmem:[#allocation2 + $0x538] sm:$0xff]
    %v368 = vld [vmem:[#allocation2 + $0x540] sm:$0xff]
    %v369 = vld [vmem:[#allocation2 + $0x548] sm:$0xff]
    %v370 = vld [vmem:[#allocation2 + $0x550] sm:$0xff]
    %v371 = vld [vmem:[#allocation2 + $0x558] sm:$0xff]
    %v372 = vld [vmem:[#allocation2 + $0x560] sm:$0xff]
    %v373 = vld [vmem:[#allocation2 + $0x568] sm:$0xff]
    %v374 = vld [vmem:[#allocation2 + $0x570] sm:$0xff]
    %v375 = vld [vmem:[#allocation2 + $0x578] sm:$0xff]
    %v376 = vld [vmem:[#allocation2 + $0x580] sm:$0xff]
    %v377 = vld [vmem:[#allocation2 + $0x588] sm:$0xff]
    %v378 = vld [vmem:[#allocation2 + $0x590] sm:$0xff]
    %v379 = vld [vmem:[#allocation2 + $0x598] sm:$0xff]
    %v380 = vld [vmem:[#allocation2 + $0x5a0] sm:$0xff]
    %v381 = vld [vmem:[#allocation2 + $0x5a8] sm:$0xff]
    %v382 = vld [vmem:[#allocation2 + $0x5b0] sm:$0xff]
    %v383 = vld [vmem:[#allocation2 + $0x5b8] sm:$0xff]
    %v384 = vld [vmem:[#allocation2 + $0x5c0] sm:$0xff]
    %v385 = vld [vmem:[#allocation2 + $0x5c8] sm:$0xff]
    %v386 = vld [vmem:[#allocation2 + $0x5d0] sm:$0xff]
    %v387 = vld [vmem:[#allocation2 + $0x5d8] sm:$0xff]
    %v388 = vld [vmem:[#allocation2 + $0x5e0] sm:$0xff]
    %v389 = vld [vmem:[#allocation2 + $0x5e8] sm:$0xff]
    %v390 = vld [vmem:[#allocation2 + $0x5f0] sm:$0xff]
    %v391 = vld [vmem:[#allocation2 + $0x5f8] sm:$0xff]
    %v392 = vld [vmem:[#allocation2 + $0x600] sm:$0xff]
    %v393 = vld [vmem:[#allocation2 + $0x608] sm:$0xff]
    %v394 = vld [vmem:[#allocation2 + $0x610] sm:$0xff]
    %v395 = vld [vmem:[#allocation2 + $0x618] sm:$0xff]
    %v396 = vld [vmem:[#allocation2 + $0x620] sm:$0xff]
    %v397 = vld [vmem:[#allocation2 + $0x628] sm:$0xff]
    %v398 = vld [vmem:[#allocation2 + $0x630] sm:$0xff]
    %v399 = vld [vmem:[#allocation2 + $0x638] sm:$0xff]
    %v400 = vld [vmem:[#allocation2 + $0x640] sm:$0xff]
    %v401 = vld [vmem:[#allocation2 + $0x648] sm:$0xff]
    %v402 = vld [vmem:[#allocation2 + $0x650] sm:$0xff]
    %v403 = vld [vmem:[#allocation2 + $0x658] sm:$0xff]
    %v404 = vld [vmem:[#allocation2 + $0x660] sm:$0xff]
    %v405 = vld [vmem:[#allocation2 + $0x668] sm:$0xff]
    %v406 = vld [vmem:[#allocation2 + $0x670] sm:$0xff]
    %v407 = vld [vmem:[#allocation2 + $0x678] sm:$0xff]
    %v408 = vld [vmem:[#allocation2 + $0x680] sm:$0xff]
    %v409 = vld [vmem:[#allocation2 + $0x688] sm:$0xff]
    %v410 = vld [vmem:[#allocation2 + $0x690] sm:$0xff]
    %v411 = vld [vmem:[#allocation2 + $0x698] sm:$0xff]
    %v412 = vld [vmem:[#allocation2 + $0x6a0] sm:$0xff]
    %v413 = vld [vmem:[#allocation2 + $0x6a8] sm:$0xff]
    %v414 = vld [vmem:[#allocation2 + $0x6b0] sm:$0xff]
    %v415 = vld [vmem:[#allocation2 + $0x6b8] sm:$0xff]
    %v416 = vld [vmem:[#allocation2 + $0x6c0] sm:$0xff]
    %v417 = vld [vmem:[#allocation2 + $0x6c8] sm:$0xff]
    %v418 = vld [vmem:[#allocation2 + $0x6d0] sm:$0xff]
    %v419 = vld [vmem:[#allocation2 + $0x6d8] sm:$0xff]
    %v420 = vld [vmem:[#allocation2 + $0x6e0] sm:$0xff]
    %v421 = vld [vmem:[#allocation2 + $0x6e8] sm:$0xff]
    %v422 = vld [vmem:[#allocation2 + $0x6f0] sm:$0xff]
    %v423 = vld [vmem:[#allocation2 + $0x6f8] sm:$0xff]
    %v424 = vld [vmem:[#allocation2 + $0x700] sm:$0xff]
    %v425 = vld [vmem:[#allocation2 + $0x708] sm:$0xff]
    %v426 = vld [vmem:[#allocation2 + $0x710] sm:$0xff]
    %v427 = vld [vmem:[#allocation2 + $0x718] sm:$0xff]
    %v428 = vld [vmem:[#allocation2 + $0x720] sm:$0xff]
    %v429 = vld [vmem:[#allocation2 + $0x728] sm:$0xff]
    %v430 = vld [vmem:[#allocation2 + $0x730] sm:$0xff]
    %v431 = vld [vmem:[#allocation2 + $0x738] sm:$0xff]
    %v432 = vld [vmem:[#allocation2 + $0x740] sm:$0xff]
    %v433 = vld [vmem:[#allocation2 + $0x748] sm:$0xff]
    %v434 = vld [vmem:[#allocation2 + $0x750] sm:$0xff]
    %v435 = vld [vmem:[#allocation2 + $0x758] sm:$0xff]
    %v436 = vld [vmem:[#allocation2 + $0x760] sm:$0xff]
    %v437 = vld [vmem:[#allocation2 + $0x768] sm:$0xff]
    %v438 = vld [vmem:[#allocation2 + $0x770] sm:$0xff]
    %v439 = vld [vmem:[#allocation2 + $0x778] sm:$0xff]
    %v440 = vld [vmem:[#allocation2 + $0x780] sm:$0xff]
    %v441 = vld [vmem:[#allocation2 + $0x788] sm:$0xff]
    %v442 = vld [vmem:[#allocation2 + $0x790] sm:$0xff]
    %v443 = vld [vmem:[#allocation2 + $0x798] sm:$0xff]
    %v444 = vld [vmem:[#allocation2 + $0x7a0] sm:$0xff]
    %v445 = vld [vmem:[#allocation2 + $0x7a8] sm:$0xff]
    %v446 = vld [vmem:[#allocation2 + $0x7b0] sm:$0xff]
    %v447 = vld [vmem:[#allocation2 + $0x7b8] sm:$0xff]
    %v448 = vld [vmem:[#allocation2 + $0x7c0] sm:$0xff]
    %v449 = vld [vmem:[#allocation2 + $0x7c8] sm:$0xff]
    %v450 = vld [vmem:[#allocation2 + $0x7d0] sm:$0xff]
    %v451 = vld [vmem:[#allocation2 + $0x7d8] sm:$0xff]
    %v452 = vld [vmem:[#allocation2 + $0x7e0] sm:$0xff]
    %v453 = vld [vmem:[#allocation2 + $0x7e8] sm:$0xff]
    %v454 = vld [vmem:[#allocation2 + $0x7f0] sm:$0xff]
    %v455 = vld [vmem:[#allocation2 + $0x7f8] sm:$0xff]
    %v456 = vld [vmem:[#allocation2 + $0x800] sm:$0xff]
    %v457 = vld [vmem:[#allocation2 + $0x808] sm:$0xff]
    %v458 = vld [vmem:[#allocation2 + $0x810] sm:$0xff]
    %v459 = vld [vmem:[#allocation2 + $0x818] sm:$0xff]
    %v460 = vld [vmem:[#allocation2 + $0x820] sm:$0xff]
    %v461 = vld [vmem:[#allocation2 + $0x828] sm:$0xff]
    %v462 = vld [vmem:[#allocation2 + $0x830] sm:$0xff]
    %v463 = vld [vmem:[#allocation2 + $0x838] sm:$0xff]
    %v464 = vld [vmem:[#allocation2 + $0x840] sm:$0xff]
    %v465 = vld [vmem:[#allocation2 + $0x848] sm:$0xff]
    %v466 = vld [vmem:[#allocation2 + $0x850] sm:$0xff]
    %v467 = vld [vmem:[#allocation2 + $0x858] sm:$0xff]
    %v468 = vld [vmem:[#allocation2 + $0x860] sm:$0xff]
    %v469 = vld [vmem:[#allocation2 + $0x868] sm:$0xff]
    %v470 = vld [vmem:[#allocation2 + $0x870] sm:$0xff]
    %v471 = vld [vmem:[#allocation2 + $0x878] sm:$0xff]
    %v472 = vld [vmem:[#allocation2 + $0x880] sm:$0xff]
    %v473 = vld [vmem:[#allocation2 + $0x888] sm:$0xff]
    %v474 = vld [vmem:[#allocation2 + $0x890] sm:$0xff]
    %v475 = vld [vmem:[#allocation2 + $0x898] sm:$0xff]
    %v476 = vld [vmem:[#allocation2 + $0x8a0] sm:$0xff]
    %v477 = vld [vmem:[#allocation2 + $0x8a8] sm:$0xff]
    %v478 = vld [vmem:[#allocation2 + $0x8b0] sm:$0xff]
    %v479 = vld [vmem:[#allocation2 + $0x8b8] sm:$0xff]
    %v480 = vld [vmem:[#allocation2 + $0x8c0] sm:$0xff]
    %v481 = vld [vmem:[#allocation2 + $0x8c8] sm:$0xff]
    %v482 = vld [vmem:[#allocation2 + $0x8d0] sm:$0xff]
    %v483 = vld [vmem:[#allocation2 + $0x8d8] sm:$0xff]
    %v484 = vld [vmem:[#allocation2 + $0x8e0] sm:$0xff]
    %v485 = vld [vmem:[#allocation2 + $0x8e8] sm:$0xff]
    %v486 = vld [vmem:[#allocation2 + $0x8f0] sm:$0xff]
    %v487 = vld [vmem:[#allocation2 + $0x8f8] sm:$0xff]
    %v488 = vld [vmem:[#allocation2 + $0x900] sm:$0xff]
    %v489 = vld [vmem:[#allocation2 + $0x908] sm:$0xff]
    %v490 = vld [vmem:[#allocation2 + $0x910] sm:$0xff]
    %v491 = vld [vmem:[#allocation2 + $0x918] sm:$0xff]
    %v492 = vld [vmem:[#allocation2 + $0x920] sm:$0xff]
    %v493 = vld [vmem:[#allocation2 + $0x928] sm:$0xff]
    %v494 = vld [vmem:[#allocation2 + $0x930] sm:$0xff]
    %v495 = vld [vmem:[#allocation2 + $0x938] sm:$0xff]
    %v496 = vld [vmem:[#allocation2 + $0x940] sm:$0xff]
    %v497 = vld [vmem:[#allocation2 + $0x948] sm:$0xff]
    %v498 = vld [vmem:[#allocation2 + $0x950] sm:$0xff]
    %v499 = vld [vmem:[#allocation2 + $0x958] sm:$0xff]
    %v500 = vld [vmem:[#allocation2 + $0x960] sm:$0xff]
    %v501 = vld [vmem:[#allocation2 + $0x968] sm:$0xff]
    %v502 = vld [vmem:[#allocation2 + $0x970] sm:$0xff]
    %v503 = vld [vmem:[#allocation2 + $0x978] sm:$0xff]
    %v504 = vld [vmem:[#allocation2 + $0x980] sm:$0xff]
    %v505 = vld [vmem:[#allocation2 + $0x988] sm:$0xff]
    %v506 = vld [vmem:[#allocation2 + $0x990] sm:$0xff]
    %v507 = vld [vmem:[#allocation2 + $0x998] sm:$0xff]
    %v508 = vld [vmem:[#allocation2 + $0x9a0] sm:$0xff]
    %v509 = vld [vmem:[#allocation2 + $0x9a8] sm:$0xff]
    %v510 = vld [vmem:[#allocation2 + $0x9b0] sm:$0xff]
    %v511 = vld [vmem:[#allocation2 + $0x9b8] sm:$0xff]
    %v512 = vld [vmem:[#allocation2 + $0x9c0] sm:$0xff]
    %v513 = vld [vmem:[#allocation2 + $0x9c8] sm:$0xff]
    %v514 = vld [vmem:[#allocation2 + $0x9d0] sm:$0xff]
    %v515 = vld [vmem:[#allocation2 + $0x9d8] sm:$0xff]
    %v516 = vld [vmem:[#allocation2 + $0x9e0] sm:$0xff]
    %v517 = vld [vmem:[#allocation2 + $0x9e8] sm:$0xff]
    %v518 = vld [vmem:[#allocation2 + $0x9f0] sm:$0xff]
    %v519 = vld [vmem:[#allocation2 + $0x9f8] sm:$0xff]
    %v520 = vld [vmem:[#allocation2 + $0xa00] sm:$0xff]
    %v521 = vld [vmem:[#allocation2 + $0xa08] sm:$0xff]
    %v522 = vld [vmem:[#allocation2 + $0xa10] sm:$0xff]
    %v523 = vld [vmem:[#allocation2 + $0xa18] sm:$0xff]
    %v524 = vld [vmem:[#allocation2 + $0xa20] sm:$0xff]
    %v525 = vld [vmem:[#allocation2 + $0xa28] sm:$0xff]
    %v526 = vld [vmem:[#allocation2 + $0xa30] sm:$0xff]
    %v527 = vld [vmem:[#allocation2 + $0xa38] sm:$0xff]
    %v528 = vld [vmem:[#allocation2 + $0xa40] sm:$0xff]
    %v529 = vld [vmem:[#allocation2 + $0xa48] sm:$0xff]
    %v530 = vld [vmem:[#allocation2 + $0xa50] sm:$0xff]
    %v531 = vld [vmem:[#allocation2 + $0xa58] sm:$0xff]
    %v532 = vld [vmem:[#allocation2 + $0xa60] sm:$0xff]
    %v533 = vld [vmem:[#allocation2 + $0xa68] sm:$0xff]
    %v534 = vld [vmem:[#allocation2 + $0xa70] sm:$0xff]
    %v535 = vld [vmem:[#allocation2 + $0xa78] sm:$0xff]
    %v536 = vld [vmem:[#allocation2 + $0xa80] sm:$0xff]
    %v537 = vld [vmem:[#allocation2 + $0xa88] sm:$0xff]
    %v538 = vld [vmem:[#allocation2 + $0xa90] sm:$0xff]
    %v539 = vld [vmem:[#allocation2 + $0xa98] sm:$0xff]
    %v540 = vld [vmem:[#allocation2 + $0xaa0] sm:$0xff]
    %v541 = vld [vmem:[#allocation2 + $0xaa8] sm:$0xff]
    %v542 = vld [vmem:[#allocation2 + $0xab0] sm:$0xff]
    %v543 = vld [vmem:[#allocation2 + $0xab8] sm:$0xff]
    %v544 = vld [vmem:[#allocation2 + $0xac0] sm:$0xff]
    %v545 = vld [vmem:[#allocation2 + $0xac8] sm:$0xff]
    %v546 = vld [vmem:[#allocation2 + $0xad0] sm:$0xff]
    %v547 = vld [vmem:[#allocation2 + $0xad8] sm:$0xff]
    %v548 = vld [vmem:[#allocation2 + $0xae0] sm:$0xff]
    %v549 = vld [vmem:[#allocation2 + $0xae8] sm:$0xff]
    %v550 = vld [vmem:[#allocation2 + $0xaf0] sm:$0xff]
    %v551 = vld [vmem:[#allocation2 + $0xaf8] sm:$0xff]
    %v552 = vld [vmem:[#allocation2 + $0xb00] sm:$0xff]
    %v553 = vld [vmem:[#allocation2 + $0xb08] sm:$0xff]
    %v554 = vld [vmem:[#allocation2 + $0xb10] sm:$0xff]
    %v555 = vld [vmem:[#allocation2 + $0xb18] sm:$0xff]
    %v556 = vld [vmem:[#allocation2 + $0xb20] sm:$0xff]
    %v557 = vld [vmem:[#allocation2 + $0xb28] sm:$0xff]
    %v558 = vld [vmem:[#allocation2 + $0xb30] sm:$0xff]
    %v559 = vld [vmem:[#allocation2 + $0xb38] sm:$0xff]
    %v560 = vld [vmem:[#allocation2 + $0xb40] sm:$0xff]
    %v561 = vld [vmem:[#allocation2 + $0xb48] sm:$0xff]
    %v562 = vld [vmem:[#allocation2 + $0xb50] sm:$0xff]
    %v563 = vld [vmem:[#allocation2 + $0xb58] sm:$0xff]
    %v564 = vld [vmem:[#allocation2 + $0xb60] sm:$0xff]
    %v565 = vld [vmem:[#allocation2 + $0xb68] sm:$0xff]
    %v566 = vld [vmem:[#allocation2 + $0xb70] sm:$0xff]
    %v567 = vld [vmem:[#allocation2 + $0xb78] sm:$0xff]
    %v568 = vld [vmem:[#allocation2 + $0xb80] sm:$0xff]
    %v569 = vld [vmem:[#allocation2 + $0xb88] sm:$0xff]
    %v570 = vld [vmem:[#allocation2 + $0xb90] sm:$0xff]
    %v571 = vld [vmem:[#allocation2 + $0xb98] sm:$0xff]
    %v572 = vld [vmem:[#allocation2 + $0xba0] sm:$0xff]
    %v573 = vld [vmem:[#allocation2 + $0xba8] sm:$0xff]
    %v574 = vld [vmem:[#allocation2 + $0xbb0] sm:$0xff]
    %v575 = vld [vmem:[#allocation2 + $0xbb8] sm:$0xff]
    %v576 = vld [vmem:[#allocation2 + $0xbc0] sm:$0xff]
    %v577 = vld [vmem:[#allocation2 + $0xbc8] sm:$0xff]
    %v578 = vld [vmem:[#allocation2 + $0xbd0] sm:$0xff]
    %v579 = vld [vmem:[#allocation2 + $0xbd8] sm:$0xff]
    %v580 = vld [vmem:[#allocation2 + $0xbe0] sm:$0xff]
    %v581 = vld [vmem:[#allocation2 + $0xbe8] sm:$0xff]
    %v582 = vld [vmem:[#allocation2 + $0xbf0] sm:$0xff]
    %v583 = vld [vmem:[#allocation2 + $0xbf8] sm:$0xff]
    %v584 = vld [vmem:[#allocation2 + $0xc00] sm:$0xff]
    %v585 = vld [vmem:[#allocation2 + $0xc08] sm:$0xff]
    %v586 = vld [vmem:[#allocation2 + $0xc10] sm:$0xff]
    %v587 = vld [vmem:[#allocation2 + $0xc18] sm:$0xff]
    %v588 = vld [vmem:[#allocation2 + $0xc20] sm:$0xff]
    %v589 = vld [vmem:[#allocation2 + $0xc28] sm:$0xff]
    %v590 = vld [vmem:[#allocation2 + $0xc30] sm:$0xff]
    %v591 = vld [vmem:[#allocation2 + $0xc38] sm:$0xff]
    %v592 = vld [vmem:[#allocation2 + $0xc40] sm:$0xff]
    %v593 = vld [vmem:[#allocation2 + $0xc48] sm:$0xff]
    %v594 = vld [vmem:[#allocation2 + $0xc50] sm:$0xff]
    %v595 = vld [vmem:[#allocation2 + $0xc58] sm:$0xff]
    %v596 = vld [vmem:[#allocation2 + $0xc60] sm:$0xff]
    %v597 = vld [vmem:[#allocation2 + $0xc68] sm:$0xff]
    %v598 = vld [vmem:[#allocation2 + $0xc70] sm:$0xff]
    %v599 = vld [vmem:[#allocation2 + $0xc78] sm:$0xff]
    %v600 = vld [vmem:[#allocation2 + $0xc80] sm:$0xff]
    %v601 = vld [vmem:[#allocation2 + $0xc88] sm:$0xff]
    %v602 = vld [vmem:[#allocation2 + $0xc90] sm:$0xff]
    %v603 = vld [vmem:[#allocation2 + $0xc98] sm:$0xff]
    %v604 = vld [vmem:[#allocation2 + $0xca0] sm:$0xff]
    %v605 = vld [vmem:[#allocation2 + $0xca8] sm:$0xff]
    %v606 = vld [vmem:[#allocation2 + $0xcb0] sm:$0xff]
    %v607 = vld [vmem:[#allocation2 + $0xcb8] sm:$0xff]
    %v608 = vld [vmem:[#allocation2 + $0xcc0] sm:$0xff]
    %v609 = vld [vmem:[#allocation2 + $0xcc8] sm:$0xff]
    %v610 = vld [vmem:[#allocation2 + $0xcd0] sm:$0xff]
    %v611 = vld [vmem:[#allocation2 + $0xcd8] sm:$0xff]
    %v612 = vld [vmem:[#allocation2 + $0xce0] sm:$0xff]
    %v613 = vld [vmem:[#allocation2 + $0xce8] sm:$0xff]
    %v614 = vld [vmem:[#allocation2 + $0xcf0] sm:$0xff]
    %v615 = vld [vmem:[#allocation2 + $0xcf8] sm:$0xff]
    %v616 = vld [vmem:[#allocation2 + $0xd00] sm:$0xff]
    %v617 = vld [vmem:[#allocation2 + $0xd08] sm:$0xff]
    %v618 = vld [vmem:[#allocation2 + $0xd10] sm:$0xff]
    %v619 = vld [vmem:[#allocation2 + $0xd18] sm:$0xff]
    %v620 = vld [vmem:[#allocation2 + $0xd20] sm:$0xff]
    %v621 = vld [vmem:[#allocation2 + $0xd28] sm:$0xff]
    %v622 = vld [vmem:[#allocation2 + $0xd30] sm:$0xff]
    %v623 = vld [vmem:[#allocation2 + $0xd38] sm:$0xff]
    %v624 = vld [vmem:[#allocation2 + $0xd40] sm:$0xff]
    %v625 = vld [vmem:[#allocation2 + $0xd48] sm:$0xff]
    %v626 = vld [vmem:[#allocation2 + $0xd50] sm:$0xff]
    %v627 = vld [vmem:[#allocation2 + $0xd58] sm:$0xff]
    %v628 = vld [vmem:[#allocation2 + $0xd60] sm:$0xff]
    %v629 = vld [vmem:[#allocation2 + $0xd68] sm:$0xff]
    %v630 = vld [vmem:[#allocation2 + $0xd70] sm:$0xff]
    %v631 = vld [vmem:[#allocation2 + $0xd78] sm:$0xff]
    %v632 = vld [vmem:[#allocation2 + $0xd80] sm:$0xff]
    %v633 = vld [vmem:[#allocation2 + $0xd88] sm:$0xff]
    %v634 = vld [vmem:[#allocation2 + $0xd90] sm:$0xff]
    %v635 = vld [vmem:[#allocation2 + $0xd98] sm:$0xff]
    %v636 = vld [vmem:[#allocation2 + $0xda0] sm:$0xff]
    %v637 = vld [vmem:[#allocation2 + $0xda8] sm:$0xff]
    %v638 = vld [vmem:[#allocation2 + $0xdb0] sm:$0xff]
    %v639 = vld [vmem:[#allocation2 + $0xdb8] sm:$0xff]
    %v640 = vld [vmem:[#allocation2 + $0xdc0] sm:$0xff]
    %v641 = vld [vmem:[#allocation2 + $0xdc8] sm:$0xff]
    %v642 = vld [vmem:[#allocation2 + $0xdd0] sm:$0xff]
    %v643 = vld [vmem:[#allocation2 + $0xdd8] sm:$0xff]
    %v644 = vld [vmem:[#allocation2 + $0xde0] sm:$0xff]
    %v645 = vld [vmem:[#allocation2 + $0xde8] sm:$0xff]
    %v646 = vld [vmem:[#allocation2 + $0xdf0] sm:$0xff]
    %v647 = vld [vmem:[#allocation2 + $0xdf8] sm:$0xff]
    %v648 = vld [vmem:[#allocation2 + $0xe00] sm:$0xff]
    %v649 = vld [vmem:[#allocation2 + $0xe08] sm:$0xff]
    %v650 = vld [vmem:[#allocation2 + $0xe10] sm:$0xff]
    %v651 = vld [vmem:[#allocation2 + $0xe18] sm:$0xff]
    %v652 = vld [vmem:[#allocation2 + $0xe20] sm:$0xff]
    %v653 = vld [vmem:[#allocation2 + $0xe28] sm:$0xff]
    %v654 = vld [vmem:[#allocation2 + $0xe30] sm:$0xff]
    %v655 = vld [vmem:[#allocation2 + $0xe38] sm:$0xff]
    %v656 = vld [vmem:[#allocation2 + $0xe40] sm:$0xff]
    %v657 = vld [vmem:[#allocation2 + $0xe48] sm:$0xff]
    %v658 = vld [vmem:[#allocation2 + $0xe50] sm:$0xff]
    %v659 = vld [vmem:[#allocation2 + $0xe58] sm:$0xff]
    %v660 = vld [vmem:[#allocation2 + $0xe60] sm:$0xff]
    %v661 = vld [vmem:[#allocation2 + $0xe68] sm:$0xff]
    %v662 = vld [vmem:[#allocation2 + $0xe70] sm:$0xff]
    %v663 = vld [vmem:[#allocation2 + $0xe78] sm:$0xff]
    %v664 = vld [vmem:[#allocation2 + $0xe80] sm:$0xff]
    %v665 = vld [vmem:[#allocation2 + $0xe88] sm:$0xff]
    %v666 = vld [vmem:[#allocation2 + $0xe90] sm:$0xff]
    %v667 = vld [vmem:[#allocation2 + $0xe98] sm:$0xff]
    %v668 = vld [vmem:[#allocation2 + $0xea0] sm:$0xff]
    %v669 = vld [vmem:[#allocation2 + $0xea8] sm:$0xff]
    %v670 = vld [vmem:[#allocation2 + $0xeb0] sm:$0xff]
    %v671 = vld [vmem:[#allocation2 + $0xeb8] sm:$0xff]
    %v672 = vld [vmem:[#allocation2 + $0xec0] sm:$0xff]
    %v673 = vld [vmem:[#allocation2 + $0xec8] sm:$0xff]
    %v674 = vld [vmem:[#allocation2 + $0xed0] sm:$0xff]
    %v675 = vld [vmem:[#allocation2 + $0xed8] sm:$0xff]
    %v676 = vld [vmem:[#allocation2 + $0xee0] sm:$0xff]
    %v677 = vld [vmem:[#allocation2 + $0xee8] sm:$0xff]
    %v678 = vld [vmem:[#allocation2 + $0xef0] sm:$0xff]
    %v679 = vld [vmem:[#allocation2 + $0xef8] sm:$0xff]
    %v680 = vld [vmem:[#allocation2 + $0xf00] sm:$0xff]
    %v681 = vld [vmem:[#allocation2 + $0xf08] sm:$0xff]
    %v682 = vld [vmem:[#allocation2 + $0xf10] sm:$0xff]
    %v683 = vld [vmem:[#allocation2 + $0xf18] sm:$0xff]
    %v684 = vld [vmem:[#allocation2 + $0xf20] sm:$0xff]
    %v685 = vld [vmem:[#allocation2 + $0xf28] sm:$0xff]
    %v686 = vld [vmem:[#allocation2 + $0xf30] sm:$0xff]
    %v687 = vld [vmem:[#allocation2 + $0xf38] sm:$0xff]
    %v688 = vld [vmem:[#allocation2 + $0xf40] sm:$0xff]
    %v689 = vld [vmem:[#allocation2 + $0xf48] sm:$0xff]
    %v690 = vld [vmem:[#allocation2 + $0xf50] sm:$0xff]
    %v691 = vld [vmem:[#allocation2 + $0xf58] sm:$0xff]
    %v692 = vld [vmem:[#allocation2 + $0xf60] sm:$0xff]
    %v693 = vld [vmem:[#allocation2 + $0xf68] sm:$0xff]
    %v694 = vld [vmem:[#allocation2 + $0xf70] sm:$0xff]
    %v695 = vld [vmem:[#allocation2 + $0xf78] sm:$0xff]
    %v696 = vld [vmem:[#allocation2 + $0xf80] sm:$0xff]
    %v697 = vld [vmem:[#allocation2 + $0xf88] sm:$0xff]
    %v698 = vld [vmem:[#allocation2 + $0xf90] sm:$0xff]
    %v699 = vld [vmem:[#allocation2 + $0xf98] sm:$0xff]
    %v700 = vld [vmem:[#allocation2 + $0xfa0] sm:$0xff]
    %v701 = vld [vmem:[#allocation2 + $0xfa8] sm:$0xff]
    %v702 = vld [vmem:[#allocation2 + $0xfb0] sm:$0xff]
    %v703 = vld [vmem:[#allocation2 + $0xfb8] sm:$0xff]
    %v704 = vld [vmem:[#allocation2 + $0xfc0] sm:$0xff]
    %v705 = vld [vmem:[#allocation2 + $0xfc8] sm:$0xff]
    %v706 = vld [vmem:[#allocation2 + $0xfd0] sm:$0xff]
    %v707 = vld [vmem:[#allocation2 + $0xfd8] sm:$0xff]
    %v708 = vld [vmem:[#allocation2 + $0xfe0] sm:$0xff]
    %v709 = vld [vmem:[#allocation2 + $0xfe8] sm:$0xff]
    %v710 = vld [vmem:[#allocation2 + $0xff0] sm:$0xff]
    %v711 = vld [vmem:[#allocation2 + $0xff8] sm:$0xff]
    %v712 = vld [vmem:[#allocation2 + $0x1000] sm:$0xff]
    %v713 = vld [vmem:[#allocation2 + $0x1008] sm:$0xff]
    %v714 = vld [vmem:[#allocation2 + $0x1010] sm:$0xff]
    %v715 = vld [vmem:[#allocation2 + $0x1018] sm:$0xff]
    %v716 = vld [vmem:[#allocation2 + $0x1020] sm:$0xff]
    %v717 = vld [vmem:[#allocation2 + $0x1028] sm:$0xff]
    %v718 = vld [vmem:[#allocation2 + $0x1030] sm:$0xff]
    %v719 = vld [vmem:[#allocation2 + $0x1038] sm:$0xff]
    %v720 = vld [vmem:[#allocation2 + $0x1040] sm:$0xff]
    %v721 = vld [vmem:[#allocation2 + $0x1048] sm:$0xff]
    %v722 = vld [vmem:[#allocation2 + $0x1050] sm:$0xff]
    %v723 = vld [vmem:[#allocation2 + $0x1058] sm:$0xff]
    %v724 = vld [vmem:[#allocation2 + $0x1060] sm:$0xff]
    %v725 = vld [vmem:[#allocation2 + $0x1068] sm:$0xff]
    %v726 = vld [vmem:[#allocation2 + $0x1070] sm:$0xff]
    %v727 = vld [vmem:[#allocation2 + $0x1078] sm:$0xff]
    %v728 = vld [vmem:[#allocation2 + $0x1080] sm:$0xff]
    %v729 = vld [vmem:[#allocation2 + $0x1088] sm:$0xff]
    %v730 = vld [vmem:[#allocation2 + $0x1090] sm:$0xff]
    %v731 = vld [vmem:[#allocation2 + $0x1098] sm:$0xff]
    %v732 = vld [vmem:[#allocation2 + $0x10a0] sm:$0xff]
    %v733 = vld [vmem:[#allocation2 + $0x10a8] sm:$0xff]
    %v734 = vld [vmem:[#allocation2 + $0x10b0] sm:$0xff]
    %v735 = vld [vmem:[#allocation2 + $0x10b8] sm:$0xff]
    %v736 = vld [vmem:[#allocation2 + $0x10c0] sm:$0xff]
    %v737 = vld [vmem:[#allocation2 + $0x10c8] sm:$0xff]
    %v738 = vld [vmem:[#allocation2 + $0x10d0] sm:$0xff]
    %v739 = vld [vmem:[#allocation2 + $0x10d8] sm:$0xff]
    %v740 = vld [vmem:[#allocation2 + $0x10e0] sm:$0xff]
    %v741 = vld [vmem:[#allocation2 + $0x10e8] sm:$0xff]
    %v742 = vld [vmem:[#allocation2 + $0x10f0] sm:$0xff]
    %v743 = vld [vmem:[#allocation2 + $0x10f8] sm:$0xff]
    %v744 = vld [vmem:[#allocation2 + $0x1100] sm:$0xff]
    %v745 = vld [vmem:[#allocation2 + $0x1108] sm:$0xff]
    %v746 = vld [vmem:[#allocation2 + $0x1110] sm:$0xff]
    %v747 = vld [vmem:[#allocation2 + $0x1118] sm:$0xff]
    %v748 = vld [vmem:[#allocation2 + $0x1120] sm:$0xff]
    %v749 = vld [vmem:[#allocation2 + $0x1128] sm:$0xff]
    %v750 = vld [vmem:[#allocation2 + $0x1130] sm:$0xff]
    %v751 = vld [vmem:[#allocation2 + $0x1138] sm:$0xff]
    %v752 = vld [vmem:[#allocation2 + $0x1140] sm:$0xff]
    %v753 = vld [vmem:[#allocation2 + $0x1148] sm:$0xff]
    %v754 = vld [vmem:[#allocation2 + $0x1150] sm:$0xff]
    %v755 = vld [vmem:[#allocation2 + $0x1158] sm:$0xff]
    %v756 = vld [vmem:[#allocation2 + $0x1160] sm:$0xff]
    %v757 = vld [vmem:[#allocation2 + $0x1168] sm:$0xff]
    %v758 = vld [vmem:[#allocation2 + $0x1170] sm:$0xff]
    %v759 = vld [vmem:[#allocation2 + $0x1178] sm:$0xff]
    %v760 = vld [vmem:[#allocation2 + $0x1180] sm:$0xff]
    %v761 = vld [vmem:[#allocation2 + $0x1188] sm:$0xff]
    %v762 = vld [vmem:[#allocation2 + $0x1190] sm:$0xff]
    %v763 = vld [vmem:[#allocation2 + $0x1198] sm:$0xff]
    %v764 = vld [vmem:[#allocation2 + $0x11a0] sm:$0xff]
    %v765 = vld [vmem:[#allocation2 + $0x11a8] sm:$0xff]
    %v766 = vld [vmem:[#allocation2 + $0x11b0] sm:$0xff]
    %v767 = vld [vmem:[#allocation2 + $0x11b8] sm:$0xff]
    %v768 = vld [vmem:[#allocation2 + $0x11c0] sm:$0xff]
    %v769 = vld [vmem:[#allocation2 + $0x11c8] sm:$0xff]
    %v770 = vld [vmem:[#allocation2 + $0x11d0] sm:$0xff]
    %v771 = vld [vmem:[#allocation2 + $0x11d8] sm:$0xff]
    %v772 = vld [vmem:[#allocation2 + $0x11e0] sm:$0xff]
    %v773 = vld [vmem:[#allocation2 + $0x11e8] sm:$0xff]
    %v774 = vld [vmem:[#allocation2 + $0x11f0] sm:$0xff]
    %v775 = vld [vmem:[#allocation2 + $0x11f8] sm:$0xff]
    %v776 = vld [vmem:[#allocation2 + $0x1200] sm:$0xff]
    %v777 = vld [vmem:[#allocation2 + $0x1208] sm:$0xff]
    %v778 = vld [vmem:[#allocation2 + $0x1210] sm:$0xff]
    %v779 = vld [vmem:[#allocation2 + $0x1218] sm:$0xff]
    %v780 = vld [vmem:[#allocation2 + $0x1220] sm:$0xff]
    %v781 = vld [vmem:[#allocation2 + $0x1228] sm:$0xff]
    %v782 = vld [vmem:[#allocation2 + $0x1230] sm:$0xff]
    %v783 = vld [vmem:[#allocation2 + $0x1238] sm:$0xff]
    %v784 = vld [vmem:[#allocation2 + $0x1240] sm:$0xff]
    %v785 = vld [vmem:[#allocation2 + $0x1248] sm:$0xff]
    %v786 = vld [vmem:[#allocation2 + $0x1250] sm:$0xff]
    %v787 = vld [vmem:[#allocation2 + $0x1258] sm:$0xff]
    %v788 = vld [vmem:[#allocation2 + $0x1260] sm:$0xff]
    %v789 = vld [vmem:[#allocation2 + $0x1268] sm:$0xff]
    %v790 = vld [vmem:[#allocation2 + $0x1270] sm:$0xff]
    %v791 = vld [vmem:[#allocation2 + $0x1278] sm:$0xff]
    %v792 = vld [vmem:[#allocation2 + $0x1280] sm:$0xff]
    %v793 = vld [vmem:[#allocation2 + $0x1288] sm:$0xff]
    %v794 = vld [vmem:[#allocation2 + $0x1290] sm:$0xff]
    %v795 = vld [vmem:[#allocation2 + $0x1298] sm:$0xff]
    %v796 = vld [vmem:[#allocation2 + $0x12a0] sm:$0xff]
    %v797 = vld [vmem:[#allocation2 + $0x12a8] sm:$0xff]
    %v798 = vld [vmem:[#allocation2 + $0x12b0] sm:$0xff]
    %v799 = vld [vmem:[#allocation2 + $0x12b8] sm:$0xff]
    %v800 = vld [vmem:[#allocation2 + $0x12c0] sm:$0xff]
    %v801 = vld [vmem:[#allocation2 + $0x12c8] sm:$0xff]
    %v802 = vld [vmem:[#allocation2 + $0x12d0] sm:$0xff]
    %v803 = vld [vmem:[#allocation2 + $0x12d8] sm:$0xff]
    %v804 = vld [vmem:[#allocation2 + $0x12e0] sm:$0xff]
    %v805 = vld [vmem:[#allocation2 + $0x12e8] sm:$0xff]
    %v806 = vld [vmem:[#allocation2 + $0x12f0] sm:$0xff]
    %v807 = vld [vmem:[#allocation2 + $0x12f8] sm:$0xff]
    %v808 = vld [vmem:[#allocation2 + $0x1300] sm:$0xff]
    %v809 = vld [vmem:[#allocation2 + $0x1308] sm:$0xff]
    %v810 = vld [vmem:[#allocation2 + $0x1310] sm:$0xff]
    %v811 = vld [vmem:[#allocation2 + $0x1318] sm:$0xff]
    %v812 = vld [vmem:[#allocation2 + $0x1320] sm:$0xff]
    %v813 = vld [vmem:[#allocation2 + $0x1328] sm:$0xff]
    %v814 = vld [vmem:[#allocation2 + $0x1330] sm:$0xff]
    %v815 = vld [vmem:[#allocation2 + $0x1338] sm:$0xff]
    %v816 = vld [vmem:[#allocation2 + $0x1340] sm:$0xff]
    %v817 = vld [vmem:[#allocation2 + $0x1348] sm:$0xff]
    %v818 = vld [vmem:[#allocation2 + $0x1350] sm:$0xff]
    %v819 = vld [vmem:[#allocation2 + $0x1358] sm:$0xff]
    %v820 = vld [vmem:[#allocation2 + $0x1360] sm:$0xff]
    %v821 = vld [vmem:[#allocation2 + $0x1368] sm:$0xff]
    %v822 = vld [vmem:[#allocation2 + $0x1370] sm:$0xff]
    %v823 = vld [vmem:[#allocation2 + $0x1378] sm:$0xff]
    %v824 = vld [vmem:[#allocation2 + $0x1380] sm:$0xff]
    %v825 = vld [vmem:[#allocation2 + $0x1388] sm:$0xff]
    %v826 = vld [vmem:[#allocation2 + $0x1390] sm:$0xff]
    %v827 = vld [vmem:[#allocation2 + $0x1398] sm:$0xff]
    %v828 = vld [vmem:[#allocation2 + $0x13a0] sm:$0xff]
    %v829 = vld [vmem:[#allocation2 + $0x13a8] sm:$0xff]
    %v830 = vld [vmem:[#allocation2 + $0x13b0] sm:$0xff]
    %v831 = vld [vmem:[#allocation2 + $0x13b8] sm:$0xff]
    %v832 = vld [vmem:[#allocation2 + $0x13c0] sm:$0xff]
    %v833 = vld [vmem:[#allocation2 + $0x13c8] sm:$0xff]
    %v834 = vld [vmem:[#allocation2 + $0x13d0] sm:$0xff]
    %v835 = vld [vmem:[#allocation2 + $0x13d8] sm:$0xff]
    %v836 = vld [vmem:[#allocation2 + $0x13e0] sm:$0xff]
    %v837 = vld [vmem:[#allocation2 + $0x13e8] sm:$0xff]
    %v838 = vld [vmem:[#allocation2 + $0x13f0] sm:$0xff]
    %v839 = vld [vmem:[#allocation2 + $0x13f8] sm:$0xff]
    %v840 = vld [vmem:[#allocation2 + $0x1400] sm:$0xff]
    %v841 = vld [vmem:[#allocation2 + $0x1408] sm:$0xff]
    %v842 = vld [vmem:[#allocation2 + $0x1410] sm:$0xff]
    %v843 = vld [vmem:[#allocation2 + $0x1418] sm:$0xff]
    %v844 = vld [vmem:[#allocation2 + $0x1420] sm:$0xff]
    %v845 = vld [vmem:[#allocation2 + $0x1428] sm:$0xff]
    %v846 = vld [vmem:[#allocation2 + $0x1430] sm:$0xff]
    %v847 = vld [vmem:[#allocation2 + $0x1438] sm:$0xff]
    %v848 = vld [vmem:[#allocation2 + $0x1440] sm:$0xff]
    %v849 = vld [vmem:[#allocation2 + $0x1448] sm:$0xff]
    %v850 = vld [vmem:[#allocation2 + $0x1450] sm:$0xff]
    %v851 = vld [vmem:[#allocation2 + $0x1458] sm:$0xff]
    %v852 = vld [vmem:[#allocation2 + $0x1460] sm:$0xff]
    %v853 = vld [vmem:[#allocation2 + $0x1468] sm:$0xff]
    %v854 = vld [vmem:[#allocation2 + $0x1470] sm:$0xff]
    %v855 = vld [vmem:[#allocation2 + $0x1478] sm:$0xff]
    %v856 = vld [vmem:[#allocation2 + $0x1480] sm:$0xff]
    %v857 = vld [vmem:[#allocation2 + $0x1488] sm:$0xff]
    %v858 = vld [vmem:[#allocation2 + $0x1490] sm:$0xff]
    %v859 = vld [vmem:[#allocation2 + $0x1498] sm:$0xff]
    %v860 = vld [vmem:[#allocation2 + $0x14a0] sm:$0xff]
    %v861 = vld [vmem:[#allocation2 + $0x14a8] sm:$0xff]
    %v862 = vld [vmem:[#allocation2 + $0x14b0] sm:$0xff]
    %v863 = vld [vmem:[#allocation2 + $0x14b8] sm:$0xff]
    %v864 = vld [vmem:[#allocation2 + $0x14c0] sm:$0xff]
    %v865 = vld [vmem:[#allocation2 + $0x14c8] sm:$0xff]
    %v866 = vld [vmem:[#allocation2 + $0x14d0] sm:$0xff]
    %v867 = vld [vmem:[#allocation2 + $0x14d8] sm:$0xff]
    %v868 = vld [vmem:[#allocation2 + $0x14e0] sm:$0xff]
    %v869 = vld [vmem:[#allocation2 + $0x14e8] sm:$0xff]
    %v870 = vld [vmem:[#allocation2 + $0x14f0] sm:$0xff]
    %v871 = vld [vmem:[#allocation2 + $0x14f8] sm:$0xff]
    %v872 = vld [vmem:[#allocation2 + $0x1500] sm:$0xff]
    %v873 = vld [vmem:[#allocation2 + $0x1508] sm:$0xff]
    %v874 = vld [vmem:[#allocation2 + $0x1510] sm:$0xff]
    %v875 = vld [vmem:[#allocation2 + $0x1518] sm:$0xff]
    %v876 = vld [vmem:[#allocation2 + $0x1520] sm:$0xff]
    %v877 = vld [vmem:[#allocation2 + $0x1528] sm:$0xff]
    %v878 = vld [vmem:[#allocation2 + $0x1530] sm:$0xff]
    %v879 = vld [vmem:[#allocation2 + $0x1538] sm:$0xff]
    %v880 = vld [vmem:[#allocation2 + $0x1540] sm:$0xff]
    %v881 = vld [vmem:[#allocation2 + $0x1548] sm:$0xff]
    %v882 = vld [vmem:[#allocation2 + $0x1550] sm:$0xff]
    %v883 = vld [vmem:[#allocation2 + $0x1558] sm:$0xff]
    %v884 = vld [vmem:[#allocation2 + $0x1560] sm:$0xff]
    %v885 = vld [vmem:[#allocation2 + $0x1568] sm:$0xff]
    %v886 = vld [vmem:[#allocation2 + $0x1570] sm:$0xff]
    %v887 = vld [vmem:[#allocation2 + $0x1578] sm:$0xff]
    %v888 = vld [vmem:[#allocation2 + $0x1580] sm:$0xff]
    %v889 = vld [vmem:[#allocation2 + $0x1588] sm:$0xff]
    %v890 = vld [vmem:[#allocation2 + $0x1590] sm:$0xff]
    %v891 = vld [vmem:[#allocation2 + $0x1598] sm:$0xff]
    %v892 = vld [vmem:[#allocation2 + $0x15a0] sm:$0xff]
    %v893 = vld [vmem:[#allocation2 + $0x15a8] sm:$0xff]
    %v894 = vld [vmem:[#allocation2 + $0x15b0] sm:$0xff]
    %v895 = vld [vmem:[#allocation2 + $0x15b8] sm:$0xff]
    %v896 = vld [vmem:[#allocation2 + $0x15c0] sm:$0xff]
    %v897 = vld [vmem:[#allocation2 + $0x15c8] sm:$0xff]
    %v898 = vld [vmem:[#allocation2 + $0x15d0] sm:$0xff]
    %v899 = vld [vmem:[#allocation2 + $0x15d8] sm:$0xff]
    %v900 = vld [vmem:[#allocation2 + $0x15e0] sm:$0xff]
    %v901 = vld [vmem:[#allocation2 + $0x15e8] sm:$0xff]
    %v902 = vld [vmem:[#allocation2 + $0x15f0] sm:$0xff]
    %v903 = vld [vmem:[#allocation2 + $0x15f8] sm:$0xff]
    %v904 = vld [vmem:[#allocation2 + $0x1600] sm:$0xff]
    %v905 = vld [vmem:[#allocation2 + $0x1608] sm:$0xff]
    %v906 = vld [vmem:[#allocation2 + $0x1610] sm:$0xff]
    %v907 = vld [vmem:[#allocation2 + $0x1618] sm:$0xff]
    %v908 = vld [vmem:[#allocation2 + $0x1620] sm:$0xff]
    %v909 = vld [vmem:[#allocation2 + $0x1628] sm:$0xff]
    %v910 = vld [vmem:[#allocation2 + $0x1630] sm:$0xff]
    %v911 = vld [vmem:[#allocation2 + $0x1638] sm:$0xff]
    %v912 = vld [vmem:[#allocation2 + $0x1640] sm:$0xff]
    %v913 = vld [vmem:[#allocation2 + $0x1648] sm:$0xff]
    %v914 = vld [vmem:[#allocation2 + $0x1650] sm:$0xff]
    %v915 = vld [vmem:[#allocation2 + $0x1658] sm:$0xff]
    %v916 = vld [vmem:[#allocation2 + $0x1660] sm:$0xff]
    %v917 = vld [vmem:[#allocation2 + $0x1668] sm:$0xff]
    %v918 = vld [vmem:[#allocation2 + $0x1670] sm:$0xff]
    %v919 = vld [vmem:[#allocation2 + $0x1678] sm:$0xff]
    %v920 = vld [vmem:[#allocation2 + $0x1680] sm:$0xff]
    %v921 = vld [vmem:[#allocation2 + $0x1688] sm:$0xff]
    %v922 = vld [vmem:[#allocation2 + $0x1690] sm:$0xff]
    %v923 = vld [vmem:[#allocation2 + $0x1698] sm:$0xff]
    %v924 = vld [vmem:[#allocation2 + $0x16a0] sm:$0xff]
    %v925 = vld [vmem:[#allocation2 + $0x16a8] sm:$0xff]
    %v926 = vld [vmem:[#allocation2 + $0x16b0] sm:$0xff]
    %v927 = vld [vmem:[#allocation2 + $0x16b8] sm:$0xff]
    %v928 = vld [vmem:[#allocation2 + $0x16c0] sm:$0xff]
    %v929 = vld [vmem:[#allocation2 + $0x16c8] sm:$0xff]
    %v930 = vld [vmem:[#allocation2 + $0x16d0] sm:$0xff]
    %v931 = vld [vmem:[#allocation2 + $0x16d8] sm:$0xff]
    %v932 = vld [vmem:[#allocation2 + $0x16e0] sm:$0xff]
    %v933 = vld [vmem:[#allocation2 + $0x16e8] sm:$0xff]
    %v934 = vld [vmem:[#allocation2 + $0x16f0] sm:$0xff]
    %v935 = vld [vmem:[#allocation2 + $0x16f8] sm:$0xff]
    %v936 = vld [vmem:[#allocation2 + $0x1700] sm:$0xff]
    %v937 = vld [vmem:[#allocation2 + $0x1708] sm:$0xff]
    %v938 = vld [vmem:[#allocation2 + $0x1710] sm:$0xff]
    %v939 = vld [vmem:[#allocation2 + $0x1718] sm:$0xff]
    %v940 = vld [vmem:[#allocation2 + $0x1720] sm:$0xff]
    %v941 = vld [vmem:[#allocation2 + $0x1728] sm:$0xff]
    %v942 = vld [vmem:[#allocation2 + $0x1730] sm:$0xff]
    %v943 = vld [vmem:[#allocation2 + $0x1738] sm:$0xff]
    %v944 = vld [vmem:[#allocation2 + $0x1740] sm:$0xff]
    %v945 = vld [vmem:[#allocation2 + $0x1748] sm:$0xff]
    %v946 = vld [vmem:[#allocation2 + $0x1750] sm:$0xff]
    %v947 = vld [vmem:[#allocation2 + $0x1758] sm:$0xff]
    %v948 = vld [vmem:[#allocation2 + $0x1760] sm:$0xff]
    %v949 = vld [vmem:[#allocation2 + $0x1768] sm:$0xff]
    %v950 = vld [vmem:[#allocation2 + $0x1770] sm:$0xff]
    %v951 = vld [vmem:[#allocation2 + $0x1778] sm:$0xff]
    %v952 = vld [vmem:[#allocation2 + $0x1780] sm:$0xff]
    %v953 = vld [vmem:[#allocation2 + $0x1788] sm:$0xff]
    %v954 = vld [vmem:[#allocation2 + $0x1790] sm:$0xff]
    %v955 = vld [vmem:[#allocation2 + $0x1798] sm:$0xff]
    %v956 = vld [vmem:[#allocation2 + $0x17a0] sm:$0xff]
    %v957 = vld [vmem:[#allocation2 + $0x17a8] sm:$0xff]
    %v958 = vld [vmem:[#allocation2 + $0x17b0] sm:$0xff]
    %v959 = vld [vmem:[#allocation2 + $0x17b8] sm:$0xff]
    %v960 = vld [vmem:[#allocation2 + $0x17c0] sm:$0xff]
    %v961 = vld [vmem:[#allocation2 + $0x17c8] sm:$0xff]
    %v962 = vld [vmem:[#allocation2 + $0x17d0] sm:$0xff]
    %v963 = vld [vmem:[#allocation2 + $0x17d8] sm:$0xff]
    %v964 = vld [vmem:[#allocation2 + $0x17e0] sm:$0xff]
    %v965 = vld [vmem:[#allocation2 + $0x17e8] sm:$0xff]
    %v966 = vld [vmem:[#allocation2 + $0x17f0] sm:$0xff]
    %v967 = vld [vmem:[#allocation2 + $0x17f8] sm:$0xff]
    %v968 = vld [vmem:[#allocation2 + $0x1800] sm:$0xff]
    %v969 = vld [vmem:[#allocation2 + $0x1808] sm:$0xff]
    %v970 = vld [vmem:[#allocation2 + $0x1810] sm:$0xff]
    %v971 = vld [vmem:[#allocation2 + $0x1818] sm:$0xff]
    %v972 = vld [vmem:[#allocation2 + $0x1820] sm:$0xff]
    %v973 = vld [vmem:[#allocation2 + $0x1828] sm:$0xff]
    %v974 = vld [vmem:[#allocation2 + $0x1830] sm:$0xff]
    %v975 = vld [vmem:[#allocation2 + $0x1838] sm:$0xff]
    %v976 = vld [vmem:[#allocation2 + $0x1840] sm:$0xff]
    %v977 = vld [vmem:[#allocation2 + $0x1848] sm:$0xff]
    %v978 = vld [vmem:[#allocation2 + $0x1850] sm:$0xff]
    %v979 = vld [vmem:[#allocation2 + $0x1858] sm:$0xff]
    %v980 = vld [vmem:[#allocation2 + $0x1860] sm:$0xff]
    %v981 = vld [vmem:[#allocation2 + $0x1868] sm:$0xff]
    %v982 = vld [vmem:[#allocation2 + $0x1870] sm:$0xff]
    %v983 = vld [vmem:[#allocation2 + $0x1878] sm:$0xff]
    %v984 = vld [vmem:[#allocation2 + $0x1880] sm:$0xff]
    %v985 = vld [vmem:[#allocation2 + $0x1888] sm:$0xff]
    %v986 = vld [vmem:[#allocation2 + $0x1890] sm:$0xff]
    %v987 = vld [vmem:[#allocation2 + $0x1898] sm:$0xff]
    %v988 = vld [vmem:[#allocation2 + $0x18a0] sm:$0xff]
    %v989 = vld [vmem:[#allocation2 + $0x18a8] sm:$0xff]
    %v990 = vld [vmem:[#allocation2 + $0x18b0] sm:$0xff]
    %v991 = vld [vmem:[#allocation2 + $0x18b8] sm:$0xff]
    %v992 = vld [vmem:[#allocation2 + $0x18c0] sm:$0xff]
    %v993 = vld [vmem:[#allocation2 + $0x18c8] sm:$0xff]
    %v994 = vld [vmem:[#allocation2 + $0x18d0] sm:$0xff]
    %v995 = vld [vmem:[#allocation2 + $0x18d8] sm:$0xff]
    %v996 = vld [vmem:[#allocation2 + $0x18e0] sm:$0xff]
    %v997 = vld [vmem:[#allocation2 + $0x18e8] sm:$0xff]
    %v998 = vld [vmem:[#allocation2 + $0x18f0] sm:$0xff]
    %v999 = vld [vmem:[#allocation2 + $0x18f8] sm:$0xff]
    %v1000 = vld [vmem:[#allocation2 + $0x1900] sm:$0xff]
    %v1001 = vld [vmem:[#allocation2 + $0x1908] sm:$0xff]
    %v1002 = vld [vmem:[#allocation2 + $0x1910] sm:$0xff]
    %v1003 = vld [vmem:[#allocation2 + $0x1918] sm:$0xff]
    %v1004 = vld [vmem:[#allocation2 + $0x1920] sm:$0xff]
    %v1005 = vld [vmem:[#allocation2 + $0x1928] sm:$0xff]
    %v1006 = vld [vmem:[#allocation2 + $0x1930] sm:$0xff]
    %v1007 = vld [vmem:[#allocation2 + $0x1938] sm:$0xff]
    %v1008 = vld [vmem:[#allocation2 + $0x1940] sm:$0xff]
    %v1009 = vld [vmem:[#allocation2 + $0x1948] sm:$0xff]
    %v1010 = vld [vmem:[#allocation2 + $0x1950] sm:$0xff]
    %v1011 = vld [vmem:[#allocation2 + $0x1958] sm:$0xff]
    %v1012 = vld [vmem:[#allocation2 + $0x1960] sm:$0xff]
    %v1013 = vld [vmem:[#allocation2 + $0x1968] sm:$0xff]
    %v1014 = vld [vmem:[#allocation2 + $0x1970] sm:$0xff]
    %v1015 = vld [vmem:[#allocation2 + $0x1978] sm:$0xff]
    %v1016 = vld [vmem:[#allocation2 + $0x1980] sm:$0xff]
    %v1017 = vld [vmem:[#allocation2 + $0x1988] sm:$0xff]
    %v1018 = vld [vmem:[#allocation2 + $0x1990] sm:$0xff]
    %v1019 = vld [vmem:[#allocation2 + $0x1998] sm:$0xff]
    %v1020 = vld [vmem:[#allocation2 + $0x19a0] sm:$0xff]
    %v1021 = vld [vmem:[#allocation2 + $0x19a8] sm:$0xff]
    %v1022 = vld [vmem:[#allocation2 + $0x19b0] sm:$0xff]
    %v1023 = vld [vmem:[#allocation2 + $0x19b8] sm:$0xff]
    %v1024 = vld [vmem:[#allocation2 + $0x19c0] sm:$0xff]
    %v1025 = vld [vmem:[#allocation2 + $0x19c8] sm:$0xff]
    %v1026 = vld [vmem:[#allocation2 + $0x19d0] sm:$0xff]
    %v1027 = vld [vmem:[#allocation2 + $0x19d8] sm:$0xff]
    %v1028 = vld [vmem:[#allocation2 + $0x19e0] sm:$0xff]
    %v1029 = vld [vmem:[#allocation2 + $0x19e8] sm:$0xff]
    %v1030 = vld [vmem:[#allocation2 + $0x19f0] sm:$0xff]
    %v1031 = vld [vmem:[#allocation2 + $0x19f8] sm:$0xff]
    %v1032 = vld [vmem:[#allocation2 + $0x1a00] sm:$0xff]
    %v1033 = vld [vmem:[#allocation2 + $0x1a08] sm:$0xff]
    %v1034 = vld [vmem:[#allocation2 + $0x1a10] sm:$0xff]
    %v1035 = vld [vmem:[#allocation2 + $0x1a18] sm:$0xff]
    %v1036 = vld [vmem:[#allocation2 + $0x1a20] sm:$0xff]
    %v1037 = vld [vmem:[#allocation2 + $0x1a28] sm:$0xff]
    %v1038 = vld [vmem:[#allocation2 + $0x1a30] sm:$0xff]
    %v1039 = vld [vmem:[#allocation2 + $0x1a38] sm:$0xff]
    %v1040 = vld [vmem:[#allocation2 + $0x1a40] sm:$0xff]
    %v1041 = vld [vmem:[#allocation2 + $0x1a48] sm:$0xff]
    %v1042 = vld [vmem:[#allocation2 + $0x1a50] sm:$0xff]
    %v1043 = vld [vmem:[#allocation2 + $0x1a58] sm:$0xff]
    %v1044 = vld [vmem:[#allocation2 + $0x1a60] sm:$0xff]
    %v1045 = vld [vmem:[#allocation2 + $0x1a68] sm:$0xff]
    %v1046 = vld [vmem:[#allocation2 + $0x1a70] sm:$0xff]
    %v1047 = vld [vmem:[#allocation2 + $0x1a78] sm:$0xff]
    %v1048 = vld [vmem:[#allocation2 + $0x1a80] sm:$0xff]
    %v1049 = vld [vmem:[#allocation2 + $0x1a88] sm:$0xff]
    %v1050 = vld [vmem:[#allocation2 + $0x1a90] sm:$0xff]
    %v1051 = vld [vmem:[#allocation2 + $0x1a98] sm:$0xff]
    %v1052 = vld [vmem:[#allocation2 + $0x1aa0] sm:$0xff]
    %v1053 = vld [vmem:[#allocation2 + $0x1aa8] sm:$0xff]
    %v1054 = vld [vmem:[#allocation2 + $0x1ab0] sm:$0xff]
    %v1055 = vld [vmem:[#allocation2 + $0x1ab8] sm:$0xff]
    %v1056 = vld [vmem:[#allocation2 + $0x1ac0] sm:$0xff]
    %v1057 = vld [vmem:[#allocation2 + $0x1ac8] sm:$0xff]
    %v1058 = vld [vmem:[#allocation2 + $0x1ad0] sm:$0xff]
    %v1059 = vld [vmem:[#allocation2 + $0x1ad8] sm:$0xff]
    %v1060 = vld [vmem:[#allocation2 + $0x1ae0] sm:$0xff]
    %v1061 = vld [vmem:[#allocation2 + $0x1ae8] sm:$0xff]
    %v1062 = vld [vmem:[#allocation2 + $0x1af0] sm:$0xff]
    %v1063 = vld [vmem:[#allocation2 + $0x1af8] sm:$0xff]
    %v1064 = vld [vmem:[#allocation2 + $0x1b00] sm:$0xff]
    %v1065 = vld [vmem:[#allocation2 + $0x1b08] sm:$0xff]
    %v1066 = vld [vmem:[#allocation2 + $0x1b10] sm:$0xff]
    %v1067 = vld [vmem:[#allocation2 + $0x1b18] sm:$0xff]
    %v1068 = vld [vmem:[#allocation2 + $0x1b20] sm:$0xff]
    %v1069 = vld [vmem:[#allocation2 + $0x1b28] sm:$0xff]
    %v1070 = vld [vmem:[#allocation2 + $0x1b30] sm:$0xff]
    %v1071 = vld [vmem:[#allocation2 + $0x1b38] sm:$0xff]
    %v1072 = vld [vmem:[#allocation2 + $0x1b40] sm:$0xff]
    %v1073 = vld [vmem:[#allocation2 + $0x1b48] sm:$0xff]
    %v1074 = vld [vmem:[#allocation2 + $0x1b50] sm:$0xff]
    %v1075 = vld [vmem:[#allocation2 + $0x1b58] sm:$0xff]
    %v1076 = vld [vmem:[#allocation2 + $0x1b60] sm:$0xff]
    %v1077 = vld [vmem:[#allocation2 + $0x1b68] sm:$0xff]
    %v1078 = vld [vmem:[#allocation2 + $0x1b70] sm:$0xff]
    %v1079 = vld [vmem:[#allocation2 + $0x1b78] sm:$0xff]
    %v1080 = vld [vmem:[#allocation2 + $0x1b80] sm:$0xff]
    %v1081 = vld [vmem:[#allocation2 + $0x1b88] sm:$0xff]
    %v1082 = vld [vmem:[#allocation2 + $0x1b90] sm:$0xff]
    %v1083 = vld [vmem:[#allocation2 + $0x1b98] sm:$0xff]
    %v1084 = vld [vmem:[#allocation2 + $0x1ba0] sm:$0xff]
    %v1085 = vld [vmem:[#allocation2 + $0x1ba8] sm:$0xff]
    %v1086 = vld [vmem:[#allocation2 + $0x1bb0] sm:$0xff]
    %v1087 = vld [vmem:[#allocation2 + $0x1bb8] sm:$0xff]
    %v1088 = vld [vmem:[#allocation2 + $0x1bc0] sm:$0xff]
    %v1089 = vld [vmem:[#allocation2 + $0x1bc8] sm:$0xff]
    %v1090 = vld [vmem:[#allocation2 + $0x1bd0] sm:$0xff]
    %v1091 = vld [vmem:[#allocation2 + $0x1bd8] sm:$0xff]
    %v1092 = vld [vmem:[#allocation2 + $0x1be0] sm:$0xff]
    %v1093 = vld [vmem:[#allocation2 + $0x1be8] sm:$0xff]
    %v1094 = vld [vmem:[#allocation2 + $0x1bf0] sm:$0xff]
    %v1095 = vld [vmem:[#allocation2 + $0x1bf8] sm:$0xff]
    %v1096 = vld [vmem:[#allocation2 + $0x1c00] sm:$0xff]
    %v1097 = vld [vmem:[#allocation2 + $0x1c08] sm:$0xff]
    %v1098 = vld [vmem:[#allocation2 + $0x1c10] sm:$0xff]
    %v1099 = vld [vmem:[#allocation2 + $0x1c18] sm:$0xff]
    %v1100 = vld [vmem:[#allocation2 + $0x1c20] sm:$0xff]
    %v1101 = vld [vmem:[#allocation2 + $0x1c28] sm:$0xff]
    %v1102 = vld [vmem:[#allocation2 + $0x1c30] sm:$0xff]
    %v1103 = vld [vmem:[#allocation2 + $0x1c38] sm:$0xff]
    %v1104 = vld [vmem:[#allocation2 + $0x1c40] sm:$0xff]
    %v1105 = vld [vmem:[#allocation2 + $0x1c48] sm:$0xff]
    %v1106 = vld [vmem:[#allocation2 + $0x1c50] sm:$0xff]
    %v1107 = vld [vmem:[#allocation2 + $0x1c58] sm:$0xff]
    %v1108 = vld [vmem:[#allocation2 + $0x1c60] sm:$0xff]
    %v1109 = vld [vmem:[#allocation2 + $0x1c68] sm:$0xff]
    %v1110 = vld [vmem:[#allocation2 + $0x1c70] sm:$0xff]
    %v1111 = vld [vmem:[#allocation2 + $0x1c78] sm:$0xff]
    %v1112 = vld [vmem:[#allocation2 + $0x1c80] sm:$0xff]
    %v1113 = vld [vmem:[#allocation2 + $0x1c88] sm:$0xff]
    %v1114 = vld [vmem:[#allocation2 + $0x1c90] sm:$0xff]
    %v1115 = vld [vmem:[#allocation2 + $0x1c98] sm:$0xff]
    %v1116 = vld [vmem:[#allocation2 + $0x1ca0] sm:$0xff]
    %v1117 = vld [vmem:[#allocation2 + $0x1ca8] sm:$0xff]
    %v1118 = vld [vmem:[#allocation2 + $0x1cb0] sm:$0xff]
    %v1119 = vld [vmem:[#allocation2 + $0x1cb8] sm:$0xff]
    %v1120 = vld [vmem:[#allocation2 + $0x1cc0] sm:$0xff]
    %v1121 = vld [vmem:[#allocation2 + $0x1cc8] sm:$0xff]
    %v1122 = vld [vmem:[#allocation2 + $0x1cd0] sm:$0xff]
    %v1123 = vld [vmem:[#allocation2 + $0x1cd8] sm:$0xff]
    %v1124 = vld [vmem:[#allocation2 + $0x1ce0] sm:$0xff]
    %v1125 = vld [vmem:[#allocation2 + $0x1ce8] sm:$0xff]
    %v1126 = vld [vmem:[#allocation2 + $0x1cf0] sm:$0xff]
    %v1127 = vld [vmem:[#allocation2 + $0x1cf8] sm:$0xff]
    %v1128 = vld [vmem:[#allocation2 + $0x1d00] sm:$0xff]
    %v1129 = vld [vmem:[#allocation2 + $0x1d08] sm:$0xff]
    %v1130 = vld [vmem:[#allocation2 + $0x1d10] sm:$0xff]
    %v1131 = vld [vmem:[#allocation2 + $0x1d18] sm:$0xff]
    %v1132 = vld [vmem:[#allocation2 + $0x1d20] sm:$0xff]
    %v1133 = vld [vmem:[#allocation2 + $0x1d28] sm:$0xff]
    %v1134 = vld [vmem:[#allocation2 + $0x1d30] sm:$0xff]
    %v1135 = vld [vmem:[#allocation2 + $0x1d38] sm:$0xff]
    %v1136 = vld [vmem:[#allocation2 + $0x1d40] sm:$0xff]
    %v1137 = vld [vmem:[#allocation2 + $0x1d48] sm:$0xff]
    %v1138 = vld [vmem:[#allocation2 + $0x1d50] sm:$0xff]
    %v1139 = vld [vmem:[#allocation2 + $0x1d58] sm:$0xff]
    %v1140 = vld [vmem:[#allocation2 + $0x1d60] sm:$0xff]
    %v1141 = vld [vmem:[#allocation2 + $0x1d68] sm:$0xff]
    %v1142 = vld [vmem:[#allocation2 + $0x1d70] sm:$0xff]
    %v1143 = vld [vmem:[#allocation2 + $0x1d78] sm:$0xff]
    %v1144 = vld [vmem:[#allocation2 + $0x1d80] sm:$0xff]
    %v1145 = vld [vmem:[#allocation2 + $0x1d88] sm:$0xff]
    %v1146 = vld [vmem:[#allocation2 + $0x1d90] sm:$0xff]
    %v1147 = vld [vmem:[#allocation2 + $0x1d98] sm:$0xff]
    %v1148 = vld [vmem:[#allocation2 + $0x1da0] sm:$0xff]
    %v1149 = vld [vmem:[#allocation2 + $0x1da8] sm:$0xff]
    %v1150 = vld [vmem:[#allocation2 + $0x1db0] sm:$0xff]
    %v1151 = vld [vmem:[#allocation2 + $0x1db8] sm:$0xff]
    %v1152 = vld [vmem:[#allocation2 + $0x1dc0] sm:$0xff]
    %v1153 = vld [vmem:[#allocation2 + $0x1dc8] sm:$0xff]
    %v1154 = vld [vmem:[#allocation2 + $0x1dd0] sm:$0xff]
    %v1155 = vld [vmem:[#allocation2 + $0x1dd8] sm:$0xff]
    %v1156 = vld [vmem:[#allocation2 + $0x1de0] sm:$0xff]
    %v1157 = vld [vmem:[#allocation2 + $0x1de8] sm:$0xff]
    %v1158 = vld [vmem:[#allocation2 + $0x1df0] sm:$0xff]
    %v1159 = vld [vmem:[#allocation2 + $0x1df8] sm:$0xff]
    %v1160 = vld [vmem:[#allocation2 + $0x1e00] sm:$0xff]
    %v1161 = vld [vmem:[#allocation2 + $0x1e08] sm:$0xff]
    %v1162 = vld [vmem:[#allocation2 + $0x1e10] sm:$0xff]
    %v1163 = vld [vmem:[#allocation2 + $0x1e18] sm:$0xff]
    %v1164 = vld [vmem:[#allocation2 + $0x1e20] sm:$0xff]
    %v1165 = vld [vmem:[#allocation2 + $0x1e28] sm:$0xff]
    %v1166 = vld [vmem:[#allocation2 + $0x1e30] sm:$0xff]
    %v1167 = vld [vmem:[#allocation2 + $0x1e38] sm:$0xff]
    %v1168 = vld [vmem:[#allocation2 + $0x1e40] sm:$0xff]
    %v1169 = vld [vmem:[#allocation2 + $0x1e48] sm:$0xff]
    %v1170 = vld [vmem:[#allocation2 + $0x1e50] sm:$0xff]
    %v1171 = vld [vmem:[#allocation2 + $0x1e58] sm:$0xff]
    %v1172 = vld [vmem:[#allocation2 + $0x1e60] sm:$0xff]
    %v1173 = vld [vmem:[#allocation2 + $0x1e68] sm:$0xff]
    %v1174 = vld [vmem:[#allocation2 + $0x1e70] sm:$0xff]
    %v1175 = vld [vmem:[#allocation2 + $0x1e78] sm:$0xff]
    %v1176 = vld [vmem:[#allocation2 + $0x1e80] sm:$0xff]
    %v1177 = vld [vmem:[#allocation2 + $0x1e88] sm:$0xff]
    %v1178 = vld [vmem:[#allocation2 + $0x1e90] sm:$0xff]
    %v1179 = vld [vmem:[#allocation2 + $0x1e98] sm:$0xff]
    %v1180 = vld [vmem:[#allocation2 + $0x1ea0] sm:$0xff]
    %v1181 = vld [vmem:[#allocation2 + $0x1ea8] sm:$0xff]
    %v1182 = vld [vmem:[#allocation2 + $0x1eb0] sm:$0xff]
    %v1183 = vld [vmem:[#allocation2 + $0x1eb8] sm:$0xff]
    %v1184 = vld [vmem:[#allocation2 + $0x1ec0] sm:$0xff]
    %v1185 = vld [vmem:[#allocation2 + $0x1ec8] sm:$0xff]
    %v1186 = vld [vmem:[#allocation2 + $0x1ed0] sm:$0xff]
    %v1187 = vld [vmem:[#allocation2 + $0x1ed8] sm:$0xff]
    %v1188 = vld [vmem:[#allocation2 + $0x1ee0] sm:$0xff]
    %v1189 = vld [vmem:[#allocation2 + $0x1ee8] sm:$0xff]
    %v1190 = vld [vmem:[#allocation2 + $0x1ef0] sm:$0xff]
    %v1191 = vld [vmem:[#allocation2 + $0x1ef8] sm:$0xff]
    %v1192 = vld [vmem:[#allocation2 + $0x1f00] sm:$0xff]
    %v1193 = vld [vmem:[#allocation2 + $0x1f08] sm:$0xff]
    %v1194 = vld [vmem:[#allocation2 + $0x1f10] sm:$0xff]
    %v1195 = vld [vmem:[#allocation2 + $0x1f18] sm:$0xff]
    %v1196 = vld [vmem:[#allocation2 + $0x1f20] sm:$0xff]
    %v1197 = vld [vmem:[#allocation2 + $0x1f28] sm:$0xff]
    %v1198 = vld [vmem:[#allocation2 + $0x1f30] sm:$0xff]
    %v1199 = vld [vmem:[#allocation2 + $0x1f38] sm:$0xff]
    %v1200 = vld [vmem:[#allocation2 + $0x1f40] sm:$0xff]
    %v1201 = vld [vmem:[#allocation2 + $0x1f48] sm:$0xff]
    %v1202 = vld [vmem:[#allocation2 + $0x1f50] sm:$0xff]
    %v1203 = vld [vmem:[#allocation2 + $0x1f58] sm:$0xff]
    %v1204 = vld [vmem:[#allocation2 + $0x1f60] sm:$0xff]
    %v1205 = vld [vmem:[#allocation2 + $0x1f68] sm:$0xff]
    %v1206 = vld [vmem:[#allocation2 + $0x1f70] sm:$0xff]
    %v1207 = vld [vmem:[#allocation2 + $0x1f78] sm:$0xff]
    %v1208 = vld [vmem:[#allocation2 + $0x1f80] sm:$0xff]
    %v1209 = vld [vmem:[#allocation2 + $0x1f88] sm:$0xff]
    %v1210 = vld [vmem:[#allocation2 + $0x1f90] sm:$0xff]
    %v1211 = vld [vmem:[#allocation2 + $0x1f98] sm:$0xff]
    %v1212 = vld [vmem:[#allocation2 + $0x1fa0] sm:$0xff]
    %v1213 = vld [vmem:[#allocation2 + $0x1fa8] sm:$0xff]
    %v1214 = vld [vmem:[#allocation2 + $0x1fb0] sm:$0xff]
    %v1215 = vld [vmem:[#allocation2 + $0x1fb8] sm:$0xff]
    %v1216 = vld [vmem:[#allocation2 + $0x1fc0] sm:$0xff]
    %v1217 = vld [vmem:[#allocation2 + $0x1fc8] sm:$0xff]
    %v1218 = vld [vmem:[#allocation2 + $0x1fd0] sm:$0xff]
    %v1219 = vld [vmem:[#allocation2 + $0x1fd8] sm:$0xff]
    %v1220 = vld [vmem:[#allocation2 + $0x1fe0] sm:$0xff]
    %v1221 = vld [vmem:[#allocation2 + $0x1fe8] sm:$0xff]
    %v1222 = vld [vmem:[#allocation2 + $0x1ff0] sm:$0xff]
    %v1223 = vld [vmem:[#allocation2 + $0x1ff8] sm:$0xff]
    %v1224 = vld [vmem:[#allocation2 + $0x2000] sm:$0xff]
    %v1225 = vld [vmem:[#allocation2 + $0x2008] sm:$0xff]
    %v1226 = vld [vmem:[#allocation2 + $0x2010] sm:$0xff]
    %v1227 = vld [vmem:[#allocation2 + $0x2018] sm:$0xff]
    %v1228 = vld [vmem:[#allocation2 + $0x2020] sm:$0xff]
    %v1229 = vld [vmem:[#allocation2 + $0x2028] sm:$0xff]
    %v1230 = vld [vmem:[#allocation2 + $0x2030] sm:$0xff]
    %v1231 = vld [vmem:[#allocation2 + $0x2038] sm:$0xff]
    %v1232 = vld [vmem:[#allocation2 + $0x2040] sm:$0xff]
    %v1233 = vld [vmem:[#allocation2 + $0x2048] sm:$0xff]
    %v1234 = vld [vmem:[#allocation2 + $0x2050] sm:$0xff]
    %v1235 = vld [vmem:[#allocation2 + $0x2058] sm:$0xff]
    %v1236 = vld [vmem:[#allocation2 + $0x2060] sm:$0xff]
    %v1237 = vld [vmem:[#allocation2 + $0x2068] sm:$0xff]
    %v1238 = vld [vmem:[#allocation2 + $0x2070] sm:$0xff]
    %v1239 = vld [vmem:[#allocation2 + $0x2078] sm:$0xff]
    %v1240 = vld [vmem:[#allocation2 + $0x2080] sm:$0xff]
    %v1241 = vld [vmem:[#allocation2 + $0x2088] sm:$0xff]
    %v1242 = vld [vmem:[#allocation2 + $0x2090] sm:$0xff]
    %v1243 = vld [vmem:[#allocation2 + $0x2098] sm:$0xff]
    %v1244 = vld [vmem:[#allocation2 + $0x20a0] sm:$0xff]
    %v1245 = vld [vmem:[#allocation2 + $0x20a8] sm:$0xff]
    %v1246 = vld [vmem:[#allocation2 + $0x20b0] sm:$0xff]
    %v1247 = vld [vmem:[#allocation2 + $0x20b8] sm:$0xff]
    %v1248 = vld [vmem:[#allocation2 + $0x20c0] sm:$0xff]
    %v1249 = vld [vmem:[#allocation2 + $0x20c8] sm:$0xff]
    %v1250 = vld [vmem:[#allocation2 + $0x20d0] sm:$0xff]
    %v1251 = vld [vmem:[#allocation2 + $0x20d8] sm:$0xff]
    %v1252 = vld [vmem:[#allocation2 + $0x20e0] sm:$0xff]
    %v1253 = vld [vmem:[#allocation2 + $0x20e8] sm:$0xff]
    %v1254 = vld [vmem:[#allocation2 + $0x20f0] sm:$0xff]
    %v1255 = vld [vmem:[#allocation2 + $0x20f8] sm:$0xff]
    %v1256 = vld [vmem:[#allocation2 + $0x2100] sm:$0xff]
    %v1257 = vld [vmem:[#allocation2 + $0x2108] sm:$0xff]
    %v1258 = vld [vmem:[#allocation2 + $0x2110] sm:$0xff]
    %v1259 = vld [vmem:[#allocation2 + $0x2118] sm:$0xff]
    %v1260 = vld [vmem:[#allocation2 + $0x2120] sm:$0xff]
    %v1261 = vld [vmem:[#allocation2 + $0x2128] sm:$0xff]
    %v1262 = vld [vmem:[#allocation2 + $0x2130] sm:$0xff]
    %v1263 = vld [vmem:[#allocation2 + $0x2138] sm:$0xff]
    %v1264 = vld [vmem:[#allocation2 + $0x2140] sm:$0xff]
    %v1265 = vld [vmem:[#allocation2 + $0x2148] sm:$0xff]
    %v1266 = vld [vmem:[#allocation2 + $0x2150] sm:$0xff]
    %v1267 = vld [vmem:[#allocation2 + $0x2158] sm:$0xff]
    %v1268 = vld [vmem:[#allocation2 + $0x2160] sm:$0xff]
    %v1269 = vld [vmem:[#allocation2 + $0x2168] sm:$0xff]
    %v1270 = vld [vmem:[#allocation2 + $0x2170] sm:$0xff]
    %v1271 = vld [vmem:[#allocation2 + $0x2178] sm:$0xff]
    %v1272 = vld [vmem:[#allocation2 + $0x2180] sm:$0xff]
    %v1273 = vld [vmem:[#allocation2 + $0x2188] sm:$0xff]
    %v1274 = vld [vmem:[#allocation2 + $0x2190] sm:$0xff]
    %v1275 = vld [vmem:[#allocation2 + $0x2198] sm:$0xff]
    %v1276 = vld [vmem:[#allocation2 + $0x21a0] sm:$0xff]
    %v1277 = vld [vmem:[#allocation2 + $0x21a8] sm:$0xff]
    %v1278 = vld [vmem:[#allocation2 + $0x21b0] sm:$0xff]
    %v1279 = vld [vmem:[#allocation2 + $0x21b8] sm:$0xff]
    %v1280 = vld [vmem:[#allocation2 + $0x21c0] sm:$0xff]
    %v1281 = vld [vmem:[#allocation2 + $0x21c8] sm:$0xff]
    %v1282 = vld [vmem:[#allocation2 + $0x21d0] sm:$0xff]
    %v1283 = vld [vmem:[#allocation2 + $0x21d8] sm:$0xff]
    %v1284 = vld [vmem:[#allocation2 + $0x21e0] sm:$0xff]
    %v1285 = vld [vmem:[#allocation2 + $0x21e8] sm:$0xff]
    %v1286 = vld [vmem:[#allocation2 + $0x21f0] sm:$0xff]
    %v1287 = vld [vmem:[#allocation2 + $0x21f8] sm:$0xff]
    %v1288 = vld [vmem:[#allocation2 + $0x2200] sm:$0xff]
    %v1289 = vld [vmem:[#allocation2 + $0x2208] sm:$0xff]
    %v1290 = vld [vmem:[#allocation2 + $0x2210] sm:$0xff]
    %v1291 = vld [vmem:[#allocation2 + $0x2218] sm:$0xff]
    %v1292 = vld [vmem:[#allocation2 + $0x2220] sm:$0xff]
    %v1293 = vld [vmem:[#allocation2 + $0x2228] sm:$0xff]
    %v1294 = vld [vmem:[#allocation2 + $0x2230] sm:$0xff]
    %v1295 = vld [vmem:[#allocation2 + $0x2238] sm:$0xff]
    %v1296 = vld [vmem:[#allocation2 + $0x2240] sm:$0xff]
    %v1297 = vld [vmem:[#allocation2 + $0x2248] sm:$0xff]
    %v1298 = vld [vmem:[#allocation2 + $0x2250] sm:$0xff]
    %v1299 = vld [vmem:[#allocation2 + $0x2258] sm:$0xff]
    %v1300 = vld [vmem:[#allocation2 + $0x2260] sm:$0xff]
    %v1301 = vld [vmem:[#allocation2 + $0x2268] sm:$0xff]
    %v1302 = vld [vmem:[#allocation2 + $0x2270] sm:$0xff]
    %v1303 = vld [vmem:[#allocation2 + $0x2278] sm:$0xff]
    %v1304 = vld [vmem:[#allocation2 + $0x2280] sm:$0xff]
    %v1305 = vld [vmem:[#allocation2 + $0x2288] sm:$0xff]
    %v1306 = vld [vmem:[#allocation2 + $0x2290] sm:$0xff]
    %v1307 = vld [vmem:[#allocation2 + $0x2298] sm:$0xff]
    %v1308 = vld [vmem:[#allocation2 + $0x22a0] sm:$0xff]
    %v1309 = vld [vmem:[#allocation2 + $0x22a8] sm:$0xff]
    %v1310 = vld [vmem:[#allocation2 + $0x22b0] sm:$0xff]
    %v1311 = vld [vmem:[#allocation2 + $0x22b8] sm:$0xff]
    %v1312 = vld [vmem:[#allocation2 + $0x22c0] sm:$0xff]
    %v1313 = vld [vmem:[#allocation2 + $0x22c8] sm:$0xff]
    %v1314 = vld [vmem:[#allocation2 + $0x22d0] sm:$0xff]
    %v1315 = vld [vmem:[#allocation2 + $0x22d8] sm:$0xff]
    %v1316 = vld [vmem:[#allocation2 + $0x22e0] sm:$0xff]
    %v1317 = vld [vmem:[#allocation2 + $0x22e8] sm:$0xff]
    %v1318 = vld [vmem:[#allocation2 + $0x22f0] sm:$0xff]
    %v1319 = vld [vmem:[#allocation2 + $0x22f8] sm:$0xff]
    %v1320 = vld [vmem:[#allocation2 + $0x2300] sm:$0xff]
    %v1321 = vld [vmem:[#allocation2 + $0x2308] sm:$0xff]
    %v1322 = vld [vmem:[#allocation2 + $0x2310] sm:$0xff]
    %v1323 = vld [vmem:[#allocation2 + $0x2318] sm:$0xff]
    %v1324 = vld [vmem:[#allocation2 + $0x2320] sm:$0xff]
    %v1325 = vld [vmem:[#allocation2 + $0x2328] sm:$0xff]
    %v1326 = vld [vmem:[#allocation2 + $0x2330] sm:$0xff]
    %v1327 = vld [vmem:[#allocation2 + $0x2338] sm:$0xff]
    %v1328 = vld [vmem:[#allocation2 + $0x2340] sm:$0xff]
    %v1329 = vld [vmem:[#allocation2 + $0x2348] sm:$0xff]
    %v1330 = vld [vmem:[#allocation2 + $0x2350] sm:$0xff]
    %v1331 = vld [vmem:[#allocation2 + $0x2358] sm:$0xff]
    %v1332 = vld [vmem:[#allocation2 + $0x2360] sm:$0xff]
    %v1333 = vld [vmem:[#allocation2 + $0x2368] sm:$0xff]
    %v1334 = vld [vmem:[#allocation2 + $0x2370] sm:$0xff]
    %v1335 = vld [vmem:[#allocation2 + $0x2378] sm:$0xff]
    %v1336 = vld [vmem:[#allocation2 + $0x2380] sm:$0xff]
    %v1337 = vld [vmem:[#allocation2 + $0x2388] sm:$0xff]
    %v1338 = vld [vmem:[#allocation2 + $0x2390] sm:$0xff]
    %v1339 = vld [vmem:[#allocation2 + $0x2398] sm:$0xff]
    %v1340 = vld [vmem:[#allocation2 + $0x23a0] sm:$0xff]
    %v1341 = vld [vmem:[#allocation2 + $0x23a8] sm:$0xff]
    %v1342 = vld [vmem:[#allocation2 + $0x23b0] sm:$0xff]
    %v1343 = vld [vmem:[#allocation2 + $0x23b8] sm:$0xff]
    %v1344 = vld [vmem:[#allocation2 + $0x23c0] sm:$0xff]
    %v1345 = vld [vmem:[#allocation2 + $0x23c8] sm:$0xff]
    %v1346 = vld [vmem:[#allocation2 + $0x23d0] sm:$0xff]
    %v1347 = vld [vmem:[#allocation2 + $0x23d8] sm:$0xff]
    %v1348 = vld [vmem:[#allocation2 + $0x23e0] sm:$0xff]
    %v1349 = vld [vmem:[#allocation2 + $0x23e8] sm:$0xff]
    %v1350 = vld [vmem:[#allocation2 + $0x23f0] sm:$0xff]
    %v1351 = vld [vmem:[#allocation2 + $0x23f8] sm:$0xff]
    %v1352 = vld [vmem:[#allocation2 + $0x2400] sm:$0xff]
    %v1353 = vld [vmem:[#allocation2 + $0x2408] sm:$0xff]
    %v1354 = vld [vmem:[#allocation2 + $0x2410] sm:$0xff]
    %v1355 = vld [vmem:[#allocation2 + $0x2418] sm:$0xff]
    %v1356 = vld [vmem:[#allocation2 + $0x2420] sm:$0xff]
    %v1357 = vld [vmem:[#allocation2 + $0x2428] sm:$0xff]
    %v1358 = vld [vmem:[#allocation2 + $0x2430] sm:$0xff]
    %v1359 = vld [vmem:[#allocation2 + $0x2438] sm:$0xff]
    %v1360 = vld [vmem:[#allocation2 + $0x2440] sm:$0xff]
    %v1361 = vld [vmem:[#allocation2 + $0x2448] sm:$0xff]
    %v1362 = vld [vmem:[#allocation2 + $0x2450] sm:$0xff]
    %v1363 = vld [vmem:[#allocation2 + $0x2458] sm:$0xff]
    %v1364 = vld [vmem:[#allocation2 + $0x2460] sm:$0xff]
    %v1365 = vld [vmem:[#allocation2 + $0x2468] sm:$0xff]
    %v1366 = vld [vmem:[#allocation2 + $0x2470] sm:$0xff]
    %v1367 = vld [vmem:[#allocation2 + $0x2478] sm:$0xff]
    %v1368 = vld [vmem:[#allocation2 + $0x2480] sm:$0xff]
    %v1369 = vld [vmem:[#allocation2 + $0x2488] sm:$0xff]
    %v1370 = vld [vmem:[#allocation2 + $0x2490] sm:$0xff]
    %v1371 = vld [vmem:[#allocation2 + $0x2498] sm:$0xff]
    %v1372 = vld [vmem:[#allocation2 + $0x24a0] sm:$0xff]
    %v1373 = vld [vmem:[#allocation2 + $0x24a8] sm:$0xff]
    %v1374 = vld [vmem:[#allocation2 + $0x24b0] sm:$0xff]
    %v1375 = vld [vmem:[#allocation2 + $0x24b8] sm:$0xff]
    %v1376 = vld [vmem:[#allocation2 + $0x24c0] sm:$0xff]
    %v1377 = vld [vmem:[#allocation2 + $0x24c8] sm:$0xff]
    %v1378 = vld [vmem:[#allocation2 + $0x24d0] sm:$0xff]
    %v1379 = vld [vmem:[#allocation2 + $0x24d8] sm:$0xff]
    %v1380 = vld [vmem:[#allocation2 + $0x24e0] sm:$0xff]
    %v1381 = vld [vmem:[#allocation2 + $0x24e8] sm:$0xff]
    %v1382 = vld [vmem:[#allocation2 + $0x24f0] sm:$0xff]
    %v1383 = vld [vmem:[#allocation2 + $0x24f8] sm:$0xff]
    %v1384 = vld [vmem:[#allocation2 + $0x2500] sm:$0xff]
    %v1385 = vld [vmem:[#allocation2 + $0x2508] sm:$0xff]
    %v1386 = vld [vmem:[#allocation2 + $0x2510] sm:$0xff]
    %v1387 = vld [vmem:[#allocation2 + $0x2518] sm:$0xff]
    %v1388 = vld [vmem:[#allocation2 + $0x2520] sm:$0xff]
    %v1389 = vld [vmem:[#allocation2 + $0x2528] sm:$0xff]
    %v1390 = vld [vmem:[#allocation2 + $0x2530] sm:$0xff]
    %v1391 = vld [vmem:[#allocation2 + $0x2538] sm:$0xff]
    %v1392 = vld [vmem:[#allocation2 + $0x2540] sm:$0xff]
    %v1393 = vld [vmem:[#allocation2 + $0x2548] sm:$0xff]
    %v1394 = vld [vmem:[#allocation2 + $0x2550] sm:$0xff]
    %v1395 = vld [vmem:[#allocation2 + $0x2558] sm:$0xff]
    %v1396 = vld [vmem:[#allocation2 + $0x2560] sm:$0xff]
    %v1397 = vld [vmem:[#allocation2 + $0x2568] sm:$0xff]
    %v1398 = vld [vmem:[#allocation2 + $0x2570] sm:$0xff]
    %v1399 = vld [vmem:[#allocation2 + $0x2578] sm:$0xff]
    %v1400 = vld [vmem:[#allocation2 + $0x2580] sm:$0xff]
    %v1401 = vld [vmem:[#allocation2 + $0x2588] sm:$0xff]
    %v1402 = vld [vmem:[#allocation2 + $0x2590] sm:$0xff]
    %v1403 = vld [vmem:[#allocation2 + $0x2598] sm:$0xff]
    %v1404 = vld [vmem:[#allocation2 + $0x25a0] sm:$0xff]
    %v1405 = vld [vmem:[#allocation2 + $0x25a8] sm:$0xff]
    %v1406 = vld [vmem:[#allocation2 + $0x25b0] sm:$0xff]
    %v1407 = vld [vmem:[#allocation2 + $0x25b8] sm:$0xff]
    %v1408 = vld [vmem:[#allocation2 + $0x25c0] sm:$0xff]
    %v1409 = vld [vmem:[#allocation2 + $0x25c8] sm:$0xff]
    %v1410 = vld [vmem:[#allocation2 + $0x25d0] sm:$0xff]
    %v1411 = vld [vmem:[#allocation2 + $0x25d8] sm:$0xff]
    %v1412 = vld [vmem:[#allocation2 + $0x25e0] sm:$0xff]
    %v1413 = vld [vmem:[#allocation2 + $0x25e8] sm:$0xff]
    %v1414 = vld [vmem:[#allocation2 + $0x25f0] sm:$0xff]
    %v1415 = vld [vmem:[#allocation2 + $0x25f8] sm:$0xff]
    %v1416 = vld [vmem:[#allocation2 + $0x2600] sm:$0xff]
    %v1417 = vld [vmem:[#allocation2 + $0x2608] sm:$0xff]
    %v1418 = vld [vmem:[#allocation2 + $0x2610] sm:$0xff]
    %v1419 = vld [vmem:[#allocation2 + $0x2618] sm:$0xff]
    %v1420 = vld [vmem:[#allocation2 + $0x2620] sm:$0xff]
    %v1421 = vld [vmem:[#allocation2 + $0x2628] sm:$0xff]
    %v1422 = vld [vmem:[#allocation2 + $0x2630] sm:$0xff]
    %v1423 = vld [vmem:[#allocation2 + $0x2638] sm:$0xff]
    %v1424 = vld [vmem:[#allocation2 + $0x2640] sm:$0xff]
    %v1425 = vld [vmem:[#allocation2 + $0x2648] sm:$0xff]
    %v1426 = vld [vmem:[#allocation2 + $0x2650] sm:$0xff]
    %v1427 = vld [vmem:[#allocation2 + $0x2658] sm:$0xff]
    %v1428 = vld [vmem:[#allocation2 + $0x2660] sm:$0xff]
    %v1429 = vld [vmem:[#allocation2 + $0x2668] sm:$0xff]
    %v1430 = vld [vmem:[#allocation2 + $0x2670] sm:$0xff]
    %v1431 = vld [vmem:[#allocation2 + $0x2678] sm:$0xff]
    %v1432 = vld [vmem:[#allocation2 + $0x2680] sm:$0xff]
    %v1433 = vld [vmem:[#allocation2 + $0x2688] sm:$0xff]
    %v1434 = vld [vmem:[#allocation2 + $0x2690] sm:$0xff]
    %v1435 = vld [vmem:[#allocation2 + $0x2698] sm:$0xff]
    %v1436 = vld [vmem:[#allocation2 + $0x26a0] sm:$0xff]
    %v1437 = vld [vmem:[#allocation2 + $0x26a8] sm:$0xff]
    %v1438 = vld [vmem:[#allocation2 + $0x26b0] sm:$0xff]
    %v1439 = vld [vmem:[#allocation2 + $0x26b8] sm:$0xff]
    %v1440 = vld [vmem:[#allocation2 + $0x26c0] sm:$0xff]
    %v1441 = vld [vmem:[#allocation2 + $0x26c8] sm:$0xff]
    %v1442 = vld [vmem:[#allocation2 + $0x26d0] sm:$0xff]
    %v1443 = vld [vmem:[#allocation2 + $0x26d8] sm:$0xff]
    %v1444 = vld [vmem:[#allocation2 + $0x26e0] sm:$0xff]
    %v1445 = vld [vmem:[#allocation2 + $0x26e8] sm:$0xff]
    %v1446 = vld [vmem:[#allocation2 + $0x26f0] sm:$0xff]
    %v1447 = vld [vmem:[#allocation2 + $0x26f8] sm:$0xff]
    %v1448 = vld [vmem:[#allocation2 + $0x2700] sm:$0xff]
    %v1449 = vld [vmem:[#allocation2 + $0x2708] sm:$0xff]
    %v1450 = vld [vmem:[#allocation2 + $0x2710] sm:$0xff]
    %v1451 = vld [vmem:[#allocation2 + $0x2718] sm:$0xff]
    %v1452 = vld [vmem:[#allocation2 + $0x2720] sm:$0xff]
    %v1453 = vld [vmem:[#allocation2 + $0x2728] sm:$0xff]
    %v1454 = vld [vmem:[#allocation2 + $0x2730] sm:$0xff]
    %v1455 = vld [vmem:[#allocation2 + $0x2738] sm:$0xff]
    %v1456 = vld [vmem:[#allocation2 + $0x2740] sm:$0xff]
    %v1457 = vld [vmem:[#allocation2 + $0x2748] sm:$0xff]
    %v1458 = vld [vmem:[#allocation2 + $0x2750] sm:$0xff]
    %v1459 = vld [vmem:[#allocation2 + $0x2758] sm:$0xff]
    %v1460 = vld [vmem:[#allocation2 + $0x2760] sm:$0xff]
    %v1461 = vld [vmem:[#allocation2 + $0x2768] sm:$0xff]
    %v1462 = vld [vmem:[#allocation2 + $0x2770] sm:$0xff]
    %v1463 = vld [vmem:[#allocation2 + $0x2778] sm:$0xff]
    %v1464 = vld [vmem:[#allocation2 + $0x2780] sm:$0xff]
    %v1465 = vld [vmem:[#allocation2 + $0x2788] sm:$0xff]
    %v1466 = vld [vmem:[#allocation2 + $0x2790] sm:$0xff]
    %v1467 = vld [vmem:[#allocation2 + $0x2798] sm:$0xff]
    %v1468 = vld [vmem:[#allocation2 + $0x27a0] sm:$0xff]
    %v1469 = vld [vmem:[#allocation2 + $0x27a8] sm:$0xff]
    %v1470 = vld [vmem:[#allocation2 + $0x27b0] sm:$0xff]
    %v1471 = vld [vmem:[#allocation2 + $0x27b8] sm:$0xff]
    %v1472 = vld [vmem:[#allocation2 + $0x27c0] sm:$0xff]
    %v1473 = vld [vmem:[#allocation2 + $0x27c8] sm:$0xff]
    %v1474 = vld [vmem:[#allocation2 + $0x27d0] sm:$0xff]
    %v1475 = vld [vmem:[#allocation2 + $0x27d8] sm:$0xff]
    %v1476 = vld [vmem:[#allocation2 + $0x27e0] sm:$0xff]
    %v1477 = vld [vmem:[#allocation2 + $0x27e8] sm:$0xff]
    %v1478 = vld [vmem:[#allocation2 + $0x27f0] sm:$0xff]
    %v1479 = vld [vmem:[#allocation2 + $0x27f8] sm:$0xff]
    %v1480 = vld [vmem:[#allocation2 + $0x2800] sm:$0xff]
    %v1481 = vld [vmem:[#allocation2 + $0x2808] sm:$0xff]
    %v1482 = vld [vmem:[#allocation2 + $0x2810] sm:$0xff]
    %v1483 = vld [vmem:[#allocation2 + $0x2818] sm:$0xff]
    %v1484 = vld [vmem:[#allocation2 + $0x2820] sm:$0xff]
    %v1485 = vld [vmem:[#allocation2 + $0x2828] sm:$0xff]
    %v1486 = vld [vmem:[#allocation2 + $0x2830] sm:$0xff]
    %v1487 = vld [vmem:[#allocation2 + $0x2838] sm:$0xff]
    %v1488 = vld [vmem:[#allocation2 + $0x2840] sm:$0xff]
    %v1489 = vld [vmem:[#allocation2 + $0x2848] sm:$0xff]
    %v1490 = vld [vmem:[#allocation2 + $0x2850] sm:$0xff]
    %v1491 = vld [vmem:[#allocation2 + $0x2858] sm:$0xff]
    %v1492 = vld [vmem:[#allocation2 + $0x2860] sm:$0xff]
    %v1493 = vld [vmem:[#allocation2 + $0x2868] sm:$0xff]
    %v1494 = vld [vmem:[#allocation2 + $0x2870] sm:$0xff]
    %v1495 = vld [vmem:[#allocation2 + $0x2878] sm:$0xff]
    %v1496 = vld [vmem:[#allocation2 + $0x2880] sm:$0xff]
    %v1497 = vld [vmem:[#allocation2 + $0x2888] sm:$0xff]
    %v1498 = vld [vmem:[#allocation2 + $0x2890] sm:$0xff]
    %v1499 = vld [vmem:[#allocation2 + $0x2898] sm:$0xff]
    %v1500 = vld [vmem:[#allocation2 + $0x28a0] sm:$0xff]
    %v1501 = vld [vmem:[#allocation2 + $0x28a8] sm:$0xff]
    %v1502 = vld [vmem:[#allocation2 + $0x28b0] sm:$0xff]
    %v1503 = vld [vmem:[#allocation2 + $0x28b8] sm:$0xff]
    %v1504 = vld [vmem:[#allocation2 + $0x28c0] sm:$0xff]
    %v1505 = vld [vmem:[#allocation2 + $0x28c8] sm:$0xff]
    %v1506 = vld [vmem:[#allocation2 + $0x28d0] sm:$0xff]
    %v1507 = vld [vmem:[#allocation2 + $0x28d8] sm:$0xff]
    %v1508 = vld [vmem:[#allocation2 + $0x28e0] sm:$0xff]
    %v1509 = vld [vmem:[#allocation2 + $0x28e8] sm:$0xff]
    %v1510 = vld [vmem:[#allocation2 + $0x28f0] sm:$0xff]
    %v1511 = vld [vmem:[#allocation2 + $0x28f8] sm:$0xff]
    %v1512 = vld [vmem:[#allocation2 + $0x2900] sm:$0xff]
    %v1513 = vld [vmem:[#allocation2 + $0x2908] sm:$0xff]
    %v1514 = vld [vmem:[#allocation2 + $0x2910] sm:$0xff]
    %v1515 = vld [vmem:[#allocation2 + $0x2918] sm:$0xff]
    %v1516 = vld [vmem:[#allocation2 + $0x2920] sm:$0xff]
    %v1517 = vld [vmem:[#allocation2 + $0x2928] sm:$0xff]
    %v1518 = vld [vmem:[#allocation2 + $0x2930] sm:$0xff]
    %v1519 = vld [vmem:[#allocation2 + $0x2938] sm:$0xff]
    %v1520 = vld [vmem:[#allocation2 + $0x2940] sm:$0xff]
    %v1521 = vld [vmem:[#allocation2 + $0x2948] sm:$0xff]
    %v1522 = vld [vmem:[#allocation2 + $0x2950] sm:$0xff]
    %v1523 = vld [vmem:[#allocation2 + $0x2958] sm:$0xff]
    %v1524 = vld [vmem:[#allocation2 + $0x2960] sm:$0xff]
    %v1525 = vld [vmem:[#allocation2 + $0x2968] sm:$0xff]
    %v1526 = vld [vmem:[#allocation2 + $0x2970] sm:$0xff]
    %v1527 = vld [vmem:[#allocation2 + $0x2978] sm:$0xff]
    %v1528 = vld [vmem:[#allocation2 + $0x2980] sm:$0xff]
    %v1529 = vld [vmem:[#allocation2 + $0x2988] sm:$0xff]
    %v1530 = vld [vmem:[#allocation2 + $0x2990] sm:$0xff]
    %v1531 = vld [vmem:[#allocation2 + $0x2998] sm:$0xff]
    %v1532 = vld [vmem:[#allocation2 + $0x29a0] sm:$0xff]
    %v1533 = vld [vmem:[#allocation2 + $0x29a8] sm:$0xff]
    %v1534 = vld [vmem:[#allocation2 + $0x29b0] sm:$0xff]
    %v1535 = vld [vmem:[#allocation2 + $0x29b8] sm:$0xff]
    %v1536 = vld [vmem:[#allocation2 + $0x29c0] sm:$0xff]
    %v1537 = vld [vmem:[#allocation2 + $0x29c8] sm:$0xff]
    %v1538 = vld [vmem:[#allocation2 + $0x29d0] sm:$0xff]
    %v1539 = vld [vmem:[#allocation2 + $0x29d8] sm:$0xff]
    %v1540 = vld [vmem:[#allocation2 + $0x29e0] sm:$0xff]
    %v1541 = vld [vmem:[#allocation2 + $0x29e8] sm:$0xff]
    %v1542 = vld [vmem:[#allocation2 + $0x29f0] sm:$0xff]
    %v1543 = vld [vmem:[#allocation2 + $0x29f8] sm:$0xff]
    %v1544 = vld [vmem:[#allocation2 + $0x2a00] sm:$0xff]
    %v1545 = vld [vmem:[#allocation2 + $0x2a08] sm:$0xff]
    %v1546 = vld [vmem:[#allocation2 + $0x2a10] sm:$0xff]
    %v1547 = vld [vmem:[#allocation2 + $0x2a18] sm:$0xff]
    %v1548 = vld [vmem:[#allocation2 + $0x2a20] sm:$0xff]
    %v1549 = vld [vmem:[#allocation2 + $0x2a28] sm:$0xff]
    %v1550 = vld [vmem:[#allocation2 + $0x2a30] sm:$0xff]
    %v1551 = vld [vmem:[#allocation2 + $0x2a38] sm:$0xff]
    %v1552 = vld [vmem:[#allocation2 + $0x2a40] sm:$0xff]
    %v1553 = vld [vmem:[#allocation2 + $0x2a48] sm:$0xff]
    %v1554 = vld [vmem:[#allocation2 + $0x2a50] sm:$0xff]
    %v1555 = vld [vmem:[#allocation2 + $0x2a58] sm:$0xff]
    %v1556 = vld [vmem:[#allocation2 + $0x2a60] sm:$0xff]
    %v1557 = vld [vmem:[#allocation2 + $0x2a68] sm:$0xff]
    %v1558 = vld [vmem:[#allocation2 + $0x2a70] sm:$0xff]
    %v1559 = vld [vmem:[#allocation2 + $0x2a78] sm:$0xff]
    %v1560 = vld [vmem:[#allocation2 + $0x2a80] sm:$0xff]
    %v1561 = vld [vmem:[#allocation2 + $0x2a88] sm:$0xff]
    %v1562 = vld [vmem:[#allocation2 + $0x2a90] sm:$0xff]
    %v1563 = vld [vmem:[#allocation2 + $0x2a98] sm:$0xff]
    %v1564 = vld [vmem:[#allocation2 + $0x2aa0] sm:$0xff]
    %v1565 = vld [vmem:[#allocation2 + $0x2aa8] sm:$0xff]
    %v1566 = vld [vmem:[#allocation2 + $0x2ab0] sm:$0xff]
    %v1567 = vld [vmem:[#allocation2 + $0x2ab8] sm:$0xff]
    %v1568 = vld [vmem:[#allocation2 + $0x2ac0] sm:$0xff]
    %v1569 = vld [vmem:[#allocation2 + $0x2ac8] sm:$0xff]
    %v1570 = vld [vmem:[#allocation2 + $0x2ad0] sm:$0xff]
    %v1571 = vld [vmem:[#allocation2 + $0x2ad8] sm:$0xff]
    %v1572 = vld [vmem:[#allocation2 + $0x2ae0] sm:$0xff]
    %v1573 = vld [vmem:[#allocation2 + $0x2ae8] sm:$0xff]
    %v1574 = vld [vmem:[#allocation2 + $0x2af0] sm:$0xff]
    %v1575 = vld [vmem:[#allocation2 + $0x2af8] sm:$0xff]
    %v1576 = vld [vmem:[#allocation2 + $0x2b00] sm:$0xff]
    %v1577 = vld [vmem:[#allocation2 + $0x2b08] sm:$0xff]
    %v1578 = vld [vmem:[#allocation2 + $0x2b10] sm:$0xff]
    %v1579 = vld [vmem:[#allocation2 + $0x2b18] sm:$0xff]
    %v1580 = vld [vmem:[#allocation2 + $0x2b20] sm:$0xff]
    %v1581 = vld [vmem:[#allocation2 + $0x2b28] sm:$0xff]
    %v1582 = vld [vmem:[#allocation2 + $0x2b30] sm:$0xff]
    %v1583 = vld [vmem:[#allocation2 + $0x2b38] sm:$0xff]
    %v1584 = vld [vmem:[#allocation2 + $0x2b40] sm:$0xff]
    %v1585 = vld [vmem:[#allocation2 + $0x2b48] sm:$0xff]
    %v1586 = vld [vmem:[#allocation2 + $0x2b50] sm:$0xff]
    %v1587 = vld [vmem:[#allocation2 + $0x2b58] sm:$0xff]
    %v1588 = vld [vmem:[#allocation2 + $0x2b60] sm:$0xff]
    %v1589 = vld [vmem:[#allocation2 + $0x2b68] sm:$0xff]
    %v1590 = vld [vmem:[#allocation2 + $0x2b70] sm:$0xff]
    %v1591 = vld [vmem:[#allocation2 + $0x2b78] sm:$0xff]
    %v1592 = vld [vmem:[#allocation2 + $0x2b80] sm:$0xff]
    %v1593 = vld [vmem:[#allocation2 + $0x2b88] sm:$0xff]
    %v1594 = vld [vmem:[#allocation2 + $0x2b90] sm:$0xff]
    %v1595 = vld [vmem:[#allocation2 + $0x2b98] sm:$0xff]
    %v1596 = vld [vmem:[#allocation2 + $0x2ba0] sm:$0xff]
    %v1597 = vld [vmem:[#allocation2 + $0x2ba8] sm:$0xff]
    %v1598 = vld [vmem:[#allocation2 + $0x2bb0] sm:$0xff]
    %v1599 = vld [vmem:[#allocation2 + $0x2bb8] sm:$0xff]
    %v1600 = vld [vmem:[#allocation2 + $0x2bc0] sm:$0xff]
    %v1601 = vld [vmem:[#allocation2 + $0x2bc8] sm:$0xff]
    %v1602 = vld [vmem:[#allocation2 + $0x2bd0] sm:$0xff]
    %v1603 = vld [vmem:[#allocation2 + $0x2bd8] sm:$0xff]
    %v1604 = vld [vmem:[#allocation2 + $0x2be0] sm:$0xff]
    %v1605 = vld [vmem:[#allocation2 + $0x2be8] sm:$0xff]
    %v1606 = vld [vmem:[#allocation2 + $0x2bf0] sm:$0xff]
    %v1607 = vld [vmem:[#allocation2 + $0x2bf8] sm:$0xff]
    %v1608 = vld [vmem:[#allocation2 + $0x2c00] sm:$0xff]
    %v1609 = vld [vmem:[#allocation2 + $0x2c08] sm:$0xff]
    %v1610 = vld [vmem:[#allocation2 + $0x2c10] sm:$0xff]
    %v1611 = vld [vmem:[#allocation2 + $0x2c18] sm:$0xff]
    %v1612 = vld [vmem:[#allocation2 + $0x2c20] sm:$0xff]
    %v1613 = vld [vmem:[#allocation2 + $0x2c28] sm:$0xff]
    %v1614 = vld [vmem:[#allocation2 + $0x2c30] sm:$0xff]
    %v1615 = vld [vmem:[#allocation2 + $0x2c38] sm:$0xff]
    %v1616 = vld [vmem:[#allocation2 + $0x2c40] sm:$0xff]
    %v1617 = vld [vmem:[#allocation2 + $0x2c48] sm:$0xff]
    %v1618 = vld [vmem:[#allocation2 + $0x2c50] sm:$0xff]
    %v1619 = vld [vmem:[#allocation2 + $0x2c58] sm:$0xff]
    %v1620 = vld [vmem:[#allocation2 + $0x2c60] sm:$0xff]
    %v1621 = vld [vmem:[#allocation2 + $0x2c68] sm:$0xff]
    %v1622 = vld [vmem:[#allocation2 + $0x2c70] sm:$0xff]
    %v1623 = vld [vmem:[#allocation2 + $0x2c78] sm:$0xff]
    %v1624 = vld [vmem:[#allocation2 + $0x2c80] sm:$0xff]
    %v1625 = vld [vmem:[#allocation2 + $0x2c88] sm:$0xff]
    %v1626 = vld [vmem:[#allocation2 + $0x2c90] sm:$0xff]
    %v1627 = vld [vmem:[#allocation2 + $0x2c98] sm:$0xff]
    %v1628 = vld [vmem:[#allocation2 + $0x2ca0] sm:$0xff]
    %v1629 = vld [vmem:[#allocation2 + $0x2ca8] sm:$0xff]
    %v1630 = vld [vmem:[#allocation2 + $0x2cb0] sm:$0xff]
    %v1631 = vld [vmem:[#allocation2 + $0x2cb8] sm:$0xff]
    %v1632 = vld [vmem:[#allocation2 + $0x2cc0] sm:$0xff]
    %v1633 = vld [vmem:[#allocation2 + $0x2cc8] sm:$0xff]
    %v1634 = vld [vmem:[#allocation2 + $0x2cd0] sm:$0xff]
    %v1635 = vld [vmem:[#allocation2 + $0x2cd8] sm:$0xff]
    %v1636 = vld [vmem:[#allocation2 + $0x2ce0] sm:$0xff]
    %v1637 = vld [vmem:[#allocation2 + $0x2ce8] sm:$0xff]
    %v1638 = vld [vmem:[#allocation2 + $0x2cf0] sm:$0xff]
    %v1639 = vld [vmem:[#allocation2 + $0x2cf8] sm:$0xff]
    %v1640 = vld [vmem:[#allocation2 + $0x2d00] sm:$0xff]
    %v1641 = vld [vmem:[#allocation2 + $0x2d08] sm:$0xff]
    %v1642 = vld [vmem:[#allocation2 + $0x2d10] sm:$0xff]
    %v1643 = vld [vmem:[#allocation2 + $0x2d18] sm:$0xff]
    %v1644 = vld [vmem:[#allocation2 + $0x2d20] sm:$0xff]
    %v1645 = vld [vmem:[#allocation2 + $0x2d28] sm:$0xff]
    %v1646 = vld [vmem:[#allocation2 + $0x2d30] sm:$0xff]
    %v1647 = vld [vmem:[#allocation2 + $0x2d38] sm:$0xff]
    %v1648 = vld [vmem:[#allocation2 + $0x2d40] sm:$0xff]
    %v1649 = vld [vmem:[#allocation2 + $0x2d48] sm:$0xff]
    %v1650 = vld [vmem:[#allocation2 + $0x2d50] sm:$0xff]
    %v1651 = vld [vmem:[#allocation2 + $0x2d58] sm:$0xff]
    %v1652 = vld [vmem:[#allocation2 + $0x2d60] sm:$0xff]
    %v1653 = vld [vmem:[#allocation2 + $0x2d68] sm:$0xff]
    %v1654 = vld [vmem:[#allocation2 + $0x2d70] sm:$0xff]
    %v1655 = vld [vmem:[#allocation2 + $0x2d78] sm:$0xff]
    %v1656 = vld [vmem:[#allocation2 + $0x2d80] sm:$0xff]
    %v1657 = vld [vmem:[#allocation2 + $0x2d88] sm:$0xff]
    %v1658 = vld [vmem:[#allocation2 + $0x2d90] sm:$0xff]
    %v1659 = vld [vmem:[#allocation2 + $0x2d98] sm:$0xff]
    %v1660 = vld [vmem:[#allocation2 + $0x2da0] sm:$0xff]
    %v1661 = vld [vmem:[#allocation2 + $0x2da8] sm:$0xff]
    %v1662 = vld [vmem:[#allocation2 + $0x2db0] sm:$0xff]
    %v1663 = vld [vmem:[#allocation2 + $0x2db8] sm:$0xff]
    %v1664 = vld [vmem:[#allocation2 + $0x2dc0] sm:$0xff]
    %v1665 = vld [vmem:[#allocation2 + $0x2dc8] sm:$0xff]
    %v1666 = vld [vmem:[#allocation2 + $0x2dd0] sm:$0xff]
    %v1667 = vld [vmem:[#allocation2 + $0x2dd8] sm:$0xff]
    %v1668 = vld [vmem:[#allocation2 + $0x2de0] sm:$0xff]
    %v1669 = vld [vmem:[#allocation2 + $0x2de8] sm:$0xff]
    %v1670 = vld [vmem:[#allocation2 + $0x2df0] sm:$0xff]
    %v1671 = vld [vmem:[#allocation2 + $0x2df8] sm:$0xff]
    %v1672 = vld [vmem:[#allocation2 + $0x2e00] sm:$0xff]
    %v1673 = vld [vmem:[#allocation2 + $0x2e08] sm:$0xff]
    %v1674 = vld [vmem:[#allocation2 + $0x2e10] sm:$0xff]
    %v1675 = vld [vmem:[#allocation2 + $0x2e18] sm:$0xff]
    %v1676 = vld [vmem:[#allocation2 + $0x2e20] sm:$0xff]
    %v1677 = vld [vmem:[#allocation2 + $0x2e28] sm:$0xff]
    %v1678 = vld [vmem:[#allocation2 + $0x2e30] sm:$0xff]
    %v1679 = vld [vmem:[#allocation2 + $0x2e38] sm:$0xff]
    %v1680 = vld [vmem:[#allocation2 + $0x2e40] sm:$0xff]
    %v1681 = vld [vmem:[#allocation2 + $0x2e48] sm:$0xff]
    %v1682 = vld [vmem:[#allocation2 + $0x2e50] sm:$0xff]
    %v1683 = vld [vmem:[#allocation2 + $0x2e58] sm:$0xff]
    %v1684 = vld [vmem:[#allocation2 + $0x2e60] sm:$0xff]
    %v1685 = vld [vmem:[#allocation2 + $0x2e68] sm:$0xff]
    %v1686 = vld [vmem:[#allocation2 + $0x2e70] sm:$0xff]
    %v1687 = vld [vmem:[#allocation2 + $0x2e78] sm:$0xff]
    %v1688 = vld [vmem:[#allocation2 + $0x2e80] sm:$0xff]
    %v1689 = vld [vmem:[#allocation2 + $0x2e88] sm:$0xff]
    %v1690 = vld [vmem:[#allocation2 + $0x2e90] sm:$0xff]
    %v1691 = vld [vmem:[#allocation2 + $0x2e98] sm:$0xff]
    %v1692 = vld [vmem:[#allocation2 + $0x2ea0] sm:$0xff]
    %v1693 = vld [vmem:[#allocation2 + $0x2ea8] sm:$0xff]
    %v1694 = vld [vmem:[#allocation2 + $0x2eb0] sm:$0xff]
    %v1695 = vld [vmem:[#allocation2 + $0x2eb8] sm:$0xff]
    %v1696 = vld [vmem:[#allocation2 + $0x2ec0] sm:$0xff]
    %v1697 = vld [vmem:[#allocation2 + $0x2ec8] sm:$0xff]
    %v1698 = vld [vmem:[#allocation2 + $0x2ed0] sm:$0xff]
    %v1699 = vld [vmem:[#allocation2 + $0x2ed8] sm:$0xff]
    %v1700 = vld [vmem:[#allocation2 + $0x2ee0] sm:$0xff]
    %v1701 = vld [vmem:[#allocation2 + $0x2ee8] sm:$0xff]
    %v1702 = vld [vmem:[#allocation2 + $0x2ef0] sm:$0xff]
    %v1703 = vld [vmem:[#allocation2 + $0x2ef8] sm:$0xff]
    %v1704 = vld [vmem:[#allocation2 + $0x2f00] sm:$0xff]
    %v1705 = vld [vmem:[#allocation2 + $0x2f08] sm:$0xff]
    %v1706 = vld [vmem:[#allocation2 + $0x2f10] sm:$0xff]
    %v1707 = vld [vmem:[#allocation2 + $0x2f18] sm:$0xff]
    %v1708 = vld [vmem:[#allocation2 + $0x2f20] sm:$0xff]
    %v1709 = vld [vmem:[#allocation2 + $0x2f28] sm:$0xff]
    %v1710 = vld [vmem:[#allocation2 + $0x2f30] sm:$0xff]
    %v1711 = vld [vmem:[#allocation2 + $0x2f38] sm:$0xff]
    %v1712 = vld [vmem:[#allocation2 + $0x2f40] sm:$0xff]
    %v1713 = vld [vmem:[#allocation2 + $0x2f48] sm:$0xff]
    %v1714 = vld [vmem:[#allocation2 + $0x2f50] sm:$0xff]
    %v1715 = vld [vmem:[#allocation2 + $0x2f58] sm:$0xff]
    %v1716 = vld [vmem:[#allocation2 + $0x2f60] sm:$0xff]
    %v1717 = vld [vmem:[#allocation2 + $0x2f68] sm:$0xff]
    %v1718 = vld [vmem:[#allocation2 + $0x2f70] sm:$0xff]
    %v1719 = vld [vmem:[#allocation2 + $0x2f78] sm:$0xff]
    %v1720 = vld [vmem:[#allocation2 + $0x2f80] sm:$0xff]
    %v1721 = vld [vmem:[#allocation2 + $0x2f88] sm:$0xff]
    %v1722 = vld [vmem:[#allocation2 + $0x2f90] sm:$0xff]
    %v1723 = vld [vmem:[#allocation2 + $0x2f98] sm:$0xff]
    %v1724 = vld [vmem:[#allocation2 + $0x2fa0] sm:$0xff]
    %v1725 = vld [vmem:[#allocation2 + $0x2fa8] sm:$0xff]
    %v1726 = vld [vmem:[#allocation2 + $0x2fb0] sm:$0xff]
    %v1727 = vld [vmem:[#allocation2 + $0x2fb8] sm:$0xff]
    %v1728 = vld [vmem:[#allocation2 + $0x2fc0] sm:$0xff]
    %v1729 = vld [vmem:[#allocation2 + $0x2fc8] sm:$0xff]
    %v1730 = vld [vmem:[#allocation2 + $0x2fd0] sm:$0xff]
    %v1731 = vld [vmem:[#allocation2 + $0x2fd8] sm:$0xff]
    %v1732 = vld [vmem:[#allocation2 + $0x2fe0] sm:$0xff]
    %v1733 = vld [vmem:[#allocation2 + $0x2fe8] sm:$0xff]
    %v1734 = vld [vmem:[#allocation2 + $0x2ff0] sm:$0xff]
    %v1735 = vld [vmem:[#allocation2 + $0x2ff8] sm:$0xff]
    %v1736 = vld [vmem:[#allocation2 + $0x3000] sm:$0xff]
    %v1737 = vld [vmem:[#allocation2 + $0x3008] sm:$0xff]
    %v1738 = vld [vmem:[#allocation2 + $0x3010] sm:$0xff]
    %v1739 = vld [vmem:[#allocation2 + $0x3018] sm:$0xff]
    %v1740 = vld [vmem:[#allocation2 + $0x3020] sm:$0xff]
    %v1741 = vld [vmem:[#allocation2 + $0x3028] sm:$0xff]
    %v1742 = vld [vmem:[#allocation2 + $0x3030] sm:$0xff]
    %v1743 = vld [vmem:[#allocation2 + $0x3038] sm:$0xff]
    %v1744 = vld [vmem:[#allocation2 + $0x3040] sm:$0xff]
    %v1745 = vld [vmem:[#allocation2 + $0x3048] sm:$0xff]
    %v1746 = vld [vmem:[#allocation2 + $0x3050] sm:$0xff]
    %v1747 = vld [vmem:[#allocation2 + $0x3058] sm:$0xff]
    %v1748 = vld [vmem:[#allocation2 + $0x3060] sm:$0xff]
    %v1749 = vld [vmem:[#allocation2 + $0x3068] sm:$0xff]
    %v1750 = vld [vmem:[#allocation2 + $0x3070] sm:$0xff]
    %v1751 = vld [vmem:[#allocation2 + $0x3078] sm:$0xff]
    %v1752 = vld [vmem:[#allocation2 + $0x3080] sm:$0xff]
    %v1753 = vld [vmem:[#allocation2 + $0x3088] sm:$0xff]
    %v1754 = vld [vmem:[#allocation2 + $0x3090] sm:$0xff]
    %v1755 = vld [vmem:[#allocation2 + $0x3098] sm:$0xff]
    %v1756 = vld [vmem:[#allocation2 + $0x30a0] sm:$0xff]
    %v1757 = vld [vmem:[#allocation2 + $0x30a8] sm:$0xff]
    %v1758 = vld [vmem:[#allocation2 + $0x30b0] sm:$0xff]
    %v1759 = vld [vmem:[#allocation2 + $0x30b8] sm:$0xff]
    %v1760 = vld [vmem:[#allocation2 + $0x30c0] sm:$0xff]
    %v1761 = vld [vmem:[#allocation2 + $0x30c8] sm:$0xff]
    %v1762 = vld [vmem:[#allocation2 + $0x30d0] sm:$0xff]
    %v1763 = vld [vmem:[#allocation2 + $0x30d8] sm:$0xff]
    %v1764 = vld [vmem:[#allocation2 + $0x30e0] sm:$0xff]
    %v1765 = vld [vmem:[#allocation2 + $0x30e8] sm:$0xff]
    %v1766 = vld [vmem:[#allocation2 + $0x30f0] sm:$0xff]
    %v1767 = vld [vmem:[#allocation2 + $0x30f8] sm:$0xff]
    %v1768 = vld [vmem:[#allocation2 + $0x3100] sm:$0xff]
    %v1769 = vld [vmem:[#allocation2 + $0x3108] sm:$0xff]
    %v1770 = vld [vmem:[#allocation2 + $0x3110] sm:$0xff]
    %v1771 = vld [vmem:[#allocation2 + $0x3118] sm:$0xff]
    %v1772 = vld [vmem:[#allocation2 + $0x3120] sm:$0xff]
    %v1773 = vld [vmem:[#allocation2 + $0x3128] sm:$0xff]
    %v1774 = vld [vmem:[#allocation2 + $0x3130] sm:$0xff]
    %v1775 = vld [vmem:[#allocation2 + $0x3138] sm:$0xff]
    %v1776 = vld [vmem:[#allocation2 + $0x3140] sm:$0xff]
    %v1777 = vld [vmem:[#allocation2 + $0x3148] sm:$0xff]
    %v1778 = vld [vmem:[#allocation2 + $0x3150] sm:$0xff]
    %v1779 = vld [vmem:[#allocation2 + $0x3158] sm:$0xff]
    %v1780 = vld [vmem:[#allocation2 + $0x3160] sm:$0xff]
    %v1781 = vld [vmem:[#allocation2 + $0x3168] sm:$0xff]
    %v1782 = vld [vmem:[#allocation2 + $0x3170] sm:$0xff]
    %v1783 = vld [vmem:[#allocation2 + $0x3178] sm:$0xff]
    %v1784 = vld [vmem:[#allocation2 + $0x3180] sm:$0xff]
    %v1785 = vld [vmem:[#allocation2 + $0x3188] sm:$0xff]
    %v1786 = vld [vmem:[#allocation2 + $0x3190] sm:$0xff]
    %v1787 = vld [vmem:[#allocation2 + $0x3198] sm:$0xff]
    %v1788 = vld [vmem:[#allocation2 + $0x31a0] sm:$0xff]
    %v1789 = vld [vmem:[#allocation2 + $0x31a8] sm:$0xff]
    %v1790 = vld [vmem:[#allocation2 + $0x31b0] sm:$0xff]
    %v1791 = vld [vmem:[#allocation2 + $0x31b8] sm:$0xff]
    %v1792 = vld [vmem:[#allocation2 + $0x31c0] sm:$0xff]
    %v1793 = vld [vmem:[#allocation2 + $0x31c8] sm:$0xff]
    %v1794 = vld [vmem:[#allocation2 + $0x31d0] sm:$0xff]
    %v1795 = vld [vmem:[#allocation2 + $0x31d8] sm:$0xff]
    %v1796 = vld [vmem:[#allocation2 + $0x31e0] sm:$0xff]
    %v1797 = vld [vmem:[#allocation2 + $0x31e8] sm:$0xff]
    %v1798 = vld [vmem:[#allocation2 + $0x31f0] sm:$0xff]
    %v1799 = vld [vmem:[#allocation2 + $0x31f8] sm:$0xff]
    %v1800 = vld [vmem:[#allocation2 + $0x3200] sm:$0xff]
    %v1801 = vld [vmem:[#allocation2 + $0x3208] sm:$0xff]
    %v1802 = vld [vmem:[#allocation2 + $0x3210] sm:$0xff]
    %v1803 = vld [vmem:[#allocation2 + $0x3218] sm:$0xff]
    %v1804 = vld [vmem:[#allocation2 + $0x3220] sm:$0xff]
    %v1805 = vld [vmem:[#allocation2 + $0x3228] sm:$0xff]
    %v1806 = vld [vmem:[#allocation2 + $0x3230] sm:$0xff]
    %v1807 = vld [vmem:[#allocation2 + $0x3238] sm:$0xff]
    %v1808 = vld [vmem:[#allocation2 + $0x3240] sm:$0xff]
    %v1809 = vld [vmem:[#allocation2 + $0x3248] sm:$0xff]
    %v1810 = vld [vmem:[#allocation2 + $0x3250] sm:$0xff]
    %v1811 = vld [vmem:[#allocation2 + $0x3258] sm:$0xff]
    %v1812 = vld [vmem:[#allocation2 + $0x3260] sm:$0xff]
    %v1813 = vld [vmem:[#allocation2 + $0x3268] sm:$0xff]
    %v1814 = vld [vmem:[#allocation2 + $0x3270] sm:$0xff]
    %v1815 = vld [vmem:[#allocation2 + $0x3278] sm:$0xff]
    %v1816 = vld [vmem:[#allocation2 + $0x3280] sm:$0xff]
    %v1817 = vld [vmem:[#allocation2 + $0x3288] sm:$0xff]
    %v1818 = vld [vmem:[#allocation2 + $0x3290] sm:$0xff]
    %v1819 = vld [vmem:[#allocation2 + $0x3298] sm:$0xff]
    %v1820 = vld [vmem:[#allocation2 + $0x32a0] sm:$0xff]
    %v1821 = vld [vmem:[#allocation2 + $0x32a8] sm:$0xff]
    %v1822 = vld [vmem:[#allocation2 + $0x32b0] sm:$0xff]
    %v1823 = vld [vmem:[#allocation2 + $0x32b8] sm:$0xff]
    %v1824 = vld [vmem:[#allocation2 + $0x32c0] sm:$0xff]
    %v1825 = vld [vmem:[#allocation2 + $0x32c8] sm:$0xff]
    %v1826 = vld [vmem:[#allocation2 + $0x32d0] sm:$0xff]
    %v1827 = vld [vmem:[#allocation2 + $0x32d8] sm:$0xff]
    %v1828 = vld [vmem:[#allocation2 + $0x32e0] sm:$0xff]
    %v1829 = vld [vmem:[#allocation2 + $0x32e8] sm:$0xff]
    %v1830 = vld [vmem:[#allocation2 + $0x32f0] sm:$0xff]
    %v1831 = vld [vmem:[#allocation2 + $0x32f8] sm:$0xff]
    %v1832 = vld [vmem:[#allocation2 + $0x3300] sm:$0xff]
    %v1833 = vld [vmem:[#allocation2 + $0x3308] sm:$0xff]
    %v1834 = vld [vmem:[#allocation2 + $0x3310] sm:$0xff]
    %v1835 = vld [vmem:[#allocation2 + $0x3318] sm:$0xff]
    %v1836 = vld [vmem:[#allocation2 + $0x3320] sm:$0xff]
    %v1837 = vld [vmem:[#allocation2 + $0x3328] sm:$0xff]
    %v1838 = vld [vmem:[#allocation2 + $0x3330] sm:$0xff]
    %v1839 = vld [vmem:[#allocation2 + $0x3338] sm:$0xff]
    %v1840 = vld [vmem:[#allocation2 + $0x3340] sm:$0xff]
    %v1841 = vld [vmem:[#allocation2 + $0x3348] sm:$0xff]
    %v1842 = vld [vmem:[#allocation2 + $0x3350] sm:$0xff]
    %v1843 = vld [vmem:[#allocation2 + $0x3358] sm:$0xff]
    %v1844 = vld [vmem:[#allocation2 + $0x3360] sm:$0xff]
    %v1845 = vld [vmem:[#allocation2 + $0x3368] sm:$0xff]
    %v1846 = vld [vmem:[#allocation2 + $0x3370] sm:$0xff]
    %v1847 = vld [vmem:[#allocation2 + $0x3378] sm:$0xff]
    %v1848 = vld [vmem:[#allocation2 + $0x3380] sm:$0xff]
    %v1849 = vld [vmem:[#allocation2 + $0x3388] sm:$0xff]
    %v1850 = vld [vmem:[#allocation2 + $0x3390] sm:$0xff]
    %v1851 = vld [vmem:[#allocation2 + $0x3398] sm:$0xff]
    %v1852 = vld [vmem:[#allocation2 + $0x33a0] sm:$0xff]
    %v1853 = vld [vmem:[#allocation2 + $0x33a8] sm:$0xff]
    %v1854 = vld [vmem:[#allocation2 + $0x33b0] sm:$0xff]
    %v1855 = vld [vmem:[#allocation2 + $0x33b8] sm:$0xff]
    %v1856 = vld [vmem:[#allocation2 + $0x33c0] sm:$0xff]
    %v1857 = vld [vmem:[#allocation2 + $0x33c8] sm:$0xff]
    %v1858 = vld [vmem:[#allocation2 + $0x33d0] sm:$0xff]
    %v1859 = vld [vmem:[#allocation2 + $0x33d8] sm:$0xff]
    %v1860 = vld [vmem:[#allocation2 + $0x33e0] sm:$0xff]
    %v1861 = vld [vmem:[#allocation2 + $0x33e8] sm:$0xff]
    %v1862 = vld [vmem:[#allocation2 + $0x33f0] sm:$0xff]
    %v1863 = vld [vmem:[#allocation2 + $0x33f8] sm:$0xff]
    %v1864 = vld [vmem:[#allocation2 + $0x3400] sm:$0xff]
    %v1865 = vld [vmem:[#allocation2 + $0x3408] sm:$0xff]
    %v1866 = vld [vmem:[#allocation2 + $0x3410] sm:$0xff]
    %v1867 = vld [vmem:[#allocation2 + $0x3418] sm:$0xff]
    %v1868 = vld [vmem:[#allocation2 + $0x3420] sm:$0xff]
    %v1869 = vld [vmem:[#allocation2 + $0x3428] sm:$0xff]
    %v1870 = vld [vmem:[#allocation2 + $0x3430] sm:$0xff]
    %v1871 = vld [vmem:[#allocation2 + $0x3438] sm:$0xff]
    %v1872 = vld [vmem:[#allocation2 + $0x3440] sm:$0xff]
    %v1873 = vld [vmem:[#allocation2 + $0x3448] sm:$0xff]
    %v1874 = vld [vmem:[#allocation2 + $0x3450] sm:$0xff]
    %v1875 = vld [vmem:[#allocation2 + $0x3458] sm:$0xff]
    %v1876 = vld [vmem:[#allocation2 + $0x3460] sm:$0xff]
    %v1877 = vld [vmem:[#allocation2 + $0x3468] sm:$0xff]
    %v1878 = vld [vmem:[#allocation2 + $0x3470] sm:$0xff]
    %v1879 = vld [vmem:[#allocation2 + $0x3478] sm:$0xff]
    %v1880 = vld [vmem:[#allocation2 + $0x3480] sm:$0xff]
    %v1881 = vld [vmem:[#allocation2 + $0x3488] sm:$0xff]
    %v1882 = vld [vmem:[#allocation2 + $0x3490] sm:$0xff]
    %v1883 = vld [vmem:[#allocation2 + $0x3498] sm:$0xff]
    %v1884 = vld [vmem:[#allocation2 + $0x34a0] sm:$0xff]
    %v1885 = vld [vmem:[#allocation2 + $0x34a8] sm:$0xff]
    %v1886 = vld [vmem:[#allocation2 + $0x34b0] sm:$0xff]
    %v1887 = vld [vmem:[#allocation2 + $0x34b8] sm:$0xff]
    %v1888 = vld [vmem:[#allocation2 + $0x34c0] sm:$0xff]
    %v1889 = vld [vmem:[#allocation2 + $0x34c8] sm:$0xff]
    %v1890 = vld [vmem:[#allocation2 + $0x34d0] sm:$0xff]
    %v1891 = vld [vmem:[#allocation2 + $0x34d8] sm:$0xff]
    %v1892 = vld [vmem:[#allocation2 + $0x34e0] sm:$0xff]
    %v1893 = vld [vmem:[#allocation2 + $0x34e8] sm:$0xff]
    %v1894 = vld [vmem:[#allocation2 + $0x34f0] sm:$0xff]
    %v1895 = vld [vmem:[#allocation2 + $0x34f8] sm:$0xff]
    %v1896 = vld [vmem:[#allocation2 + $0x3500] sm:$0xff]
    %v1897 = vld [vmem:[#allocation2 + $0x3508] sm:$0xff]
    %v1898 = vld [vmem:[#allocation2 + $0x3510] sm:$0xff]
    %v1899 = vld [vmem:[#allocation2 + $0x3518] sm:$0xff]
    %v1900 = vld [vmem:[#allocation2 + $0x3520] sm:$0xff]
    %v1901 = vld [vmem:[#allocation2 + $0x3528] sm:$0xff]
    %v1902 = vld [vmem:[#allocation2 + $0x3530] sm:$0xff]
    %v1903 = vld [vmem:[#allocation2 + $0x3538] sm:$0xff]
    %v1904 = vld [vmem:[#allocation2 + $0x3540] sm:$0xff]
    %v1905 = vld [vmem:[#allocation2 + $0x3548] sm:$0xff]
    %v1906 = vld [vmem:[#allocation2 + $0x3550] sm:$0xff]
    %v1907 = vld [vmem:[#allocation2 + $0x3558] sm:$0xff]
    %v1908 = vld [vmem:[#allocation2 + $0x3560] sm:$0xff]
    %v1909 = vld [vmem:[#allocation2 + $0x3568] sm:$0xff]
    %v1910 = vld [vmem:[#allocation2 + $0x3570] sm:$0xff]
    %v1911 = vld [vmem:[#allocation2 + $0x3578] sm:$0xff]
    %v1912 = vld [vmem:[#allocation2 + $0x3580] sm:$0xff]
    %v1913 = vld [vmem:[#allocation2 + $0x3588] sm:$0xff]
    %v1914 = vld [vmem:[#allocation2 + $0x3590] sm:$0xff]
    %v1915 = vld [vmem:[#allocation2 + $0x3598] sm:$0xff]
    %v1916 = vld [vmem:[#allocation2 + $0x35a0] sm:$0xff]
    %v1917 = vld [vmem:[#allocation2 + $0x35a8] sm:$0xff]
    %v1918 = vld [vmem:[#allocation2 + $0x35b0] sm:$0xff]
    %v1919 = vld [vmem:[#allocation2 + $0x35b8] sm:$0xff]
    %v1920 = vld [vmem:[#allocation2 + $0x35c0] sm:$0xff]
    %v1921 = vld [vmem:[#allocation2 + $0x35c8] sm:$0xff]
    %v1922 = vld [vmem:[#allocation2 + $0x35d0] sm:$0xff]
    %v1923 = vld [vmem:[#allocation2 + $0x35d8] sm:$0xff]
    %v1924 = vld [vmem:[#allocation2 + $0x35e0] sm:$0xff]
    %v1925 = vld [vmem:[#allocation2 + $0x35e8] sm:$0xff]
    %v1926 = vld [vmem:[#allocation2 + $0x35f0] sm:$0xff]
    %v1927 = vld [vmem:[#allocation2 + $0x35f8] sm:$0xff]
    %v1928 = vld [vmem:[#allocation2 + $0x3600] sm:$0xff]
    %v1929 = vld [vmem:[#allocation2 + $0x3608] sm:$0xff]
    %v1930 = vld [vmem:[#allocation2 + $0x3610] sm:$0xff]
    %v1931 = vld [vmem:[#allocation2 + $0x3618] sm:$0xff]
    %v1932 = vld [vmem:[#allocation2 + $0x3620] sm:$0xff]
    %v1933 = vld [vmem:[#allocation2 + $0x3628] sm:$0xff]
    %v1934 = vld [vmem:[#allocation2 + $0x3630] sm:$0xff]
    %v1935 = vld [vmem:[#allocation2 + $0x3638] sm:$0xff]
    %v1936 = vld [vmem:[#allocation2 + $0x3640] sm:$0xff]
    %v1937 = vld [vmem:[#allocation2 + $0x3648] sm:$0xff]
    %v1938 = vld [vmem:[#allocation2 + $0x3650] sm:$0xff]
    %v1939 = vld [vmem:[#allocation2 + $0x3658] sm:$0xff]
    %v1940 = vld [vmem:[#allocation2 + $0x3660] sm:$0xff]
    %v1941 = vld [vmem:[#allocation2 + $0x3668] sm:$0xff]
    %v1942 = vld [vmem:[#allocation2 + $0x3670] sm:$0xff]
    %v1943 = vld [vmem:[#allocation2 + $0x3678] sm:$0xff]
    %v1944 = vld [vmem:[#allocation2 + $0x3680] sm:$0xff]
    %v1945 = vld [vmem:[#allocation2 + $0x3688] sm:$0xff]
    %v1946 = vld [vmem:[#allocation2 + $0x3690] sm:$0xff]
    %v1947 = vld [vmem:[#allocation2 + $0x3698] sm:$0xff]
    %v1948 = vld [vmem:[#allocation2 + $0x36a0] sm:$0xff]
    %v1949 = vld [vmem:[#allocation2 + $0x36a8] sm:$0xff]
    %v1950 = vld [vmem:[#allocation2 + $0x36b0] sm:$0xff]
    %v1951 = vld [vmem:[#allocation2 + $0x36b8] sm:$0xff]
    %v1952 = vld [vmem:[#allocation2 + $0x36c0] sm:$0xff]
    %v1953 = vld [vmem:[#allocation2 + $0x36c8] sm:$0xff]
    %v1954 = vld [vmem:[#allocation2 + $0x36d0] sm:$0xff]
    %v1955 = vld [vmem:[#allocation2 + $0x36d8] sm:$0xff]
    %v1956 = vld [vmem:[#allocation2 + $0x36e0] sm:$0xff]
    %v1957 = vld [vmem:[#allocation2 + $0x36e8] sm:$0xff]
    %v1958 = vld [vmem:[#allocation2 + $0x36f0] sm:$0xff]
    %v1959 = vld [vmem:[#allocation2 + $0x36f8] sm:$0xff]
    %v1960 = vld [vmem:[#allocation2 + $0x3700] sm:$0xff]
    %v1961 = vld [vmem:[#allocation2 + $0x3708] sm:$0xff]
    %v1962 = vld [vmem:[#allocation2 + $0x3710] sm:$0xff]
    %v1963 = vld [vmem:[#allocation2 + $0x3718] sm:$0xff]
    %v1964 = vld [vmem:[#allocation2 + $0x3720] sm:$0xff]
    %v1965 = vld [vmem:[#allocation2 + $0x3728] sm:$0xff]
    %v1966 = vld [vmem:[#allocation2 + $0x3730] sm:$0xff]
    %v1967 = vld [vmem:[#allocation2 + $0x3738] sm:$0xff]
    %v1968 = vld [vmem:[#allocation2 + $0x3740] sm:$0xff]
    %v1969 = vld [vmem:[#allocation2 + $0x3748] sm:$0xff]
    %v1970 = vld [vmem:[#allocation2 + $0x3750] sm:$0xff]
    %v1971 = vld [vmem:[#allocation2 + $0x3758] sm:$0xff]
    %v1972 = vld [vmem:[#allocation2 + $0x3760] sm:$0xff]
    %v1973 = vld [vmem:[#allocation2 + $0x3768] sm:$0xff]
    %v1974 = vld [vmem:[#allocation2 + $0x3770] sm:$0xff]
    %v1975 = vld [vmem:[#allocation2 + $0x3778] sm:$0xff]
    %v1976 = vld [vmem:[#allocation2 + $0x3780] sm:$0xff]
    %v1977 = vld [vmem:[#allocation2 + $0x3788] sm:$0xff]
    %v1978 = vld [vmem:[#allocation2 + $0x3790] sm:$0xff]
    %v1979 = vld [vmem:[#allocation2 + $0x3798] sm:$0xff]
    %v1980 = vld [vmem:[#allocation2 + $0x37a0] sm:$0xff]
    %v1981 = vld [vmem:[#allocation2 + $0x37a8] sm:$0xff]
    %v1982 = vld [vmem:[#allocation2 + $0x37b0] sm:$0xff]
    %v1983 = vld [vmem:[#allocation2 + $0x37b8] sm:$0xff]
    %v1984 = vld [vmem:[#allocation2 + $0x37c0] sm:$0xff]
    %v1985 = vld [vmem:[#allocation2 + $0x37c8] sm:$0xff]
    %v1986 = vld [vmem:[#allocation2 + $0x37d0] sm:$0xff]
    %v1987 = vld [vmem:[#allocation2 + $0x37d8] sm:$0xff]
    %v1988 = vld [vmem:[#allocation2 + $0x37e0] sm:$0xff]
    %v1989 = vld [vmem:[#allocation2 + $0x37e8] sm:$0xff]
    %v1990 = vld [vmem:[#allocation2 + $0x37f0] sm:$0xff]
    %v1991 = vld [vmem:[#allocation2 + $0x37f8] sm:$0xff]
    %v1992 = vld [vmem:[#allocation2 + $0x3800] sm:$0xff]
    %v1993 = vld [vmem:[#allocation2 + $0x3808] sm:$0xff]
    %v1994 = vld [vmem:[#allocation2 + $0x3810] sm:$0xff]
    %v1995 = vld [vmem:[#allocation2 + $0x3818] sm:$0xff]
    %v1996 = vld [vmem:[#allocation2 + $0x3820] sm:$0xff]
    %v1997 = vld [vmem:[#allocation2 + $0x3828] sm:$0xff]
    %v1998 = vld [vmem:[#allocation2 + $0x3830] sm:$0xff]
    %v1999 = vld [vmem:[#allocation2 + $0x3838] sm:$0xff]
    %v2000 = vld [vmem:[#allocation2 + $0x3840] sm:$0xff]
    %v2001 = vld [vmem:[#allocation2 + $0x3848] sm:$0xff]
    %v2002 = vld [vmem:[#allocation2 + $0x3850] sm:$0xff]
    %v2003 = vld [vmem:[#allocation2 + $0x3858] sm:$0xff]
    %v2004 = vld [vmem:[#allocation2 + $0x3860] sm:$0xff]
    %v2005 = vld [vmem:[#allocation2 + $0x3868] sm:$0xff]
    %v2006 = vld [vmem:[#allocation2 + $0x3870] sm:$0xff]
    %v2007 = vld [vmem:[#allocation2 + $0x3878] sm:$0xff]
    %v2008 = vld [vmem:[#allocation2 + $0x3880] sm:$0xff]
    %v2009 = vld [vmem:[#allocation2 + $0x3888] sm:$0xff]
    %v2010 = vld [vmem:[#allocation2 + $0x3890] sm:$0xff]
    %v2011 = vld [vmem:[#allocation2 + $0x3898] sm:$0xff]
    %v2012 = vld [vmem:[#allocation2 + $0x38a0] sm:$0xff]
    %v2013 = vld [vmem:[#allocation2 + $0x38a8] sm:$0xff]
    %v2014 = vld [vmem:[#allocation2 + $0x38b0] sm:$0xff]
    %v2015 = vld [vmem:[#allocation2 + $0x38b8] sm:$0xff]
    %v2016 = vld [vmem:[#allocation2 + $0x38c0] sm:$0xff]
    %v2017 = vld [vmem:[#allocation2 + $0x38c8] sm:$0xff]
    %v2018 = vld [vmem:[#allocation2 + $0x38d0] sm:$0xff]
    %v2019 = vld [vmem:[#allocation2 + $0x38d8] sm:$0xff]
    %v2020 = vld [vmem:[#allocation2 + $0x38e0] sm:$0xff]
    %v2021 = vld [vmem:[#allocation2 + $0x38e8] sm:$0xff]
    %v2022 = vld [vmem:[#allocation2 + $0x38f0] sm:$0xff]
    %v2023 = vld [vmem:[#allocation2 + $0x38f8] sm:$0xff]
    %v2024 = vld [vmem:[#allocation2 + $0x3900] sm:$0xff]
    %v2025 = vld [vmem:[#allocation2 + $0x3908] sm:$0xff]
    %v2026 = vld [vmem:[#allocation2 + $0x3910] sm:$0xff]
    %v2027 = vld [vmem:[#allocation2 + $0x3918] sm:$0xff]
    %v2028 = vld [vmem:[#allocation2 + $0x3920] sm:$0xff]
    %v2029 = vld [vmem:[#allocation2 + $0x3928] sm:$0xff]
    %v2030 = vld [vmem:[#allocation2 + $0x3930] sm:$0xff]
    %v2031 = vld [vmem:[#allocation2 + $0x3938] sm:$0xff]
    %v2032 = vld [vmem:[#allocation2 + $0x3940] sm:$0xff]
    %v2033 = vld [vmem:[#allocation2 + $0x3948] sm:$0xff]
    %v2034 = vld [vmem:[#allocation2 + $0x3950] sm:$0xff]
    %v2035 = vld [vmem:[#allocation2 + $0x3958] sm:$0xff]
    %v2036 = vld [vmem:[#allocation2 + $0x3960] sm:$0xff]
    %v2037 = vld [vmem:[#allocation2 + $0x3968] sm:$0xff]
    %v2038 = vld [vmem:[#allocation2 + $0x3970] sm:$0xff]
    %v2039 = vld [vmem:[#allocation2 + $0x3978] sm:$0xff]
    %v2040 = vld [vmem:[#allocation2 + $0x3980] sm:$0xff]
    %v2041 = vld [vmem:[#allocation2 + $0x3988] sm:$0xff]
    %v2042 = vld [vmem:[#allocation2 + $0x3990] sm:$0xff]
    %v2043 = vld [vmem:[#allocation2 + $0x3998] sm:$0xff]
    %v2044 = vld [vmem:[#allocation2 + $0x39a0] sm:$0xff]
    %v2045 = vld [vmem:[#allocation2 + $0x39a8] sm:$0xff]
    %v2046 = vld [vmem:[#allocation2 + $0x39b0] sm:$0xff]
    %v2047 = vld [vmem:[#allocation2 + $0x39b8] sm:$0xff]
    %v2048 = vld [vmem:[#allocation2 + $0x39c0] sm:$0xff]
    %v2049 = vld [vmem:[#allocation2 + $0x39c8] sm:$0xff]
    %v2050 = vld [vmem:[#allocation2 + $0x39d0] sm:$0xff]
    %v2051 = vld [vmem:[#allocation2 + $0x39d8] sm:$0xff]
    %v2052 = vld [vmem:[#allocation2 + $0x39e0] sm:$0xff]
    %v2053 = vld [vmem:[#allocation2 + $0x39e8] sm:$0xff]
    %v2054 = vld [vmem:[#allocation2 + $0x39f0] sm:$0xff]
    %v2055 = vld [vmem:[#allocation2 + $0x39f8] sm:$0xff]
    %v2056 = vld [vmem:[#allocation2 + $0x3a00] sm:$0xff]
    %v2057 = vld [vmem:[#allocation2 + $0x3a08] sm:$0xff]
    %v2058 = vld [vmem:[#allocation2 + $0x3a10] sm:$0xff]
    %v2059 = vld [vmem:[#allocation2 + $0x3a18] sm:$0xff]
    %v2060 = vld [vmem:[#allocation2 + $0x3a20] sm:$0xff]
    %v2061 = vld [vmem:[#allocation2 + $0x3a28] sm:$0xff]
    %v2062 = vld [vmem:[#allocation2 + $0x3a30] sm:$0xff]
    %v2063 = vld [vmem:[#allocation2 + $0x3a38] sm:$0xff]
    %v2064 = vld [vmem:[#allocation2 + $0x3a40] sm:$0xff]
    %v2065 = vld [vmem:[#allocation2 + $0x3a48] sm:$0xff]
    %v2066 = vld [vmem:[#allocation2 + $0x3a50] sm:$0xff]
    %v2067 = vld [vmem:[#allocation2 + $0x3a58] sm:$0xff]
    %v2068 = vld [vmem:[#allocation2 + $0x3a60] sm:$0xff]
    %v2069 = vld [vmem:[#allocation2 + $0x3a68] sm:$0xff]
    %v2070 = vld [vmem:[#allocation2 + $0x3a70] sm:$0xff]
    %v2071 = vld [vmem:[#allocation2 + $0x3a78] sm:$0xff]
    %v2072 = vld [vmem:[#allocation2 + $0x3a80] sm:$0xff]
    %v2073 = vld [vmem:[#allocation2 + $0x3a88] sm:$0xff]
    %v2074 = vld [vmem:[#allocation2 + $0x3a90] sm:$0xff]
    %v2075 = vld [vmem:[#allocation2 + $0x3a98] sm:$0xff]
    %v2076 = vld [vmem:[#allocation2 + $0x3aa0] sm:$0xff]
    %v2077 = vld [vmem:[#allocation2 + $0x3aa8] sm:$0xff]
    %v2078 = vld [vmem:[#allocation2 + $0x3ab0] sm:$0xff]
    %v2079 = vld [vmem:[#allocation2 + $0x3ab8] sm:$0xff]
    %v2080 = vld [vmem:[#allocation2 + $0x3ac0] sm:$0xff]
    %v2081 = vld [vmem:[#allocation2 + $0x3ac8] sm:$0xff]
    %v2082 = vld [vmem:[#allocation2 + $0x3ad0] sm:$0xff]
    %v2083 = vld [vmem:[#allocation2 + $0x3ad8] sm:$0xff]
    %v2084 = vld [vmem:[#allocation2 + $0x3ae0] sm:$0xff]
    %v2085 = vld [vmem:[#allocation2 + $0x3ae8] sm:$0xff]
    %v2086 = vld [vmem:[#allocation2 + $0x3af0] sm:$0xff]
    %v2087 = vld [vmem:[#allocation2 + $0x3af8] sm:$0xff]
    %v2088 = vld [vmem:[#allocation2 + $0x3b00] sm:$0xff]
    %v2089 = vld [vmem:[#allocation2 + $0x3b08] sm:$0xff]
    %v2090 = vld [vmem:[#allocation2 + $0x3b10] sm:$0xff]
    %v2091 = vld [vmem:[#allocation2 + $0x3b18] sm:$0xff]
    %v2092 = vld [vmem:[#allocation2 + $0x3b20] sm:$0xff]
    %v2093 = vld [vmem:[#allocation2 + $0x3b28] sm:$0xff]
    %v2094 = vld [vmem:[#allocation2 + $0x3b30] sm:$0xff]
    %v2095 = vld [vmem:[#allocation2 + $0x3b38] sm:$0xff]
    %v2096 = vld [vmem:[#allocation2 + $0x3b40] sm:$0xff]
    %v2097 = vld [vmem:[#allocation2 + $0x3b48] sm:$0xff]
    %v2098 = vld [vmem:[#allocation2 + $0x3b50] sm:$0xff]
    %v2099 = vld [vmem:[#allocation2 + $0x3b58] sm:$0xff]
    %v2100 = vld [vmem:[#allocation2 + $0x3b60] sm:$0xff]
    %v2101 = vld [vmem:[#allocation2 + $0x3b68] sm:$0xff]
    %v2102 = vld [vmem:[#allocation2 + $0x3b70] sm:$0xff]
    %v2103 = vld [vmem:[#allocation2 + $0x3b78] sm:$0xff]
    %v2104 = vld [vmem:[#allocation2 + $0x3b80] sm:$0xff]
    %v2105 = vld [vmem:[#allocation2 + $0x3b88] sm:$0xff]
    %v2106 = vld [vmem:[#allocation2 + $0x3b90] sm:$0xff]
    %v2107 = vld [vmem:[#allocation2 + $0x3b98] sm:$0xff]
    %v2108 = vld [vmem:[#allocation2 + $0x3ba0] sm:$0xff]
    %v2109 = vld [vmem:[#allocation2 + $0x3ba8] sm:$0xff]
    %v2110 = vld [vmem:[#allocation2 + $0x3bb0] sm:$0xff]
    %v2111 = vld [vmem:[#allocation2 + $0x3bb8] sm:$0xff]
    %v2112 = vld [vmem:[#allocation2 + $0x3bc0] sm:$0xff]
    %v2113 = vld [vmem:[#allocation2 + $0x3bc8] sm:$0xff]
    %v2114 = vld [vmem:[#allocation2 + $0x3bd0] sm:$0xff]
    %v2115 = vld [vmem:[#allocation2 + $0x3bd8] sm:$0xff]
    %v2116 = vld [vmem:[#allocation2 + $0x3be0] sm:$0xff]
    %v2117 = vld [vmem:[#allocation2 + $0x3be8] sm:$0xff]
    %v2118 = vld [vmem:[#allocation2 + $0x3bf0] sm:$0xff]
    %v2119 = vld [vmem:[#allocation2 + $0x3bf8] sm:$0xff]
    %v2120 = vld [vmem:[#allocation2 + $0x3c00] sm:$0xff]
    %v2121 = vld [vmem:[#allocation2 + $0x3c08] sm:$0xff]
    %v2122 = vld [vmem:[#allocation2 + $0x3c10] sm:$0xff]
    %v2123 = vld [vmem:[#allocation2 + $0x3c18] sm:$0xff]
    %v2124 = vld [vmem:[#allocation2 + $0x3c20] sm:$0xff]
    %v2125 = vld [vmem:[#allocation2 + $0x3c28] sm:$0xff]
    %v2126 = vld [vmem:[#allocation2 + $0x3c30] sm:$0xff]
    %v2127 = vld [vmem:[#allocation2 + $0x3c38] sm:$0xff]
    %v2128 = vld [vmem:[#allocation2 + $0x3c40] sm:$0xff]
    %v2129 = vld [vmem:[#allocation2 + $0x3c48] sm:$0xff]
    %v2130 = vld [vmem:[#allocation2 + $0x3c50] sm:$0xff]
    %v2131 = vld [vmem:[#allocation2 + $0x3c58] sm:$0xff]
    %v2132 = vld [vmem:[#allocation2 + $0x3c60] sm:$0xff]
    %v2133 = vld [vmem:[#allocation2 + $0x3c68] sm:$0xff]
    %v2134 = vld [vmem:[#allocation2 + $0x3c70] sm:$0xff]
    %v2135 = vld [vmem:[#allocation2 + $0x3c78] sm:$0xff]
    %v2136 = vld [vmem:[#allocation2 + $0x3c80] sm:$0xff]
    %v2137 = vld [vmem:[#allocation2 + $0x3c88] sm:$0xff]
    %v2138 = vld [vmem:[#allocation2 + $0x3c90] sm:$0xff]
    %v2139 = vld [vmem:[#allocation2 + $0x3c98] sm:$0xff]
    %v2140 = vld [vmem:[#allocation2 + $0x3ca0] sm:$0xff]
    %v2141 = vld [vmem:[#allocation2 + $0x3ca8] sm:$0xff]
    %v2142 = vld [vmem:[#allocation2 + $0x3cb0] sm:$0xff]
    %v2143 = vld [vmem:[#allocation2 + $0x3cb8] sm:$0xff]
    %v2144 = vld [vmem:[#allocation2 + $0x3cc0] sm:$0xff]
    %v2145 = vld [vmem:[#allocation2 + $0x3cc8] sm:$0xff]
    %v2146 = vld [vmem:[#allocation2 + $0x3cd0] sm:$0xff]
    %v2147 = vld [vmem:[#allocation2 + $0x3cd8] sm:$0xff]
    %v2148 = vld [vmem:[#allocation2 + $0x3ce0] sm:$0xff]
    %v2149 = vld [vmem:[#allocation2 + $0x3ce8] sm:$0xff]
    %v2150 = vld [vmem:[#allocation2 + $0x3cf0] sm:$0xff]
    %v2151 = vld [vmem:[#allocation2 + $0x3cf8] sm:$0xff]
    %v2152 = vld [vmem:[#allocation2 + $0x3d00] sm:$0xff]
    %v2153 = vld [vmem:[#allocation2 + $0x3d08] sm:$0xff]
    %v2154 = vld [vmem:[#allocation2 + $0x3d10] sm:$0xff]
    %v2155 = vld [vmem:[#allocation2 + $0x3d18] sm:$0xff]
    %v2156 = vld [vmem:[#allocation2 + $0x3d20] sm:$0xff]
    %v2157 = vld [vmem:[#allocation2 + $0x3d28] sm:$0xff]
    %v2158 = vld [vmem:[#allocation2 + $0x3d30] sm:$0xff]
    %v2159 = vld [vmem:[#allocation2 + $0x3d38] sm:$0xff]
    %v2160 = vld [vmem:[#allocation2 + $0x3d40] sm:$0xff]
    %v2161 = vld [vmem:[#allocation2 + $0x3d48] sm:$0xff]
    %v2162 = vld [vmem:[#allocation2 + $0x3d50] sm:$0xff]
    %v2163 = vld [vmem:[#allocation2 + $0x3d58] sm:$0xff]
    %v2164 = vld [vmem:[#allocation2 + $0x3d60] sm:$0xff]
    %v2165 = vld [vmem:[#allocation2 + $0x3d68] sm:$0xff]
    %v2166 = vld [vmem:[#allocation2 + $0x3d70] sm:$0xff]
    %v2167 = vld [vmem:[#allocation2 + $0x3d78] sm:$0xff]
    %v2168 = vld [vmem:[#allocation2 + $0x3d80] sm:$0xff]
    %v2169 = vld [vmem:[#allocation2 + $0x3d88] sm:$0xff]
    %v2170 = vld [vmem:[#allocation2 + $0x3d90] sm:$0xff]
    %v2171 = vld [vmem:[#allocation2 + $0x3d98] sm:$0xff]
    %v2172 = vld [vmem:[#allocation2 + $0x3da0] sm:$0xff]
    %v2173 = vld [vmem:[#allocation2 + $0x3da8] sm:$0xff]
    %v2174 = vld [vmem:[#allocation2 + $0x3db0] sm:$0xff]
    %v2175 = vld [vmem:[#allocation2 + $0x3db8] sm:$0xff]
    %v2176 = vld [vmem:[#allocation2 + $0x3dc0] sm:$0xff]
    %v2177 = vld [vmem:[#allocation2 + $0x3dc8] sm:$0xff]
    %v2178 = vld [vmem:[#allocation2 + $0x3dd0] sm:$0xff]
    %v2179 = vld [vmem:[#allocation2 + $0x3dd8] sm:$0xff]
    %v2180 = vld [vmem:[#allocation2 + $0x3de0] sm:$0xff]
    %v2181 = vld [vmem:[#allocation2 + $0x3de8] sm:$0xff]
    %v2182 = vld [vmem:[#allocation2 + $0x3df0] sm:$0xff]
    %v2183 = vld [vmem:[#allocation2 + $0x3df8] sm:$0xff]
    %v2184 = vld [vmem:[#allocation2 + $0x3e00] sm:$0xff]
    %v2185 = vld [vmem:[#allocation2 + $0x3e08] sm:$0xff]
    %v2186 = vld [vmem:[#allocation2 + $0x3e10] sm:$0xff]
    %v2187 = vld [vmem:[#allocation2 + $0x3e18] sm:$0xff]
    %v2188 = vld [vmem:[#allocation2 + $0x3e20] sm:$0xff]
    %v2189 = vld [vmem:[#allocation2 + $0x3e28] sm:$0xff]
    %v2190 = vld [vmem:[#allocation2 + $0x3e30] sm:$0xff]
    %v2191 = vld [vmem:[#allocation2 + $0x3e38] sm:$0xff]
    %v2192 = vld [vmem:[#allocation2 + $0x3e40] sm:$0xff]
    %v2193 = vld [vmem:[#allocation2 + $0x3e48] sm:$0xff]
    %v2194 = vld [vmem:[#allocation2 + $0x3e50] sm:$0xff]
    %v2195 = vld [vmem:[#allocation2 + $0x3e58] sm:$0xff]
    %v2196 = vld [vmem:[#allocation2 + $0x3e60] sm:$0xff]
    %v2197 = vld [vmem:[#allocation2 + $0x3e68] sm:$0xff]
    %v2198 = vld [vmem:[#allocation2 + $0x3e70] sm:$0xff]
    %v2199 = vld [vmem:[#allocation2 + $0x3e78] sm:$0xff]
    %v2200 = vld [vmem:[#allocation2 + $0x3e80] sm:$0xff]
    %v2201 = vld [vmem:[#allocation2 + $0x3e88] sm:$0xff]
    %v2202 = vld [vmem:[#allocation2 + $0x3e90] sm:$0xff]
    %v2203 = vld [vmem:[#allocation2 + $0x3e98] sm:$0xff]
    %v2204 = vld [vmem:[#allocation2 + $0x3ea0] sm:$0xff]
    %v2205 = vld [vmem:[#allocation2 + $0x3ea8] sm:$0xff]
    %v2206 = vld [vmem:[#allocation2 + $0x3eb0] sm:$0xff]
    %v2207 = vld [vmem:[#allocation2 + $0x3eb8] sm:$0xff]
    %v2208 = vld [vmem:[#allocation2 + $0x3ec0] sm:$0xff]
    %v2209 = vld [vmem:[#allocation2 + $0x3ec8] sm:$0xff]
    %v2210 = vld [vmem:[#allocation2 + $0x3ed0] sm:$0xff]
    %v2211 = vld [vmem:[#allocation2 + $0x3ed8] sm:$0xff]
    %v2212 = vld [vmem:[#allocation2 + $0x3ee0] sm:$0xff]
    %v2213 = vld [vmem:[#allocation2 + $0x3ee8] sm:$0xff]
    %v2214 = vld [vmem:[#allocation2 + $0x3ef0] sm:$0xff]
    %v2215 = vld [vmem:[#allocation2 + $0x3ef8] sm:$0xff]
    %v2216 = vld [vmem:[#allocation2 + $0x3f00] sm:$0xff]
    %v2217 = vld [vmem:[#allocation2 + $0x3f08] sm:$0xff]
    %v2218 = vld [vmem:[#allocation2 + $0x3f10] sm:$0xff]
    %v2219 = vld [vmem:[#allocation2 + $0x3f18] sm:$0xff]
    %v2220 = vld [vmem:[#allocation2 + $0x3f20] sm:$0xff]
    %v2221 = vld [vmem:[#allocation2 + $0x3f28] sm:$0xff]
    %v2222 = vld [vmem:[#allocation2 + $0x3f30] sm:$0xff]
    %v2223 = vld [vmem:[#allocation2 + $0x3f38] sm:$0xff]
    %v2224 = vld [vmem:[#allocation2 + $0x3f40] sm:$0xff]
    %v2225 = vld [vmem:[#allocation2 + $0x3f48] sm:$0xff]
    %v2226 = vld [vmem:[#allocation2 + $0x3f50] sm:$0xff]
    %v2227 = vld [vmem:[#allocation2 + $0x3f58] sm:$0xff]
    %v2228 = vld [vmem:[#allocation2 + $0x3f60] sm:$0xff]
    %v2229 = vld [vmem:[#allocation2 + $0x3f68] sm:$0xff]
    %v2230 = vld [vmem:[#allocation2 + $0x3f70] sm:$0xff]
    %v2231 = vld [vmem:[#allocation2 + $0x3f78] sm:$0xff]
    %v2232 = vld [vmem:[#allocation2 + $0x3f80] sm:$0xff]
    %v2233 = vld [vmem:[#allocation2 + $0x3f88] sm:$0xff]
    %v2234 = vld [vmem:[#allocation2 + $0x3f90] sm:$0xff]
    %v2235 = vld [vmem:[#allocation2 + $0x3f98] sm:$0xff]
    %v2236 = vld [vmem:[#allocation2 + $0x3fa0] sm:$0xff]
    %v2237 = vld [vmem:[#allocation2 + $0x3fa8] sm:$0xff]
    %v2238 = vld [vmem:[#allocation2 + $0x3fb0] sm:$0xff]
    %v2239 = vld [vmem:[#allocation2 + $0x3fb8] sm:$0xff]
    %v2240 = vld [vmem:[#allocation2 + $0x3fc0] sm:$0xff]
    %v2241 = vld [vmem:[#allocation2 + $0x3fc8] sm:$0xff]
    %v2242 = vld [vmem:[#allocation2 + $0x3fd0] sm:$0xff]
    %v2243 = vld [vmem:[#allocation2 + $0x3fd8] sm:$0xff]
    %v2244 = vld [vmem:[#allocation2 + $0x3fe0] sm:$0xff]
    %v2245 = vld [vmem:[#allocation2 + $0x3fe8] sm:$0xff]
    %v2246 = vld [vmem:[#allocation2 + $0x3ff0] sm:$0xff]
    %v2247 = vld [vmem:[#allocation2 + $0x3ff8] sm:$0xff]
    %v2248 = vld [vmem:[#allocation4] sm:$0xf]
    %v2250 = vlaneseq
    %v2251 = vshrl.u32 %v2250, 7
    %v2252 = vsub.s32 0, %v2251
    %v2253 = vrot.slane %v2248, %v2252
    %v2254 = vlaneseq
    %v2255 = vshrl.u32 %v2254, 7
    %v2256 = vsub.s32 1, %v2255
    %v2257 = vrot.slane %v2248, %v2256
    %v2258 = vlaneseq
    %v2259 = vshrl.u32 %v2258, 7
    %v2260 = vsub.s32 2, %v2259
    %v2261 = vrot.slane %v2248, %v2260
    %v2262 = vlaneseq
    %v2263 = vshrl.u32 %v2262, 7
    %v2264 = vsub.s32 3, %v2263
    %v2265 = vrot.slane %v2248, %v2264
    %v4318 = vunpack.c.l.b16 %v200
    %v4319 = vunpack.c.h.b16 %v200
    %v4320 = vunpack.c.l.b16 %v201
    %v4321 = vunpack.c.h.b16 %v201
    %v4322 = vunpack.c.l.b16 %v202
    %v4323 = vunpack.c.h.b16 %v202
    %v4324 = vunpack.c.l.b16 %v203
    %v4325 = vunpack.c.h.b16 %v203
    %v4326 = vunpack.c.l.b16 %v204
    %v4327 = vunpack.c.h.b16 %v204
    %v4328 = vunpack.c.l.b16 %v205
    %v4329 = vunpack.c.h.b16 %v205
    %v4330 = vunpack.c.l.b16 %v206
    %v4331 = vunpack.c.h.b16 %v206
    %v4332 = vunpack.c.l.b16 %v207
    %v4333 = vunpack.c.h.b16 %v207
    %v4334 = vunpack.c.l.b16 %v208
    %v4335 = vunpack.c.h.b16 %v208
    %v4336 = vunpack.c.l.b16 %v209
    %v4337 = vunpack.c.h.b16 %v209
    %v4338 = vunpack.c.l.b16 %v210
    %v4339 = vunpack.c.h.b16 %v210
    %v4340 = vunpack.c.l.b16 %v211
    %v4341 = vunpack.c.h.b16 %v211
    %v4342 = vunpack.c.l.b16 %v212
    %v4343 = vunpack.c.h.b16 %v212
    %v4344 = vunpack.c.l.b16 %v213
    %v4345 = vunpack.c.h.b16 %v213
    %v4346 = vunpack.c.l.b16 %v214
    %v4347 = vunpack.c.h.b16 %v214
    %v4348 = vunpack.c.l.b16 %v215
    %v4349 = vunpack.c.h.b16 %v215
    %v4350 = vunpack.c.l.b16 %v216
    %v4351 = vunpack.c.h.b16 %v216
    %v4352 = vunpack.c.l.b16 %v217
    %v4353 = vunpack.c.h.b16 %v217
    %v4354 = vunpack.c.l.b16 %v218
    %v4355 = vunpack.c.h.b16 %v218
    %v4356 = vunpack.c.l.b16 %v219
    %v4357 = vunpack.c.h.b16 %v219
    %v4358 = vunpack.c.l.b16 %v220
    %v4359 = vunpack.c.h.b16 %v220
    %v4360 = vunpack.c.l.b16 %v221
    %v4361 = vunpack.c.h.b16 %v221
    %v4362 = vunpack.c.l.b16 %v222
    %v4363 = vunpack.c.h.b16 %v222
    %v4364 = vunpack.c.l.b16 %v223
    %v4365 = vunpack.c.h.b16 %v223
    %v4366 = vunpack.c.l.b16 %v224
    %v4367 = vunpack.c.h.b16 %v224
    %v4368 = vunpack.c.l.b16 %v225
    %v4369 = vunpack.c.h.b16 %v225
    %v4370 = vunpack.c.l.b16 %v226
    %v4371 = vunpack.c.h.b16 %v226
    %v4372 = vunpack.c.l.b16 %v227
    %v4373 = vunpack.c.h.b16 %v227
    %v4374 = vunpack.c.l.b16 %v228
    %v4375 = vunpack.c.h.b16 %v228
    %v4376 = vunpack.c.l.b16 %v229
    %v4377 = vunpack.c.h.b16 %v229
    %v4378 = vunpack.c.l.b16 %v230
    %v4379 = vunpack.c.h.b16 %v230
    %v4380 = vunpack.c.l.b16 %v231
    %v4381 = vunpack.c.h.b16 %v231
    %v4382 = vunpack.c.l.b16 %v232
    %v4383 = vunpack.c.h.b16 %v232
    %v4384 = vunpack.c.l.b16 %v233
    %v4385 = vunpack.c.h.b16 %v233
    %v4386 = vunpack.c.l.b16 %v234
    %v4387 = vunpack.c.h.b16 %v234
    %v4388 = vunpack.c.l.b16 %v235
    %v4389 = vunpack.c.h.b16 %v235
    %v4390 = vunpack.c.l.b16 %v236
    %v4391 = vunpack.c.h.b16 %v236
    %v4392 = vunpack.c.l.b16 %v237
    %v4393 = vunpack.c.h.b16 %v237
    %v4394 = vunpack.c.l.b16 %v238
    %v4395 = vunpack.c.h.b16 %v238
    %v4396 = vunpack.c.l.b16 %v239
    %v4397 = vunpack.c.h.b16 %v239
    %v4398 = vunpack.c.l.b16 %v240
    %v4399 = vunpack.c.h.b16 %v240
    %v4400 = vunpack.c.l.b16 %v241
    %v4401 = vunpack.c.h.b16 %v241
    %v4402 = vunpack.c.l.b16 %v242
    %v4403 = vunpack.c.h.b16 %v242
    %v4404 = vunpack.c.l.b16 %v243
    %v4405 = vunpack.c.h.b16 %v243
    %v4406 = vunpack.c.l.b16 %v244
    %v4407 = vunpack.c.h.b16 %v244
    %v4408 = vunpack.c.l.b16 %v245
    %v4409 = vunpack.c.h.b16 %v245
    %v4410 = vunpack.c.l.b16 %v246
    %v4411 = vunpack.c.h.b16 %v246
    %v4412 = vunpack.c.l.b16 %v247
    %v4413 = vunpack.c.h.b16 %v247
    %v4414 = vunpack.c.l.b16 %v248
    %v4415 = vunpack.c.h.b16 %v248
    %v4416 = vunpack.c.l.b16 %v249
    %v4417 = vunpack.c.h.b16 %v249
    %v4418 = vunpack.c.l.b16 %v250
    %v4419 = vunpack.c.h.b16 %v250
    %v4420 = vunpack.c.l.b16 %v251
    %v4421 = vunpack.c.h.b16 %v251
    %v4422 = vunpack.c.l.b16 %v252
    %v4423 = vunpack.c.h.b16 %v252
    %v4424 = vunpack.c.l.b16 %v253
    %v4425 = vunpack.c.h.b16 %v253
    %v4426 = vunpack.c.l.b16 %v254
    %v4427 = vunpack.c.h.b16 %v254
    %v4428 = vunpack.c.l.b16 %v255
    %v4429 = vunpack.c.h.b16 %v255
    %v4430 = vunpack.c.l.b16 %v256
    %v4431 = vunpack.c.h.b16 %v256
    %v4432 = vunpack.c.l.b16 %v257
    %v4433 = vunpack.c.h.b16 %v257
    %v4434 = vunpack.c.l.b16 %v258
    %v4435 = vunpack.c.h.b16 %v258
    %v4436 = vunpack.c.l.b16 %v259
    %v4437 = vunpack.c.h.b16 %v259
    %v4438 = vunpack.c.l.b16 %v260
    %v4439 = vunpack.c.h.b16 %v260
    %v4440 = vunpack.c.l.b16 %v261
    %v4441 = vunpack.c.h.b16 %v261
    %v4442 = vunpack.c.l.b16 %v262
    %v4443 = vunpack.c.h.b16 %v262
    %v4444 = vunpack.c.l.b16 %v263
    %v4445 = vunpack.c.h.b16 %v263
    %v4446 = vunpack.c.l.b16 %v264
    %v4447 = vunpack.c.h.b16 %v264
    %v4448 = vunpack.c.l.b16 %v265
    %v4449 = vunpack.c.h.b16 %v265
    %v4450 = vunpack.c.l.b16 %v266
    %v4451 = vunpack.c.h.b16 %v266
    %v4452 = vunpack.c.l.b16 %v267
    %v4453 = vunpack.c.h.b16 %v267
    %v4454 = vunpack.c.l.b16 %v268
    %v4455 = vunpack.c.h.b16 %v268
    %v4456 = vunpack.c.l.b16 %v269
    %v4457 = vunpack.c.h.b16 %v269
    %v4458 = vunpack.c.l.b16 %v270
    %v4459 = vunpack.c.h.b16 %v270
    %v4460 = vunpack.c.l.b16 %v271
    %v4461 = vunpack.c.h.b16 %v271
    %v4462 = vunpack.c.l.b16 %v272
    %v4463 = vunpack.c.h.b16 %v272
    %v4464 = vunpack.c.l.b16 %v273
    %v4465 = vunpack.c.h.b16 %v273
    %v4466 = vunpack.c.l.b16 %v274
    %v4467 = vunpack.c.h.b16 %v274
    %v4468 = vunpack.c.l.b16 %v275
    %v4469 = vunpack.c.h.b16 %v275
    %v4470 = vunpack.c.l.b16 %v276
    %v4471 = vunpack.c.h.b16 %v276
    %v4472 = vunpack.c.l.b16 %v277
    %v4473 = vunpack.c.h.b16 %v277
    %v4474 = vunpack.c.l.b16 %v278
    %v4475 = vunpack.c.h.b16 %v278
    %v4476 = vunpack.c.l.b16 %v279
    %v4477 = vunpack.c.h.b16 %v279
    %v4478 = vunpack.c.l.b16 %v280
    %v4479 = vunpack.c.h.b16 %v280
    %v4480 = vunpack.c.l.b16 %v281
    %v4481 = vunpack.c.h.b16 %v281
    %v4482 = vunpack.c.l.b16 %v282
    %v4483 = vunpack.c.h.b16 %v282
    %v4484 = vunpack.c.l.b16 %v283
    %v4485 = vunpack.c.h.b16 %v283
    %v4486 = vunpack.c.l.b16 %v284
    %v4487 = vunpack.c.h.b16 %v284
    %v4488 = vunpack.c.l.b16 %v285
    %v4489 = vunpack.c.h.b16 %v285
    %v4490 = vunpack.c.l.b16 %v286
    %v4491 = vunpack.c.h.b16 %v286
    %v4492 = vunpack.c.l.b16 %v287
    %v4493 = vunpack.c.h.b16 %v287
    %v4494 = vunpack.c.l.b16 %v288
    %v4495 = vunpack.c.h.b16 %v288
    %v4496 = vunpack.c.l.b16 %v289
    %v4497 = vunpack.c.h.b16 %v289
    %v4498 = vunpack.c.l.b16 %v290
    %v4499 = vunpack.c.h.b16 %v290
    %v4500 = vunpack.c.l.b16 %v291
    %v4501 = vunpack.c.h.b16 %v291
    %v4502 = vunpack.c.l.b16 %v292
    %v4503 = vunpack.c.h.b16 %v292
    %v4504 = vunpack.c.l.b16 %v293
    %v4505 = vunpack.c.h.b16 %v293
    %v4506 = vunpack.c.l.b16 %v294
    %v4507 = vunpack.c.h.b16 %v294
    %v4508 = vunpack.c.l.b16 %v295
    %v4509 = vunpack.c.h.b16 %v295
    %v4510 = vunpack.c.l.b16 %v296
    %v4511 = vunpack.c.h.b16 %v296
    %v4512 = vunpack.c.l.b16 %v297
    %v4513 = vunpack.c.h.b16 %v297
    %v4514 = vunpack.c.l.b16 %v298
    %v4515 = vunpack.c.h.b16 %v298
    %v4516 = vunpack.c.l.b16 %v299
    %v4517 = vunpack.c.h.b16 %v299
    %v4518 = vunpack.c.l.b16 %v300
    %v4519 = vunpack.c.h.b16 %v300
    %v4520 = vunpack.c.l.b16 %v301
    %v4521 = vunpack.c.h.b16 %v301
    %v4522 = vunpack.c.l.b16 %v302
    %v4523 = vunpack.c.h.b16 %v302
    %v4524 = vunpack.c.l.b16 %v303
    %v4525 = vunpack.c.h.b16 %v303
    %v4526 = vunpack.c.l.b16 %v304
    %v4527 = vunpack.c.h.b16 %v304
    %v4528 = vunpack.c.l.b16 %v305
    %v4529 = vunpack.c.h.b16 %v305
    %v4530 = vunpack.c.l.b16 %v306
    %v4531 = vunpack.c.h.b16 %v306
    %v4532 = vunpack.c.l.b16 %v307
    %v4533 = vunpack.c.h.b16 %v307
    %v4534 = vunpack.c.l.b16 %v308
    %v4535 = vunpack.c.h.b16 %v308
    %v4536 = vunpack.c.l.b16 %v309
    %v4537 = vunpack.c.h.b16 %v309
    %v4538 = vunpack.c.l.b16 %v310
    %v4539 = vunpack.c.h.b16 %v310
    %v4540 = vunpack.c.l.b16 %v311
    %v4541 = vunpack.c.h.b16 %v311
    %v4542 = vunpack.c.l.b16 %v312
    %v4543 = vunpack.c.h.b16 %v312
    %v4544 = vunpack.c.l.b16 %v313
    %v4545 = vunpack.c.h.b16 %v313
    %v4546 = vunpack.c.l.b16 %v314
    %v4547 = vunpack.c.h.b16 %v314
    %v4548 = vunpack.c.l.b16 %v315
    %v4549 = vunpack.c.h.b16 %v315
    %v4550 = vunpack.c.l.b16 %v316
    %v4551 = vunpack.c.h.b16 %v316
    %v4552 = vunpack.c.l.b16 %v317
    %v4553 = vunpack.c.h.b16 %v317
    %v4554 = vunpack.c.l.b16 %v318
    %v4555 = vunpack.c.h.b16 %v318
    %v4556 = vunpack.c.l.b16 %v319
    %v4557 = vunpack.c.h.b16 %v319
    %v4558 = vunpack.c.l.b16 %v320
    %v4559 = vunpack.c.h.b16 %v320
    %v4560 = vunpack.c.l.b16 %v321
    %v4561 = vunpack.c.h.b16 %v321
    %v4562 = vunpack.c.l.b16 %v322
    %v4563 = vunpack.c.h.b16 %v322
    %v4564 = vunpack.c.l.b16 %v323
    %v4565 = vunpack.c.h.b16 %v323
    %v4566 = vunpack.c.l.b16 %v324
    %v4567 = vunpack.c.h.b16 %v324
    %v4568 = vunpack.c.l.b16 %v325
    %v4569 = vunpack.c.h.b16 %v325
    %v4570 = vunpack.c.l.b16 %v326
    %v4571 = vunpack.c.h.b16 %v326
    %v4572 = vunpack.c.l.b16 %v327
    %v4573 = vunpack.c.h.b16 %v327
    %v4574 = vunpack.c.l.b16 %v328
    %v4575 = vunpack.c.h.b16 %v328
    %v4576 = vunpack.c.l.b16 %v329
    %v4577 = vunpack.c.h.b16 %v329
    %v4578 = vunpack.c.l.b16 %v330
    %v4579 = vunpack.c.h.b16 %v330
    %v4580 = vunpack.c.l.b16 %v331
    %v4581 = vunpack.c.h.b16 %v331
    %v4582 = vunpack.c.l.b16 %v332
    %v4583 = vunpack.c.h.b16 %v332
    %v4584 = vunpack.c.l.b16 %v333
    %v4585 = vunpack.c.h.b16 %v333
    %v4586 = vunpack.c.l.b16 %v334
    %v4587 = vunpack.c.h.b16 %v334
    %v4588 = vunpack.c.l.b16 %v335
    %v4589 = vunpack.c.h.b16 %v335
    %v4590 = vunpack.c.l.b16 %v336
    %v4591 = vunpack.c.h.b16 %v336
    %v4592 = vunpack.c.l.b16 %v337
    %v4593 = vunpack.c.h.b16 %v337
    %v4594 = vunpack.c.l.b16 %v338
    %v4595 = vunpack.c.h.b16 %v338
    %v4596 = vunpack.c.l.b16 %v339
    %v4597 = vunpack.c.h.b16 %v339
    %v4598 = vunpack.c.l.b16 %v340
    %v4599 = vunpack.c.h.b16 %v340
    %v4600 = vunpack.c.l.b16 %v341
    %v4601 = vunpack.c.h.b16 %v341
    %v4602 = vunpack.c.l.b16 %v342
    %v4603 = vunpack.c.h.b16 %v342
    %v4604 = vunpack.c.l.b16 %v343
    %v4605 = vunpack.c.h.b16 %v343
    %v4606 = vunpack.c.l.b16 %v344
    %v4607 = vunpack.c.h.b16 %v344
    %v4608 = vunpack.c.l.b16 %v345
    %v4609 = vunpack.c.h.b16 %v345
    %v4610 = vunpack.c.l.b16 %v346
    %v4611 = vunpack.c.h.b16 %v346
    %v4612 = vunpack.c.l.b16 %v347
    %v4613 = vunpack.c.h.b16 %v347
    %v4614 = vunpack.c.l.b16 %v348
    %v4615 = vunpack.c.h.b16 %v348
    %v4616 = vunpack.c.l.b16 %v349
    %v4617 = vunpack.c.h.b16 %v349
    %v4618 = vunpack.c.l.b16 %v350
    %v4619 = vunpack.c.h.b16 %v350
    %v4620 = vunpack.c.l.b16 %v351
    %v4621 = vunpack.c.h.b16 %v351
    %v4622 = vunpack.c.l.b16 %v352
    %v4623 = vunpack.c.h.b16 %v352
    %v4624 = vunpack.c.l.b16 %v353
    %v4625 = vunpack.c.h.b16 %v353
    %v4626 = vunpack.c.l.b16 %v354
    %v4627 = vunpack.c.h.b16 %v354
    %v4628 = vunpack.c.l.b16 %v355
    %v4629 = vunpack.c.h.b16 %v355
    %v4630 = vunpack.c.l.b16 %v356
    %v4631 = vunpack.c.h.b16 %v356
    %v4632 = vunpack.c.l.b16 %v357
    %v4633 = vunpack.c.h.b16 %v357
    %v4634 = vunpack.c.l.b16 %v358
    %v4635 = vunpack.c.h.b16 %v358
    %v4636 = vunpack.c.l.b16 %v359
    %v4637 = vunpack.c.h.b16 %v359
    %v4638 = vunpack.c.l.b16 %v360
    %v4639 = vunpack.c.h.b16 %v360
    %v4640 = vunpack.c.l.b16 %v361
    %v4641 = vunpack.c.h.b16 %v361
    %v4642 = vunpack.c.l.b16 %v362
    %v4643 = vunpack.c.h.b16 %v362
    %v4644 = vunpack.c.l.b16 %v363
    %v4645 = vunpack.c.h.b16 %v363
    %v4646 = vunpack.c.l.b16 %v364
    %v4647 = vunpack.c.h.b16 %v364
    %v4648 = vunpack.c.l.b16 %v365
    %v4649 = vunpack.c.h.b16 %v365
    %v4650 = vunpack.c.l.b16 %v366
    %v4651 = vunpack.c.h.b16 %v366
    %v4652 = vunpack.c.l.b16 %v367
    %v4653 = vunpack.c.h.b16 %v367
    %v4654 = vunpack.c.l.b16 %v368
    %v4655 = vunpack.c.h.b16 %v368
    %v4656 = vunpack.c.l.b16 %v369
    %v4657 = vunpack.c.h.b16 %v369
    %v4658 = vunpack.c.l.b16 %v370
    %v4659 = vunpack.c.h.b16 %v370
    %v4660 = vunpack.c.l.b16 %v371
    %v4661 = vunpack.c.h.b16 %v371
    %v4662 = vunpack.c.l.b16 %v372
    %v4663 = vunpack.c.h.b16 %v372
    %v4664 = vunpack.c.l.b16 %v373
    %v4665 = vunpack.c.h.b16 %v373
    %v4666 = vunpack.c.l.b16 %v374
    %v4667 = vunpack.c.h.b16 %v374
    %v4668 = vunpack.c.l.b16 %v375
    %v4669 = vunpack.c.h.b16 %v375
    %v4670 = vunpack.c.l.b16 %v376
    %v4671 = vunpack.c.h.b16 %v376
    %v4672 = vunpack.c.l.b16 %v377
    %v4673 = vunpack.c.h.b16 %v377
    %v4674 = vunpack.c.l.b16 %v378
    %v4675 = vunpack.c.h.b16 %v378
    %v4676 = vunpack.c.l.b16 %v379
    %v4677 = vunpack.c.h.b16 %v379
    %v4678 = vunpack.c.l.b16 %v380
    %v4679 = vunpack.c.h.b16 %v380
    %v4680 = vunpack.c.l.b16 %v381
    %v4681 = vunpack.c.h.b16 %v381
    %v4682 = vunpack.c.l.b16 %v382
    %v4683 = vunpack.c.h.b16 %v382
    %v4684 = vunpack.c.l.b16 %v383
    %v4685 = vunpack.c.h.b16 %v383
    %v4686 = vunpack.c.l.b16 %v384
    %v4687 = vunpack.c.h.b16 %v384
    %v4688 = vunpack.c.l.b16 %v385
    %v4689 = vunpack.c.h.b16 %v385
    %v4690 = vunpack.c.l.b16 %v386
    %v4691 = vunpack.c.h.b16 %v386
    %v4692 = vunpack.c.l.b16 %v387
    %v4693 = vunpack.c.h.b16 %v387
    %v4694 = vunpack.c.l.b16 %v388
    %v4695 = vunpack.c.h.b16 %v388
    %v4696 = vunpack.c.l.b16 %v389
    %v4697 = vunpack.c.h.b16 %v389
    %v4698 = vunpack.c.l.b16 %v390
    %v4699 = vunpack.c.h.b16 %v390
    %v4700 = vunpack.c.l.b16 %v391
    %v4701 = vunpack.c.h.b16 %v391
    %v4702 = vunpack.c.l.b16 %v392
    %v4703 = vunpack.c.h.b16 %v392
    %v4704 = vunpack.c.l.b16 %v393
    %v4705 = vunpack.c.h.b16 %v393
    %v4706 = vunpack.c.l.b16 %v394
    %v4707 = vunpack.c.h.b16 %v394
    %v4708 = vunpack.c.l.b16 %v395
    %v4709 = vunpack.c.h.b16 %v395
    %v4710 = vunpack.c.l.b16 %v396
    %v4711 = vunpack.c.h.b16 %v396
    %v4712 = vunpack.c.l.b16 %v397
    %v4713 = vunpack.c.h.b16 %v397
    %v4714 = vunpack.c.l.b16 %v398
    %v4715 = vunpack.c.h.b16 %v398
    %v4716 = vunpack.c.l.b16 %v399
    %v4717 = vunpack.c.h.b16 %v399
    %v4718 = vunpack.c.l.b16 %v400
    %v4719 = vunpack.c.h.b16 %v400
    %v4720 = vunpack.c.l.b16 %v401
    %v4721 = vunpack.c.h.b16 %v401
    %v4722 = vunpack.c.l.b16 %v402
    %v4723 = vunpack.c.h.b16 %v402
    %v4724 = vunpack.c.l.b16 %v403
    %v4725 = vunpack.c.h.b16 %v403
    %v4726 = vunpack.c.l.b16 %v404
    %v4727 = vunpack.c.h.b16 %v404
    %v4728 = vunpack.c.l.b16 %v405
    %v4729 = vunpack.c.h.b16 %v405
    %v4730 = vunpack.c.l.b16 %v406
    %v4731 = vunpack.c.h.b16 %v406
    %v4732 = vunpack.c.l.b16 %v407
    %v4733 = vunpack.c.h.b16 %v407
    %v4734 = vunpack.c.l.b16 %v408
    %v4735 = vunpack.c.h.b16 %v408
    %v4736 = vunpack.c.l.b16 %v409
    %v4737 = vunpack.c.h.b16 %v409
    %v4738 = vunpack.c.l.b16 %v410
    %v4739 = vunpack.c.h.b16 %v410
    %v4740 = vunpack.c.l.b16 %v411
    %v4741 = vunpack.c.h.b16 %v411
    %v4742 = vunpack.c.l.b16 %v412
    %v4743 = vunpack.c.h.b16 %v412
    %v4744 = vunpack.c.l.b16 %v413
    %v4745 = vunpack.c.h.b16 %v413
    %v4746 = vunpack.c.l.b16 %v414
    %v4747 = vunpack.c.h.b16 %v414
    %v4748 = vunpack.c.l.b16 %v415
    %v4749 = vunpack.c.h.b16 %v415
    %v4750 = vunpack.c.l.b16 %v416
    %v4751 = vunpack.c.h.b16 %v416
    %v4752 = vunpack.c.l.b16 %v417
    %v4753 = vunpack.c.h.b16 %v417
    %v4754 = vunpack.c.l.b16 %v418
    %v4755 = vunpack.c.h.b16 %v418
    %v4756 = vunpack.c.l.b16 %v419
    %v4757 = vunpack.c.h.b16 %v419
    %v4758 = vunpack.c.l.b16 %v420
    %v4759 = vunpack.c.h.b16 %v420
    %v4760 = vunpack.c.l.b16 %v421
    %v4761 = vunpack.c.h.b16 %v421
    %v4762 = vunpack.c.l.b16 %v422
    %v4763 = vunpack.c.h.b16 %v422
    %v4764 = vunpack.c.l.b16 %v423
    %v4765 = vunpack.c.h.b16 %v423
    %v4766 = vunpack.c.l.b16 %v424
    %v4767 = vunpack.c.h.b16 %v424
    %v4768 = vunpack.c.l.b16 %v425
    %v4769 = vunpack.c.h.b16 %v425
    %v4770 = vunpack.c.l.b16 %v426
    %v4771 = vunpack.c.h.b16 %v426
    %v4772 = vunpack.c.l.b16 %v427
    %v4773 = vunpack.c.h.b16 %v427
    %v4774 = vunpack.c.l.b16 %v428
    %v4775 = vunpack.c.h.b16 %v428
    %v4776 = vunpack.c.l.b16 %v429
    %v4777 = vunpack.c.h.b16 %v429
    %v4778 = vunpack.c.l.b16 %v430
    %v4779 = vunpack.c.h.b16 %v430
    %v4780 = vunpack.c.l.b16 %v431
    %v4781 = vunpack.c.h.b16 %v431
    %v4782 = vunpack.c.l.b16 %v432
    %v4783 = vunpack.c.h.b16 %v432
    %v4784 = vunpack.c.l.b16 %v433
    %v4785 = vunpack.c.h.b16 %v433
    %v4786 = vunpack.c.l.b16 %v434
    %v4787 = vunpack.c.h.b16 %v434
    %v4788 = vunpack.c.l.b16 %v435
    %v4789 = vunpack.c.h.b16 %v435
    %v4790 = vunpack.c.l.b16 %v436
    %v4791 = vunpack.c.h.b16 %v436
    %v4792 = vunpack.c.l.b16 %v437
    %v4793 = vunpack.c.h.b16 %v437
    %v4794 = vunpack.c.l.b16 %v438
    %v4795 = vunpack.c.h.b16 %v438
    %v4796 = vunpack.c.l.b16 %v439
    %v4797 = vunpack.c.h.b16 %v439
    %v4798 = vunpack.c.l.b16 %v440
    %v4799 = vunpack.c.h.b16 %v440
    %v4800 = vunpack.c.l.b16 %v441
    %v4801 = vunpack.c.h.b16 %v441
    %v4802 = vunpack.c.l.b16 %v442
    %v4803 = vunpack.c.h.b16 %v442
    %v4804 = vunpack.c.l.b16 %v443
    %v4805 = vunpack.c.h.b16 %v443
    %v4806 = vunpack.c.l.b16 %v444
    %v4807 = vunpack.c.h.b16 %v444
    %v4808 = vunpack.c.l.b16 %v445
    %v4809 = vunpack.c.h.b16 %v445
    %v4810 = vunpack.c.l.b16 %v446
    %v4811 = vunpack.c.h.b16 %v446
    %v4812 = vunpack.c.l.b16 %v447
    %v4813 = vunpack.c.h.b16 %v447
    %v4814 = vunpack.c.l.b16 %v448
    %v4815 = vunpack.c.h.b16 %v448
    %v4816 = vunpack.c.l.b16 %v449
    %v4817 = vunpack.c.h.b16 %v449
    %v4818 = vunpack.c.l.b16 %v450
    %v4819 = vunpack.c.h.b16 %v450
    %v4820 = vunpack.c.l.b16 %v451
    %v4821 = vunpack.c.h.b16 %v451
    %v4822 = vunpack.c.l.b16 %v452
    %v4823 = vunpack.c.h.b16 %v452
    %v4824 = vunpack.c.l.b16 %v453
    %v4825 = vunpack.c.h.b16 %v453
    %v4826 = vunpack.c.l.b16 %v454
    %v4827 = vunpack.c.h.b16 %v454
    %v4828 = vunpack.c.l.b16 %v455
    %v4829 = vunpack.c.h.b16 %v455
    %v4830 = vunpack.c.l.b16 %v456
    %v4831 = vunpack.c.h.b16 %v456
    %v4832 = vunpack.c.l.b16 %v457
    %v4833 = vunpack.c.h.b16 %v457
    %v4834 = vunpack.c.l.b16 %v458
    %v4835 = vunpack.c.h.b16 %v458
    %v4836 = vunpack.c.l.b16 %v459
    %v4837 = vunpack.c.h.b16 %v459
    %v4838 = vunpack.c.l.b16 %v460
    %v4839 = vunpack.c.h.b16 %v460
    %v4840 = vunpack.c.l.b16 %v461
    %v4841 = vunpack.c.h.b16 %v461
    %v4842 = vunpack.c.l.b16 %v462
    %v4843 = vunpack.c.h.b16 %v462
    %v4844 = vunpack.c.l.b16 %v463
    %v4845 = vunpack.c.h.b16 %v463
    %v4846 = vunpack.c.l.b16 %v464
    %v4847 = vunpack.c.h.b16 %v464
    %v4848 = vunpack.c.l.b16 %v465
    %v4849 = vunpack.c.h.b16 %v465
    %v4850 = vunpack.c.l.b16 %v466
    %v4851 = vunpack.c.h.b16 %v466
    %v4852 = vunpack.c.l.b16 %v467
    %v4853 = vunpack.c.h.b16 %v467
    %v4854 = vunpack.c.l.b16 %v468
    %v4855 = vunpack.c.h.b16 %v468
    %v4856 = vunpack.c.l.b16 %v469
    %v4857 = vunpack.c.h.b16 %v469
    %v4858 = vunpack.c.l.b16 %v470
    %v4859 = vunpack.c.h.b16 %v470
    %v4860 = vunpack.c.l.b16 %v471
    %v4861 = vunpack.c.h.b16 %v471
    %v4862 = vunpack.c.l.b16 %v472
    %v4863 = vunpack.c.h.b16 %v472
    %v4864 = vunpack.c.l.b16 %v473
    %v4865 = vunpack.c.h.b16 %v473
    %v4866 = vunpack.c.l.b16 %v474
    %v4867 = vunpack.c.h.b16 %v474
    %v4868 = vunpack.c.l.b16 %v475
    %v4869 = vunpack.c.h.b16 %v475
    %v4870 = vunpack.c.l.b16 %v476
    %v4871 = vunpack.c.h.b16 %v476
    %v4872 = vunpack.c.l.b16 %v477
    %v4873 = vunpack.c.h.b16 %v477
    %v4874 = vunpack.c.l.b16 %v478
    %v4875 = vunpack.c.h.b16 %v478
    %v4876 = vunpack.c.l.b16 %v479
    %v4877 = vunpack.c.h.b16 %v479
    %v4878 = vunpack.c.l.b16 %v480
    %v4879 = vunpack.c.h.b16 %v480
    %v4880 = vunpack.c.l.b16 %v481
    %v4881 = vunpack.c.h.b16 %v481
    %v4882 = vunpack.c.l.b16 %v482
    %v4883 = vunpack.c.h.b16 %v482
    %v4884 = vunpack.c.l.b16 %v483
    %v4885 = vunpack.c.h.b16 %v483
    %v4886 = vunpack.c.l.b16 %v484
    %v4887 = vunpack.c.h.b16 %v484
    %v4888 = vunpack.c.l.b16 %v485
    %v4889 = vunpack.c.h.b16 %v485
    %v4890 = vunpack.c.l.b16 %v486
    %v4891 = vunpack.c.h.b16 %v486
    %v4892 = vunpack.c.l.b16 %v487
    %v4893 = vunpack.c.h.b16 %v487
    %v4894 = vunpack.c.l.b16 %v488
    %v4895 = vunpack.c.h.b16 %v488
    %v4896 = vunpack.c.l.b16 %v489
    %v4897 = vunpack.c.h.b16 %v489
    %v4898 = vunpack.c.l.b16 %v490
    %v4899 = vunpack.c.h.b16 %v490
    %v4900 = vunpack.c.l.b16 %v491
    %v4901 = vunpack.c.h.b16 %v491
    %v4902 = vunpack.c.l.b16 %v492
    %v4903 = vunpack.c.h.b16 %v492
    %v4904 = vunpack.c.l.b16 %v493
    %v4905 = vunpack.c.h.b16 %v493
    %v4906 = vunpack.c.l.b16 %v494
    %v4907 = vunpack.c.h.b16 %v494
    %v4908 = vunpack.c.l.b16 %v495
    %v4909 = vunpack.c.h.b16 %v495
    %v4910 = vunpack.c.l.b16 %v496
    %v4911 = vunpack.c.h.b16 %v496
    %v4912 = vunpack.c.l.b16 %v497
    %v4913 = vunpack.c.h.b16 %v497
    %v4914 = vunpack.c.l.b16 %v498
    %v4915 = vunpack.c.h.b16 %v498
    %v4916 = vunpack.c.l.b16 %v499
    %v4917 = vunpack.c.h.b16 %v499
    %v4918 = vunpack.c.l.b16 %v500
    %v4919 = vunpack.c.h.b16 %v500
    %v4920 = vunpack.c.l.b16 %v501
    %v4921 = vunpack.c.h.b16 %v501
    %v4922 = vunpack.c.l.b16 %v502
    %v4923 = vunpack.c.h.b16 %v502
    %v4924 = vunpack.c.l.b16 %v503
    %v4925 = vunpack.c.h.b16 %v503
    %v4926 = vunpack.c.l.b16 %v504
    %v4927 = vunpack.c.h.b16 %v504
    %v4928 = vunpack.c.l.b16 %v505
    %v4929 = vunpack.c.h.b16 %v505
    %v4930 = vunpack.c.l.b16 %v506
    %v4931 = vunpack.c.h.b16 %v506
    %v4932 = vunpack.c.l.b16 %v507
    %v4933 = vunpack.c.h.b16 %v507
    %v4934 = vunpack.c.l.b16 %v508
    %v4935 = vunpack.c.h.b16 %v508
    %v4936 = vunpack.c.l.b16 %v509
    %v4937 = vunpack.c.h.b16 %v509
    %v4938 = vunpack.c.l.b16 %v510
    %v4939 = vunpack.c.h.b16 %v510
    %v4940 = vunpack.c.l.b16 %v511
    %v4941 = vunpack.c.h.b16 %v511
    %v4942 = vunpack.c.l.b16 %v512
    %v4943 = vunpack.c.h.b16 %v512
    %v4944 = vunpack.c.l.b16 %v513
    %v4945 = vunpack.c.h.b16 %v513
    %v4946 = vunpack.c.l.b16 %v514
    %v4947 = vunpack.c.h.b16 %v514
    %v4948 = vunpack.c.l.b16 %v515
    %v4949 = vunpack.c.h.b16 %v515
    %v4950 = vunpack.c.l.b16 %v516
    %v4951 = vunpack.c.h.b16 %v516
    %v4952 = vunpack.c.l.b16 %v517
    %v4953 = vunpack.c.h.b16 %v517
    %v4954 = vunpack.c.l.b16 %v518
    %v4955 = vunpack.c.h.b16 %v518
    %v4956 = vunpack.c.l.b16 %v519
    %v4957 = vunpack.c.h.b16 %v519
    %v4958 = vunpack.c.l.b16 %v520
    %v4959 = vunpack.c.h.b16 %v520
    %v4960 = vunpack.c.l.b16 %v521
    %v4961 = vunpack.c.h.b16 %v521
    %v4962 = vunpack.c.l.b16 %v522
    %v4963 = vunpack.c.h.b16 %v522
    %v4964 = vunpack.c.l.b16 %v523
    %v4965 = vunpack.c.h.b16 %v523
    %v4966 = vunpack.c.l.b16 %v524
    %v4967 = vunpack.c.h.b16 %v524
    %v4968 = vunpack.c.l.b16 %v525
    %v4969 = vunpack.c.h.b16 %v525
    %v4970 = vunpack.c.l.b16 %v526
    %v4971 = vunpack.c.h.b16 %v526
    %v4972 = vunpack.c.l.b16 %v527
    %v4973 = vunpack.c.h.b16 %v527
    %v4974 = vunpack.c.l.b16 %v528
    %v4975 = vunpack.c.h.b16 %v528
    %v4976 = vunpack.c.l.b16 %v529
    %v4977 = vunpack.c.h.b16 %v529
    %v4978 = vunpack.c.l.b16 %v530
    %v4979 = vunpack.c.h.b16 %v530
    %v4980 = vunpack.c.l.b16 %v531
    %v4981 = vunpack.c.h.b16 %v531
    %v4982 = vunpack.c.l.b16 %v532
    %v4983 = vunpack.c.h.b16 %v532
    %v4984 = vunpack.c.l.b16 %v533
    %v4985 = vunpack.c.h.b16 %v533
    %v4986 = vunpack.c.l.b16 %v534
    %v4987 = vunpack.c.h.b16 %v534
    %v4988 = vunpack.c.l.b16 %v535
    %v4989 = vunpack.c.h.b16 %v535
    %v4990 = vunpack.c.l.b16 %v536
    %v4991 = vunpack.c.h.b16 %v536
    %v4992 = vunpack.c.l.b16 %v537
    %v4993 = vunpack.c.h.b16 %v537
    %v4994 = vunpack.c.l.b16 %v538
    %v4995 = vunpack.c.h.b16 %v538
    %v4996 = vunpack.c.l.b16 %v539
    %v4997 = vunpack.c.h.b16 %v539
    %v4998 = vunpack.c.l.b16 %v540
    %v4999 = vunpack.c.h.b16 %v540
    %v5000 = vunpack.c.l.b16 %v541
    %v5001 = vunpack.c.h.b16 %v541
    %v5002 = vunpack.c.l.b16 %v542
    %v5003 = vunpack.c.h.b16 %v542
    %v5004 = vunpack.c.l.b16 %v543
    %v5005 = vunpack.c.h.b16 %v543
    %v5006 = vunpack.c.l.b16 %v544
    %v5007 = vunpack.c.h.b16 %v544
    %v5008 = vunpack.c.l.b16 %v545
    %v5009 = vunpack.c.h.b16 %v545
    %v5010 = vunpack.c.l.b16 %v546
    %v5011 = vunpack.c.h.b16 %v546
    %v5012 = vunpack.c.l.b16 %v547
    %v5013 = vunpack.c.h.b16 %v547
    %v5014 = vunpack.c.l.b16 %v548
    %v5015 = vunpack.c.h.b16 %v548
    %v5016 = vunpack.c.l.b16 %v549
    %v5017 = vunpack.c.h.b16 %v549
    %v5018 = vunpack.c.l.b16 %v550
    %v5019 = vunpack.c.h.b16 %v550
    %v5020 = vunpack.c.l.b16 %v551
    %v5021 = vunpack.c.h.b16 %v551
    %v5022 = vunpack.c.l.b16 %v552
    %v5023 = vunpack.c.h.b16 %v552
    %v5024 = vunpack.c.l.b16 %v553
    %v5025 = vunpack.c.h.b16 %v553
    %v5026 = vunpack.c.l.b16 %v554
    %v5027 = vunpack.c.h.b16 %v554
    %v5028 = vunpack.c.l.b16 %v555
    %v5029 = vunpack.c.h.b16 %v555
    %v5030 = vunpack.c.l.b16 %v556
    %v5031 = vunpack.c.h.b16 %v556
    %v5032 = vunpack.c.l.b16 %v557
    %v5033 = vunpack.c.h.b16 %v557
    %v5034 = vunpack.c.l.b16 %v558
    %v5035 = vunpack.c.h.b16 %v558
    %v5036 = vunpack.c.l.b16 %v559
    %v5037 = vunpack.c.h.b16 %v559
    %v5038 = vunpack.c.l.b16 %v560
    %v5039 = vunpack.c.h.b16 %v560
    %v5040 = vunpack.c.l.b16 %v561
    %v5041 = vunpack.c.h.b16 %v561
    %v5042 = vunpack.c.l.b16 %v562
    %v5043 = vunpack.c.h.b16 %v562
    %v5044 = vunpack.c.l.b16 %v563
    %v5045 = vunpack.c.h.b16 %v563
    %v5046 = vunpack.c.l.b16 %v564
    %v5047 = vunpack.c.h.b16 %v564
    %v5048 = vunpack.c.l.b16 %v565
    %v5049 = vunpack.c.h.b16 %v565
    %v5050 = vunpack.c.l.b16 %v566
    %v5051 = vunpack.c.h.b16 %v566
    %v5052 = vunpack.c.l.b16 %v567
    %v5053 = vunpack.c.h.b16 %v567
    %v5054 = vunpack.c.l.b16 %v568
    %v5055 = vunpack.c.h.b16 %v568
    %v5056 = vunpack.c.l.b16 %v569
    %v5057 = vunpack.c.h.b16 %v569
    %v5058 = vunpack.c.l.b16 %v570
    %v5059 = vunpack.c.h.b16 %v570
    %v5060 = vunpack.c.l.b16 %v571
    %v5061 = vunpack.c.h.b16 %v571
    %v5062 = vunpack.c.l.b16 %v572
    %v5063 = vunpack.c.h.b16 %v572
    %v5064 = vunpack.c.l.b16 %v573
    %v5065 = vunpack.c.h.b16 %v573
    %v5066 = vunpack.c.l.b16 %v574
    %v5067 = vunpack.c.h.b16 %v574
    %v5068 = vunpack.c.l.b16 %v575
    %v5069 = vunpack.c.h.b16 %v575
    %v5070 = vunpack.c.l.b16 %v576
    %v5071 = vunpack.c.h.b16 %v576
    %v5072 = vunpack.c.l.b16 %v577
    %v5073 = vunpack.c.h.b16 %v577
    %v5074 = vunpack.c.l.b16 %v578
    %v5075 = vunpack.c.h.b16 %v578
    %v5076 = vunpack.c.l.b16 %v579
    %v5077 = vunpack.c.h.b16 %v579
    %v5078 = vunpack.c.l.b16 %v580
    %v5079 = vunpack.c.h.b16 %v580
    %v5080 = vunpack.c.l.b16 %v581
    %v5081 = vunpack.c.h.b16 %v581
    %v5082 = vunpack.c.l.b16 %v582
    %v5083 = vunpack.c.h.b16 %v582
    %v5084 = vunpack.c.l.b16 %v583
    %v5085 = vunpack.c.h.b16 %v583
    %v5086 = vunpack.c.l.b16 %v584
    %v5087 = vunpack.c.h.b16 %v584
    %v5088 = vunpack.c.l.b16 %v585
    %v5089 = vunpack.c.h.b16 %v585
    %v5090 = vunpack.c.l.b16 %v586
    %v5091 = vunpack.c.h.b16 %v586
    %v5092 = vunpack.c.l.b16 %v587
    %v5093 = vunpack.c.h.b16 %v587
    %v5094 = vunpack.c.l.b16 %v588
    %v5095 = vunpack.c.h.b16 %v588
    %v5096 = vunpack.c.l.b16 %v589
    %v5097 = vunpack.c.h.b16 %v589
    %v5098 = vunpack.c.l.b16 %v590
    %v5099 = vunpack.c.h.b16 %v590
    %v5100 = vunpack.c.l.b16 %v591
    %v5101 = vunpack.c.h.b16 %v591
    %v5102 = vunpack.c.l.b16 %v592
    %v5103 = vunpack.c.h.b16 %v592
    %v5104 = vunpack.c.l.b16 %v593
    %v5105 = vunpack.c.h.b16 %v593
    %v5106 = vunpack.c.l.b16 %v594
    %v5107 = vunpack.c.h.b16 %v594
    %v5108 = vunpack.c.l.b16 %v595
    %v5109 = vunpack.c.h.b16 %v595
    %v5110 = vunpack.c.l.b16 %v596
    %v5111 = vunpack.c.h.b16 %v596
    %v5112 = vunpack.c.l.b16 %v597
    %v5113 = vunpack.c.h.b16 %v597
    %v5114 = vunpack.c.l.b16 %v598
    %v5115 = vunpack.c.h.b16 %v598
    %v5116 = vunpack.c.l.b16 %v599
    %v5117 = vunpack.c.h.b16 %v599
    %v5118 = vunpack.c.l.b16 %v600
    %v5119 = vunpack.c.h.b16 %v600
    %v5120 = vunpack.c.l.b16 %v601
    %v5121 = vunpack.c.h.b16 %v601
    %v5122 = vunpack.c.l.b16 %v602
    %v5123 = vunpack.c.h.b16 %v602
    %v5124 = vunpack.c.l.b16 %v603
    %v5125 = vunpack.c.h.b16 %v603
    %v5126 = vunpack.c.l.b16 %v604
    %v5127 = vunpack.c.h.b16 %v604
    %v5128 = vunpack.c.l.b16 %v605
    %v5129 = vunpack.c.h.b16 %v605
    %v5130 = vunpack.c.l.b16 %v606
    %v5131 = vunpack.c.h.b16 %v606
    %v5132 = vunpack.c.l.b16 %v607
    %v5133 = vunpack.c.h.b16 %v607
    %v5134 = vunpack.c.l.b16 %v608
    %v5135 = vunpack.c.h.b16 %v608
    %v5136 = vunpack.c.l.b16 %v609
    %v5137 = vunpack.c.h.b16 %v609
    %v5138 = vunpack.c.l.b16 %v610
    %v5139 = vunpack.c.h.b16 %v610
    %v5140 = vunpack.c.l.b16 %v611
    %v5141 = vunpack.c.h.b16 %v611
    %v5142 = vunpack.c.l.b16 %v612
    %v5143 = vunpack.c.h.b16 %v612
    %v5144 = vunpack.c.l.b16 %v613
    %v5145 = vunpack.c.h.b16 %v613
    %v5146 = vunpack.c.l.b16 %v614
    %v5147 = vunpack.c.h.b16 %v614
    %v5148 = vunpack.c.l.b16 %v615
    %v5149 = vunpack.c.h.b16 %v615
    %v5150 = vunpack.c.l.b16 %v616
    %v5151 = vunpack.c.h.b16 %v616
    %v5152 = vunpack.c.l.b16 %v617
    %v5153 = vunpack.c.h.b16 %v617
    %v5154 = vunpack.c.l.b16 %v618
    %v5155 = vunpack.c.h.b16 %v618
    %v5156 = vunpack.c.l.b16 %v619
    %v5157 = vunpack.c.h.b16 %v619
    %v5158 = vunpack.c.l.b16 %v620
    %v5159 = vunpack.c.h.b16 %v620
    %v5160 = vunpack.c.l.b16 %v621
    %v5161 = vunpack.c.h.b16 %v621
    %v5162 = vunpack.c.l.b16 %v622
    %v5163 = vunpack.c.h.b16 %v622
    %v5164 = vunpack.c.l.b16 %v623
    %v5165 = vunpack.c.h.b16 %v623
    %v5166 = vunpack.c.l.b16 %v624
    %v5167 = vunpack.c.h.b16 %v624
    %v5168 = vunpack.c.l.b16 %v625
    %v5169 = vunpack.c.h.b16 %v625
    %v5170 = vunpack.c.l.b16 %v626
    %v5171 = vunpack.c.h.b16 %v626
    %v5172 = vunpack.c.l.b16 %v627
    %v5173 = vunpack.c.h.b16 %v627
    %v5174 = vunpack.c.l.b16 %v628
    %v5175 = vunpack.c.h.b16 %v628
    %v5176 = vunpack.c.l.b16 %v629
    %v5177 = vunpack.c.h.b16 %v629
    %v5178 = vunpack.c.l.b16 %v630
    %v5179 = vunpack.c.h.b16 %v630
    %v5180 = vunpack.c.l.b16 %v631
    %v5181 = vunpack.c.h.b16 %v631
    %v5182 = vunpack.c.l.b16 %v632
    %v5183 = vunpack.c.h.b16 %v632
    %v5184 = vunpack.c.l.b16 %v633
    %v5185 = vunpack.c.h.b16 %v633
    %v5186 = vunpack.c.l.b16 %v634
    %v5187 = vunpack.c.h.b16 %v634
    %v5188 = vunpack.c.l.b16 %v635
    %v5189 = vunpack.c.h.b16 %v635
    %v5190 = vunpack.c.l.b16 %v636
    %v5191 = vunpack.c.h.b16 %v636
    %v5192 = vunpack.c.l.b16 %v637
    %v5193 = vunpack.c.h.b16 %v637
    %v5194 = vunpack.c.l.b16 %v638
    %v5195 = vunpack.c.h.b16 %v638
    %v5196 = vunpack.c.l.b16 %v639
    %v5197 = vunpack.c.h.b16 %v639
    %v5198 = vunpack.c.l.b16 %v640
    %v5199 = vunpack.c.h.b16 %v640
    %v5200 = vunpack.c.l.b16 %v641
    %v5201 = vunpack.c.h.b16 %v641
    %v5202 = vunpack.c.l.b16 %v642
    %v5203 = vunpack.c.h.b16 %v642
    %v5204 = vunpack.c.l.b16 %v643
    %v5205 = vunpack.c.h.b16 %v643
    %v5206 = vunpack.c.l.b16 %v644
    %v5207 = vunpack.c.h.b16 %v644
    %v5208 = vunpack.c.l.b16 %v645
    %v5209 = vunpack.c.h.b16 %v645
    %v5210 = vunpack.c.l.b16 %v646
    %v5211 = vunpack.c.h.b16 %v646
    %v5212 = vunpack.c.l.b16 %v647
    %v5213 = vunpack.c.h.b16 %v647
    %v5214 = vunpack.c.l.b16 %v648
    %v5215 = vunpack.c.h.b16 %v648
    %v5216 = vunpack.c.l.b16 %v649
    %v5217 = vunpack.c.h.b16 %v649
    %v5218 = vunpack.c.l.b16 %v650
    %v5219 = vunpack.c.h.b16 %v650
    %v5220 = vunpack.c.l.b16 %v651
    %v5221 = vunpack.c.h.b16 %v651
    %v5222 = vunpack.c.l.b16 %v652
    %v5223 = vunpack.c.h.b16 %v652
    %v5224 = vunpack.c.l.b16 %v653
    %v5225 = vunpack.c.h.b16 %v653
    %v5226 = vunpack.c.l.b16 %v654
    %v5227 = vunpack.c.h.b16 %v654
    %v5228 = vunpack.c.l.b16 %v655
    %v5229 = vunpack.c.h.b16 %v655
    %v5230 = vunpack.c.l.b16 %v656
    %v5231 = vunpack.c.h.b16 %v656
    %v5232 = vunpack.c.l.b16 %v657
    %v5233 = vunpack.c.h.b16 %v657
    %v5234 = vunpack.c.l.b16 %v658
    %v5235 = vunpack.c.h.b16 %v658
    %v5236 = vunpack.c.l.b16 %v659
    %v5237 = vunpack.c.h.b16 %v659
    %v5238 = vunpack.c.l.b16 %v660
    %v5239 = vunpack.c.h.b16 %v660
    %v5240 = vunpack.c.l.b16 %v661
    %v5241 = vunpack.c.h.b16 %v661
    %v5242 = vunpack.c.l.b16 %v662
    %v5243 = vunpack.c.h.b16 %v662
    %v5244 = vunpack.c.l.b16 %v663
    %v5245 = vunpack.c.h.b16 %v663
    %v5246 = vunpack.c.l.b16 %v664
    %v5247 = vunpack.c.h.b16 %v664
    %v5248 = vunpack.c.l.b16 %v665
    %v5249 = vunpack.c.h.b16 %v665
    %v5250 = vunpack.c.l.b16 %v666
    %v5251 = vunpack.c.h.b16 %v666
    %v5252 = vunpack.c.l.b16 %v667
    %v5253 = vunpack.c.h.b16 %v667
    %v5254 = vunpack.c.l.b16 %v668
    %v5255 = vunpack.c.h.b16 %v668
    %v5256 = vunpack.c.l.b16 %v669
    %v5257 = vunpack.c.h.b16 %v669
    %v5258 = vunpack.c.l.b16 %v670
    %v5259 = vunpack.c.h.b16 %v670
    %v5260 = vunpack.c.l.b16 %v671
    %v5261 = vunpack.c.h.b16 %v671
    %v5262 = vunpack.c.l.b16 %v672
    %v5263 = vunpack.c.h.b16 %v672
    %v5264 = vunpack.c.l.b16 %v673
    %v5265 = vunpack.c.h.b16 %v673
    %v5266 = vunpack.c.l.b16 %v674
    %v5267 = vunpack.c.h.b16 %v674
    %v5268 = vunpack.c.l.b16 %v675
    %v5269 = vunpack.c.h.b16 %v675
    %v5270 = vunpack.c.l.b16 %v676
    %v5271 = vunpack.c.h.b16 %v676
    %v5272 = vunpack.c.l.b16 %v677
    %v5273 = vunpack.c.h.b16 %v677
    %v5274 = vunpack.c.l.b16 %v678
    %v5275 = vunpack.c.h.b16 %v678
    %v5276 = vunpack.c.l.b16 %v679
    %v5277 = vunpack.c.h.b16 %v679
    %v5278 = vunpack.c.l.b16 %v680
    %v5279 = vunpack.c.h.b16 %v680
    %v5280 = vunpack.c.l.b16 %v681
    %v5281 = vunpack.c.h.b16 %v681
    %v5282 = vunpack.c.l.b16 %v682
    %v5283 = vunpack.c.h.b16 %v682
    %v5284 = vunpack.c.l.b16 %v683
    %v5285 = vunpack.c.h.b16 %v683
    %v5286 = vunpack.c.l.b16 %v684
    %v5287 = vunpack.c.h.b16 %v684
    %v5288 = vunpack.c.l.b16 %v685
    %v5289 = vunpack.c.h.b16 %v685
    %v5290 = vunpack.c.l.b16 %v686
    %v5291 = vunpack.c.h.b16 %v686
    %v5292 = vunpack.c.l.b16 %v687
    %v5293 = vunpack.c.h.b16 %v687
    %v5294 = vunpack.c.l.b16 %v688
    %v5295 = vunpack.c.h.b16 %v688
    %v5296 = vunpack.c.l.b16 %v689
    %v5297 = vunpack.c.h.b16 %v689
    %v5298 = vunpack.c.l.b16 %v690
    %v5299 = vunpack.c.h.b16 %v690
    %v5300 = vunpack.c.l.b16 %v691
    %v5301 = vunpack.c.h.b16 %v691
    %v5302 = vunpack.c.l.b16 %v692
    %v5303 = vunpack.c.h.b16 %v692
    %v5304 = vunpack.c.l.b16 %v693
    %v5305 = vunpack.c.h.b16 %v693
    %v5306 = vunpack.c.l.b16 %v694
    %v5307 = vunpack.c.h.b16 %v694
    %v5308 = vunpack.c.l.b16 %v695
    %v5309 = vunpack.c.h.b16 %v695
    %v5310 = vunpack.c.l.b16 %v696
    %v5311 = vunpack.c.h.b16 %v696
    %v5312 = vunpack.c.l.b16 %v697
    %v5313 = vunpack.c.h.b16 %v697
    %v5314 = vunpack.c.l.b16 %v698
    %v5315 = vunpack.c.h.b16 %v698
    %v5316 = vunpack.c.l.b16 %v699
    %v5317 = vunpack.c.h.b16 %v699
    %v5318 = vunpack.c.l.b16 %v700
    %v5319 = vunpack.c.h.b16 %v700
    %v5320 = vunpack.c.l.b16 %v701
    %v5321 = vunpack.c.h.b16 %v701
    %v5322 = vunpack.c.l.b16 %v702
    %v5323 = vunpack.c.h.b16 %v702
    %v5324 = vunpack.c.l.b16 %v703
    %v5325 = vunpack.c.h.b16 %v703
    %v5326 = vunpack.c.l.b16 %v704
    %v5327 = vunpack.c.h.b16 %v704
    %v5328 = vunpack.c.l.b16 %v705
    %v5329 = vunpack.c.h.b16 %v705
    %v5330 = vunpack.c.l.b16 %v706
    %v5331 = vunpack.c.h.b16 %v706
    %v5332 = vunpack.c.l.b16 %v707
    %v5333 = vunpack.c.h.b16 %v707
    %v5334 = vunpack.c.l.b16 %v708
    %v5335 = vunpack.c.h.b16 %v708
    %v5336 = vunpack.c.l.b16 %v709
    %v5337 = vunpack.c.h.b16 %v709
    %v5338 = vunpack.c.l.b16 %v710
    %v5339 = vunpack.c.h.b16 %v710
    %v5340 = vunpack.c.l.b16 %v711
    %v5341 = vunpack.c.h.b16 %v711
    %v5342 = vunpack.c.l.b16 %v712
    %v5343 = vunpack.c.h.b16 %v712
    %v5344 = vunpack.c.l.b16 %v713
    %v5345 = vunpack.c.h.b16 %v713
    %v5346 = vunpack.c.l.b16 %v714
    %v5347 = vunpack.c.h.b16 %v714
    %v5348 = vunpack.c.l.b16 %v715
    %v5349 = vunpack.c.h.b16 %v715
    %v5350 = vunpack.c.l.b16 %v716
    %v5351 = vunpack.c.h.b16 %v716
    %v5352 = vunpack.c.l.b16 %v717
    %v5353 = vunpack.c.h.b16 %v717
    %v5354 = vunpack.c.l.b16 %v718
    %v5355 = vunpack.c.h.b16 %v718
    %v5356 = vunpack.c.l.b16 %v719
    %v5357 = vunpack.c.h.b16 %v719
    %v5358 = vunpack.c.l.b16 %v720
    %v5359 = vunpack.c.h.b16 %v720
    %v5360 = vunpack.c.l.b16 %v721
    %v5361 = vunpack.c.h.b16 %v721
    %v5362 = vunpack.c.l.b16 %v722
    %v5363 = vunpack.c.h.b16 %v722
    %v5364 = vunpack.c.l.b16 %v723
    %v5365 = vunpack.c.h.b16 %v723
    %v5366 = vunpack.c.l.b16 %v724
    %v5367 = vunpack.c.h.b16 %v724
    %v5368 = vunpack.c.l.b16 %v725
    %v5369 = vunpack.c.h.b16 %v725
    %v5370 = vunpack.c.l.b16 %v726
    %v5371 = vunpack.c.h.b16 %v726
    %v5372 = vunpack.c.l.b16 %v727
    %v5373 = vunpack.c.h.b16 %v727
    %v5374 = vunpack.c.l.b16 %v728
    %v5375 = vunpack.c.h.b16 %v728
    %v5376 = vunpack.c.l.b16 %v729
    %v5377 = vunpack.c.h.b16 %v729
    %v5378 = vunpack.c.l.b16 %v730
    %v5379 = vunpack.c.h.b16 %v730
    %v5380 = vunpack.c.l.b16 %v731
    %v5381 = vunpack.c.h.b16 %v731
    %v5382 = vunpack.c.l.b16 %v732
    %v5383 = vunpack.c.h.b16 %v732
    %v5384 = vunpack.c.l.b16 %v733
    %v5385 = vunpack.c.h.b16 %v733
    %v5386 = vunpack.c.l.b16 %v734
    %v5387 = vunpack.c.h.b16 %v734
    %v5388 = vunpack.c.l.b16 %v735
    %v5389 = vunpack.c.h.b16 %v735
    %v5390 = vunpack.c.l.b16 %v736
    %v5391 = vunpack.c.h.b16 %v736
    %v5392 = vunpack.c.l.b16 %v737
    %v5393 = vunpack.c.h.b16 %v737
    %v5394 = vunpack.c.l.b16 %v738
    %v5395 = vunpack.c.h.b16 %v738
    %v5396 = vunpack.c.l.b16 %v739
    %v5397 = vunpack.c.h.b16 %v739
    %v5398 = vunpack.c.l.b16 %v740
    %v5399 = vunpack.c.h.b16 %v740
    %v5400 = vunpack.c.l.b16 %v741
    %v5401 = vunpack.c.h.b16 %v741
    %v5402 = vunpack.c.l.b16 %v742
    %v5403 = vunpack.c.h.b16 %v742
    %v5404 = vunpack.c.l.b16 %v743
    %v5405 = vunpack.c.h.b16 %v743
    %v5406 = vunpack.c.l.b16 %v744
    %v5407 = vunpack.c.h.b16 %v744
    %v5408 = vunpack.c.l.b16 %v745
    %v5409 = vunpack.c.h.b16 %v745
    %v5410 = vunpack.c.l.b16 %v746
    %v5411 = vunpack.c.h.b16 %v746
    %v5412 = vunpack.c.l.b16 %v747
    %v5413 = vunpack.c.h.b16 %v747
    %v5414 = vunpack.c.l.b16 %v748
    %v5415 = vunpack.c.h.b16 %v748
    %v5416 = vunpack.c.l.b16 %v749
    %v5417 = vunpack.c.h.b16 %v749
    %v5418 = vunpack.c.l.b16 %v750
    %v5419 = vunpack.c.h.b16 %v750
    %v5420 = vunpack.c.l.b16 %v751
    %v5421 = vunpack.c.h.b16 %v751
    %v5422 = vunpack.c.l.b16 %v752
    %v5423 = vunpack.c.h.b16 %v752
    %v5424 = vunpack.c.l.b16 %v753
    %v5425 = vunpack.c.h.b16 %v753
    %v5426 = vunpack.c.l.b16 %v754
    %v5427 = vunpack.c.h.b16 %v754
    %v5428 = vunpack.c.l.b16 %v755
    %v5429 = vunpack.c.h.b16 %v755
    %v5430 = vunpack.c.l.b16 %v756
    %v5431 = vunpack.c.h.b16 %v756
    %v5432 = vunpack.c.l.b16 %v757
    %v5433 = vunpack.c.h.b16 %v757
    %v5434 = vunpack.c.l.b16 %v758
    %v5435 = vunpack.c.h.b16 %v758
    %v5436 = vunpack.c.l.b16 %v759
    %v5437 = vunpack.c.h.b16 %v759
    %v5438 = vunpack.c.l.b16 %v760
    %v5439 = vunpack.c.h.b16 %v760
    %v5440 = vunpack.c.l.b16 %v761
    %v5441 = vunpack.c.h.b16 %v761
    %v5442 = vunpack.c.l.b16 %v762
    %v5443 = vunpack.c.h.b16 %v762
    %v5444 = vunpack.c.l.b16 %v763
    %v5445 = vunpack.c.h.b16 %v763
    %v5446 = vunpack.c.l.b16 %v764
    %v5447 = vunpack.c.h.b16 %v764
    %v5448 = vunpack.c.l.b16 %v765
    %v5449 = vunpack.c.h.b16 %v765
    %v5450 = vunpack.c.l.b16 %v766
    %v5451 = vunpack.c.h.b16 %v766
    %v5452 = vunpack.c.l.b16 %v767
    %v5453 = vunpack.c.h.b16 %v767
    %v5454 = vunpack.c.l.b16 %v768
    %v5455 = vunpack.c.h.b16 %v768
    %v5456 = vunpack.c.l.b16 %v769
    %v5457 = vunpack.c.h.b16 %v769
    %v5458 = vunpack.c.l.b16 %v770
    %v5459 = vunpack.c.h.b16 %v770
    %v5460 = vunpack.c.l.b16 %v771
    %v5461 = vunpack.c.h.b16 %v771
    %v5462 = vunpack.c.l.b16 %v772
    %v5463 = vunpack.c.h.b16 %v772
    %v5464 = vunpack.c.l.b16 %v773
    %v5465 = vunpack.c.h.b16 %v773
    %v5466 = vunpack.c.l.b16 %v774
    %v5467 = vunpack.c.h.b16 %v774
    %v5468 = vunpack.c.l.b16 %v775
    %v5469 = vunpack.c.h.b16 %v775
    %v5470 = vunpack.c.l.b16 %v776
    %v5471 = vunpack.c.h.b16 %v776
    %v5472 = vunpack.c.l.b16 %v777
    %v5473 = vunpack.c.h.b16 %v777
    %v5474 = vunpack.c.l.b16 %v778
    %v5475 = vunpack.c.h.b16 %v778
    %v5476 = vunpack.c.l.b16 %v779
    %v5477 = vunpack.c.h.b16 %v779
    %v5478 = vunpack.c.l.b16 %v780
    %v5479 = vunpack.c.h.b16 %v780
    %v5480 = vunpack.c.l.b16 %v781
    %v5481 = vunpack.c.h.b16 %v781
    %v5482 = vunpack.c.l.b16 %v782
    %v5483 = vunpack.c.h.b16 %v782
    %v5484 = vunpack.c.l.b16 %v783
    %v5485 = vunpack.c.h.b16 %v783
    %v5486 = vunpack.c.l.b16 %v784
    %v5487 = vunpack.c.h.b16 %v784
    %v5488 = vunpack.c.l.b16 %v785
    %v5489 = vunpack.c.h.b16 %v785
    %v5490 = vunpack.c.l.b16 %v786
    %v5491 = vunpack.c.h.b16 %v786
    %v5492 = vunpack.c.l.b16 %v787
    %v5493 = vunpack.c.h.b16 %v787
    %v5494 = vunpack.c.l.b16 %v788
    %v5495 = vunpack.c.h.b16 %v788
    %v5496 = vunpack.c.l.b16 %v789
    %v5497 = vunpack.c.h.b16 %v789
    %v5498 = vunpack.c.l.b16 %v790
    %v5499 = vunpack.c.h.b16 %v790
    %v5500 = vunpack.c.l.b16 %v791
    %v5501 = vunpack.c.h.b16 %v791
    %v5502 = vunpack.c.l.b16 %v792
    %v5503 = vunpack.c.h.b16 %v792
    %v5504 = vunpack.c.l.b16 %v793
    %v5505 = vunpack.c.h.b16 %v793
    %v5506 = vunpack.c.l.b16 %v794
    %v5507 = vunpack.c.h.b16 %v794
    %v5508 = vunpack.c.l.b16 %v795
    %v5509 = vunpack.c.h.b16 %v795
    %v5510 = vunpack.c.l.b16 %v796
    %v5511 = vunpack.c.h.b16 %v796
    %v5512 = vunpack.c.l.b16 %v797
    %v5513 = vunpack.c.h.b16 %v797
    %v5514 = vunpack.c.l.b16 %v798
    %v5515 = vunpack.c.h.b16 %v798
    %v5516 = vunpack.c.l.b16 %v799
    %v5517 = vunpack.c.h.b16 %v799
    %v5518 = vunpack.c.l.b16 %v800
    %v5519 = vunpack.c.h.b16 %v800
    %v5520 = vunpack.c.l.b16 %v801
    %v5521 = vunpack.c.h.b16 %v801
    %v5522 = vunpack.c.l.b16 %v802
    %v5523 = vunpack.c.h.b16 %v802
    %v5524 = vunpack.c.l.b16 %v803
    %v5525 = vunpack.c.h.b16 %v803
    %v5526 = vunpack.c.l.b16 %v804
    %v5527 = vunpack.c.h.b16 %v804
    %v5528 = vunpack.c.l.b16 %v805
    %v5529 = vunpack.c.h.b16 %v805
    %v5530 = vunpack.c.l.b16 %v806
    %v5531 = vunpack.c.h.b16 %v806
    %v5532 = vunpack.c.l.b16 %v807
    %v5533 = vunpack.c.h.b16 %v807
    %v5534 = vunpack.c.l.b16 %v808
    %v5535 = vunpack.c.h.b16 %v808
    %v5536 = vunpack.c.l.b16 %v809
    %v5537 = vunpack.c.h.b16 %v809
    %v5538 = vunpack.c.l.b16 %v810
    %v5539 = vunpack.c.h.b16 %v810
    %v5540 = vunpack.c.l.b16 %v811
    %v5541 = vunpack.c.h.b16 %v811
    %v5542 = vunpack.c.l.b16 %v812
    %v5543 = vunpack.c.h.b16 %v812
    %v5544 = vunpack.c.l.b16 %v813
    %v5545 = vunpack.c.h.b16 %v813
    %v5546 = vunpack.c.l.b16 %v814
    %v5547 = vunpack.c.h.b16 %v814
    %v5548 = vunpack.c.l.b16 %v815
    %v5549 = vunpack.c.h.b16 %v815
    %v5550 = vunpack.c.l.b16 %v816
    %v5551 = vunpack.c.h.b16 %v816
    %v5552 = vunpack.c.l.b16 %v817
    %v5553 = vunpack.c.h.b16 %v817
    %v5554 = vunpack.c.l.b16 %v818
    %v5555 = vunpack.c.h.b16 %v818
    %v5556 = vunpack.c.l.b16 %v819
    %v5557 = vunpack.c.h.b16 %v819
    %v5558 = vunpack.c.l.b16 %v820
    %v5559 = vunpack.c.h.b16 %v820
    %v5560 = vunpack.c.l.b16 %v821
    %v5561 = vunpack.c.h.b16 %v821
    %v5562 = vunpack.c.l.b16 %v822
    %v5563 = vunpack.c.h.b16 %v822
    %v5564 = vunpack.c.l.b16 %v823
    %v5565 = vunpack.c.h.b16 %v823
    %v5566 = vunpack.c.l.b16 %v824
    %v5567 = vunpack.c.h.b16 %v824
    %v5568 = vunpack.c.l.b16 %v825
    %v5569 = vunpack.c.h.b16 %v825
    %v5570 = vunpack.c.l.b16 %v826
    %v5571 = vunpack.c.h.b16 %v826
    %v5572 = vunpack.c.l.b16 %v827
    %v5573 = vunpack.c.h.b16 %v827
    %v5574 = vunpack.c.l.b16 %v828
    %v5575 = vunpack.c.h.b16 %v828
    %v5576 = vunpack.c.l.b16 %v829
    %v5577 = vunpack.c.h.b16 %v829
    %v5578 = vunpack.c.l.b16 %v830
    %v5579 = vunpack.c.h.b16 %v830
    %v5580 = vunpack.c.l.b16 %v831
    %v5581 = vunpack.c.h.b16 %v831
    %v5582 = vunpack.c.l.b16 %v832
    %v5583 = vunpack.c.h.b16 %v832
    %v5584 = vunpack.c.l.b16 %v833
    %v5585 = vunpack.c.h.b16 %v833
    %v5586 = vunpack.c.l.b16 %v834
    %v5587 = vunpack.c.h.b16 %v834
    %v5588 = vunpack.c.l.b16 %v835
    %v5589 = vunpack.c.h.b16 %v835
    %v5590 = vunpack.c.l.b16 %v836
    %v5591 = vunpack.c.h.b16 %v836
    %v5592 = vunpack.c.l.b16 %v837
    %v5593 = vunpack.c.h.b16 %v837
    %v5594 = vunpack.c.l.b16 %v838
    %v5595 = vunpack.c.h.b16 %v838
    %v5596 = vunpack.c.l.b16 %v839
    %v5597 = vunpack.c.h.b16 %v839
    %v5598 = vunpack.c.l.b16 %v840
    %v5599 = vunpack.c.h.b16 %v840
    %v5600 = vunpack.c.l.b16 %v841
    %v5601 = vunpack.c.h.b16 %v841
    %v5602 = vunpack.c.l.b16 %v842
    %v5603 = vunpack.c.h.b16 %v842
    %v5604 = vunpack.c.l.b16 %v843
    %v5605 = vunpack.c.h.b16 %v843
    %v5606 = vunpack.c.l.b16 %v844
    %v5607 = vunpack.c.h.b16 %v844
    %v5608 = vunpack.c.l.b16 %v845
    %v5609 = vunpack.c.h.b16 %v845
    %v5610 = vunpack.c.l.b16 %v846
    %v5611 = vunpack.c.h.b16 %v846
    %v5612 = vunpack.c.l.b16 %v847
    %v5613 = vunpack.c.h.b16 %v847
    %v5614 = vunpack.c.l.b16 %v848
    %v5615 = vunpack.c.h.b16 %v848
    %v5616 = vunpack.c.l.b16 %v849
    %v5617 = vunpack.c.h.b16 %v849
    %v5618 = vunpack.c.l.b16 %v850
    %v5619 = vunpack.c.h.b16 %v850
    %v5620 = vunpack.c.l.b16 %v851
    %v5621 = vunpack.c.h.b16 %v851
    %v5622 = vunpack.c.l.b16 %v852
    %v5623 = vunpack.c.h.b16 %v852
    %v5624 = vunpack.c.l.b16 %v853
    %v5625 = vunpack.c.h.b16 %v853
    %v5626 = vunpack.c.l.b16 %v854
    %v5627 = vunpack.c.h.b16 %v854
    %v5628 = vunpack.c.l.b16 %v855
    %v5629 = vunpack.c.h.b16 %v855
    %v5630 = vunpack.c.l.b16 %v856
    %v5631 = vunpack.c.h.b16 %v856
    %v5632 = vunpack.c.l.b16 %v857
    %v5633 = vunpack.c.h.b16 %v857
    %v5634 = vunpack.c.l.b16 %v858
    %v5635 = vunpack.c.h.b16 %v858
    %v5636 = vunpack.c.l.b16 %v859
    %v5637 = vunpack.c.h.b16 %v859
    %v5638 = vunpack.c.l.b16 %v860
    %v5639 = vunpack.c.h.b16 %v860
    %v5640 = vunpack.c.l.b16 %v861
    %v5641 = vunpack.c.h.b16 %v861
    %v5642 = vunpack.c.l.b16 %v862
    %v5643 = vunpack.c.h.b16 %v862
    %v5644 = vunpack.c.l.b16 %v863
    %v5645 = vunpack.c.h.b16 %v863
    %v5646 = vunpack.c.l.b16 %v864
    %v5647 = vunpack.c.h.b16 %v864
    %v5648 = vunpack.c.l.b16 %v865
    %v5649 = vunpack.c.h.b16 %v865
    %v5650 = vunpack.c.l.b16 %v866
    %v5651 = vunpack.c.h.b16 %v866
    %v5652 = vunpack.c.l.b16 %v867
    %v5653 = vunpack.c.h.b16 %v867
    %v5654 = vunpack.c.l.b16 %v868
    %v5655 = vunpack.c.h.b16 %v868
    %v5656 = vunpack.c.l.b16 %v869
    %v5657 = vunpack.c.h.b16 %v869
    %v5658 = vunpack.c.l.b16 %v870
    %v5659 = vunpack.c.h.b16 %v870
    %v5660 = vunpack.c.l.b16 %v871
    %v5661 = vunpack.c.h.b16 %v871
    %v5662 = vunpack.c.l.b16 %v872
    %v5663 = vunpack.c.h.b16 %v872
    %v5664 = vunpack.c.l.b16 %v873
    %v5665 = vunpack.c.h.b16 %v873
    %v5666 = vunpack.c.l.b16 %v874
    %v5667 = vunpack.c.h.b16 %v874
    %v5668 = vunpack.c.l.b16 %v875
    %v5669 = vunpack.c.h.b16 %v875
    %v5670 = vunpack.c.l.b16 %v876
    %v5671 = vunpack.c.h.b16 %v876
    %v5672 = vunpack.c.l.b16 %v877
    %v5673 = vunpack.c.h.b16 %v877
    %v5674 = vunpack.c.l.b16 %v878
    %v5675 = vunpack.c.h.b16 %v878
    %v5676 = vunpack.c.l.b16 %v879
    %v5677 = vunpack.c.h.b16 %v879
    %v5678 = vunpack.c.l.b16 %v880
    %v5679 = vunpack.c.h.b16 %v880
    %v5680 = vunpack.c.l.b16 %v881
    %v5681 = vunpack.c.h.b16 %v881
    %v5682 = vunpack.c.l.b16 %v882
    %v5683 = vunpack.c.h.b16 %v882
    %v5684 = vunpack.c.l.b16 %v883
    %v5685 = vunpack.c.h.b16 %v883
    %v5686 = vunpack.c.l.b16 %v884
    %v5687 = vunpack.c.h.b16 %v884
    %v5688 = vunpack.c.l.b16 %v885
    %v5689 = vunpack.c.h.b16 %v885
    %v5690 = vunpack.c.l.b16 %v886
    %v5691 = vunpack.c.h.b16 %v886
    %v5692 = vunpack.c.l.b16 %v887
    %v5693 = vunpack.c.h.b16 %v887
    %v5694 = vunpack.c.l.b16 %v888
    %v5695 = vunpack.c.h.b16 %v888
    %v5696 = vunpack.c.l.b16 %v889
    %v5697 = vunpack.c.h.b16 %v889
    %v5698 = vunpack.c.l.b16 %v890
    %v5699 = vunpack.c.h.b16 %v890
    %v5700 = vunpack.c.l.b16 %v891
    %v5701 = vunpack.c.h.b16 %v891
    %v5702 = vunpack.c.l.b16 %v892
    %v5703 = vunpack.c.h.b16 %v892
    %v5704 = vunpack.c.l.b16 %v893
    %v5705 = vunpack.c.h.b16 %v893
    %v5706 = vunpack.c.l.b16 %v894
    %v5707 = vunpack.c.h.b16 %v894
    %v5708 = vunpack.c.l.b16 %v895
    %v5709 = vunpack.c.h.b16 %v895
    %v5710 = vunpack.c.l.b16 %v896
    %v5711 = vunpack.c.h.b16 %v896
    %v5712 = vunpack.c.l.b16 %v897
    %v5713 = vunpack.c.h.b16 %v897
    %v5714 = vunpack.c.l.b16 %v898
    %v5715 = vunpack.c.h.b16 %v898
    %v5716 = vunpack.c.l.b16 %v899
    %v5717 = vunpack.c.h.b16 %v899
    %v5718 = vunpack.c.l.b16 %v900
    %v5719 = vunpack.c.h.b16 %v900
    %v5720 = vunpack.c.l.b16 %v901
    %v5721 = vunpack.c.h.b16 %v901
    %v5722 = vunpack.c.l.b16 %v902
    %v5723 = vunpack.c.h.b16 %v902
    %v5724 = vunpack.c.l.b16 %v903
    %v5725 = vunpack.c.h.b16 %v903
    %v5726 = vunpack.c.l.b16 %v904
    %v5727 = vunpack.c.h.b16 %v904
    %v5728 = vunpack.c.l.b16 %v905
    %v5729 = vunpack.c.h.b16 %v905
    %v5730 = vunpack.c.l.b16 %v906
    %v5731 = vunpack.c.h.b16 %v906
    %v5732 = vunpack.c.l.b16 %v907
    %v5733 = vunpack.c.h.b16 %v907
    %v5734 = vunpack.c.l.b16 %v908
    %v5735 = vunpack.c.h.b16 %v908
    %v5736 = vunpack.c.l.b16 %v909
    %v5737 = vunpack.c.h.b16 %v909
    %v5738 = vunpack.c.l.b16 %v910
    %v5739 = vunpack.c.h.b16 %v910
    %v5740 = vunpack.c.l.b16 %v911
    %v5741 = vunpack.c.h.b16 %v911
    %v5742 = vunpack.c.l.b16 %v912
    %v5743 = vunpack.c.h.b16 %v912
    %v5744 = vunpack.c.l.b16 %v913
    %v5745 = vunpack.c.h.b16 %v913
    %v5746 = vunpack.c.l.b16 %v914
    %v5747 = vunpack.c.h.b16 %v914
    %v5748 = vunpack.c.l.b16 %v915
    %v5749 = vunpack.c.h.b16 %v915
    %v5750 = vunpack.c.l.b16 %v916
    %v5751 = vunpack.c.h.b16 %v916
    %v5752 = vunpack.c.l.b16 %v917
    %v5753 = vunpack.c.h.b16 %v917
    %v5754 = vunpack.c.l.b16 %v918
    %v5755 = vunpack.c.h.b16 %v918
    %v5756 = vunpack.c.l.b16 %v919
    %v5757 = vunpack.c.h.b16 %v919
    %v5758 = vunpack.c.l.b16 %v920
    %v5759 = vunpack.c.h.b16 %v920
    %v5760 = vunpack.c.l.b16 %v921
    %v5761 = vunpack.c.h.b16 %v921
    %v5762 = vunpack.c.l.b16 %v922
    %v5763 = vunpack.c.h.b16 %v922
    %v5764 = vunpack.c.l.b16 %v923
    %v5765 = vunpack.c.h.b16 %v923
    %v5766 = vunpack.c.l.b16 %v924
    %v5767 = vunpack.c.h.b16 %v924
    %v5768 = vunpack.c.l.b16 %v925
    %v5769 = vunpack.c.h.b16 %v925
    %v5770 = vunpack.c.l.b16 %v926
    %v5771 = vunpack.c.h.b16 %v926
    %v5772 = vunpack.c.l.b16 %v927
    %v5773 = vunpack.c.h.b16 %v927
    %v5774 = vunpack.c.l.b16 %v928
    %v5775 = vunpack.c.h.b16 %v928
    %v5776 = vunpack.c.l.b16 %v929
    %v5777 = vunpack.c.h.b16 %v929
    %v5778 = vunpack.c.l.b16 %v930
    %v5779 = vunpack.c.h.b16 %v930
    %v5780 = vunpack.c.l.b16 %v931
    %v5781 = vunpack.c.h.b16 %v931
    %v5782 = vunpack.c.l.b16 %v932
    %v5783 = vunpack.c.h.b16 %v932
    %v5784 = vunpack.c.l.b16 %v933
    %v5785 = vunpack.c.h.b16 %v933
    %v5786 = vunpack.c.l.b16 %v934
    %v5787 = vunpack.c.h.b16 %v934
    %v5788 = vunpack.c.l.b16 %v935
    %v5789 = vunpack.c.h.b16 %v935
    %v5790 = vunpack.c.l.b16 %v936
    %v5791 = vunpack.c.h.b16 %v936
    %v5792 = vunpack.c.l.b16 %v937
    %v5793 = vunpack.c.h.b16 %v937
    %v5794 = vunpack.c.l.b16 %v938
    %v5795 = vunpack.c.h.b16 %v938
    %v5796 = vunpack.c.l.b16 %v939
    %v5797 = vunpack.c.h.b16 %v939
    %v5798 = vunpack.c.l.b16 %v940
    %v5799 = vunpack.c.h.b16 %v940
    %v5800 = vunpack.c.l.b16 %v941
    %v5801 = vunpack.c.h.b16 %v941
    %v5802 = vunpack.c.l.b16 %v942
    %v5803 = vunpack.c.h.b16 %v942
    %v5804 = vunpack.c.l.b16 %v943
    %v5805 = vunpack.c.h.b16 %v943
    %v5806 = vunpack.c.l.b16 %v944
    %v5807 = vunpack.c.h.b16 %v944
    %v5808 = vunpack.c.l.b16 %v945
    %v5809 = vunpack.c.h.b16 %v945
    %v5810 = vunpack.c.l.b16 %v946
    %v5811 = vunpack.c.h.b16 %v946
    %v5812 = vunpack.c.l.b16 %v947
    %v5813 = vunpack.c.h.b16 %v947
    %v5814 = vunpack.c.l.b16 %v948
    %v5815 = vunpack.c.h.b16 %v948
    %v5816 = vunpack.c.l.b16 %v949
    %v5817 = vunpack.c.h.b16 %v949
    %v5818 = vunpack.c.l.b16 %v950
    %v5819 = vunpack.c.h.b16 %v950
    %v5820 = vunpack.c.l.b16 %v951
    %v5821 = vunpack.c.h.b16 %v951
    %v5822 = vunpack.c.l.b16 %v952
    %v5823 = vunpack.c.h.b16 %v952
    %v5824 = vunpack.c.l.b16 %v953
    %v5825 = vunpack.c.h.b16 %v953
    %v5826 = vunpack.c.l.b16 %v954
    %v5827 = vunpack.c.h.b16 %v954
    %v5828 = vunpack.c.l.b16 %v955
    %v5829 = vunpack.c.h.b16 %v955
    %v5830 = vunpack.c.l.b16 %v956
    %v5831 = vunpack.c.h.b16 %v956
    %v5832 = vunpack.c.l.b16 %v957
    %v5833 = vunpack.c.h.b16 %v957
    %v5834 = vunpack.c.l.b16 %v958
    %v5835 = vunpack.c.h.b16 %v958
    %v5836 = vunpack.c.l.b16 %v959
    %v5837 = vunpack.c.h.b16 %v959
    %v5838 = vunpack.c.l.b16 %v960
    %v5839 = vunpack.c.h.b16 %v960
    %v5840 = vunpack.c.l.b16 %v961
    %v5841 = vunpack.c.h.b16 %v961
    %v5842 = vunpack.c.l.b16 %v962
    %v5843 = vunpack.c.h.b16 %v962
    %v5844 = vunpack.c.l.b16 %v963
    %v5845 = vunpack.c.h.b16 %v963
    %v5846 = vunpack.c.l.b16 %v964
    %v5847 = vunpack.c.h.b16 %v964
    %v5848 = vunpack.c.l.b16 %v965
    %v5849 = vunpack.c.h.b16 %v965
    %v5850 = vunpack.c.l.b16 %v966
    %v5851 = vunpack.c.h.b16 %v966
    %v5852 = vunpack.c.l.b16 %v967
    %v5853 = vunpack.c.h.b16 %v967
    %v5854 = vunpack.c.l.b16 %v968
    %v5855 = vunpack.c.h.b16 %v968
    %v5856 = vunpack.c.l.b16 %v969
    %v5857 = vunpack.c.h.b16 %v969
    %v5858 = vunpack.c.l.b16 %v970
    %v5859 = vunpack.c.h.b16 %v970
    %v5860 = vunpack.c.l.b16 %v971
    %v5861 = vunpack.c.h.b16 %v971
    %v5862 = vunpack.c.l.b16 %v972
    %v5863 = vunpack.c.h.b16 %v972
    %v5864 = vunpack.c.l.b16 %v973
    %v5865 = vunpack.c.h.b16 %v973
    %v5866 = vunpack.c.l.b16 %v974
    %v5867 = vunpack.c.h.b16 %v974
    %v5868 = vunpack.c.l.b16 %v975
    %v5869 = vunpack.c.h.b16 %v975
    %v5870 = vunpack.c.l.b16 %v976
    %v5871 = vunpack.c.h.b16 %v976
    %v5872 = vunpack.c.l.b16 %v977
    %v5873 = vunpack.c.h.b16 %v977
    %v5874 = vunpack.c.l.b16 %v978
    %v5875 = vunpack.c.h.b16 %v978
    %v5876 = vunpack.c.l.b16 %v979
    %v5877 = vunpack.c.h.b16 %v979
    %v5878 = vunpack.c.l.b16 %v980
    %v5879 = vunpack.c.h.b16 %v980
    %v5880 = vunpack.c.l.b16 %v981
    %v5881 = vunpack.c.h.b16 %v981
    %v5882 = vunpack.c.l.b16 %v982
    %v5883 = vunpack.c.h.b16 %v982
    %v5884 = vunpack.c.l.b16 %v983
    %v5885 = vunpack.c.h.b16 %v983
    %v5886 = vunpack.c.l.b16 %v984
    %v5887 = vunpack.c.h.b16 %v984
    %v5888 = vunpack.c.l.b16 %v985
    %v5889 = vunpack.c.h.b16 %v985
    %v5890 = vunpack.c.l.b16 %v986
    %v5891 = vunpack.c.h.b16 %v986
    %v5892 = vunpack.c.l.b16 %v987
    %v5893 = vunpack.c.h.b16 %v987
    %v5894 = vunpack.c.l.b16 %v988
    %v5895 = vunpack.c.h.b16 %v988
    %v5896 = vunpack.c.l.b16 %v989
    %v5897 = vunpack.c.h.b16 %v989
    %v5898 = vunpack.c.l.b16 %v990
    %v5899 = vunpack.c.h.b16 %v990
    %v5900 = vunpack.c.l.b16 %v991
    %v5901 = vunpack.c.h.b16 %v991
    %v5902 = vunpack.c.l.b16 %v992
    %v5903 = vunpack.c.h.b16 %v992
    %v5904 = vunpack.c.l.b16 %v993
    %v5905 = vunpack.c.h.b16 %v993
    %v5906 = vunpack.c.l.b16 %v994
    %v5907 = vunpack.c.h.b16 %v994
    %v5908 = vunpack.c.l.b16 %v995
    %v5909 = vunpack.c.h.b16 %v995
    %v5910 = vunpack.c.l.b16 %v996
    %v5911 = vunpack.c.h.b16 %v996
    %v5912 = vunpack.c.l.b16 %v997
    %v5913 = vunpack.c.h.b16 %v997
    %v5914 = vunpack.c.l.b16 %v998
    %v5915 = vunpack.c.h.b16 %v998
    %v5916 = vunpack.c.l.b16 %v999
    %v5917 = vunpack.c.h.b16 %v999
    %v5918 = vunpack.c.l.b16 %v1000
    %v5919 = vunpack.c.h.b16 %v1000
    %v5920 = vunpack.c.l.b16 %v1001
    %v5921 = vunpack.c.h.b16 %v1001
    %v5922 = vunpack.c.l.b16 %v1002
    %v5923 = vunpack.c.h.b16 %v1002
    %v5924 = vunpack.c.l.b16 %v1003
    %v5925 = vunpack.c.h.b16 %v1003
    %v5926 = vunpack.c.l.b16 %v1004
    %v5927 = vunpack.c.h.b16 %v1004
    %v5928 = vunpack.c.l.b16 %v1005
    %v5929 = vunpack.c.h.b16 %v1005
    %v5930 = vunpack.c.l.b16 %v1006
    %v5931 = vunpack.c.h.b16 %v1006
    %v5932 = vunpack.c.l.b16 %v1007
    %v5933 = vunpack.c.h.b16 %v1007
    %v5934 = vunpack.c.l.b16 %v1008
    %v5935 = vunpack.c.h.b16 %v1008
    %v5936 = vunpack.c.l.b16 %v1009
    %v5937 = vunpack.c.h.b16 %v1009
    %v5938 = vunpack.c.l.b16 %v1010
    %v5939 = vunpack.c.h.b16 %v1010
    %v5940 = vunpack.c.l.b16 %v1011
    %v5941 = vunpack.c.h.b16 %v1011
    %v5942 = vunpack.c.l.b16 %v1012
    %v5943 = vunpack.c.h.b16 %v1012
    %v5944 = vunpack.c.l.b16 %v1013
    %v5945 = vunpack.c.h.b16 %v1013
    %v5946 = vunpack.c.l.b16 %v1014
    %v5947 = vunpack.c.h.b16 %v1014
    %v5948 = vunpack.c.l.b16 %v1015
    %v5949 = vunpack.c.h.b16 %v1015
    %v5950 = vunpack.c.l.b16 %v1016
    %v5951 = vunpack.c.h.b16 %v1016
    %v5952 = vunpack.c.l.b16 %v1017
    %v5953 = vunpack.c.h.b16 %v1017
    %v5954 = vunpack.c.l.b16 %v1018
    %v5955 = vunpack.c.h.b16 %v1018
    %v5956 = vunpack.c.l.b16 %v1019
    %v5957 = vunpack.c.h.b16 %v1019
    %v5958 = vunpack.c.l.b16 %v1020
    %v5959 = vunpack.c.h.b16 %v1020
    %v5960 = vunpack.c.l.b16 %v1021
    %v5961 = vunpack.c.h.b16 %v1021
    %v5962 = vunpack.c.l.b16 %v1022
    %v5963 = vunpack.c.h.b16 %v1022
    %v5964 = vunpack.c.l.b16 %v1023
    %v5965 = vunpack.c.h.b16 %v1023
    %v5966 = vunpack.c.l.b16 %v1024
    %v5967 = vunpack.c.h.b16 %v1024
    %v5968 = vunpack.c.l.b16 %v1025
    %v5969 = vunpack.c.h.b16 %v1025
    %v5970 = vunpack.c.l.b16 %v1026
    %v5971 = vunpack.c.h.b16 %v1026
    %v5972 = vunpack.c.l.b16 %v1027
    %v5973 = vunpack.c.h.b16 %v1027
    %v5974 = vunpack.c.l.b16 %v1028
    %v5975 = vunpack.c.h.b16 %v1028
    %v5976 = vunpack.c.l.b16 %v1029
    %v5977 = vunpack.c.h.b16 %v1029
    %v5978 = vunpack.c.l.b16 %v1030
    %v5979 = vunpack.c.h.b16 %v1030
    %v5980 = vunpack.c.l.b16 %v1031
    %v5981 = vunpack.c.h.b16 %v1031
    %v5982 = vunpack.c.l.b16 %v1032
    %v5983 = vunpack.c.h.b16 %v1032
    %v5984 = vunpack.c.l.b16 %v1033
    %v5985 = vunpack.c.h.b16 %v1033
    %v5986 = vunpack.c.l.b16 %v1034
    %v5987 = vunpack.c.h.b16 %v1034
    %v5988 = vunpack.c.l.b16 %v1035
    %v5989 = vunpack.c.h.b16 %v1035
    %v5990 = vunpack.c.l.b16 %v1036
    %v5991 = vunpack.c.h.b16 %v1036
    %v5992 = vunpack.c.l.b16 %v1037
    %v5993 = vunpack.c.h.b16 %v1037
    %v5994 = vunpack.c.l.b16 %v1038
    %v5995 = vunpack.c.h.b16 %v1038
    %v5996 = vunpack.c.l.b16 %v1039
    %v5997 = vunpack.c.h.b16 %v1039
    %v5998 = vunpack.c.l.b16 %v1040
    %v5999 = vunpack.c.h.b16 %v1040
    %v6000 = vunpack.c.l.b16 %v1041
    %v6001 = vunpack.c.h.b16 %v1041
    %v6002 = vunpack.c.l.b16 %v1042
    %v6003 = vunpack.c.h.b16 %v1042
    %v6004 = vunpack.c.l.b16 %v1043
    %v6005 = vunpack.c.h.b16 %v1043
    %v6006 = vunpack.c.l.b16 %v1044
    %v6007 = vunpack.c.h.b16 %v1044
    %v6008 = vunpack.c.l.b16 %v1045
    %v6009 = vunpack.c.h.b16 %v1045
    %v6010 = vunpack.c.l.b16 %v1046
    %v6011 = vunpack.c.h.b16 %v1046
    %v6012 = vunpack.c.l.b16 %v1047
    %v6013 = vunpack.c.h.b16 %v1047
    %v6014 = vunpack.c.l.b16 %v1048
    %v6015 = vunpack.c.h.b16 %v1048
    %v6016 = vunpack.c.l.b16 %v1049
    %v6017 = vunpack.c.h.b16 %v1049
    %v6018 = vunpack.c.l.b16 %v1050
    %v6019 = vunpack.c.h.b16 %v1050
    %v6020 = vunpack.c.l.b16 %v1051
    %v6021 = vunpack.c.h.b16 %v1051
    %v6022 = vunpack.c.l.b16 %v1052
    %v6023 = vunpack.c.h.b16 %v1052
    %v6024 = vunpack.c.l.b16 %v1053
    %v6025 = vunpack.c.h.b16 %v1053
    %v6026 = vunpack.c.l.b16 %v1054
    %v6027 = vunpack.c.h.b16 %v1054
    %v6028 = vunpack.c.l.b16 %v1055
    %v6029 = vunpack.c.h.b16 %v1055
    %v6030 = vunpack.c.l.b16 %v1056
    %v6031 = vunpack.c.h.b16 %v1056
    %v6032 = vunpack.c.l.b16 %v1057
    %v6033 = vunpack.c.h.b16 %v1057
    %v6034 = vunpack.c.l.b16 %v1058
    %v6035 = vunpack.c.h.b16 %v1058
    %v6036 = vunpack.c.l.b16 %v1059
    %v6037 = vunpack.c.h.b16 %v1059
    %v6038 = vunpack.c.l.b16 %v1060
    %v6039 = vunpack.c.h.b16 %v1060
    %v6040 = vunpack.c.l.b16 %v1061
    %v6041 = vunpack.c.h.b16 %v1061
    %v6042 = vunpack.c.l.b16 %v1062
    %v6043 = vunpack.c.h.b16 %v1062
    %v6044 = vunpack.c.l.b16 %v1063
    %v6045 = vunpack.c.h.b16 %v1063
    %v6046 = vunpack.c.l.b16 %v1064
    %v6047 = vunpack.c.h.b16 %v1064
    %v6048 = vunpack.c.l.b16 %v1065
    %v6049 = vunpack.c.h.b16 %v1065
    %v6050 = vunpack.c.l.b16 %v1066
    %v6051 = vunpack.c.h.b16 %v1066
    %v6052 = vunpack.c.l.b16 %v1067
    %v6053 = vunpack.c.h.b16 %v1067
    %v6054 = vunpack.c.l.b16 %v1068
    %v6055 = vunpack.c.h.b16 %v1068
    %v6056 = vunpack.c.l.b16 %v1069
    %v6057 = vunpack.c.h.b16 %v1069
    %v6058 = vunpack.c.l.b16 %v1070
    %v6059 = vunpack.c.h.b16 %v1070
    %v6060 = vunpack.c.l.b16 %v1071
    %v6061 = vunpack.c.h.b16 %v1071
    %v6062 = vunpack.c.l.b16 %v1072
    %v6063 = vunpack.c.h.b16 %v1072
    %v6064 = vunpack.c.l.b16 %v1073
    %v6065 = vunpack.c.h.b16 %v1073
    %v6066 = vunpack.c.l.b16 %v1074
    %v6067 = vunpack.c.h.b16 %v1074
    %v6068 = vunpack.c.l.b16 %v1075
    %v6069 = vunpack.c.h.b16 %v1075
    %v6070 = vunpack.c.l.b16 %v1076
    %v6071 = vunpack.c.h.b16 %v1076
    %v6072 = vunpack.c.l.b16 %v1077
    %v6073 = vunpack.c.h.b16 %v1077
    %v6074 = vunpack.c.l.b16 %v1078
    %v6075 = vunpack.c.h.b16 %v1078
    %v6076 = vunpack.c.l.b16 %v1079
    %v6077 = vunpack.c.h.b16 %v1079
    %v6078 = vunpack.c.l.b16 %v1080
    %v6079 = vunpack.c.h.b16 %v1080
    %v6080 = vunpack.c.l.b16 %v1081
    %v6081 = vunpack.c.h.b16 %v1081
    %v6082 = vunpack.c.l.b16 %v1082
    %v6083 = vunpack.c.h.b16 %v1082
    %v6084 = vunpack.c.l.b16 %v1083
    %v6085 = vunpack.c.h.b16 %v1083
    %v6086 = vunpack.c.l.b16 %v1084
    %v6087 = vunpack.c.h.b16 %v1084
    %v6088 = vunpack.c.l.b16 %v1085
    %v6089 = vunpack.c.h.b16 %v1085
    %v6090 = vunpack.c.l.b16 %v1086
    %v6091 = vunpack.c.h.b16 %v1086
    %v6092 = vunpack.c.l.b16 %v1087
    %v6093 = vunpack.c.h.b16 %v1087
    %v6094 = vunpack.c.l.b16 %v1088
    %v6095 = vunpack.c.h.b16 %v1088
    %v6096 = vunpack.c.l.b16 %v1089
    %v6097 = vunpack.c.h.b16 %v1089
    %v6098 = vunpack.c.l.b16 %v1090
    %v6099 = vunpack.c.h.b16 %v1090
    %v6100 = vunpack.c.l.b16 %v1091
    %v6101 = vunpack.c.h.b16 %v1091
    %v6102 = vunpack.c.l.b16 %v1092
    %v6103 = vunpack.c.h.b16 %v1092
    %v6104 = vunpack.c.l.b16 %v1093
    %v6105 = vunpack.c.h.b16 %v1093
    %v6106 = vunpack.c.l.b16 %v1094
    %v6107 = vunpack.c.h.b16 %v1094
    %v6108 = vunpack.c.l.b16 %v1095
    %v6109 = vunpack.c.h.b16 %v1095
    %v6110 = vunpack.c.l.b16 %v1096
    %v6111 = vunpack.c.h.b16 %v1096
    %v6112 = vunpack.c.l.b16 %v1097
    %v6113 = vunpack.c.h.b16 %v1097
    %v6114 = vunpack.c.l.b16 %v1098
    %v6115 = vunpack.c.h.b16 %v1098
    %v6116 = vunpack.c.l.b16 %v1099
    %v6117 = vunpack.c.h.b16 %v1099
    %v6118 = vunpack.c.l.b16 %v1100
    %v6119 = vunpack.c.h.b16 %v1100
    %v6120 = vunpack.c.l.b16 %v1101
    %v6121 = vunpack.c.h.b16 %v1101
    %v6122 = vunpack.c.l.b16 %v1102
    %v6123 = vunpack.c.h.b16 %v1102
    %v6124 = vunpack.c.l.b16 %v1103
    %v6125 = vunpack.c.h.b16 %v1103
    %v6126 = vunpack.c.l.b16 %v1104
    %v6127 = vunpack.c.h.b16 %v1104
    %v6128 = vunpack.c.l.b16 %v1105
    %v6129 = vunpack.c.h.b16 %v1105
    %v6130 = vunpack.c.l.b16 %v1106
    %v6131 = vunpack.c.h.b16 %v1106
    %v6132 = vunpack.c.l.b16 %v1107
    %v6133 = vunpack.c.h.b16 %v1107
    %v6134 = vunpack.c.l.b16 %v1108
    %v6135 = vunpack.c.h.b16 %v1108
    %v6136 = vunpack.c.l.b16 %v1109
    %v6137 = vunpack.c.h.b16 %v1109
    %v6138 = vunpack.c.l.b16 %v1110
    %v6139 = vunpack.c.h.b16 %v1110
    %v6140 = vunpack.c.l.b16 %v1111
    %v6141 = vunpack.c.h.b16 %v1111
    %v6142 = vunpack.c.l.b16 %v1112
    %v6143 = vunpack.c.h.b16 %v1112
    %v6144 = vunpack.c.l.b16 %v1113
    %v6145 = vunpack.c.h.b16 %v1113
    %v6146 = vunpack.c.l.b16 %v1114
    %v6147 = vunpack.c.h.b16 %v1114
    %v6148 = vunpack.c.l.b16 %v1115
    %v6149 = vunpack.c.h.b16 %v1115
    %v6150 = vunpack.c.l.b16 %v1116
    %v6151 = vunpack.c.h.b16 %v1116
    %v6152 = vunpack.c.l.b16 %v1117
    %v6153 = vunpack.c.h.b16 %v1117
    %v6154 = vunpack.c.l.b16 %v1118
    %v6155 = vunpack.c.h.b16 %v1118
    %v6156 = vunpack.c.l.b16 %v1119
    %v6157 = vunpack.c.h.b16 %v1119
    %v6158 = vunpack.c.l.b16 %v1120
    %v6159 = vunpack.c.h.b16 %v1120
    %v6160 = vunpack.c.l.b16 %v1121
    %v6161 = vunpack.c.h.b16 %v1121
    %v6162 = vunpack.c.l.b16 %v1122
    %v6163 = vunpack.c.h.b16 %v1122
    %v6164 = vunpack.c.l.b16 %v1123
    %v6165 = vunpack.c.h.b16 %v1123
    %v6166 = vunpack.c.l.b16 %v1124
    %v6167 = vunpack.c.h.b16 %v1124
    %v6168 = vunpack.c.l.b16 %v1125
    %v6169 = vunpack.c.h.b16 %v1125
    %v6170 = vunpack.c.l.b16 %v1126
    %v6171 = vunpack.c.h.b16 %v1126
    %v6172 = vunpack.c.l.b16 %v1127
    %v6173 = vunpack.c.h.b16 %v1127
    %v6174 = vunpack.c.l.b16 %v1128
    %v6175 = vunpack.c.h.b16 %v1128
    %v6176 = vunpack.c.l.b16 %v1129
    %v6177 = vunpack.c.h.b16 %v1129
    %v6178 = vunpack.c.l.b16 %v1130
    %v6179 = vunpack.c.h.b16 %v1130
    %v6180 = vunpack.c.l.b16 %v1131
    %v6181 = vunpack.c.h.b16 %v1131
    %v6182 = vunpack.c.l.b16 %v1132
    %v6183 = vunpack.c.h.b16 %v1132
    %v6184 = vunpack.c.l.b16 %v1133
    %v6185 = vunpack.c.h.b16 %v1133
    %v6186 = vunpack.c.l.b16 %v1134
    %v6187 = vunpack.c.h.b16 %v1134
    %v6188 = vunpack.c.l.b16 %v1135
    %v6189 = vunpack.c.h.b16 %v1135
    %v6190 = vunpack.c.l.b16 %v1136
    %v6191 = vunpack.c.h.b16 %v1136
    %v6192 = vunpack.c.l.b16 %v1137
    %v6193 = vunpack.c.h.b16 %v1137
    %v6194 = vunpack.c.l.b16 %v1138
    %v6195 = vunpack.c.h.b16 %v1138
    %v6196 = vunpack.c.l.b16 %v1139
    %v6197 = vunpack.c.h.b16 %v1139
    %v6198 = vunpack.c.l.b16 %v1140
    %v6199 = vunpack.c.h.b16 %v1140
    %v6200 = vunpack.c.l.b16 %v1141
    %v6201 = vunpack.c.h.b16 %v1141
    %v6202 = vunpack.c.l.b16 %v1142
    %v6203 = vunpack.c.h.b16 %v1142
    %v6204 = vunpack.c.l.b16 %v1143
    %v6205 = vunpack.c.h.b16 %v1143
    %v6206 = vunpack.c.l.b16 %v1144
    %v6207 = vunpack.c.h.b16 %v1144
    %v6208 = vunpack.c.l.b16 %v1145
    %v6209 = vunpack.c.h.b16 %v1145
    %v6210 = vunpack.c.l.b16 %v1146
    %v6211 = vunpack.c.h.b16 %v1146
    %v6212 = vunpack.c.l.b16 %v1147
    %v6213 = vunpack.c.h.b16 %v1147
    %v6214 = vunpack.c.l.b16 %v1148
    %v6215 = vunpack.c.h.b16 %v1148
    %v6216 = vunpack.c.l.b16 %v1149
    %v6217 = vunpack.c.h.b16 %v1149
    %v6218 = vunpack.c.l.b16 %v1150
    %v6219 = vunpack.c.h.b16 %v1150
    %v6220 = vunpack.c.l.b16 %v1151
    %v6221 = vunpack.c.h.b16 %v1151
    %v6222 = vunpack.c.l.b16 %v1152
    %v6223 = vunpack.c.h.b16 %v1152
    %v6224 = vunpack.c.l.b16 %v1153
    %v6225 = vunpack.c.h.b16 %v1153
    %v6226 = vunpack.c.l.b16 %v1154
    %v6227 = vunpack.c.h.b16 %v1154
    %v6228 = vunpack.c.l.b16 %v1155
    %v6229 = vunpack.c.h.b16 %v1155
    %v6230 = vunpack.c.l.b16 %v1156
    %v6231 = vunpack.c.h.b16 %v1156
    %v6232 = vunpack.c.l.b16 %v1157
    %v6233 = vunpack.c.h.b16 %v1157
    %v6234 = vunpack.c.l.b16 %v1158
    %v6235 = vunpack.c.h.b16 %v1158
    %v6236 = vunpack.c.l.b16 %v1159
    %v6237 = vunpack.c.h.b16 %v1159
    %v6238 = vunpack.c.l.b16 %v1160
    %v6239 = vunpack.c.h.b16 %v1160
    %v6240 = vunpack.c.l.b16 %v1161
    %v6241 = vunpack.c.h.b16 %v1161
    %v6242 = vunpack.c.l.b16 %v1162
    %v6243 = vunpack.c.h.b16 %v1162
    %v6244 = vunpack.c.l.b16 %v1163
    %v6245 = vunpack.c.h.b16 %v1163
    %v6246 = vunpack.c.l.b16 %v1164
    %v6247 = vunpack.c.h.b16 %v1164
    %v6248 = vunpack.c.l.b16 %v1165
    %v6249 = vunpack.c.h.b16 %v1165
    %v6250 = vunpack.c.l.b16 %v1166
    %v6251 = vunpack.c.h.b16 %v1166
    %v6252 = vunpack.c.l.b16 %v1167
    %v6253 = vunpack.c.h.b16 %v1167
    %v6254 = vunpack.c.l.b16 %v1168
    %v6255 = vunpack.c.h.b16 %v1168
    %v6256 = vunpack.c.l.b16 %v1169
    %v6257 = vunpack.c.h.b16 %v1169
    %v6258 = vunpack.c.l.b16 %v1170
    %v6259 = vunpack.c.h.b16 %v1170
    %v6260 = vunpack.c.l.b16 %v1171
    %v6261 = vunpack.c.h.b16 %v1171
    %v6262 = vunpack.c.l.b16 %v1172
    %v6263 = vunpack.c.h.b16 %v1172
    %v6264 = vunpack.c.l.b16 %v1173
    %v6265 = vunpack.c.h.b16 %v1173
    %v6266 = vunpack.c.l.b16 %v1174
    %v6267 = vunpack.c.h.b16 %v1174
    %v6268 = vunpack.c.l.b16 %v1175
    %v6269 = vunpack.c.h.b16 %v1175
    %v6270 = vunpack.c.l.b16 %v1176
    %v6271 = vunpack.c.h.b16 %v1176
    %v6272 = vunpack.c.l.b16 %v1177
    %v6273 = vunpack.c.h.b16 %v1177
    %v6274 = vunpack.c.l.b16 %v1178
    %v6275 = vunpack.c.h.b16 %v1178
    %v6276 = vunpack.c.l.b16 %v1179
    %v6277 = vunpack.c.h.b16 %v1179
    %v6278 = vunpack.c.l.b16 %v1180
    %v6279 = vunpack.c.h.b16 %v1180
    %v6280 = vunpack.c.l.b16 %v1181
    %v6281 = vunpack.c.h.b16 %v1181
    %v6282 = vunpack.c.l.b16 %v1182
    %v6283 = vunpack.c.h.b16 %v1182
    %v6284 = vunpack.c.l.b16 %v1183
    %v6285 = vunpack.c.h.b16 %v1183
    %v6286 = vunpack.c.l.b16 %v1184
    %v6287 = vunpack.c.h.b16 %v1184
    %v6288 = vunpack.c.l.b16 %v1185
    %v6289 = vunpack.c.h.b16 %v1185
    %v6290 = vunpack.c.l.b16 %v1186
    %v6291 = vunpack.c.h.b16 %v1186
    %v6292 = vunpack.c.l.b16 %v1187
    %v6293 = vunpack.c.h.b16 %v1187
    %v6294 = vunpack.c.l.b16 %v1188
    %v6295 = vunpack.c.h.b16 %v1188
    %v6296 = vunpack.c.l.b16 %v1189
    %v6297 = vunpack.c.h.b16 %v1189
    %v6298 = vunpack.c.l.b16 %v1190
    %v6299 = vunpack.c.h.b16 %v1190
    %v6300 = vunpack.c.l.b16 %v1191
    %v6301 = vunpack.c.h.b16 %v1191
    %v6302 = vunpack.c.l.b16 %v1192
    %v6303 = vunpack.c.h.b16 %v1192
    %v6304 = vunpack.c.l.b16 %v1193
    %v6305 = vunpack.c.h.b16 %v1193
    %v6306 = vunpack.c.l.b16 %v1194
    %v6307 = vunpack.c.h.b16 %v1194
    %v6308 = vunpack.c.l.b16 %v1195
    %v6309 = vunpack.c.h.b16 %v1195
    %v6310 = vunpack.c.l.b16 %v1196
    %v6311 = vunpack.c.h.b16 %v1196
    %v6312 = vunpack.c.l.b16 %v1197
    %v6313 = vunpack.c.h.b16 %v1197
    %v6314 = vunpack.c.l.b16 %v1198
    %v6315 = vunpack.c.h.b16 %v1198
    %v6316 = vunpack.c.l.b16 %v1199
    %v6317 = vunpack.c.h.b16 %v1199
    %v6318 = vunpack.c.l.b16 %v1200
    %v6319 = vunpack.c.h.b16 %v1200
    %v6320 = vunpack.c.l.b16 %v1201
    %v6321 = vunpack.c.h.b16 %v1201
    %v6322 = vunpack.c.l.b16 %v1202
    %v6323 = vunpack.c.h.b16 %v1202
    %v6324 = vunpack.c.l.b16 %v1203
    %v6325 = vunpack.c.h.b16 %v1203
    %v6326 = vunpack.c.l.b16 %v1204
    %v6327 = vunpack.c.h.b16 %v1204
    %v6328 = vunpack.c.l.b16 %v1205
    %v6329 = vunpack.c.h.b16 %v1205
    %v6330 = vunpack.c.l.b16 %v1206
    %v6331 = vunpack.c.h.b16 %v1206
    %v6332 = vunpack.c.l.b16 %v1207
    %v6333 = vunpack.c.h.b16 %v1207
    %v6334 = vunpack.c.l.b16 %v1208
    %v6335 = vunpack.c.h.b16 %v1208
    %v6336 = vunpack.c.l.b16 %v1209
    %v6337 = vunpack.c.h.b16 %v1209
    %v6338 = vunpack.c.l.b16 %v1210
    %v6339 = vunpack.c.h.b16 %v1210
    %v6340 = vunpack.c.l.b16 %v1211
    %v6341 = vunpack.c.h.b16 %v1211
    %v6342 = vunpack.c.l.b16 %v1212
    %v6343 = vunpack.c.h.b16 %v1212
    %v6344 = vunpack.c.l.b16 %v1213
    %v6345 = vunpack.c.h.b16 %v1213
    %v6346 = vunpack.c.l.b16 %v1214
    %v6347 = vunpack.c.h.b16 %v1214
    %v6348 = vunpack.c.l.b16 %v1215
    %v6349 = vunpack.c.h.b16 %v1215
    %v6350 = vunpack.c.l.b16 %v1216
    %v6351 = vunpack.c.h.b16 %v1216
    %v6352 = vunpack.c.l.b16 %v1217
    %v6353 = vunpack.c.h.b16 %v1217
    %v6354 = vunpack.c.l.b16 %v1218
    %v6355 = vunpack.c.h.b16 %v1218
    %v6356 = vunpack.c.l.b16 %v1219
    %v6357 = vunpack.c.h.b16 %v1219
    %v6358 = vunpack.c.l.b16 %v1220
    %v6359 = vunpack.c.h.b16 %v1220
    %v6360 = vunpack.c.l.b16 %v1221
    %v6361 = vunpack.c.h.b16 %v1221
    %v6362 = vunpack.c.l.b16 %v1222
    %v6363 = vunpack.c.h.b16 %v1222
    %v6364 = vunpack.c.l.b16 %v1223
    %v6365 = vunpack.c.h.b16 %v1223
    %v6366 = vunpack.c.l.b16 %v1224
    %v6367 = vunpack.c.h.b16 %v1224
    %v6368 = vunpack.c.l.b16 %v1225
    %v6369 = vunpack.c.h.b16 %v1225
    %v6370 = vunpack.c.l.b16 %v1226
    %v6371 = vunpack.c.h.b16 %v1226
    %v6372 = vunpack.c.l.b16 %v1227
    %v6373 = vunpack.c.h.b16 %v1227
    %v6374 = vunpack.c.l.b16 %v1228
    %v6375 = vunpack.c.h.b16 %v1228
    %v6376 = vunpack.c.l.b16 %v1229
    %v6377 = vunpack.c.h.b16 %v1229
    %v6378 = vunpack.c.l.b16 %v1230
    %v6379 = vunpack.c.h.b16 %v1230
    %v6380 = vunpack.c.l.b16 %v1231
    %v6381 = vunpack.c.h.b16 %v1231
    %v6382 = vunpack.c.l.b16 %v1232
    %v6383 = vunpack.c.h.b16 %v1232
    %v6384 = vunpack.c.l.b16 %v1233
    %v6385 = vunpack.c.h.b16 %v1233
    %v6386 = vunpack.c.l.b16 %v1234
    %v6387 = vunpack.c.h.b16 %v1234
    %v6388 = vunpack.c.l.b16 %v1235
    %v6389 = vunpack.c.h.b16 %v1235
    %v6390 = vunpack.c.l.b16 %v1236
    %v6391 = vunpack.c.h.b16 %v1236
    %v6392 = vunpack.c.l.b16 %v1237
    %v6393 = vunpack.c.h.b16 %v1237
    %v6394 = vunpack.c.l.b16 %v1238
    %v6395 = vunpack.c.h.b16 %v1238
    %v6396 = vunpack.c.l.b16 %v1239
    %v6397 = vunpack.c.h.b16 %v1239
    %v6398 = vunpack.c.l.b16 %v1240
    %v6399 = vunpack.c.h.b16 %v1240
    %v6400 = vunpack.c.l.b16 %v1241
    %v6401 = vunpack.c.h.b16 %v1241
    %v6402 = vunpack.c.l.b16 %v1242
    %v6403 = vunpack.c.h.b16 %v1242
    %v6404 = vunpack.c.l.b16 %v1243
    %v6405 = vunpack.c.h.b16 %v1243
    %v6406 = vunpack.c.l.b16 %v1244
    %v6407 = vunpack.c.h.b16 %v1244
    %v6408 = vunpack.c.l.b16 %v1245
    %v6409 = vunpack.c.h.b16 %v1245
    %v6410 = vunpack.c.l.b16 %v1246
    %v6411 = vunpack.c.h.b16 %v1246
    %v6412 = vunpack.c.l.b16 %v1247
    %v6413 = vunpack.c.h.b16 %v1247
    %v6414 = vunpack.c.l.b16 %v1248
    %v6415 = vunpack.c.h.b16 %v1248
    %v6416 = vunpack.c.l.b16 %v1249
    %v6417 = vunpack.c.h.b16 %v1249
    %v6418 = vunpack.c.l.b16 %v1250
    %v6419 = vunpack.c.h.b16 %v1250
    %v6420 = vunpack.c.l.b16 %v1251
    %v6421 = vunpack.c.h.b16 %v1251
    %v6422 = vunpack.c.l.b16 %v1252
    %v6423 = vunpack.c.h.b16 %v1252
    %v6424 = vunpack.c.l.b16 %v1253
    %v6425 = vunpack.c.h.b16 %v1253
    %v6426 = vunpack.c.l.b16 %v1254
    %v6427 = vunpack.c.h.b16 %v1254
    %v6428 = vunpack.c.l.b16 %v1255
    %v6429 = vunpack.c.h.b16 %v1255
    %v6430 = vunpack.c.l.b16 %v1256
    %v6431 = vunpack.c.h.b16 %v1256
    %v6432 = vunpack.c.l.b16 %v1257
    %v6433 = vunpack.c.h.b16 %v1257
    %v6434 = vunpack.c.l.b16 %v1258
    %v6435 = vunpack.c.h.b16 %v1258
    %v6436 = vunpack.c.l.b16 %v1259
    %v6437 = vunpack.c.h.b16 %v1259
    %v6438 = vunpack.c.l.b16 %v1260
    %v6439 = vunpack.c.h.b16 %v1260
    %v6440 = vunpack.c.l.b16 %v1261
    %v6441 = vunpack.c.h.b16 %v1261
    %v6442 = vunpack.c.l.b16 %v1262
    %v6443 = vunpack.c.h.b16 %v1262
    %v6444 = vunpack.c.l.b16 %v1263
    %v6445 = vunpack.c.h.b16 %v1263
    %v6446 = vunpack.c.l.b16 %v1264
    %v6447 = vunpack.c.h.b16 %v1264
    %v6448 = vunpack.c.l.b16 %v1265
    %v6449 = vunpack.c.h.b16 %v1265
    %v6450 = vunpack.c.l.b16 %v1266
    %v6451 = vunpack.c.h.b16 %v1266
    %v6452 = vunpack.c.l.b16 %v1267
    %v6453 = vunpack.c.h.b16 %v1267
    %v6454 = vunpack.c.l.b16 %v1268
    %v6455 = vunpack.c.h.b16 %v1268
    %v6456 = vunpack.c.l.b16 %v1269
    %v6457 = vunpack.c.h.b16 %v1269
    %v6458 = vunpack.c.l.b16 %v1270
    %v6459 = vunpack.c.h.b16 %v1270
    %v6460 = vunpack.c.l.b16 %v1271
    %v6461 = vunpack.c.h.b16 %v1271
    %v6462 = vunpack.c.l.b16 %v1272
    %v6463 = vunpack.c.h.b16 %v1272
    %v6464 = vunpack.c.l.b16 %v1273
    %v6465 = vunpack.c.h.b16 %v1273
    %v6466 = vunpack.c.l.b16 %v1274
    %v6467 = vunpack.c.h.b16 %v1274
    %v6468 = vunpack.c.l.b16 %v1275
    %v6469 = vunpack.c.h.b16 %v1275
    %v6470 = vunpack.c.l.b16 %v1276
    %v6471 = vunpack.c.h.b16 %v1276
    %v6472 = vunpack.c.l.b16 %v1277
    %v6473 = vunpack.c.h.b16 %v1277
    %v6474 = vunpack.c.l.b16 %v1278
    %v6475 = vunpack.c.h.b16 %v1278
    %v6476 = vunpack.c.l.b16 %v1279
    %v6477 = vunpack.c.h.b16 %v1279
    %v6478 = vunpack.c.l.b16 %v1280
    %v6479 = vunpack.c.h.b16 %v1280
    %v6480 = vunpack.c.l.b16 %v1281
    %v6481 = vunpack.c.h.b16 %v1281
    %v6482 = vunpack.c.l.b16 %v1282
    %v6483 = vunpack.c.h.b16 %v1282
    %v6484 = vunpack.c.l.b16 %v1283
    %v6485 = vunpack.c.h.b16 %v1283
    %v6486 = vunpack.c.l.b16 %v1284
    %v6487 = vunpack.c.h.b16 %v1284
    %v6488 = vunpack.c.l.b16 %v1285
    %v6489 = vunpack.c.h.b16 %v1285
    %v6490 = vunpack.c.l.b16 %v1286
    %v6491 = vunpack.c.h.b16 %v1286
    %v6492 = vunpack.c.l.b16 %v1287
    %v6493 = vunpack.c.h.b16 %v1287
    %v6494 = vunpack.c.l.b16 %v1288
    %v6495 = vunpack.c.h.b16 %v1288
    %v6496 = vunpack.c.l.b16 %v1289
    %v6497 = vunpack.c.h.b16 %v1289
    %v6498 = vunpack.c.l.b16 %v1290
    %v6499 = vunpack.c.h.b16 %v1290
    %v6500 = vunpack.c.l.b16 %v1291
    %v6501 = vunpack.c.h.b16 %v1291
    %v6502 = vunpack.c.l.b16 %v1292
    %v6503 = vunpack.c.h.b16 %v1292
    %v6504 = vunpack.c.l.b16 %v1293
    %v6505 = vunpack.c.h.b16 %v1293
    %v6506 = vunpack.c.l.b16 %v1294
    %v6507 = vunpack.c.h.b16 %v1294
    %v6508 = vunpack.c.l.b16 %v1295
    %v6509 = vunpack.c.h.b16 %v1295
    %v6510 = vunpack.c.l.b16 %v1296
    %v6511 = vunpack.c.h.b16 %v1296
    %v6512 = vunpack.c.l.b16 %v1297
    %v6513 = vunpack.c.h.b16 %v1297
    %v6514 = vunpack.c.l.b16 %v1298
    %v6515 = vunpack.c.h.b16 %v1298
    %v6516 = vunpack.c.l.b16 %v1299
    %v6517 = vunpack.c.h.b16 %v1299
    %v6518 = vunpack.c.l.b16 %v1300
    %v6519 = vunpack.c.h.b16 %v1300
    %v6520 = vunpack.c.l.b16 %v1301
    %v6521 = vunpack.c.h.b16 %v1301
    %v6522 = vunpack.c.l.b16 %v1302
    %v6523 = vunpack.c.h.b16 %v1302
    %v6524 = vunpack.c.l.b16 %v1303
    %v6525 = vunpack.c.h.b16 %v1303
    %v6526 = vunpack.c.l.b16 %v1304
    %v6527 = vunpack.c.h.b16 %v1304
    %v6528 = vunpack.c.l.b16 %v1305
    %v6529 = vunpack.c.h.b16 %v1305
    %v6530 = vunpack.c.l.b16 %v1306
    %v6531 = vunpack.c.h.b16 %v1306
    %v6532 = vunpack.c.l.b16 %v1307
    %v6533 = vunpack.c.h.b16 %v1307
    %v6534 = vunpack.c.l.b16 %v1308
    %v6535 = vunpack.c.h.b16 %v1308
    %v6536 = vunpack.c.l.b16 %v1309
    %v6537 = vunpack.c.h.b16 %v1309
    %v6538 = vunpack.c.l.b16 %v1310
    %v6539 = vunpack.c.h.b16 %v1310
    %v6540 = vunpack.c.l.b16 %v1311
    %v6541 = vunpack.c.h.b16 %v1311
    %v6542 = vunpack.c.l.b16 %v1312
    %v6543 = vunpack.c.h.b16 %v1312
    %v6544 = vunpack.c.l.b16 %v1313
    %v6545 = vunpack.c.h.b16 %v1313
    %v6546 = vunpack.c.l.b16 %v1314
    %v6547 = vunpack.c.h.b16 %v1314
    %v6548 = vunpack.c.l.b16 %v1315
    %v6549 = vunpack.c.h.b16 %v1315
    %v6550 = vunpack.c.l.b16 %v1316
    %v6551 = vunpack.c.h.b16 %v1316
    %v6552 = vunpack.c.l.b16 %v1317
    %v6553 = vunpack.c.h.b16 %v1317
    %v6554 = vunpack.c.l.b16 %v1318
    %v6555 = vunpack.c.h.b16 %v1318
    %v6556 = vunpack.c.l.b16 %v1319
    %v6557 = vunpack.c.h.b16 %v1319
    %v6558 = vunpack.c.l.b16 %v1320
    %v6559 = vunpack.c.h.b16 %v1320
    %v6560 = vunpack.c.l.b16 %v1321
    %v6561 = vunpack.c.h.b16 %v1321
    %v6562 = vunpack.c.l.b16 %v1322
    %v6563 = vunpack.c.h.b16 %v1322
    %v6564 = vunpack.c.l.b16 %v1323
    %v6565 = vunpack.c.h.b16 %v1323
    %v6566 = vunpack.c.l.b16 %v1324
    %v6567 = vunpack.c.h.b16 %v1324
    %v6568 = vunpack.c.l.b16 %v1325
    %v6569 = vunpack.c.h.b16 %v1325
    %v6570 = vunpack.c.l.b16 %v1326
    %v6571 = vunpack.c.h.b16 %v1326
    %v6572 = vunpack.c.l.b16 %v1327
    %v6573 = vunpack.c.h.b16 %v1327
    %v6574 = vunpack.c.l.b16 %v1328
    %v6575 = vunpack.c.h.b16 %v1328
    %v6576 = vunpack.c.l.b16 %v1329
    %v6577 = vunpack.c.h.b16 %v1329
    %v6578 = vunpack.c.l.b16 %v1330
    %v6579 = vunpack.c.h.b16 %v1330
    %v6580 = vunpack.c.l.b16 %v1331
    %v6581 = vunpack.c.h.b16 %v1331
    %v6582 = vunpack.c.l.b16 %v1332
    %v6583 = vunpack.c.h.b16 %v1332
    %v6584 = vunpack.c.l.b16 %v1333
    %v6585 = vunpack.c.h.b16 %v1333
    %v6586 = vunpack.c.l.b16 %v1334
    %v6587 = vunpack.c.h.b16 %v1334
    %v6588 = vunpack.c.l.b16 %v1335
    %v6589 = vunpack.c.h.b16 %v1335
    %v6590 = vunpack.c.l.b16 %v1336
    %v6591 = vunpack.c.h.b16 %v1336
    %v6592 = vunpack.c.l.b16 %v1337
    %v6593 = vunpack.c.h.b16 %v1337
    %v6594 = vunpack.c.l.b16 %v1338
    %v6595 = vunpack.c.h.b16 %v1338
    %v6596 = vunpack.c.l.b16 %v1339
    %v6597 = vunpack.c.h.b16 %v1339
    %v6598 = vunpack.c.l.b16 %v1340
    %v6599 = vunpack.c.h.b16 %v1340
    %v6600 = vunpack.c.l.b16 %v1341
    %v6601 = vunpack.c.h.b16 %v1341
    %v6602 = vunpack.c.l.b16 %v1342
    %v6603 = vunpack.c.h.b16 %v1342
    %v6604 = vunpack.c.l.b16 %v1343
    %v6605 = vunpack.c.h.b16 %v1343
    %v6606 = vunpack.c.l.b16 %v1344
    %v6607 = vunpack.c.h.b16 %v1344
    %v6608 = vunpack.c.l.b16 %v1345
    %v6609 = vunpack.c.h.b16 %v1345
    %v6610 = vunpack.c.l.b16 %v1346
    %v6611 = vunpack.c.h.b16 %v1346
    %v6612 = vunpack.c.l.b16 %v1347
    %v6613 = vunpack.c.h.b16 %v1347
    %v6614 = vunpack.c.l.b16 %v1348
    %v6615 = vunpack.c.h.b16 %v1348
    %v6616 = vunpack.c.l.b16 %v1349
    %v6617 = vunpack.c.h.b16 %v1349
    %v6618 = vunpack.c.l.b16 %v1350
    %v6619 = vunpack.c.h.b16 %v1350
    %v6620 = vunpack.c.l.b16 %v1351
    %v6621 = vunpack.c.h.b16 %v1351
    %v6622 = vunpack.c.l.b16 %v1352
    %v6623 = vunpack.c.h.b16 %v1352
    %v6624 = vunpack.c.l.b16 %v1353
    %v6625 = vunpack.c.h.b16 %v1353
    %v6626 = vunpack.c.l.b16 %v1354
    %v6627 = vunpack.c.h.b16 %v1354
    %v6628 = vunpack.c.l.b16 %v1355
    %v6629 = vunpack.c.h.b16 %v1355
    %v6630 = vunpack.c.l.b16 %v1356
    %v6631 = vunpack.c.h.b16 %v1356
    %v6632 = vunpack.c.l.b16 %v1357
    %v6633 = vunpack.c.h.b16 %v1357
    %v6634 = vunpack.c.l.b16 %v1358
    %v6635 = vunpack.c.h.b16 %v1358
    %v6636 = vunpack.c.l.b16 %v1359
    %v6637 = vunpack.c.h.b16 %v1359
    %v6638 = vunpack.c.l.b16 %v1360
    %v6639 = vunpack.c.h.b16 %v1360
    %v6640 = vunpack.c.l.b16 %v1361
    %v6641 = vunpack.c.h.b16 %v1361
    %v6642 = vunpack.c.l.b16 %v1362
    %v6643 = vunpack.c.h.b16 %v1362
    %v6644 = vunpack.c.l.b16 %v1363
    %v6645 = vunpack.c.h.b16 %v1363
    %v6646 = vunpack.c.l.b16 %v1364
    %v6647 = vunpack.c.h.b16 %v1364
    %v6648 = vunpack.c.l.b16 %v1365
    %v6649 = vunpack.c.h.b16 %v1365
    %v6650 = vunpack.c.l.b16 %v1366
    %v6651 = vunpack.c.h.b16 %v1366
    %v6652 = vunpack.c.l.b16 %v1367
    %v6653 = vunpack.c.h.b16 %v1367
    %v6654 = vunpack.c.l.b16 %v1368
    %v6655 = vunpack.c.h.b16 %v1368
    %v6656 = vunpack.c.l.b16 %v1369
    %v6657 = vunpack.c.h.b16 %v1369
    %v6658 = vunpack.c.l.b16 %v1370
    %v6659 = vunpack.c.h.b16 %v1370
    %v6660 = vunpack.c.l.b16 %v1371
    %v6661 = vunpack.c.h.b16 %v1371
    %v6662 = vunpack.c.l.b16 %v1372
    %v6663 = vunpack.c.h.b16 %v1372
    %v6664 = vunpack.c.l.b16 %v1373
    %v6665 = vunpack.c.h.b16 %v1373
    %v6666 = vunpack.c.l.b16 %v1374
    %v6667 = vunpack.c.h.b16 %v1374
    %v6668 = vunpack.c.l.b16 %v1375
    %v6669 = vunpack.c.h.b16 %v1375
    %v6670 = vunpack.c.l.b16 %v1376
    %v6671 = vunpack.c.h.b16 %v1376
    %v6672 = vunpack.c.l.b16 %v1377
    %v6673 = vunpack.c.h.b16 %v1377
    %v6674 = vunpack.c.l.b16 %v1378
    %v6675 = vunpack.c.h.b16 %v1378
    %v6676 = vunpack.c.l.b16 %v1379
    %v6677 = vunpack.c.h.b16 %v1379
    %v6678 = vunpack.c.l.b16 %v1380
    %v6679 = vunpack.c.h.b16 %v1380
    %v6680 = vunpack.c.l.b16 %v1381
    %v6681 = vunpack.c.h.b16 %v1381
    %v6682 = vunpack.c.l.b16 %v1382
    %v6683 = vunpack.c.h.b16 %v1382
    %v6684 = vunpack.c.l.b16 %v1383
    %v6685 = vunpack.c.h.b16 %v1383
    %v6686 = vunpack.c.l.b16 %v1384
    %v6687 = vunpack.c.h.b16 %v1384
    %v6688 = vunpack.c.l.b16 %v1385
    %v6689 = vunpack.c.h.b16 %v1385
    %v6690 = vunpack.c.l.b16 %v1386
    %v6691 = vunpack.c.h.b16 %v1386
    %v6692 = vunpack.c.l.b16 %v1387
    %v6693 = vunpack.c.h.b16 %v1387
    %v6694 = vunpack.c.l.b16 %v1388
    %v6695 = vunpack.c.h.b16 %v1388
    %v6696 = vunpack.c.l.b16 %v1389
    %v6697 = vunpack.c.h.b16 %v1389
    %v6698 = vunpack.c.l.b16 %v1390
    %v6699 = vunpack.c.h.b16 %v1390
    %v6700 = vunpack.c.l.b16 %v1391
    %v6701 = vunpack.c.h.b16 %v1391
    %v6702 = vunpack.c.l.b16 %v1392
    %v6703 = vunpack.c.h.b16 %v1392
    %v6704 = vunpack.c.l.b16 %v1393
    %v6705 = vunpack.c.h.b16 %v1393
    %v6706 = vunpack.c.l.b16 %v1394
    %v6707 = vunpack.c.h.b16 %v1394
    %v6708 = vunpack.c.l.b16 %v1395
    %v6709 = vunpack.c.h.b16 %v1395
    %v6710 = vunpack.c.l.b16 %v1396
    %v6711 = vunpack.c.h.b16 %v1396
    %v6712 = vunpack.c.l.b16 %v1397
    %v6713 = vunpack.c.h.b16 %v1397
    %v6714 = vunpack.c.l.b16 %v1398
    %v6715 = vunpack.c.h.b16 %v1398
    %v6716 = vunpack.c.l.b16 %v1399
    %v6717 = vunpack.c.h.b16 %v1399
    %v6718 = vunpack.c.l.b16 %v1400
    %v6719 = vunpack.c.h.b16 %v1400
    %v6720 = vunpack.c.l.b16 %v1401
    %v6721 = vunpack.c.h.b16 %v1401
    %v6722 = vunpack.c.l.b16 %v1402
    %v6723 = vunpack.c.h.b16 %v1402
    %v6724 = vunpack.c.l.b16 %v1403
    %v6725 = vunpack.c.h.b16 %v1403
    %v6726 = vunpack.c.l.b16 %v1404
    %v6727 = vunpack.c.h.b16 %v1404
    %v6728 = vunpack.c.l.b16 %v1405
    %v6729 = vunpack.c.h.b16 %v1405
    %v6730 = vunpack.c.l.b16 %v1406
    %v6731 = vunpack.c.h.b16 %v1406
    %v6732 = vunpack.c.l.b16 %v1407
    %v6733 = vunpack.c.h.b16 %v1407
    %v6734 = vunpack.c.l.b16 %v1408
    %v6735 = vunpack.c.h.b16 %v1408
    %v6736 = vunpack.c.l.b16 %v1409
    %v6737 = vunpack.c.h.b16 %v1409
    %v6738 = vunpack.c.l.b16 %v1410
    %v6739 = vunpack.c.h.b16 %v1410
    %v6740 = vunpack.c.l.b16 %v1411
    %v6741 = vunpack.c.h.b16 %v1411
    %v6742 = vunpack.c.l.b16 %v1412
    %v6743 = vunpack.c.h.b16 %v1412
    %v6744 = vunpack.c.l.b16 %v1413
    %v6745 = vunpack.c.h.b16 %v1413
    %v6746 = vunpack.c.l.b16 %v1414
    %v6747 = vunpack.c.h.b16 %v1414
    %v6748 = vunpack.c.l.b16 %v1415
    %v6749 = vunpack.c.h.b16 %v1415
    %v6750 = vunpack.c.l.b16 %v1416
    %v6751 = vunpack.c.h.b16 %v1416
    %v6752 = vunpack.c.l.b16 %v1417
    %v6753 = vunpack.c.h.b16 %v1417
    %v6754 = vunpack.c.l.b16 %v1418
    %v6755 = vunpack.c.h.b16 %v1418
    %v6756 = vunpack.c.l.b16 %v1419
    %v6757 = vunpack.c.h.b16 %v1419
    %v6758 = vunpack.c.l.b16 %v1420
    %v6759 = vunpack.c.h.b16 %v1420
    %v6760 = vunpack.c.l.b16 %v1421
    %v6761 = vunpack.c.h.b16 %v1421
    %v6762 = vunpack.c.l.b16 %v1422
    %v6763 = vunpack.c.h.b16 %v1422
    %v6764 = vunpack.c.l.b16 %v1423
    %v6765 = vunpack.c.h.b16 %v1423
    %v6766 = vunpack.c.l.b16 %v1424
    %v6767 = vunpack.c.h.b16 %v1424
    %v6768 = vunpack.c.l.b16 %v1425
    %v6769 = vunpack.c.h.b16 %v1425
    %v6770 = vunpack.c.l.b16 %v1426
    %v6771 = vunpack.c.h.b16 %v1426
    %v6772 = vunpack.c.l.b16 %v1427
    %v6773 = vunpack.c.h.b16 %v1427
    %v6774 = vunpack.c.l.b16 %v1428
    %v6775 = vunpack.c.h.b16 %v1428
    %v6776 = vunpack.c.l.b16 %v1429
    %v6777 = vunpack.c.h.b16 %v1429
    %v6778 = vunpack.c.l.b16 %v1430
    %v6779 = vunpack.c.h.b16 %v1430
    %v6780 = vunpack.c.l.b16 %v1431
    %v6781 = vunpack.c.h.b16 %v1431
    %v6782 = vunpack.c.l.b16 %v1432
    %v6783 = vunpack.c.h.b16 %v1432
    %v6784 = vunpack.c.l.b16 %v1433
    %v6785 = vunpack.c.h.b16 %v1433
    %v6786 = vunpack.c.l.b16 %v1434
    %v6787 = vunpack.c.h.b16 %v1434
    %v6788 = vunpack.c.l.b16 %v1435
    %v6789 = vunpack.c.h.b16 %v1435
    %v6790 = vunpack.c.l.b16 %v1436
    %v6791 = vunpack.c.h.b16 %v1436
    %v6792 = vunpack.c.l.b16 %v1437
    %v6793 = vunpack.c.h.b16 %v1437
    %v6794 = vunpack.c.l.b16 %v1438
    %v6795 = vunpack.c.h.b16 %v1438
    %v6796 = vunpack.c.l.b16 %v1439
    %v6797 = vunpack.c.h.b16 %v1439
    %v6798 = vunpack.c.l.b16 %v1440
    %v6799 = vunpack.c.h.b16 %v1440
    %v6800 = vunpack.c.l.b16 %v1441
    %v6801 = vunpack.c.h.b16 %v1441
    %v6802 = vunpack.c.l.b16 %v1442
    %v6803 = vunpack.c.h.b16 %v1442
    %v6804 = vunpack.c.l.b16 %v1443
    %v6805 = vunpack.c.h.b16 %v1443
    %v6806 = vunpack.c.l.b16 %v1444
    %v6807 = vunpack.c.h.b16 %v1444
    %v6808 = vunpack.c.l.b16 %v1445
    %v6809 = vunpack.c.h.b16 %v1445
    %v6810 = vunpack.c.l.b16 %v1446
    %v6811 = vunpack.c.h.b16 %v1446
    %v6812 = vunpack.c.l.b16 %v1447
    %v6813 = vunpack.c.h.b16 %v1447
    %v6814 = vunpack.c.l.b16 %v1448
    %v6815 = vunpack.c.h.b16 %v1448
    %v6816 = vunpack.c.l.b16 %v1449
    %v6817 = vunpack.c.h.b16 %v1449
    %v6818 = vunpack.c.l.b16 %v1450
    %v6819 = vunpack.c.h.b16 %v1450
    %v6820 = vunpack.c.l.b16 %v1451
    %v6821 = vunpack.c.h.b16 %v1451
    %v6822 = vunpack.c.l.b16 %v1452
    %v6823 = vunpack.c.h.b16 %v1452
    %v6824 = vunpack.c.l.b16 %v1453
    %v6825 = vunpack.c.h.b16 %v1453
    %v6826 = vunpack.c.l.b16 %v1454
    %v6827 = vunpack.c.h.b16 %v1454
    %v6828 = vunpack.c.l.b16 %v1455
    %v6829 = vunpack.c.h.b16 %v1455
    %v6830 = vunpack.c.l.b16 %v1456
    %v6831 = vunpack.c.h.b16 %v1456
    %v6832 = vunpack.c.l.b16 %v1457
    %v6833 = vunpack.c.h.b16 %v1457
    %v6834 = vunpack.c.l.b16 %v1458
    %v6835 = vunpack.c.h.b16 %v1458
    %v6836 = vunpack.c.l.b16 %v1459
    %v6837 = vunpack.c.h.b16 %v1459
    %v6838 = vunpack.c.l.b16 %v1460
    %v6839 = vunpack.c.h.b16 %v1460
    %v6840 = vunpack.c.l.b16 %v1461
    %v6841 = vunpack.c.h.b16 %v1461
    %v6842 = vunpack.c.l.b16 %v1462
    %v6843 = vunpack.c.h.b16 %v1462
    %v6844 = vunpack.c.l.b16 %v1463
    %v6845 = vunpack.c.h.b16 %v1463
    %v6846 = vunpack.c.l.b16 %v1464
    %v6847 = vunpack.c.h.b16 %v1464
    %v6848 = vunpack.c.l.b16 %v1465
    %v6849 = vunpack.c.h.b16 %v1465
    %v6850 = vunpack.c.l.b16 %v1466
    %v6851 = vunpack.c.h.b16 %v1466
    %v6852 = vunpack.c.l.b16 %v1467
    %v6853 = vunpack.c.h.b16 %v1467
    %v6854 = vunpack.c.l.b16 %v1468
    %v6855 = vunpack.c.h.b16 %v1468
    %v6856 = vunpack.c.l.b16 %v1469
    %v6857 = vunpack.c.h.b16 %v1469
    %v6858 = vunpack.c.l.b16 %v1470
    %v6859 = vunpack.c.h.b16 %v1470
    %v6860 = vunpack.c.l.b16 %v1471
    %v6861 = vunpack.c.h.b16 %v1471
    %v6862 = vunpack.c.l.b16 %v1472
    %v6863 = vunpack.c.h.b16 %v1472
    %v6864 = vunpack.c.l.b16 %v1473
    %v6865 = vunpack.c.h.b16 %v1473
    %v6866 = vunpack.c.l.b16 %v1474
    %v6867 = vunpack.c.h.b16 %v1474
    %v6868 = vunpack.c.l.b16 %v1475
    %v6869 = vunpack.c.h.b16 %v1475
    %v6870 = vunpack.c.l.b16 %v1476
    %v6871 = vunpack.c.h.b16 %v1476
    %v6872 = vunpack.c.l.b16 %v1477
    %v6873 = vunpack.c.h.b16 %v1477
    %v6874 = vunpack.c.l.b16 %v1478
    %v6875 = vunpack.c.h.b16 %v1478
    %v6876 = vunpack.c.l.b16 %v1479
    %v6877 = vunpack.c.h.b16 %v1479
    %v6878 = vunpack.c.l.b16 %v1480
    %v6879 = vunpack.c.h.b16 %v1480
    %v6880 = vunpack.c.l.b16 %v1481
    %v6881 = vunpack.c.h.b16 %v1481
    %v6882 = vunpack.c.l.b16 %v1482
    %v6883 = vunpack.c.h.b16 %v1482
    %v6884 = vunpack.c.l.b16 %v1483
    %v6885 = vunpack.c.h.b16 %v1483
    %v6886 = vunpack.c.l.b16 %v1484
    %v6887 = vunpack.c.h.b16 %v1484
    %v6888 = vunpack.c.l.b16 %v1485
    %v6889 = vunpack.c.h.b16 %v1485
    %v6890 = vunpack.c.l.b16 %v1486
    %v6891 = vunpack.c.h.b16 %v1486
    %v6892 = vunpack.c.l.b16 %v1487
    %v6893 = vunpack.c.h.b16 %v1487
    %v6894 = vunpack.c.l.b16 %v1488
    %v6895 = vunpack.c.h.b16 %v1488
    %v6896 = vunpack.c.l.b16 %v1489
    %v6897 = vunpack.c.h.b16 %v1489
    %v6898 = vunpack.c.l.b16 %v1490
    %v6899 = vunpack.c.h.b16 %v1490
    %v6900 = vunpack.c.l.b16 %v1491
    %v6901 = vunpack.c.h.b16 %v1491
    %v6902 = vunpack.c.l.b16 %v1492
    %v6903 = vunpack.c.h.b16 %v1492
    %v6904 = vunpack.c.l.b16 %v1493
    %v6905 = vunpack.c.h.b16 %v1493
    %v6906 = vunpack.c.l.b16 %v1494
    %v6907 = vunpack.c.h.b16 %v1494
    %v6908 = vunpack.c.l.b16 %v1495
    %v6909 = vunpack.c.h.b16 %v1495
    %v6910 = vunpack.c.l.b16 %v1496
    %v6911 = vunpack.c.h.b16 %v1496
    %v6912 = vunpack.c.l.b16 %v1497
    %v6913 = vunpack.c.h.b16 %v1497
    %v6914 = vunpack.c.l.b16 %v1498
    %v6915 = vunpack.c.h.b16 %v1498
    %v6916 = vunpack.c.l.b16 %v1499
    %v6917 = vunpack.c.h.b16 %v1499
    %v6918 = vunpack.c.l.b16 %v1500
    %v6919 = vunpack.c.h.b16 %v1500
    %v6920 = vunpack.c.l.b16 %v1501
    %v6921 = vunpack.c.h.b16 %v1501
    %v6922 = vunpack.c.l.b16 %v1502
    %v6923 = vunpack.c.h.b16 %v1502
    %v6924 = vunpack.c.l.b16 %v1503
    %v6925 = vunpack.c.h.b16 %v1503
    %v6926 = vunpack.c.l.b16 %v1504
    %v6927 = vunpack.c.h.b16 %v1504
    %v6928 = vunpack.c.l.b16 %v1505
    %v6929 = vunpack.c.h.b16 %v1505
    %v6930 = vunpack.c.l.b16 %v1506
    %v6931 = vunpack.c.h.b16 %v1506
    %v6932 = vunpack.c.l.b16 %v1507
    %v6933 = vunpack.c.h.b16 %v1507
    %v6934 = vunpack.c.l.b16 %v1508
    %v6935 = vunpack.c.h.b16 %v1508
    %v6936 = vunpack.c.l.b16 %v1509
    %v6937 = vunpack.c.h.b16 %v1509
    %v6938 = vunpack.c.l.b16 %v1510
    %v6939 = vunpack.c.h.b16 %v1510
    %v6940 = vunpack.c.l.b16 %v1511
    %v6941 = vunpack.c.h.b16 %v1511
    %v6942 = vunpack.c.l.b16 %v1512
    %v6943 = vunpack.c.h.b16 %v1512
    %v6944 = vunpack.c.l.b16 %v1513
    %v6945 = vunpack.c.h.b16 %v1513
    %v6946 = vunpack.c.l.b16 %v1514
    %v6947 = vunpack.c.h.b16 %v1514
    %v6948 = vunpack.c.l.b16 %v1515
    %v6949 = vunpack.c.h.b16 %v1515
    %v6950 = vunpack.c.l.b16 %v1516
    %v6951 = vunpack.c.h.b16 %v1516
    %v6952 = vunpack.c.l.b16 %v1517
    %v6953 = vunpack.c.h.b16 %v1517
    %v6954 = vunpack.c.l.b16 %v1518
    %v6955 = vunpack.c.h.b16 %v1518
    %v6956 = vunpack.c.l.b16 %v1519
    %v6957 = vunpack.c.h.b16 %v1519
    %v6958 = vunpack.c.l.b16 %v1520
    %v6959 = vunpack.c.h.b16 %v1520
    %v6960 = vunpack.c.l.b16 %v1521
    %v6961 = vunpack.c.h.b16 %v1521
    %v6962 = vunpack.c.l.b16 %v1522
    %v6963 = vunpack.c.h.b16 %v1522
    %v6964 = vunpack.c.l.b16 %v1523
    %v6965 = vunpack.c.h.b16 %v1523
    %v6966 = vunpack.c.l.b16 %v1524
    %v6967 = vunpack.c.h.b16 %v1524
    %v6968 = vunpack.c.l.b16 %v1525
    %v6969 = vunpack.c.h.b16 %v1525
    %v6970 = vunpack.c.l.b16 %v1526
    %v6971 = vunpack.c.h.b16 %v1526
    %v6972 = vunpack.c.l.b16 %v1527
    %v6973 = vunpack.c.h.b16 %v1527
    %v6974 = vunpack.c.l.b16 %v1528
    %v6975 = vunpack.c.h.b16 %v1528
    %v6976 = vunpack.c.l.b16 %v1529
    %v6977 = vunpack.c.h.b16 %v1529
    %v6978 = vunpack.c.l.b16 %v1530
    %v6979 = vunpack.c.h.b16 %v1530
    %v6980 = vunpack.c.l.b16 %v1531
    %v6981 = vunpack.c.h.b16 %v1531
    %v6982 = vunpack.c.l.b16 %v1532
    %v6983 = vunpack.c.h.b16 %v1532
    %v6984 = vunpack.c.l.b16 %v1533
    %v6985 = vunpack.c.h.b16 %v1533
    %v6986 = vunpack.c.l.b16 %v1534
    %v6987 = vunpack.c.h.b16 %v1534
    %v6988 = vunpack.c.l.b16 %v1535
    %v6989 = vunpack.c.h.b16 %v1535
    %v6990 = vunpack.c.l.b16 %v1536
    %v6991 = vunpack.c.h.b16 %v1536
    %v6992 = vunpack.c.l.b16 %v1537
    %v6993 = vunpack.c.h.b16 %v1537
    %v6994 = vunpack.c.l.b16 %v1538
    %v6995 = vunpack.c.h.b16 %v1538
    %v6996 = vunpack.c.l.b16 %v1539
    %v6997 = vunpack.c.h.b16 %v1539
    %v6998 = vunpack.c.l.b16 %v1540
    %v6999 = vunpack.c.h.b16 %v1540
    %v7000 = vunpack.c.l.b16 %v1541
    %v7001 = vunpack.c.h.b16 %v1541
    %v7002 = vunpack.c.l.b16 %v1542
    %v7003 = vunpack.c.h.b16 %v1542
    %v7004 = vunpack.c.l.b16 %v1543
    %v7005 = vunpack.c.h.b16 %v1543
    %v7006 = vunpack.c.l.b16 %v1544
    %v7007 = vunpack.c.h.b16 %v1544
    %v7008 = vunpack.c.l.b16 %v1545
    %v7009 = vunpack.c.h.b16 %v1545
    %v7010 = vunpack.c.l.b16 %v1546
    %v7011 = vunpack.c.h.b16 %v1546
    %v7012 = vunpack.c.l.b16 %v1547
    %v7013 = vunpack.c.h.b16 %v1547
    %v7014 = vunpack.c.l.b16 %v1548
    %v7015 = vunpack.c.h.b16 %v1548
    %v7016 = vunpack.c.l.b16 %v1549
    %v7017 = vunpack.c.h.b16 %v1549
    %v7018 = vunpack.c.l.b16 %v1550
    %v7019 = vunpack.c.h.b16 %v1550
    %v7020 = vunpack.c.l.b16 %v1551
    %v7021 = vunpack.c.h.b16 %v1551
    %v7022 = vunpack.c.l.b16 %v1552
    %v7023 = vunpack.c.h.b16 %v1552
    %v7024 = vunpack.c.l.b16 %v1553
    %v7025 = vunpack.c.h.b16 %v1553
    %v7026 = vunpack.c.l.b16 %v1554
    %v7027 = vunpack.c.h.b16 %v1554
    %v7028 = vunpack.c.l.b16 %v1555
    %v7029 = vunpack.c.h.b16 %v1555
    %v7030 = vunpack.c.l.b16 %v1556
    %v7031 = vunpack.c.h.b16 %v1556
    %v7032 = vunpack.c.l.b16 %v1557
    %v7033 = vunpack.c.h.b16 %v1557
    %v7034 = vunpack.c.l.b16 %v1558
    %v7035 = vunpack.c.h.b16 %v1558
    %v7036 = vunpack.c.l.b16 %v1559
    %v7037 = vunpack.c.h.b16 %v1559
    %v7038 = vunpack.c.l.b16 %v1560
    %v7039 = vunpack.c.h.b16 %v1560
    %v7040 = vunpack.c.l.b16 %v1561
    %v7041 = vunpack.c.h.b16 %v1561
    %v7042 = vunpack.c.l.b16 %v1562
    %v7043 = vunpack.c.h.b16 %v1562
    %v7044 = vunpack.c.l.b16 %v1563
    %v7045 = vunpack.c.h.b16 %v1563
    %v7046 = vunpack.c.l.b16 %v1564
    %v7047 = vunpack.c.h.b16 %v1564
    %v7048 = vunpack.c.l.b16 %v1565
    %v7049 = vunpack.c.h.b16 %v1565
    %v7050 = vunpack.c.l.b16 %v1566
    %v7051 = vunpack.c.h.b16 %v1566
    %v7052 = vunpack.c.l.b16 %v1567
    %v7053 = vunpack.c.h.b16 %v1567
    %v7054 = vunpack.c.l.b16 %v1568
    %v7055 = vunpack.c.h.b16 %v1568
    %v7056 = vunpack.c.l.b16 %v1569
    %v7057 = vunpack.c.h.b16 %v1569
    %v7058 = vunpack.c.l.b16 %v1570
    %v7059 = vunpack.c.h.b16 %v1570
    %v7060 = vunpack.c.l.b16 %v1571
    %v7061 = vunpack.c.h.b16 %v1571
    %v7062 = vunpack.c.l.b16 %v1572
    %v7063 = vunpack.c.h.b16 %v1572
    %v7064 = vunpack.c.l.b16 %v1573
    %v7065 = vunpack.c.h.b16 %v1573
    %v7066 = vunpack.c.l.b16 %v1574
    %v7067 = vunpack.c.h.b16 %v1574
    %v7068 = vunpack.c.l.b16 %v1575
    %v7069 = vunpack.c.h.b16 %v1575
    %v7070 = vunpack.c.l.b16 %v1576
    %v7071 = vunpack.c.h.b16 %v1576
    %v7072 = vunpack.c.l.b16 %v1577
    %v7073 = vunpack.c.h.b16 %v1577
    %v7074 = vunpack.c.l.b16 %v1578
    %v7075 = vunpack.c.h.b16 %v1578
    %v7076 = vunpack.c.l.b16 %v1579
    %v7077 = vunpack.c.h.b16 %v1579
    %v7078 = vunpack.c.l.b16 %v1580
    %v7079 = vunpack.c.h.b16 %v1580
    %v7080 = vunpack.c.l.b16 %v1581
    %v7081 = vunpack.c.h.b16 %v1581
    %v7082 = vunpack.c.l.b16 %v1582
    %v7083 = vunpack.c.h.b16 %v1582
    %v7084 = vunpack.c.l.b16 %v1583
    %v7085 = vunpack.c.h.b16 %v1583
    %v7086 = vunpack.c.l.b16 %v1584
    %v7087 = vunpack.c.h.b16 %v1584
    %v7088 = vunpack.c.l.b16 %v1585
    %v7089 = vunpack.c.h.b16 %v1585
    %v7090 = vunpack.c.l.b16 %v1586
    %v7091 = vunpack.c.h.b16 %v1586
    %v7092 = vunpack.c.l.b16 %v1587
    %v7093 = vunpack.c.h.b16 %v1587
    %v7094 = vunpack.c.l.b16 %v1588
    %v7095 = vunpack.c.h.b16 %v1588
    %v7096 = vunpack.c.l.b16 %v1589
    %v7097 = vunpack.c.h.b16 %v1589
    %v7098 = vunpack.c.l.b16 %v1590
    %v7099 = vunpack.c.h.b16 %v1590
    %v7100 = vunpack.c.l.b16 %v1591
    %v7101 = vunpack.c.h.b16 %v1591
    %v7102 = vunpack.c.l.b16 %v1592
    %v7103 = vunpack.c.h.b16 %v1592
    %v7104 = vunpack.c.l.b16 %v1593
    %v7105 = vunpack.c.h.b16 %v1593
    %v7106 = vunpack.c.l.b16 %v1594
    %v7107 = vunpack.c.h.b16 %v1594
    %v7108 = vunpack.c.l.b16 %v1595
    %v7109 = vunpack.c.h.b16 %v1595
    %v7110 = vunpack.c.l.b16 %v1596
    %v7111 = vunpack.c.h.b16 %v1596
    %v7112 = vunpack.c.l.b16 %v1597
    %v7113 = vunpack.c.h.b16 %v1597
    %v7114 = vunpack.c.l.b16 %v1598
    %v7115 = vunpack.c.h.b16 %v1598
    %v7116 = vunpack.c.l.b16 %v1599
    %v7117 = vunpack.c.h.b16 %v1599
    %v7118 = vunpack.c.l.b16 %v1600
    %v7119 = vunpack.c.h.b16 %v1600
    %v7120 = vunpack.c.l.b16 %v1601
    %v7121 = vunpack.c.h.b16 %v1601
    %v7122 = vunpack.c.l.b16 %v1602
    %v7123 = vunpack.c.h.b16 %v1602
    %v7124 = vunpack.c.l.b16 %v1603
    %v7125 = vunpack.c.h.b16 %v1603
    %v7126 = vunpack.c.l.b16 %v1604
    %v7127 = vunpack.c.h.b16 %v1604
    %v7128 = vunpack.c.l.b16 %v1605
    %v7129 = vunpack.c.h.b16 %v1605
    %v7130 = vunpack.c.l.b16 %v1606
    %v7131 = vunpack.c.h.b16 %v1606
    %v7132 = vunpack.c.l.b16 %v1607
    %v7133 = vunpack.c.h.b16 %v1607
    %v7134 = vunpack.c.l.b16 %v1608
    %v7135 = vunpack.c.h.b16 %v1608
    %v7136 = vunpack.c.l.b16 %v1609
    %v7137 = vunpack.c.h.b16 %v1609
    %v7138 = vunpack.c.l.b16 %v1610
    %v7139 = vunpack.c.h.b16 %v1610
    %v7140 = vunpack.c.l.b16 %v1611
    %v7141 = vunpack.c.h.b16 %v1611
    %v7142 = vunpack.c.l.b16 %v1612
    %v7143 = vunpack.c.h.b16 %v1612
    %v7144 = vunpack.c.l.b16 %v1613
    %v7145 = vunpack.c.h.b16 %v1613
    %v7146 = vunpack.c.l.b16 %v1614
    %v7147 = vunpack.c.h.b16 %v1614
    %v7148 = vunpack.c.l.b16 %v1615
    %v7149 = vunpack.c.h.b16 %v1615
    %v7150 = vunpack.c.l.b16 %v1616
    %v7151 = vunpack.c.h.b16 %v1616
    %v7152 = vunpack.c.l.b16 %v1617
    %v7153 = vunpack.c.h.b16 %v1617
    %v7154 = vunpack.c.l.b16 %v1618
    %v7155 = vunpack.c.h.b16 %v1618
    %v7156 = vunpack.c.l.b16 %v1619
    %v7157 = vunpack.c.h.b16 %v1619
    %v7158 = vunpack.c.l.b16 %v1620
    %v7159 = vunpack.c.h.b16 %v1620
    %v7160 = vunpack.c.l.b16 %v1621
    %v7161 = vunpack.c.h.b16 %v1621
    %v7162 = vunpack.c.l.b16 %v1622
    %v7163 = vunpack.c.h.b16 %v1622
    %v7164 = vunpack.c.l.b16 %v1623
    %v7165 = vunpack.c.h.b16 %v1623
    %v7166 = vunpack.c.l.b16 %v1624
    %v7167 = vunpack.c.h.b16 %v1624
    %v7168 = vunpack.c.l.b16 %v1625
    %v7169 = vunpack.c.h.b16 %v1625
    %v7170 = vunpack.c.l.b16 %v1626
    %v7171 = vunpack.c.h.b16 %v1626
    %v7172 = vunpack.c.l.b16 %v1627
    %v7173 = vunpack.c.h.b16 %v1627
    %v7174 = vunpack.c.l.b16 %v1628
    %v7175 = vunpack.c.h.b16 %v1628
    %v7176 = vunpack.c.l.b16 %v1629
    %v7177 = vunpack.c.h.b16 %v1629
    %v7178 = vunpack.c.l.b16 %v1630
    %v7179 = vunpack.c.h.b16 %v1630
    %v7180 = vunpack.c.l.b16 %v1631
    %v7181 = vunpack.c.h.b16 %v1631
    %v7182 = vunpack.c.l.b16 %v1632
    %v7183 = vunpack.c.h.b16 %v1632
    %v7184 = vunpack.c.l.b16 %v1633
    %v7185 = vunpack.c.h.b16 %v1633
    %v7186 = vunpack.c.l.b16 %v1634
    %v7187 = vunpack.c.h.b16 %v1634
    %v7188 = vunpack.c.l.b16 %v1635
    %v7189 = vunpack.c.h.b16 %v1635
    %v7190 = vunpack.c.l.b16 %v1636
    %v7191 = vunpack.c.h.b16 %v1636
    %v7192 = vunpack.c.l.b16 %v1637
    %v7193 = vunpack.c.h.b16 %v1637
    %v7194 = vunpack.c.l.b16 %v1638
    %v7195 = vunpack.c.h.b16 %v1638
    %v7196 = vunpack.c.l.b16 %v1639
    %v7197 = vunpack.c.h.b16 %v1639
    %v7198 = vunpack.c.l.b16 %v1640
    %v7199 = vunpack.c.h.b16 %v1640
    %v7200 = vunpack.c.l.b16 %v1641
    %v7201 = vunpack.c.h.b16 %v1641
    %v7202 = vunpack.c.l.b16 %v1642
    %v7203 = vunpack.c.h.b16 %v1642
    %v7204 = vunpack.c.l.b16 %v1643
    %v7205 = vunpack.c.h.b16 %v1643
    %v7206 = vunpack.c.l.b16 %v1644
    %v7207 = vunpack.c.h.b16 %v1644
    %v7208 = vunpack.c.l.b16 %v1645
    %v7209 = vunpack.c.h.b16 %v1645
    %v7210 = vunpack.c.l.b16 %v1646
    %v7211 = vunpack.c.h.b16 %v1646
    %v7212 = vunpack.c.l.b16 %v1647
    %v7213 = vunpack.c.h.b16 %v1647
    %v7214 = vunpack.c.l.b16 %v1648
    %v7215 = vunpack.c.h.b16 %v1648
    %v7216 = vunpack.c.l.b16 %v1649
    %v7217 = vunpack.c.h.b16 %v1649
    %v7218 = vunpack.c.l.b16 %v1650
    %v7219 = vunpack.c.h.b16 %v1650
    %v7220 = vunpack.c.l.b16 %v1651
    %v7221 = vunpack.c.h.b16 %v1651
    %v7222 = vunpack.c.l.b16 %v1652
    %v7223 = vunpack.c.h.b16 %v1652
    %v7224 = vunpack.c.l.b16 %v1653
    %v7225 = vunpack.c.h.b16 %v1653
    %v7226 = vunpack.c.l.b16 %v1654
    %v7227 = vunpack.c.h.b16 %v1654
    %v7228 = vunpack.c.l.b16 %v1655
    %v7229 = vunpack.c.h.b16 %v1655
    %v7230 = vunpack.c.l.b16 %v1656
    %v7231 = vunpack.c.h.b16 %v1656
    %v7232 = vunpack.c.l.b16 %v1657
    %v7233 = vunpack.c.h.b16 %v1657
    %v7234 = vunpack.c.l.b16 %v1658
    %v7235 = vunpack.c.h.b16 %v1658
    %v7236 = vunpack.c.l.b16 %v1659
    %v7237 = vunpack.c.h.b16 %v1659
    %v7238 = vunpack.c.l.b16 %v1660
    %v7239 = vunpack.c.h.b16 %v1660
    %v7240 = vunpack.c.l.b16 %v1661
    %v7241 = vunpack.c.h.b16 %v1661
    %v7242 = vunpack.c.l.b16 %v1662
    %v7243 = vunpack.c.h.b16 %v1662
    %v7244 = vunpack.c.l.b16 %v1663
    %v7245 = vunpack.c.h.b16 %v1663
    %v7246 = vunpack.c.l.b16 %v1664
    %v7247 = vunpack.c.h.b16 %v1664
    %v7248 = vunpack.c.l.b16 %v1665
    %v7249 = vunpack.c.h.b16 %v1665
    %v7250 = vunpack.c.l.b16 %v1666
    %v7251 = vunpack.c.h.b16 %v1666
    %v7252 = vunpack.c.l.b16 %v1667
    %v7253 = vunpack.c.h.b16 %v1667
    %v7254 = vunpack.c.l.b16 %v1668
    %v7255 = vunpack.c.h.b16 %v1668
    %v7256 = vunpack.c.l.b16 %v1669
    %v7257 = vunpack.c.h.b16 %v1669
    %v7258 = vunpack.c.l.b16 %v1670
    %v7259 = vunpack.c.h.b16 %v1670
    %v7260 = vunpack.c.l.b16 %v1671
    %v7261 = vunpack.c.h.b16 %v1671
    %v7262 = vunpack.c.l.b16 %v1672
    %v7263 = vunpack.c.h.b16 %v1672
    %v7264 = vunpack.c.l.b16 %v1673
    %v7265 = vunpack.c.h.b16 %v1673
    %v7266 = vunpack.c.l.b16 %v1674
    %v7267 = vunpack.c.h.b16 %v1674
    %v7268 = vunpack.c.l.b16 %v1675
    %v7269 = vunpack.c.h.b16 %v1675
    %v7270 = vunpack.c.l.b16 %v1676
    %v7271 = vunpack.c.h.b16 %v1676
    %v7272 = vunpack.c.l.b16 %v1677
    %v7273 = vunpack.c.h.b16 %v1677
    %v7274 = vunpack.c.l.b16 %v1678
    %v7275 = vunpack.c.h.b16 %v1678
    %v7276 = vunpack.c.l.b16 %v1679
    %v7277 = vunpack.c.h.b16 %v1679
    %v7278 = vunpack.c.l.b16 %v1680
    %v7279 = vunpack.c.h.b16 %v1680
    %v7280 = vunpack.c.l.b16 %v1681
    %v7281 = vunpack.c.h.b16 %v1681
    %v7282 = vunpack.c.l.b16 %v1682
    %v7283 = vunpack.c.h.b16 %v1682
    %v7284 = vunpack.c.l.b16 %v1683
    %v7285 = vunpack.c.h.b16 %v1683
    %v7286 = vunpack.c.l.b16 %v1684
    %v7287 = vunpack.c.h.b16 %v1684
    %v7288 = vunpack.c.l.b16 %v1685
    %v7289 = vunpack.c.h.b16 %v1685
    %v7290 = vunpack.c.l.b16 %v1686
    %v7291 = vunpack.c.h.b16 %v1686
    %v7292 = vunpack.c.l.b16 %v1687
    %v7293 = vunpack.c.h.b16 %v1687
    %v7294 = vunpack.c.l.b16 %v1688
    %v7295 = vunpack.c.h.b16 %v1688
    %v7296 = vunpack.c.l.b16 %v1689
    %v7297 = vunpack.c.h.b16 %v1689
    %v7298 = vunpack.c.l.b16 %v1690
    %v7299 = vunpack.c.h.b16 %v1690
    %v7300 = vunpack.c.l.b16 %v1691
    %v7301 = vunpack.c.h.b16 %v1691
    %v7302 = vunpack.c.l.b16 %v1692
    %v7303 = vunpack.c.h.b16 %v1692
    %v7304 = vunpack.c.l.b16 %v1693
    %v7305 = vunpack.c.h.b16 %v1693
    %v7306 = vunpack.c.l.b16 %v1694
    %v7307 = vunpack.c.h.b16 %v1694
    %v7308 = vunpack.c.l.b16 %v1695
    %v7309 = vunpack.c.h.b16 %v1695
    %v7310 = vunpack.c.l.b16 %v1696
    %v7311 = vunpack.c.h.b16 %v1696
    %v7312 = vunpack.c.l.b16 %v1697
    %v7313 = vunpack.c.h.b16 %v1697
    %v7314 = vunpack.c.l.b16 %v1698
    %v7315 = vunpack.c.h.b16 %v1698
    %v7316 = vunpack.c.l.b16 %v1699
    %v7317 = vunpack.c.h.b16 %v1699
    %v7318 = vunpack.c.l.b16 %v1700
    %v7319 = vunpack.c.h.b16 %v1700
    %v7320 = vunpack.c.l.b16 %v1701
    %v7321 = vunpack.c.h.b16 %v1701
    %v7322 = vunpack.c.l.b16 %v1702
    %v7323 = vunpack.c.h.b16 %v1702
    %v7324 = vunpack.c.l.b16 %v1703
    %v7325 = vunpack.c.h.b16 %v1703
    %v7326 = vunpack.c.l.b16 %v1704
    %v7327 = vunpack.c.h.b16 %v1704
    %v7328 = vunpack.c.l.b16 %v1705
    %v7329 = vunpack.c.h.b16 %v1705
    %v7330 = vunpack.c.l.b16 %v1706
    %v7331 = vunpack.c.h.b16 %v1706
    %v7332 = vunpack.c.l.b16 %v1707
    %v7333 = vunpack.c.h.b16 %v1707
    %v7334 = vunpack.c.l.b16 %v1708
    %v7335 = vunpack.c.h.b16 %v1708
    %v7336 = vunpack.c.l.b16 %v1709
    %v7337 = vunpack.c.h.b16 %v1709
    %v7338 = vunpack.c.l.b16 %v1710
    %v7339 = vunpack.c.h.b16 %v1710
    %v7340 = vunpack.c.l.b16 %v1711
    %v7341 = vunpack.c.h.b16 %v1711
    %v7342 = vunpack.c.l.b16 %v1712
    %v7343 = vunpack.c.h.b16 %v1712
    %v7344 = vunpack.c.l.b16 %v1713
    %v7345 = vunpack.c.h.b16 %v1713
    %v7346 = vunpack.c.l.b16 %v1714
    %v7347 = vunpack.c.h.b16 %v1714
    %v7348 = vunpack.c.l.b16 %v1715
    %v7349 = vunpack.c.h.b16 %v1715
    %v7350 = vunpack.c.l.b16 %v1716
    %v7351 = vunpack.c.h.b16 %v1716
    %v7352 = vunpack.c.l.b16 %v1717
    %v7353 = vunpack.c.h.b16 %v1717
    %v7354 = vunpack.c.l.b16 %v1718
    %v7355 = vunpack.c.h.b16 %v1718
    %v7356 = vunpack.c.l.b16 %v1719
    %v7357 = vunpack.c.h.b16 %v1719
    %v7358 = vunpack.c.l.b16 %v1720
    %v7359 = vunpack.c.h.b16 %v1720
    %v7360 = vunpack.c.l.b16 %v1721
    %v7361 = vunpack.c.h.b16 %v1721
    %v7362 = vunpack.c.l.b16 %v1722
    %v7363 = vunpack.c.h.b16 %v1722
    %v7364 = vunpack.c.l.b16 %v1723
    %v7365 = vunpack.c.h.b16 %v1723
    %v7366 = vunpack.c.l.b16 %v1724
    %v7367 = vunpack.c.h.b16 %v1724
    %v7368 = vunpack.c.l.b16 %v1725
    %v7369 = vunpack.c.h.b16 %v1725
    %v7370 = vunpack.c.l.b16 %v1726
    %v7371 = vunpack.c.h.b16 %v1726
    %v7372 = vunpack.c.l.b16 %v1727
    %v7373 = vunpack.c.h.b16 %v1727
    %v7374 = vunpack.c.l.b16 %v1728
    %v7375 = vunpack.c.h.b16 %v1728
    %v7376 = vunpack.c.l.b16 %v1729
    %v7377 = vunpack.c.h.b16 %v1729
    %v7378 = vunpack.c.l.b16 %v1730
    %v7379 = vunpack.c.h.b16 %v1730
    %v7380 = vunpack.c.l.b16 %v1731
    %v7381 = vunpack.c.h.b16 %v1731
    %v7382 = vunpack.c.l.b16 %v1732
    %v7383 = vunpack.c.h.b16 %v1732
    %v7384 = vunpack.c.l.b16 %v1733
    %v7385 = vunpack.c.h.b16 %v1733
    %v7386 = vunpack.c.l.b16 %v1734
    %v7387 = vunpack.c.h.b16 %v1734
    %v7388 = vunpack.c.l.b16 %v1735
    %v7389 = vunpack.c.h.b16 %v1735
    %v7390 = vunpack.c.l.b16 %v1736
    %v7391 = vunpack.c.h.b16 %v1736
    %v7392 = vunpack.c.l.b16 %v1737
    %v7393 = vunpack.c.h.b16 %v1737
    %v7394 = vunpack.c.l.b16 %v1738
    %v7395 = vunpack.c.h.b16 %v1738
    %v7396 = vunpack.c.l.b16 %v1739
    %v7397 = vunpack.c.h.b16 %v1739
    %v7398 = vunpack.c.l.b16 %v1740
    %v7399 = vunpack.c.h.b16 %v1740
    %v7400 = vunpack.c.l.b16 %v1741
    %v7401 = vunpack.c.h.b16 %v1741
    %v7402 = vunpack.c.l.b16 %v1742
    %v7403 = vunpack.c.h.b16 %v1742
    %v7404 = vunpack.c.l.b16 %v1743
    %v7405 = vunpack.c.h.b16 %v1743
    %v7406 = vunpack.c.l.b16 %v1744
    %v7407 = vunpack.c.h.b16 %v1744
    %v7408 = vunpack.c.l.b16 %v1745
    %v7409 = vunpack.c.h.b16 %v1745
    %v7410 = vunpack.c.l.b16 %v1746
    %v7411 = vunpack.c.h.b16 %v1746
    %v7412 = vunpack.c.l.b16 %v1747
    %v7413 = vunpack.c.h.b16 %v1747
    %v7414 = vunpack.c.l.b16 %v1748
    %v7415 = vunpack.c.h.b16 %v1748
    %v7416 = vunpack.c.l.b16 %v1749
    %v7417 = vunpack.c.h.b16 %v1749
    %v7418 = vunpack.c.l.b16 %v1750
    %v7419 = vunpack.c.h.b16 %v1750
    %v7420 = vunpack.c.l.b16 %v1751
    %v7421 = vunpack.c.h.b16 %v1751
    %v7422 = vunpack.c.l.b16 %v1752
    %v7423 = vunpack.c.h.b16 %v1752
    %v7424 = vunpack.c.l.b16 %v1753
    %v7425 = vunpack.c.h.b16 %v1753
    %v7426 = vunpack.c.l.b16 %v1754
    %v7427 = vunpack.c.h.b16 %v1754
    %v7428 = vunpack.c.l.b16 %v1755
    %v7429 = vunpack.c.h.b16 %v1755
    %v7430 = vunpack.c.l.b16 %v1756
    %v7431 = vunpack.c.h.b16 %v1756
    %v7432 = vunpack.c.l.b16 %v1757
    %v7433 = vunpack.c.h.b16 %v1757
    %v7434 = vunpack.c.l.b16 %v1758
    %v7435 = vunpack.c.h.b16 %v1758
    %v7436 = vunpack.c.l.b16 %v1759
    %v7437 = vunpack.c.h.b16 %v1759
    %v7438 = vunpack.c.l.b16 %v1760
    %v7439 = vunpack.c.h.b16 %v1760
    %v7440 = vunpack.c.l.b16 %v1761
    %v7441 = vunpack.c.h.b16 %v1761
    %v7442 = vunpack.c.l.b16 %v1762
    %v7443 = vunpack.c.h.b16 %v1762
    %v7444 = vunpack.c.l.b16 %v1763
    %v7445 = vunpack.c.h.b16 %v1763
    %v7446 = vunpack.c.l.b16 %v1764
    %v7447 = vunpack.c.h.b16 %v1764
    %v7448 = vunpack.c.l.b16 %v1765
    %v7449 = vunpack.c.h.b16 %v1765
    %v7450 = vunpack.c.l.b16 %v1766
    %v7451 = vunpack.c.h.b16 %v1766
    %v7452 = vunpack.c.l.b16 %v1767
    %v7453 = vunpack.c.h.b16 %v1767
    %v7454 = vunpack.c.l.b16 %v1768
    %v7455 = vunpack.c.h.b16 %v1768
    %v7456 = vunpack.c.l.b16 %v1769
    %v7457 = vunpack.c.h.b16 %v1769
    %v7458 = vunpack.c.l.b16 %v1770
    %v7459 = vunpack.c.h.b16 %v1770
    %v7460 = vunpack.c.l.b16 %v1771
    %v7461 = vunpack.c.h.b16 %v1771
    %v7462 = vunpack.c.l.b16 %v1772
    %v7463 = vunpack.c.h.b16 %v1772
    %v7464 = vunpack.c.l.b16 %v1773
    %v7465 = vunpack.c.h.b16 %v1773
    %v7466 = vunpack.c.l.b16 %v1774
    %v7467 = vunpack.c.h.b16 %v1774
    %v7468 = vunpack.c.l.b16 %v1775
    %v7469 = vunpack.c.h.b16 %v1775
    %v7470 = vunpack.c.l.b16 %v1776
    %v7471 = vunpack.c.h.b16 %v1776
    %v7472 = vunpack.c.l.b16 %v1777
    %v7473 = vunpack.c.h.b16 %v1777
    %v7474 = vunpack.c.l.b16 %v1778
    %v7475 = vunpack.c.h.b16 %v1778
    %v7476 = vunpack.c.l.b16 %v1779
    %v7477 = vunpack.c.h.b16 %v1779
    %v7478 = vunpack.c.l.b16 %v1780
    %v7479 = vunpack.c.h.b16 %v1780
    %v7480 = vunpack.c.l.b16 %v1781
    %v7481 = vunpack.c.h.b16 %v1781
    %v7482 = vunpack.c.l.b16 %v1782
    %v7483 = vunpack.c.h.b16 %v1782
    %v7484 = vunpack.c.l.b16 %v1783
    %v7485 = vunpack.c.h.b16 %v1783
    %v7486 = vunpack.c.l.b16 %v1784
    %v7487 = vunpack.c.h.b16 %v1784
    %v7488 = vunpack.c.l.b16 %v1785
    %v7489 = vunpack.c.h.b16 %v1785
    %v7490 = vunpack.c.l.b16 %v1786
    %v7491 = vunpack.c.h.b16 %v1786
    %v7492 = vunpack.c.l.b16 %v1787
    %v7493 = vunpack.c.h.b16 %v1787
    %v7494 = vunpack.c.l.b16 %v1788
    %v7495 = vunpack.c.h.b16 %v1788
    %v7496 = vunpack.c.l.b16 %v1789
    %v7497 = vunpack.c.h.b16 %v1789
    %v7498 = vunpack.c.l.b16 %v1790
    %v7499 = vunpack.c.h.b16 %v1790
    %v7500 = vunpack.c.l.b16 %v1791
    %v7501 = vunpack.c.h.b16 %v1791
    %v7502 = vunpack.c.l.b16 %v1792
    %v7503 = vunpack.c.h.b16 %v1792
    %v7504 = vunpack.c.l.b16 %v1793
    %v7505 = vunpack.c.h.b16 %v1793
    %v7506 = vunpack.c.l.b16 %v1794
    %v7507 = vunpack.c.h.b16 %v1794
    %v7508 = vunpack.c.l.b16 %v1795
    %v7509 = vunpack.c.h.b16 %v1795
    %v7510 = vunpack.c.l.b16 %v1796
    %v7511 = vunpack.c.h.b16 %v1796
    %v7512 = vunpack.c.l.b16 %v1797
    %v7513 = vunpack.c.h.b16 %v1797
    %v7514 = vunpack.c.l.b16 %v1798
    %v7515 = vunpack.c.h.b16 %v1798
    %v7516 = vunpack.c.l.b16 %v1799
    %v7517 = vunpack.c.h.b16 %v1799
    %v7518 = vunpack.c.l.b16 %v1800
    %v7519 = vunpack.c.h.b16 %v1800
    %v7520 = vunpack.c.l.b16 %v1801
    %v7521 = vunpack.c.h.b16 %v1801
    %v7522 = vunpack.c.l.b16 %v1802
    %v7523 = vunpack.c.h.b16 %v1802
    %v7524 = vunpack.c.l.b16 %v1803
    %v7525 = vunpack.c.h.b16 %v1803
    %v7526 = vunpack.c.l.b16 %v1804
    %v7527 = vunpack.c.h.b16 %v1804
    %v7528 = vunpack.c.l.b16 %v1805
    %v7529 = vunpack.c.h.b16 %v1805
    %v7530 = vunpack.c.l.b16 %v1806
    %v7531 = vunpack.c.h.b16 %v1806
    %v7532 = vunpack.c.l.b16 %v1807
    %v7533 = vunpack.c.h.b16 %v1807
    %v7534 = vunpack.c.l.b16 %v1808
    %v7535 = vunpack.c.h.b16 %v1808
    %v7536 = vunpack.c.l.b16 %v1809
    %v7537 = vunpack.c.h.b16 %v1809
    %v7538 = vunpack.c.l.b16 %v1810
    %v7539 = vunpack.c.h.b16 %v1810
    %v7540 = vunpack.c.l.b16 %v1811
    %v7541 = vunpack.c.h.b16 %v1811
    %v7542 = vunpack.c.l.b16 %v1812
    %v7543 = vunpack.c.h.b16 %v1812
    %v7544 = vunpack.c.l.b16 %v1813
    %v7545 = vunpack.c.h.b16 %v1813
    %v7546 = vunpack.c.l.b16 %v1814
    %v7547 = vunpack.c.h.b16 %v1814
    %v7548 = vunpack.c.l.b16 %v1815
    %v7549 = vunpack.c.h.b16 %v1815
    %v7550 = vunpack.c.l.b16 %v1816
    %v7551 = vunpack.c.h.b16 %v1816
    %v7552 = vunpack.c.l.b16 %v1817
    %v7553 = vunpack.c.h.b16 %v1817
    %v7554 = vunpack.c.l.b16 %v1818
    %v7555 = vunpack.c.h.b16 %v1818
    %v7556 = vunpack.c.l.b16 %v1819
    %v7557 = vunpack.c.h.b16 %v1819
    %v7558 = vunpack.c.l.b16 %v1820
    %v7559 = vunpack.c.h.b16 %v1820
    %v7560 = vunpack.c.l.b16 %v1821
    %v7561 = vunpack.c.h.b16 %v1821
    %v7562 = vunpack.c.l.b16 %v1822
    %v7563 = vunpack.c.h.b16 %v1822
    %v7564 = vunpack.c.l.b16 %v1823
    %v7565 = vunpack.c.h.b16 %v1823
    %v7566 = vunpack.c.l.b16 %v1824
    %v7567 = vunpack.c.h.b16 %v1824
    %v7568 = vunpack.c.l.b16 %v1825
    %v7569 = vunpack.c.h.b16 %v1825
    %v7570 = vunpack.c.l.b16 %v1826
    %v7571 = vunpack.c.h.b16 %v1826
    %v7572 = vunpack.c.l.b16 %v1827
    %v7573 = vunpack.c.h.b16 %v1827
    %v7574 = vunpack.c.l.b16 %v1828
    %v7575 = vunpack.c.h.b16 %v1828
    %v7576 = vunpack.c.l.b16 %v1829
    %v7577 = vunpack.c.h.b16 %v1829
    %v7578 = vunpack.c.l.b16 %v1830
    %v7579 = vunpack.c.h.b16 %v1830
    %v7580 = vunpack.c.l.b16 %v1831
    %v7581 = vunpack.c.h.b16 %v1831
    %v7582 = vunpack.c.l.b16 %v1832
    %v7583 = vunpack.c.h.b16 %v1832
    %v7584 = vunpack.c.l.b16 %v1833
    %v7585 = vunpack.c.h.b16 %v1833
    %v7586 = vunpack.c.l.b16 %v1834
    %v7587 = vunpack.c.h.b16 %v1834
    %v7588 = vunpack.c.l.b16 %v1835
    %v7589 = vunpack.c.h.b16 %v1835
    %v7590 = vunpack.c.l.b16 %v1836
    %v7591 = vunpack.c.h.b16 %v1836
    %v7592 = vunpack.c.l.b16 %v1837
    %v7593 = vunpack.c.h.b16 %v1837
    %v7594 = vunpack.c.l.b16 %v1838
    %v7595 = vunpack.c.h.b16 %v1838
    %v7596 = vunpack.c.l.b16 %v1839
    %v7597 = vunpack.c.h.b16 %v1839
    %v7598 = vunpack.c.l.b16 %v1840
    %v7599 = vunpack.c.h.b16 %v1840
    %v7600 = vunpack.c.l.b16 %v1841
    %v7601 = vunpack.c.h.b16 %v1841
    %v7602 = vunpack.c.l.b16 %v1842
    %v7603 = vunpack.c.h.b16 %v1842
    %v7604 = vunpack.c.l.b16 %v1843
    %v7605 = vunpack.c.h.b16 %v1843
    %v7606 = vunpack.c.l.b16 %v1844
    %v7607 = vunpack.c.h.b16 %v1844
    %v7608 = vunpack.c.l.b16 %v1845
    %v7609 = vunpack.c.h.b16 %v1845
    %v7610 = vunpack.c.l.b16 %v1846
    %v7611 = vunpack.c.h.b16 %v1846
    %v7612 = vunpack.c.l.b16 %v1847
    %v7613 = vunpack.c.h.b16 %v1847
    %v7614 = vunpack.c.l.b16 %v1848
    %v7615 = vunpack.c.h.b16 %v1848
    %v7616 = vunpack.c.l.b16 %v1849
    %v7617 = vunpack.c.h.b16 %v1849
    %v7618 = vunpack.c.l.b16 %v1850
    %v7619 = vunpack.c.h.b16 %v1850
    %v7620 = vunpack.c.l.b16 %v1851
    %v7621 = vunpack.c.h.b16 %v1851
    %v7622 = vunpack.c.l.b16 %v1852
    %v7623 = vunpack.c.h.b16 %v1852
    %v7624 = vunpack.c.l.b16 %v1853
    %v7625 = vunpack.c.h.b16 %v1853
    %v7626 = vunpack.c.l.b16 %v1854
    %v7627 = vunpack.c.h.b16 %v1854
    %v7628 = vunpack.c.l.b16 %v1855
    %v7629 = vunpack.c.h.b16 %v1855
    %v7630 = vunpack.c.l.b16 %v1856
    %v7631 = vunpack.c.h.b16 %v1856
    %v7632 = vunpack.c.l.b16 %v1857
    %v7633 = vunpack.c.h.b16 %v1857
    %v7634 = vunpack.c.l.b16 %v1858
    %v7635 = vunpack.c.h.b16 %v1858
    %v7636 = vunpack.c.l.b16 %v1859
    %v7637 = vunpack.c.h.b16 %v1859
    %v7638 = vunpack.c.l.b16 %v1860
    %v7639 = vunpack.c.h.b16 %v1860
    %v7640 = vunpack.c.l.b16 %v1861
    %v7641 = vunpack.c.h.b16 %v1861
    %v7642 = vunpack.c.l.b16 %v1862
    %v7643 = vunpack.c.h.b16 %v1862
    %v7644 = vunpack.c.l.b16 %v1863
    %v7645 = vunpack.c.h.b16 %v1863
    %v7646 = vunpack.c.l.b16 %v1864
    %v7647 = vunpack.c.h.b16 %v1864
    %v7648 = vunpack.c.l.b16 %v1865
    %v7649 = vunpack.c.h.b16 %v1865
    %v7650 = vunpack.c.l.b16 %v1866
    %v7651 = vunpack.c.h.b16 %v1866
    %v7652 = vunpack.c.l.b16 %v1867
    %v7653 = vunpack.c.h.b16 %v1867
    %v7654 = vunpack.c.l.b16 %v1868
    %v7655 = vunpack.c.h.b16 %v1868
    %v7656 = vunpack.c.l.b16 %v1869
    %v7657 = vunpack.c.h.b16 %v1869
    %v7658 = vunpack.c.l.b16 %v1870
    %v7659 = vunpack.c.h.b16 %v1870
    %v7660 = vunpack.c.l.b16 %v1871
    %v7661 = vunpack.c.h.b16 %v1871
    %v7662 = vunpack.c.l.b16 %v1872
    %v7663 = vunpack.c.h.b16 %v1872
    %v7664 = vunpack.c.l.b16 %v1873
    %v7665 = vunpack.c.h.b16 %v1873
    %v7666 = vunpack.c.l.b16 %v1874
    %v7667 = vunpack.c.h.b16 %v1874
    %v7668 = vunpack.c.l.b16 %v1875
    %v7669 = vunpack.c.h.b16 %v1875
    %v7670 = vunpack.c.l.b16 %v1876
    %v7671 = vunpack.c.h.b16 %v1876
    %v7672 = vunpack.c.l.b16 %v1877
    %v7673 = vunpack.c.h.b16 %v1877
    %v7674 = vunpack.c.l.b16 %v1878
    %v7675 = vunpack.c.h.b16 %v1878
    %v7676 = vunpack.c.l.b16 %v1879
    %v7677 = vunpack.c.h.b16 %v1879
    %v7678 = vunpack.c.l.b16 %v1880
    %v7679 = vunpack.c.h.b16 %v1880
    %v7680 = vunpack.c.l.b16 %v1881
    %v7681 = vunpack.c.h.b16 %v1881
    %v7682 = vunpack.c.l.b16 %v1882
    %v7683 = vunpack.c.h.b16 %v1882
    %v7684 = vunpack.c.l.b16 %v1883
    %v7685 = vunpack.c.h.b16 %v1883
    %v7686 = vunpack.c.l.b16 %v1884
    %v7687 = vunpack.c.h.b16 %v1884
    %v7688 = vunpack.c.l.b16 %v1885
    %v7689 = vunpack.c.h.b16 %v1885
    %v7690 = vunpack.c.l.b16 %v1886
    %v7691 = vunpack.c.h.b16 %v1886
    %v7692 = vunpack.c.l.b16 %v1887
    %v7693 = vunpack.c.h.b16 %v1887
    %v7694 = vunpack.c.l.b16 %v1888
    %v7695 = vunpack.c.h.b16 %v1888
    %v7696 = vunpack.c.l.b16 %v1889
    %v7697 = vunpack.c.h.b16 %v1889
    %v7698 = vunpack.c.l.b16 %v1890
    %v7699 = vunpack.c.h.b16 %v1890
    %v7700 = vunpack.c.l.b16 %v1891
    %v7701 = vunpack.c.h.b16 %v1891
    %v7702 = vunpack.c.l.b16 %v1892
    %v7703 = vunpack.c.h.b16 %v1892
    %v7704 = vunpack.c.l.b16 %v1893
    %v7705 = vunpack.c.h.b16 %v1893
    %v7706 = vunpack.c.l.b16 %v1894
    %v7707 = vunpack.c.h.b16 %v1894
    %v7708 = vunpack.c.l.b16 %v1895
    %v7709 = vunpack.c.h.b16 %v1895
    %v7710 = vunpack.c.l.b16 %v1896
    %v7711 = vunpack.c.h.b16 %v1896
    %v7712 = vunpack.c.l.b16 %v1897
    %v7713 = vunpack.c.h.b16 %v1897
    %v7714 = vunpack.c.l.b16 %v1898
    %v7715 = vunpack.c.h.b16 %v1898
    %v7716 = vunpack.c.l.b16 %v1899
    %v7717 = vunpack.c.h.b16 %v1899
    %v7718 = vunpack.c.l.b16 %v1900
    %v7719 = vunpack.c.h.b16 %v1900
    %v7720 = vunpack.c.l.b16 %v1901
    %v7721 = vunpack.c.h.b16 %v1901
    %v7722 = vunpack.c.l.b16 %v1902
    %v7723 = vunpack.c.h.b16 %v1902
    %v7724 = vunpack.c.l.b16 %v1903
    %v7725 = vunpack.c.h.b16 %v1903
    %v7726 = vunpack.c.l.b16 %v1904
    %v7727 = vunpack.c.h.b16 %v1904
    %v7728 = vunpack.c.l.b16 %v1905
    %v7729 = vunpack.c.h.b16 %v1905
    %v7730 = vunpack.c.l.b16 %v1906
    %v7731 = vunpack.c.h.b16 %v1906
    %v7732 = vunpack.c.l.b16 %v1907
    %v7733 = vunpack.c.h.b16 %v1907
    %v7734 = vunpack.c.l.b16 %v1908
    %v7735 = vunpack.c.h.b16 %v1908
    %v7736 = vunpack.c.l.b16 %v1909
    %v7737 = vunpack.c.h.b16 %v1909
    %v7738 = vunpack.c.l.b16 %v1910
    %v7739 = vunpack.c.h.b16 %v1910
    %v7740 = vunpack.c.l.b16 %v1911
    %v7741 = vunpack.c.h.b16 %v1911
    %v7742 = vunpack.c.l.b16 %v1912
    %v7743 = vunpack.c.h.b16 %v1912
    %v7744 = vunpack.c.l.b16 %v1913
    %v7745 = vunpack.c.h.b16 %v1913
    %v7746 = vunpack.c.l.b16 %v1914
    %v7747 = vunpack.c.h.b16 %v1914
    %v7748 = vunpack.c.l.b16 %v1915
    %v7749 = vunpack.c.h.b16 %v1915
    %v7750 = vunpack.c.l.b16 %v1916
    %v7751 = vunpack.c.h.b16 %v1916
    %v7752 = vunpack.c.l.b16 %v1917
    %v7753 = vunpack.c.h.b16 %v1917
    %v7754 = vunpack.c.l.b16 %v1918
    %v7755 = vunpack.c.h.b16 %v1918
    %v7756 = vunpack.c.l.b16 %v1919
    %v7757 = vunpack.c.h.b16 %v1919
    %v7758 = vunpack.c.l.b16 %v1920
    %v7759 = vunpack.c.h.b16 %v1920
    %v7760 = vunpack.c.l.b16 %v1921
    %v7761 = vunpack.c.h.b16 %v1921
    %v7762 = vunpack.c.l.b16 %v1922
    %v7763 = vunpack.c.h.b16 %v1922
    %v7764 = vunpack.c.l.b16 %v1923
    %v7765 = vunpack.c.h.b16 %v1923
    %v7766 = vunpack.c.l.b16 %v1924
    %v7767 = vunpack.c.h.b16 %v1924
    %v7768 = vunpack.c.l.b16 %v1925
    %v7769 = vunpack.c.h.b16 %v1925
    %v7770 = vunpack.c.l.b16 %v1926
    %v7771 = vunpack.c.h.b16 %v1926
    %v7772 = vunpack.c.l.b16 %v1927
    %v7773 = vunpack.c.h.b16 %v1927
    %v7774 = vunpack.c.l.b16 %v1928
    %v7775 = vunpack.c.h.b16 %v1928
    %v7776 = vunpack.c.l.b16 %v1929
    %v7777 = vunpack.c.h.b16 %v1929
    %v7778 = vunpack.c.l.b16 %v1930
    %v7779 = vunpack.c.h.b16 %v1930
    %v7780 = vunpack.c.l.b16 %v1931
    %v7781 = vunpack.c.h.b16 %v1931
    %v7782 = vunpack.c.l.b16 %v1932
    %v7783 = vunpack.c.h.b16 %v1932
    %v7784 = vunpack.c.l.b16 %v1933
    %v7785 = vunpack.c.h.b16 %v1933
    %v7786 = vunpack.c.l.b16 %v1934
    %v7787 = vunpack.c.h.b16 %v1934
    %v7788 = vunpack.c.l.b16 %v1935
    %v7789 = vunpack.c.h.b16 %v1935
    %v7790 = vunpack.c.l.b16 %v1936
    %v7791 = vunpack.c.h.b16 %v1936
    %v7792 = vunpack.c.l.b16 %v1937
    %v7793 = vunpack.c.h.b16 %v1937
    %v7794 = vunpack.c.l.b16 %v1938
    %v7795 = vunpack.c.h.b16 %v1938
    %v7796 = vunpack.c.l.b16 %v1939
    %v7797 = vunpack.c.h.b16 %v1939
    %v7798 = vunpack.c.l.b16 %v1940
    %v7799 = vunpack.c.h.b16 %v1940
    %v7800 = vunpack.c.l.b16 %v1941
    %v7801 = vunpack.c.h.b16 %v1941
    %v7802 = vunpack.c.l.b16 %v1942
    %v7803 = vunpack.c.h.b16 %v1942
    %v7804 = vunpack.c.l.b16 %v1943
    %v7805 = vunpack.c.h.b16 %v1943
    %v7806 = vunpack.c.l.b16 %v1944
    %v7807 = vunpack.c.h.b16 %v1944
    %v7808 = vunpack.c.l.b16 %v1945
    %v7809 = vunpack.c.h.b16 %v1945
    %v7810 = vunpack.c.l.b16 %v1946
    %v7811 = vunpack.c.h.b16 %v1946
    %v7812 = vunpack.c.l.b16 %v1947
    %v7813 = vunpack.c.h.b16 %v1947
    %v7814 = vunpack.c.l.b16 %v1948
    %v7815 = vunpack.c.h.b16 %v1948
    %v7816 = vunpack.c.l.b16 %v1949
    %v7817 = vunpack.c.h.b16 %v1949
    %v7818 = vunpack.c.l.b16 %v1950
    %v7819 = vunpack.c.h.b16 %v1950
    %v7820 = vunpack.c.l.b16 %v1951
    %v7821 = vunpack.c.h.b16 %v1951
    %v7822 = vunpack.c.l.b16 %v1952
    %v7823 = vunpack.c.h.b16 %v1952
    %v7824 = vunpack.c.l.b16 %v1953
    %v7825 = vunpack.c.h.b16 %v1953
    %v7826 = vunpack.c.l.b16 %v1954
    %v7827 = vunpack.c.h.b16 %v1954
    %v7828 = vunpack.c.l.b16 %v1955
    %v7829 = vunpack.c.h.b16 %v1955
    %v7830 = vunpack.c.l.b16 %v1956
    %v7831 = vunpack.c.h.b16 %v1956
    %v7832 = vunpack.c.l.b16 %v1957
    %v7833 = vunpack.c.h.b16 %v1957
    %v7834 = vunpack.c.l.b16 %v1958
    %v7835 = vunpack.c.h.b16 %v1958
    %v7836 = vunpack.c.l.b16 %v1959
    %v7837 = vunpack.c.h.b16 %v1959
    %v7838 = vunpack.c.l.b16 %v1960
    %v7839 = vunpack.c.h.b16 %v1960
    %v7840 = vunpack.c.l.b16 %v1961
    %v7841 = vunpack.c.h.b16 %v1961
    %v7842 = vunpack.c.l.b16 %v1962
    %v7843 = vunpack.c.h.b16 %v1962
    %v7844 = vunpack.c.l.b16 %v1963
    %v7845 = vunpack.c.h.b16 %v1963
    %v7846 = vunpack.c.l.b16 %v1964
    %v7847 = vunpack.c.h.b16 %v1964
    %v7848 = vunpack.c.l.b16 %v1965
    %v7849 = vunpack.c.h.b16 %v1965
    %v7850 = vunpack.c.l.b16 %v1966
    %v7851 = vunpack.c.h.b16 %v1966
    %v7852 = vunpack.c.l.b16 %v1967
    %v7853 = vunpack.c.h.b16 %v1967
    %v7854 = vunpack.c.l.b16 %v1968
    %v7855 = vunpack.c.h.b16 %v1968
    %v7856 = vunpack.c.l.b16 %v1969
    %v7857 = vunpack.c.h.b16 %v1969
    %v7858 = vunpack.c.l.b16 %v1970
    %v7859 = vunpack.c.h.b16 %v1970
    %v7860 = vunpack.c.l.b16 %v1971
    %v7861 = vunpack.c.h.b16 %v1971
    %v7862 = vunpack.c.l.b16 %v1972
    %v7863 = vunpack.c.h.b16 %v1972
    %v7864 = vunpack.c.l.b16 %v1973
    %v7865 = vunpack.c.h.b16 %v1973
    %v7866 = vunpack.c.l.b16 %v1974
    %v7867 = vunpack.c.h.b16 %v1974
    %v7868 = vunpack.c.l.b16 %v1975
    %v7869 = vunpack.c.h.b16 %v1975
    %v7870 = vunpack.c.l.b16 %v1976
    %v7871 = vunpack.c.h.b16 %v1976
    %v7872 = vunpack.c.l.b16 %v1977
    %v7873 = vunpack.c.h.b16 %v1977
    %v7874 = vunpack.c.l.b16 %v1978
    %v7875 = vunpack.c.h.b16 %v1978
    %v7876 = vunpack.c.l.b16 %v1979
    %v7877 = vunpack.c.h.b16 %v1979
    %v7878 = vunpack.c.l.b16 %v1980
    %v7879 = vunpack.c.h.b16 %v1980
    %v7880 = vunpack.c.l.b16 %v1981
    %v7881 = vunpack.c.h.b16 %v1981
    %v7882 = vunpack.c.l.b16 %v1982
    %v7883 = vunpack.c.h.b16 %v1982
    %v7884 = vunpack.c.l.b16 %v1983
    %v7885 = vunpack.c.h.b16 %v1983
    %v7886 = vunpack.c.l.b16 %v1984
    %v7887 = vunpack.c.h.b16 %v1984
    %v7888 = vunpack.c.l.b16 %v1985
    %v7889 = vunpack.c.h.b16 %v1985
    %v7890 = vunpack.c.l.b16 %v1986
    %v7891 = vunpack.c.h.b16 %v1986
    %v7892 = vunpack.c.l.b16 %v1987
    %v7893 = vunpack.c.h.b16 %v1987
    %v7894 = vunpack.c.l.b16 %v1988
    %v7895 = vunpack.c.h.b16 %v1988
    %v7896 = vunpack.c.l.b16 %v1989
    %v7897 = vunpack.c.h.b16 %v1989
    %v7898 = vunpack.c.l.b16 %v1990
    %v7899 = vunpack.c.h.b16 %v1990
    %v7900 = vunpack.c.l.b16 %v1991
    %v7901 = vunpack.c.h.b16 %v1991
    %v7902 = vunpack.c.l.b16 %v1992
    %v7903 = vunpack.c.h.b16 %v1992
    %v7904 = vunpack.c.l.b16 %v1993
    %v7905 = vunpack.c.h.b16 %v1993
    %v7906 = vunpack.c.l.b16 %v1994
    %v7907 = vunpack.c.h.b16 %v1994
    %v7908 = vunpack.c.l.b16 %v1995
    %v7909 = vunpack.c.h.b16 %v1995
    %v7910 = vunpack.c.l.b16 %v1996
    %v7911 = vunpack.c.h.b16 %v1996
    %v7912 = vunpack.c.l.b16 %v1997
    %v7913 = vunpack.c.h.b16 %v1997
    %v7914 = vunpack.c.l.b16 %v1998
    %v7915 = vunpack.c.h.b16 %v1998
    %v7916 = vunpack.c.l.b16 %v1999
    %v7917 = vunpack.c.h.b16 %v1999
    %v7918 = vunpack.c.l.b16 %v2000
    %v7919 = vunpack.c.h.b16 %v2000
    %v7920 = vunpack.c.l.b16 %v2001
    %v7921 = vunpack.c.h.b16 %v2001
    %v7922 = vunpack.c.l.b16 %v2002
    %v7923 = vunpack.c.h.b16 %v2002
    %v7924 = vunpack.c.l.b16 %v2003
    %v7925 = vunpack.c.h.b16 %v2003
    %v7926 = vunpack.c.l.b16 %v2004
    %v7927 = vunpack.c.h.b16 %v2004
    %v7928 = vunpack.c.l.b16 %v2005
    %v7929 = vunpack.c.h.b16 %v2005
    %v7930 = vunpack.c.l.b16 %v2006
    %v7931 = vunpack.c.h.b16 %v2006
    %v7932 = vunpack.c.l.b16 %v2007
    %v7933 = vunpack.c.h.b16 %v2007
    %v7934 = vunpack.c.l.b16 %v2008
    %v7935 = vunpack.c.h.b16 %v2008
    %v7936 = vunpack.c.l.b16 %v2009
    %v7937 = vunpack.c.h.b16 %v2009
    %v7938 = vunpack.c.l.b16 %v2010
    %v7939 = vunpack.c.h.b16 %v2010
    %v7940 = vunpack.c.l.b16 %v2011
    %v7941 = vunpack.c.h.b16 %v2011
    %v7942 = vunpack.c.l.b16 %v2012
    %v7943 = vunpack.c.h.b16 %v2012
    %v7944 = vunpack.c.l.b16 %v2013
    %v7945 = vunpack.c.h.b16 %v2013
    %v7946 = vunpack.c.l.b16 %v2014
    %v7947 = vunpack.c.h.b16 %v2014
    %v7948 = vunpack.c.l.b16 %v2015
    %v7949 = vunpack.c.h.b16 %v2015
    %v7950 = vunpack.c.l.b16 %v2016
    %v7951 = vunpack.c.h.b16 %v2016
    %v7952 = vunpack.c.l.b16 %v2017
    %v7953 = vunpack.c.h.b16 %v2017
    %v7954 = vunpack.c.l.b16 %v2018
    %v7955 = vunpack.c.h.b16 %v2018
    %v7956 = vunpack.c.l.b16 %v2019
    %v7957 = vunpack.c.h.b16 %v2019
    %v7958 = vunpack.c.l.b16 %v2020
    %v7959 = vunpack.c.h.b16 %v2020
    %v7960 = vunpack.c.l.b16 %v2021
    %v7961 = vunpack.c.h.b16 %v2021
    %v7962 = vunpack.c.l.b16 %v2022
    %v7963 = vunpack.c.h.b16 %v2022
    %v7964 = vunpack.c.l.b16 %v2023
    %v7965 = vunpack.c.h.b16 %v2023
    %v7966 = vunpack.c.l.b16 %v2024
    %v7967 = vunpack.c.h.b16 %v2024
    %v7968 = vunpack.c.l.b16 %v2025
    %v7969 = vunpack.c.h.b16 %v2025
    %v7970 = vunpack.c.l.b16 %v2026
    %v7971 = vunpack.c.h.b16 %v2026
    %v7972 = vunpack.c.l.b16 %v2027
    %v7973 = vunpack.c.h.b16 %v2027
    %v7974 = vunpack.c.l.b16 %v2028
    %v7975 = vunpack.c.h.b16 %v2028
    %v7976 = vunpack.c.l.b16 %v2029
    %v7977 = vunpack.c.h.b16 %v2029
    %v7978 = vunpack.c.l.b16 %v2030
    %v7979 = vunpack.c.h.b16 %v2030
    %v7980 = vunpack.c.l.b16 %v2031
    %v7981 = vunpack.c.h.b16 %v2031
    %v7982 = vunpack.c.l.b16 %v2032
    %v7983 = vunpack.c.h.b16 %v2032
    %v7984 = vunpack.c.l.b16 %v2033
    %v7985 = vunpack.c.h.b16 %v2033
    %v7986 = vunpack.c.l.b16 %v2034
    %v7987 = vunpack.c.h.b16 %v2034
    %v7988 = vunpack.c.l.b16 %v2035
    %v7989 = vunpack.c.h.b16 %v2035
    %v7990 = vunpack.c.l.b16 %v2036
    %v7991 = vunpack.c.h.b16 %v2036
    %v7992 = vunpack.c.l.b16 %v2037
    %v7993 = vunpack.c.h.b16 %v2037
    %v7994 = vunpack.c.l.b16 %v2038
    %v7995 = vunpack.c.h.b16 %v2038
    %v7996 = vunpack.c.l.b16 %v2039
    %v7997 = vunpack.c.h.b16 %v2039
    %v7998 = vunpack.c.l.b16 %v2040
    %v7999 = vunpack.c.h.b16 %v2040
    %v8000 = vunpack.c.l.b16 %v2041
    %v8001 = vunpack.c.h.b16 %v2041
    %v8002 = vunpack.c.l.b16 %v2042
    %v8003 = vunpack.c.h.b16 %v2042
    %v8004 = vunpack.c.l.b16 %v2043
    %v8005 = vunpack.c.h.b16 %v2043
    %v8006 = vunpack.c.l.b16 %v2044
    %v8007 = vunpack.c.h.b16 %v2044
    %v8008 = vunpack.c.l.b16 %v2045
    %v8009 = vunpack.c.h.b16 %v2045
    %v8010 = vunpack.c.l.b16 %v2046
    %v8011 = vunpack.c.h.b16 %v2046
    %v8012 = vunpack.c.l.b16 %v2047
    %v8013 = vunpack.c.h.b16 %v2047
    %v8014 = vunpack.c.l.b16 %v2048
    %v8015 = vunpack.c.h.b16 %v2048
    %v8016 = vunpack.c.l.b16 %v2049
    %v8017 = vunpack.c.h.b16 %v2049
    %v8018 = vunpack.c.l.b16 %v2050
    %v8019 = vunpack.c.h.b16 %v2050
    %v8020 = vunpack.c.l.b16 %v2051
    %v8021 = vunpack.c.h.b16 %v2051
    %v8022 = vunpack.c.l.b16 %v2052
    %v8023 = vunpack.c.h.b16 %v2052
    %v8024 = vunpack.c.l.b16 %v2053
    %v8025 = vunpack.c.h.b16 %v2053
    %v8026 = vunpack.c.l.b16 %v2054
    %v8027 = vunpack.c.h.b16 %v2054
    %v8028 = vunpack.c.l.b16 %v2055
    %v8029 = vunpack.c.h.b16 %v2055
    %v8030 = vunpack.c.l.b16 %v2056
    %v8031 = vunpack.c.h.b16 %v2056
    %v8032 = vunpack.c.l.b16 %v2057
    %v8033 = vunpack.c.h.b16 %v2057
    %v8034 = vunpack.c.l.b16 %v2058
    %v8035 = vunpack.c.h.b16 %v2058
    %v8036 = vunpack.c.l.b16 %v2059
    %v8037 = vunpack.c.h.b16 %v2059
    %v8038 = vunpack.c.l.b16 %v2060
    %v8039 = vunpack.c.h.b16 %v2060
    %v8040 = vunpack.c.l.b16 %v2061
    %v8041 = vunpack.c.h.b16 %v2061
    %v8042 = vunpack.c.l.b16 %v2062
    %v8043 = vunpack.c.h.b16 %v2062
    %v8044 = vunpack.c.l.b16 %v2063
    %v8045 = vunpack.c.h.b16 %v2063
    %v8046 = vunpack.c.l.b16 %v2064
    %v8047 = vunpack.c.h.b16 %v2064
    %v8048 = vunpack.c.l.b16 %v2065
    %v8049 = vunpack.c.h.b16 %v2065
    %v8050 = vunpack.c.l.b16 %v2066
    %v8051 = vunpack.c.h.b16 %v2066
    %v8052 = vunpack.c.l.b16 %v2067
    %v8053 = vunpack.c.h.b16 %v2067
    %v8054 = vunpack.c.l.b16 %v2068
    %v8055 = vunpack.c.h.b16 %v2068
    %v8056 = vunpack.c.l.b16 %v2069
    %v8057 = vunpack.c.h.b16 %v2069
    %v8058 = vunpack.c.l.b16 %v2070
    %v8059 = vunpack.c.h.b16 %v2070
    %v8060 = vunpack.c.l.b16 %v2071
    %v8061 = vunpack.c.h.b16 %v2071
    %v8062 = vunpack.c.l.b16 %v2072
    %v8063 = vunpack.c.h.b16 %v2072
    %v8064 = vunpack.c.l.b16 %v2073
    %v8065 = vunpack.c.h.b16 %v2073
    %v8066 = vunpack.c.l.b16 %v2074
    %v8067 = vunpack.c.h.b16 %v2074
    %v8068 = vunpack.c.l.b16 %v2075
    %v8069 = vunpack.c.h.b16 %v2075
    %v8070 = vunpack.c.l.b16 %v2076
    %v8071 = vunpack.c.h.b16 %v2076
    %v8072 = vunpack.c.l.b16 %v2077
    %v8073 = vunpack.c.h.b16 %v2077
    %v8074 = vunpack.c.l.b16 %v2078
    %v8075 = vunpack.c.h.b16 %v2078
    %v8076 = vunpack.c.l.b16 %v2079
    %v8077 = vunpack.c.h.b16 %v2079
    %v8078 = vunpack.c.l.b16 %v2080
    %v8079 = vunpack.c.h.b16 %v2080
    %v8080 = vunpack.c.l.b16 %v2081
    %v8081 = vunpack.c.h.b16 %v2081
    %v8082 = vunpack.c.l.b16 %v2082
    %v8083 = vunpack.c.h.b16 %v2082
    %v8084 = vunpack.c.l.b16 %v2083
    %v8085 = vunpack.c.h.b16 %v2083
    %v8086 = vunpack.c.l.b16 %v2084
    %v8087 = vunpack.c.h.b16 %v2084
    %v8088 = vunpack.c.l.b16 %v2085
    %v8089 = vunpack.c.h.b16 %v2085
    %v8090 = vunpack.c.l.b16 %v2086
    %v8091 = vunpack.c.h.b16 %v2086
    %v8092 = vunpack.c.l.b16 %v2087
    %v8093 = vunpack.c.h.b16 %v2087
    %v8094 = vunpack.c.l.b16 %v2088
    %v8095 = vunpack.c.h.b16 %v2088
    %v8096 = vunpack.c.l.b16 %v2089
    %v8097 = vunpack.c.h.b16 %v2089
    %v8098 = vunpack.c.l.b16 %v2090
    %v8099 = vunpack.c.h.b16 %v2090
    %v8100 = vunpack.c.l.b16 %v2091
    %v8101 = vunpack.c.h.b16 %v2091
    %v8102 = vunpack.c.l.b16 %v2092
    %v8103 = vunpack.c.h.b16 %v2092
    %v8104 = vunpack.c.l.b16 %v2093
    %v8105 = vunpack.c.h.b16 %v2093
    %v8106 = vunpack.c.l.b16 %v2094
    %v8107 = vunpack.c.h.b16 %v2094
    %v8108 = vunpack.c.l.b16 %v2095
    %v8109 = vunpack.c.h.b16 %v2095
    %v8110 = vunpack.c.l.b16 %v2096
    %v8111 = vunpack.c.h.b16 %v2096
    %v8112 = vunpack.c.l.b16 %v2097
    %v8113 = vunpack.c.h.b16 %v2097
    %v8114 = vunpack.c.l.b16 %v2098
    %v8115 = vunpack.c.h.b16 %v2098
    %v8116 = vunpack.c.l.b16 %v2099
    %v8117 = vunpack.c.h.b16 %v2099
    %v8118 = vunpack.c.l.b16 %v2100
    %v8119 = vunpack.c.h.b16 %v2100
    %v8120 = vunpack.c.l.b16 %v2101
    %v8121 = vunpack.c.h.b16 %v2101
    %v8122 = vunpack.c.l.b16 %v2102
    %v8123 = vunpack.c.h.b16 %v2102
    %v8124 = vunpack.c.l.b16 %v2103
    %v8125 = vunpack.c.h.b16 %v2103
    %v8126 = vunpack.c.l.b16 %v2104
    %v8127 = vunpack.c.h.b16 %v2104
    %v8128 = vunpack.c.l.b16 %v2105
    %v8129 = vunpack.c.h.b16 %v2105
    %v8130 = vunpack.c.l.b16 %v2106
    %v8131 = vunpack.c.h.b16 %v2106
    %v8132 = vunpack.c.l.b16 %v2107
    %v8133 = vunpack.c.h.b16 %v2107
    %v8134 = vunpack.c.l.b16 %v2108
    %v8135 = vunpack.c.h.b16 %v2108
    %v8136 = vunpack.c.l.b16 %v2109
    %v8137 = vunpack.c.h.b16 %v2109
    %v8138 = vunpack.c.l.b16 %v2110
    %v8139 = vunpack.c.h.b16 %v2110
    %v8140 = vunpack.c.l.b16 %v2111
    %v8141 = vunpack.c.h.b16 %v2111
    %v8142 = vunpack.c.l.b16 %v2112
    %v8143 = vunpack.c.h.b16 %v2112
    %v8144 = vunpack.c.l.b16 %v2113
    %v8145 = vunpack.c.h.b16 %v2113
    %v8146 = vunpack.c.l.b16 %v2114
    %v8147 = vunpack.c.h.b16 %v2114
    %v8148 = vunpack.c.l.b16 %v2115
    %v8149 = vunpack.c.h.b16 %v2115
    %v8150 = vunpack.c.l.b16 %v2116
    %v8151 = vunpack.c.h.b16 %v2116
    %v8152 = vunpack.c.l.b16 %v2117
    %v8153 = vunpack.c.h.b16 %v2117
    %v8154 = vunpack.c.l.b16 %v2118
    %v8155 = vunpack.c.h.b16 %v2118
    %v8156 = vunpack.c.l.b16 %v2119
    %v8157 = vunpack.c.h.b16 %v2119
    %v8158 = vunpack.c.l.b16 %v2120
    %v8159 = vunpack.c.h.b16 %v2120
    %v8160 = vunpack.c.l.b16 %v2121
    %v8161 = vunpack.c.h.b16 %v2121
    %v8162 = vunpack.c.l.b16 %v2122
    %v8163 = vunpack.c.h.b16 %v2122
    %v8164 = vunpack.c.l.b16 %v2123
    %v8165 = vunpack.c.h.b16 %v2123
    %v8166 = vunpack.c.l.b16 %v2124
    %v8167 = vunpack.c.h.b16 %v2124
    %v8168 = vunpack.c.l.b16 %v2125
    %v8169 = vunpack.c.h.b16 %v2125
    %v8170 = vunpack.c.l.b16 %v2126
    %v8171 = vunpack.c.h.b16 %v2126
    %v8172 = vunpack.c.l.b16 %v2127
    %v8173 = vunpack.c.h.b16 %v2127
    %v8174 = vunpack.c.l.b16 %v2128
    %v8175 = vunpack.c.h.b16 %v2128
    %v8176 = vunpack.c.l.b16 %v2129
    %v8177 = vunpack.c.h.b16 %v2129
    %v8178 = vunpack.c.l.b16 %v2130
    %v8179 = vunpack.c.h.b16 %v2130
    %v8180 = vunpack.c.l.b16 %v2131
    %v8181 = vunpack.c.h.b16 %v2131
    %v8182 = vunpack.c.l.b16 %v2132
    %v8183 = vunpack.c.h.b16 %v2132
    %v8184 = vunpack.c.l.b16 %v2133
    %v8185 = vunpack.c.h.b16 %v2133
    %v8186 = vunpack.c.l.b16 %v2134
    %v8187 = vunpack.c.h.b16 %v2134
    %v8188 = vunpack.c.l.b16 %v2135
    %v8189 = vunpack.c.h.b16 %v2135
    %v8190 = vunpack.c.l.b16 %v2136
    %v8191 = vunpack.c.h.b16 %v2136
    %v8192 = vunpack.c.l.b16 %v2137
    %v8193 = vunpack.c.h.b16 %v2137
    %v8194 = vunpack.c.l.b16 %v2138
    %v8195 = vunpack.c.h.b16 %v2138
    %v8196 = vunpack.c.l.b16 %v2139
    %v8197 = vunpack.c.h.b16 %v2139
    %v8198 = vunpack.c.l.b16 %v2140
    %v8199 = vunpack.c.h.b16 %v2140
    %v8200 = vunpack.c.l.b16 %v2141
    %v8201 = vunpack.c.h.b16 %v2141
    %v8202 = vunpack.c.l.b16 %v2142
    %v8203 = vunpack.c.h.b16 %v2142
    %v8204 = vunpack.c.l.b16 %v2143
    %v8205 = vunpack.c.h.b16 %v2143
    %v8206 = vunpack.c.l.b16 %v2144
    %v8207 = vunpack.c.h.b16 %v2144
    %v8208 = vunpack.c.l.b16 %v2145
    %v8209 = vunpack.c.h.b16 %v2145
    %v8210 = vunpack.c.l.b16 %v2146
    %v8211 = vunpack.c.h.b16 %v2146
    %v8212 = vunpack.c.l.b16 %v2147
    %v8213 = vunpack.c.h.b16 %v2147
    %v8214 = vunpack.c.l.b16 %v2148
    %v8215 = vunpack.c.h.b16 %v2148
    %v8216 = vunpack.c.l.b16 %v2149
    %v8217 = vunpack.c.h.b16 %v2149
    %v8218 = vunpack.c.l.b16 %v2150
    %v8219 = vunpack.c.h.b16 %v2150
    %v8220 = vunpack.c.l.b16 %v2151
    %v8221 = vunpack.c.h.b16 %v2151
    %v8222 = vunpack.c.l.b16 %v2152
    %v8223 = vunpack.c.h.b16 %v2152
    %v8224 = vunpack.c.l.b16 %v2153
    %v8225 = vunpack.c.h.b16 %v2153
    %v8226 = vunpack.c.l.b16 %v2154
    %v8227 = vunpack.c.h.b16 %v2154
    %v8228 = vunpack.c.l.b16 %v2155
    %v8229 = vunpack.c.h.b16 %v2155
    %v8230 = vunpack.c.l.b16 %v2156
    %v8231 = vunpack.c.h.b16 %v2156
    %v8232 = vunpack.c.l.b16 %v2157
    %v8233 = vunpack.c.h.b16 %v2157
    %v8234 = vunpack.c.l.b16 %v2158
    %v8235 = vunpack.c.h.b16 %v2158
    %v8236 = vunpack.c.l.b16 %v2159
    %v8237 = vunpack.c.h.b16 %v2159
    %v8238 = vunpack.c.l.b16 %v2160
    %v8239 = vunpack.c.h.b16 %v2160
    %v8240 = vunpack.c.l.b16 %v2161
    %v8241 = vunpack.c.h.b16 %v2161
    %v8242 = vunpack.c.l.b16 %v2162
    %v8243 = vunpack.c.h.b16 %v2162
    %v8244 = vunpack.c.l.b16 %v2163
    %v8245 = vunpack.c.h.b16 %v2163
    %v8246 = vunpack.c.l.b16 %v2164
    %v8247 = vunpack.c.h.b16 %v2164
    %v8248 = vunpack.c.l.b16 %v2165
    %v8249 = vunpack.c.h.b16 %v2165
    %v8250 = vunpack.c.l.b16 %v2166
    %v8251 = vunpack.c.h.b16 %v2166
    %v8252 = vunpack.c.l.b16 %v2167
    %v8253 = vunpack.c.h.b16 %v2167
    %v8254 = vunpack.c.l.b16 %v2168
    %v8255 = vunpack.c.h.b16 %v2168
    %v8256 = vunpack.c.l.b16 %v2169
    %v8257 = vunpack.c.h.b16 %v2169
    %v8258 = vunpack.c.l.b16 %v2170
    %v8259 = vunpack.c.h.b16 %v2170
    %v8260 = vunpack.c.l.b16 %v2171
    %v8261 = vunpack.c.h.b16 %v2171
    %v8262 = vunpack.c.l.b16 %v2172
    %v8263 = vunpack.c.h.b16 %v2172
    %v8264 = vunpack.c.l.b16 %v2173
    %v8265 = vunpack.c.h.b16 %v2173
    %v8266 = vunpack.c.l.b16 %v2174
    %v8267 = vunpack.c.h.b16 %v2174
    %v8268 = vunpack.c.l.b16 %v2175
    %v8269 = vunpack.c.h.b16 %v2175
    %v8270 = vunpack.c.l.b16 %v2176
    %v8271 = vunpack.c.h.b16 %v2176
    %v8272 = vunpack.c.l.b16 %v2177
    %v8273 = vunpack.c.h.b16 %v2177
    %v8274 = vunpack.c.l.b16 %v2178
    %v8275 = vunpack.c.h.b16 %v2178
    %v8276 = vunpack.c.l.b16 %v2179
    %v8277 = vunpack.c.h.b16 %v2179
    %v8278 = vunpack.c.l.b16 %v2180
    %v8279 = vunpack.c.h.b16 %v2180
    %v8280 = vunpack.c.l.b16 %v2181
    %v8281 = vunpack.c.h.b16 %v2181
    %v8282 = vunpack.c.l.b16 %v2182
    %v8283 = vunpack.c.h.b16 %v2182
    %v8284 = vunpack.c.l.b16 %v2183
    %v8285 = vunpack.c.h.b16 %v2183
    %v8286 = vunpack.c.l.b16 %v2184
    %v8287 = vunpack.c.h.b16 %v2184
    %v8288 = vunpack.c.l.b16 %v2185
    %v8289 = vunpack.c.h.b16 %v2185
    %v8290 = vunpack.c.l.b16 %v2186
    %v8291 = vunpack.c.h.b16 %v2186
    %v8292 = vunpack.c.l.b16 %v2187
    %v8293 = vunpack.c.h.b16 %v2187
    %v8294 = vunpack.c.l.b16 %v2188
    %v8295 = vunpack.c.h.b16 %v2188
    %v8296 = vunpack.c.l.b16 %v2189
    %v8297 = vunpack.c.h.b16 %v2189
    %v8298 = vunpack.c.l.b16 %v2190
    %v8299 = vunpack.c.h.b16 %v2190
    %v8300 = vunpack.c.l.b16 %v2191
    %v8301 = vunpack.c.h.b16 %v2191
    %v8302 = vunpack.c.l.b16 %v2192
    %v8303 = vunpack.c.h.b16 %v2192
    %v8304 = vunpack.c.l.b16 %v2193
    %v8305 = vunpack.c.h.b16 %v2193
    %v8306 = vunpack.c.l.b16 %v2194
    %v8307 = vunpack.c.h.b16 %v2194
    %v8308 = vunpack.c.l.b16 %v2195
    %v8309 = vunpack.c.h.b16 %v2195
    %v8310 = vunpack.c.l.b16 %v2196
    %v8311 = vunpack.c.h.b16 %v2196
    %v8312 = vunpack.c.l.b16 %v2197
    %v8313 = vunpack.c.h.b16 %v2197
    %v8314 = vunpack.c.l.b16 %v2198
    %v8315 = vunpack.c.h.b16 %v2198
    %v8316 = vunpack.c.l.b16 %v2199
    %v8317 = vunpack.c.h.b16 %v2199
    %v8318 = vunpack.c.l.b16 %v2200
    %v8319 = vunpack.c.h.b16 %v2200
    %v8320 = vunpack.c.l.b16 %v2201
    %v8321 = vunpack.c.h.b16 %v2201
    %v8322 = vunpack.c.l.b16 %v2202
    %v8323 = vunpack.c.h.b16 %v2202
    %v8324 = vunpack.c.l.b16 %v2203
    %v8325 = vunpack.c.h.b16 %v2203
    %v8326 = vunpack.c.l.b16 %v2204
    %v8327 = vunpack.c.h.b16 %v2204
    %v8328 = vunpack.c.l.b16 %v2205
    %v8329 = vunpack.c.h.b16 %v2205
    %v8330 = vunpack.c.l.b16 %v2206
    %v8331 = vunpack.c.h.b16 %v2206
    %v8332 = vunpack.c.l.b16 %v2207
    %v8333 = vunpack.c.h.b16 %v2207
    %v8334 = vunpack.c.l.b16 %v2208
    %v8335 = vunpack.c.h.b16 %v2208
    %v8336 = vunpack.c.l.b16 %v2209
    %v8337 = vunpack.c.h.b16 %v2209
    %v8338 = vunpack.c.l.b16 %v2210
    %v8339 = vunpack.c.h.b16 %v2210
    %v8340 = vunpack.c.l.b16 %v2211
    %v8341 = vunpack.c.h.b16 %v2211
    %v8342 = vunpack.c.l.b16 %v2212
    %v8343 = vunpack.c.h.b16 %v2212
    %v8344 = vunpack.c.l.b16 %v2213
    %v8345 = vunpack.c.h.b16 %v2213
    %v8346 = vunpack.c.l.b16 %v2214
    %v8347 = vunpack.c.h.b16 %v2214
    %v8348 = vunpack.c.l.b16 %v2215
    %v8349 = vunpack.c.h.b16 %v2215
    %v8350 = vunpack.c.l.b16 %v2216
    %v8351 = vunpack.c.h.b16 %v2216
    %v8352 = vunpack.c.l.b16 %v2217
    %v8353 = vunpack.c.h.b16 %v2217
    %v8354 = vunpack.c.l.b16 %v2218
    %v8355 = vunpack.c.h.b16 %v2218
    %v8356 = vunpack.c.l.b16 %v2219
    %v8357 = vunpack.c.h.b16 %v2219
    %v8358 = vunpack.c.l.b16 %v2220
    %v8359 = vunpack.c.h.b16 %v2220
    %v8360 = vunpack.c.l.b16 %v2221
    %v8361 = vunpack.c.h.b16 %v2221
    %v8362 = vunpack.c.l.b16 %v2222
    %v8363 = vunpack.c.h.b16 %v2222
    %v8364 = vunpack.c.l.b16 %v2223
    %v8365 = vunpack.c.h.b16 %v2223
    %v8366 = vunpack.c.l.b16 %v2224
    %v8367 = vunpack.c.h.b16 %v2224
    %v8368 = vunpack.c.l.b16 %v2225
    %v8369 = vunpack.c.h.b16 %v2225
    %v8370 = vunpack.c.l.b16 %v2226
    %v8371 = vunpack.c.h.b16 %v2226
    %v8372 = vunpack.c.l.b16 %v2227
    %v8373 = vunpack.c.h.b16 %v2227
    %v8374 = vunpack.c.l.b16 %v2228
    %v8375 = vunpack.c.h.b16 %v2228
    %v8376 = vunpack.c.l.b16 %v2229
    %v8377 = vunpack.c.h.b16 %v2229
    %v8378 = vunpack.c.l.b16 %v2230
    %v8379 = vunpack.c.h.b16 %v2230
    %v8380 = vunpack.c.l.b16 %v2231
    %v8381 = vunpack.c.h.b16 %v2231
    %v8382 = vunpack.c.l.b16 %v2232
    %v8383 = vunpack.c.h.b16 %v2232
    %v8384 = vunpack.c.l.b16 %v2233
    %v8385 = vunpack.c.h.b16 %v2233
    %v8386 = vunpack.c.l.b16 %v2234
    %v8387 = vunpack.c.h.b16 %v2234
    %v8388 = vunpack.c.l.b16 %v2235
    %v8389 = vunpack.c.h.b16 %v2235
    %v8390 = vunpack.c.l.b16 %v2236
    %v8391 = vunpack.c.h.b16 %v2236
    %v8392 = vunpack.c.l.b16 %v2237
    %v8393 = vunpack.c.h.b16 %v2237
    %v8394 = vunpack.c.l.b16 %v2238
    %v8395 = vunpack.c.h.b16 %v2238
    %v8396 = vunpack.c.l.b16 %v2239
    %v8397 = vunpack.c.h.b16 %v2239
    %v8398 = vunpack.c.l.b16 %v2240
    %v8399 = vunpack.c.h.b16 %v2240
    %v8400 = vunpack.c.l.b16 %v2241
    %v8401 = vunpack.c.h.b16 %v2241
    %v8402 = vunpack.c.l.b16 %v2242
    %v8403 = vunpack.c.h.b16 %v2242
    %v8404 = vunpack.c.l.b16 %v2243
    %v8405 = vunpack.c.h.b16 %v2243
    %v8406 = vunpack.c.l.b16 %v2244
    %v8407 = vunpack.c.h.b16 %v2244
    %v8408 = vunpack.c.l.b16 %v2245
    %v8409 = vunpack.c.h.b16 %v2245
    %v8410 = vunpack.c.l.b16 %v2246
    %v8411 = vunpack.c.h.b16 %v2246
    %v8412 = vunpack.c.l.b16 %v2247
    %v8413 = vunpack.c.h.b16 %v2247
    %v8414 = vpack.c.b16 %v4322, %v4318
    %v8415 = vpack.c.b16 %v4323, %v4319
    %v8416 = vpack.c.b16 %v4324, %v4320
    %v8417 = vpack.c.b16 %v4325, %v4321
    %v8418 = vpack.c.b16 %v4330, %v4326
    %v8419 = vpack.c.b16 %v4331, %v4327
    %v8420 = vpack.c.b16 %v4332, %v4328
    %v8421 = vpack.c.b16 %v4333, %v4329
    %v8422 = vpack.c.b16 %v4338, %v4334
    %v8423 = vpack.c.b16 %v4339, %v4335
    %v8424 = vpack.c.b16 %v4340, %v4336
    %v8425 = vpack.c.b16 %v4341, %v4337
    %v8426 = vpack.c.b16 %v4346, %v4342
    %v8427 = vpack.c.b16 %v4347, %v4343
    %v8428 = vpack.c.b16 %v4348, %v4344
    %v8429 = vpack.c.b16 %v4349, %v4345
    %v8430 = vpack.c.b16 %v4354, %v4350
    %v8431 = vpack.c.b16 %v4355, %v4351
    %v8432 = vpack.c.b16 %v4356, %v4352
    %v8433 = vpack.c.b16 %v4357, %v4353
    %v8434 = vpack.c.b16 %v4362, %v4358
    %v8435 = vpack.c.b16 %v4363, %v4359
    %v8436 = vpack.c.b16 %v4364, %v4360
    %v8437 = vpack.c.b16 %v4365, %v4361
    %v8438 = vpack.c.b16 %v4370, %v4366
    %v8439 = vpack.c.b16 %v4371, %v4367
    %v8440 = vpack.c.b16 %v4372, %v4368
    %v8441 = vpack.c.b16 %v4373, %v4369
    %v8442 = vpack.c.b16 %v4378, %v4374
    %v8443 = vpack.c.b16 %v4379, %v4375
    %v8444 = vpack.c.b16 %v4380, %v4376
    %v8445 = vpack.c.b16 %v4381, %v4377
    %v8446 = vpack.c.b16 %v4386, %v4382
    %v8447 = vpack.c.b16 %v4387, %v4383
    %v8448 = vpack.c.b16 %v4388, %v4384
    %v8449 = vpack.c.b16 %v4389, %v4385
    %v8450 = vpack.c.b16 %v4394, %v4390
    %v8451 = vpack.c.b16 %v4395, %v4391
    %v8452 = vpack.c.b16 %v4396, %v4392
    %v8453 = vpack.c.b16 %v4397, %v4393
    %v8454 = vpack.c.b16 %v4402, %v4398
    %v8455 = vpack.c.b16 %v4403, %v4399
    %v8456 = vpack.c.b16 %v4404, %v4400
    %v8457 = vpack.c.b16 %v4405, %v4401
    %v8458 = vpack.c.b16 %v4410, %v4406
    %v8459 = vpack.c.b16 %v4411, %v4407
    %v8460 = vpack.c.b16 %v4412, %v4408
    %v8461 = vpack.c.b16 %v4413, %v4409
    %v8462 = vpack.c.b16 %v4418, %v4414
    %v8463 = vpack.c.b16 %v4419, %v4415
    %v8464 = vpack.c.b16 %v4420, %v4416
    %v8465 = vpack.c.b16 %v4421, %v4417
    %v8466 = vpack.c.b16 %v4426, %v4422
    %v8467 = vpack.c.b16 %v4427, %v4423
    %v8468 = vpack.c.b16 %v4428, %v4424
    %v8469 = vpack.c.b16 %v4429, %v4425
    %v8470 = vpack.c.b16 %v4434, %v4430
    %v8471 = vpack.c.b16 %v4435, %v4431
    %v8472 = vpack.c.b16 %v4436, %v4432
    %v8473 = vpack.c.b16 %v4437, %v4433
    %v8474 = vpack.c.b16 %v4442, %v4438
    %v8475 = vpack.c.b16 %v4443, %v4439
    %v8476 = vpack.c.b16 %v4444, %v4440
    %v8477 = vpack.c.b16 %v4445, %v4441
    %v8478 = vpack.c.b16 %v4450, %v4446
    %v8479 = vpack.c.b16 %v4451, %v4447
    %v8480 = vpack.c.b16 %v4452, %v4448
    %v8481 = vpack.c.b16 %v4453, %v4449
    %v8482 = vpack.c.b16 %v4458, %v4454
    %v8483 = vpack.c.b16 %v4459, %v4455
    %v8484 = vpack.c.b16 %v4460, %v4456
    %v8485 = vpack.c.b16 %v4461, %v4457
    %v8486 = vpack.c.b16 %v4466, %v4462
    %v8487 = vpack.c.b16 %v4467, %v4463
    %v8488 = vpack.c.b16 %v4468, %v4464
    %v8489 = vpack.c.b16 %v4469, %v4465
    %v8490 = vpack.c.b16 %v4474, %v4470
    %v8491 = vpack.c.b16 %v4475, %v4471
    %v8492 = vpack.c.b16 %v4476, %v4472
    %v8493 = vpack.c.b16 %v4477, %v4473
    %v8494 = vpack.c.b16 %v4482, %v4478
    %v8495 = vpack.c.b16 %v4483, %v4479
    %v8496 = vpack.c.b16 %v4484, %v4480
    %v8497 = vpack.c.b16 %v4485, %v4481
    %v8498 = vpack.c.b16 %v4490, %v4486
    %v8499 = vpack.c.b16 %v4491, %v4487
    %v8500 = vpack.c.b16 %v4492, %v4488
    %v8501 = vpack.c.b16 %v4493, %v4489
    %v8502 = vpack.c.b16 %v4498, %v4494
    %v8503 = vpack.c.b16 %v4499, %v4495
    %v8504 = vpack.c.b16 %v4500, %v4496
    %v8505 = vpack.c.b16 %v4501, %v4497
    %v8506 = vpack.c.b16 %v4506, %v4502
    %v8507 = vpack.c.b16 %v4507, %v4503
    %v8508 = vpack.c.b16 %v4508, %v4504
    %v8509 = vpack.c.b16 %v4509, %v4505
    %v8510 = vpack.c.b16 %v4514, %v4510
    %v8511 = vpack.c.b16 %v4515, %v4511
    %v8512 = vpack.c.b16 %v4516, %v4512
    %v8513 = vpack.c.b16 %v4517, %v4513
    %v8514 = vpack.c.b16 %v4522, %v4518
    %v8515 = vpack.c.b16 %v4523, %v4519
    %v8516 = vpack.c.b16 %v4524, %v4520
    %v8517 = vpack.c.b16 %v4525, %v4521
    %v8518 = vpack.c.b16 %v4530, %v4526
    %v8519 = vpack.c.b16 %v4531, %v4527
    %v8520 = vpack.c.b16 %v4532, %v4528
    %v8521 = vpack.c.b16 %v4533, %v4529
    %v8522 = vpack.c.b16 %v4538, %v4534
    %v8523 = vpack.c.b16 %v4539, %v4535
    %v8524 = vpack.c.b16 %v4540, %v4536
    %v8525 = vpack.c.b16 %v4541, %v4537
    %v8526 = vpack.c.b16 %v4546, %v4542
    %v8527 = vpack.c.b16 %v4547, %v4543
    %v8528 = vpack.c.b16 %v4548, %v4544
    %v8529 = vpack.c.b16 %v4549, %v4545
    %v8530 = vpack.c.b16 %v4554, %v4550
    %v8531 = vpack.c.b16 %v4555, %v4551
    %v8532 = vpack.c.b16 %v4556, %v4552
    %v8533 = vpack.c.b16 %v4557, %v4553
    %v8534 = vpack.c.b16 %v4562, %v4558
    %v8535 = vpack.c.b16 %v4563, %v4559
    %v8536 = vpack.c.b16 %v4564, %v4560
    %v8537 = vpack.c.b16 %v4565, %v4561
    %v8538 = vpack.c.b16 %v4570, %v4566
    %v8539 = vpack.c.b16 %v4571, %v4567
    %v8540 = vpack.c.b16 %v4572, %v4568
    %v8541 = vpack.c.b16 %v4573, %v4569
    %v8542 = vpack.c.b16 %v4578, %v4574
    %v8543 = vpack.c.b16 %v4579, %v4575
    %v8544 = vpack.c.b16 %v4580, %v4576
    %v8545 = vpack.c.b16 %v4581, %v4577
    %v8546 = vpack.c.b16 %v4586, %v4582
    %v8547 = vpack.c.b16 %v4587, %v4583
    %v8548 = vpack.c.b16 %v4588, %v4584
    %v8549 = vpack.c.b16 %v4589, %v4585
    %v8550 = vpack.c.b16 %v4594, %v4590
    %v8551 = vpack.c.b16 %v4595, %v4591
    %v8552 = vpack.c.b16 %v4596, %v4592
    %v8553 = vpack.c.b16 %v4597, %v4593
    %v8554 = vpack.c.b16 %v4602, %v4598
    %v8555 = vpack.c.b16 %v4603, %v4599
    %v8556 = vpack.c.b16 %v4604, %v4600
    %v8557 = vpack.c.b16 %v4605, %v4601
    %v8558 = vpack.c.b16 %v4610, %v4606
    %v8559 = vpack.c.b16 %v4611, %v4607
    %v8560 = vpack.c.b16 %v4612, %v4608
    %v8561 = vpack.c.b16 %v4613, %v4609
    %v8562 = vpack.c.b16 %v4618, %v4614
    %v8563 = vpack.c.b16 %v4619, %v4615
    %v8564 = vpack.c.b16 %v4620, %v4616
    %v8565 = vpack.c.b16 %v4621, %v4617
    %v8566 = vpack.c.b16 %v4626, %v4622
    %v8567 = vpack.c.b16 %v4627, %v4623
    %v8568 = vpack.c.b16 %v4628, %v4624
    %v8569 = vpack.c.b16 %v4629, %v4625
    %v8570 = vpack.c.b16 %v4634, %v4630
    %v8571 = vpack.c.b16 %v4635, %v4631
    %v8572 = vpack.c.b16 %v4636, %v4632
    %v8573 = vpack.c.b16 %v4637, %v4633
    %v8574 = vpack.c.b16 %v4642, %v4638
    %v8575 = vpack.c.b16 %v4643, %v4639
    %v8576 = vpack.c.b16 %v4644, %v4640
    %v8577 = vpack.c.b16 %v4645, %v4641
    %v8578 = vpack.c.b16 %v4650, %v4646
    %v8579 = vpack.c.b16 %v4651, %v4647
    %v8580 = vpack.c.b16 %v4652, %v4648
    %v8581 = vpack.c.b16 %v4653, %v4649
    %v8582 = vpack.c.b16 %v4658, %v4654
    %v8583 = vpack.c.b16 %v4659, %v4655
    %v8584 = vpack.c.b16 %v4660, %v4656
    %v8585 = vpack.c.b16 %v4661, %v4657
    %v8586 = vpack.c.b16 %v4666, %v4662
    %v8587 = vpack.c.b16 %v4667, %v4663
    %v8588 = vpack.c.b16 %v4668, %v4664
    %v8589 = vpack.c.b16 %v4669, %v4665
    %v8590 = vpack.c.b16 %v4674, %v4670
    %v8591 = vpack.c.b16 %v4675, %v4671
    %v8592 = vpack.c.b16 %v4676, %v4672
    %v8593 = vpack.c.b16 %v4677, %v4673
    %v8594 = vpack.c.b16 %v4682, %v4678
    %v8595 = vpack.c.b16 %v4683, %v4679
    %v8596 = vpack.c.b16 %v4684, %v4680
    %v8597 = vpack.c.b16 %v4685, %v4681
    %v8598 = vpack.c.b16 %v4690, %v4686
    %v8599 = vpack.c.b16 %v4691, %v4687
    %v8600 = vpack.c.b16 %v4692, %v4688
    %v8601 = vpack.c.b16 %v4693, %v4689
    %v8602 = vpack.c.b16 %v4698, %v4694
    %v8603 = vpack.c.b16 %v4699, %v4695
    %v8604 = vpack.c.b16 %v4700, %v4696
    %v8605 = vpack.c.b16 %v4701, %v4697
    %v8606 = vpack.c.b16 %v4706, %v4702
    %v8607 = vpack.c.b16 %v4707, %v4703
    %v8608 = vpack.c.b16 %v4708, %v4704
    %v8609 = vpack.c.b16 %v4709, %v4705
    %v8610 = vpack.c.b16 %v4714, %v4710
    %v8611 = vpack.c.b16 %v4715, %v4711
    %v8612 = vpack.c.b16 %v4716, %v4712
    %v8613 = vpack.c.b16 %v4717, %v4713
    %v8614 = vpack.c.b16 %v4722, %v4718
    %v8615 = vpack.c.b16 %v4723, %v4719
    %v8616 = vpack.c.b16 %v4724, %v4720
    %v8617 = vpack.c.b16 %v4725, %v4721
    %v8618 = vpack.c.b16 %v4730, %v4726
    %v8619 = vpack.c.b16 %v4731, %v4727
    %v8620 = vpack.c.b16 %v4732, %v4728
    %v8621 = vpack.c.b16 %v4733, %v4729
    %v8622 = vpack.c.b16 %v4738, %v4734
    %v8623 = vpack.c.b16 %v4739, %v4735
    %v8624 = vpack.c.b16 %v4740, %v4736
    %v8625 = vpack.c.b16 %v4741, %v4737
    %v8626 = vpack.c.b16 %v4746, %v4742
    %v8627 = vpack.c.b16 %v4747, %v4743
    %v8628 = vpack.c.b16 %v4748, %v4744
    %v8629 = vpack.c.b16 %v4749, %v4745
    %v8630 = vpack.c.b16 %v4754, %v4750
    %v8631 = vpack.c.b16 %v4755, %v4751
    %v8632 = vpack.c.b16 %v4756, %v4752
    %v8633 = vpack.c.b16 %v4757, %v4753
    %v8634 = vpack.c.b16 %v4762, %v4758
    %v8635 = vpack.c.b16 %v4763, %v4759
    %v8636 = vpack.c.b16 %v4764, %v4760
    %v8637 = vpack.c.b16 %v4765, %v4761
    %v8638 = vpack.c.b16 %v4770, %v4766
    %v8639 = vpack.c.b16 %v4771, %v4767
    %v8640 = vpack.c.b16 %v4772, %v4768
    %v8641 = vpack.c.b16 %v4773, %v4769
    %v8642 = vpack.c.b16 %v4778, %v4774
    %v8643 = vpack.c.b16 %v4779, %v4775
    %v8644 = vpack.c.b16 %v4780, %v4776
    %v8645 = vpack.c.b16 %v4781, %v4777
    %v8646 = vpack.c.b16 %v4786, %v4782
    %v8647 = vpack.c.b16 %v4787, %v4783
    %v8648 = vpack.c.b16 %v4788, %v4784
    %v8649 = vpack.c.b16 %v4789, %v4785
    %v8650 = vpack.c.b16 %v4794, %v4790
    %v8651 = vpack.c.b16 %v4795, %v4791
    %v8652 = vpack.c.b16 %v4796, %v4792
    %v8653 = vpack.c.b16 %v4797, %v4793
    %v8654 = vpack.c.b16 %v4802, %v4798
    %v8655 = vpack.c.b16 %v4803, %v4799
    %v8656 = vpack.c.b16 %v4804, %v4800
    %v8657 = vpack.c.b16 %v4805, %v4801
    %v8658 = vpack.c.b16 %v4810, %v4806
    %v8659 = vpack.c.b16 %v4811, %v4807
    %v8660 = vpack.c.b16 %v4812, %v4808
    %v8661 = vpack.c.b16 %v4813, %v4809
    %v8662 = vpack.c.b16 %v4818, %v4814
    %v8663 = vpack.c.b16 %v4819, %v4815
    %v8664 = vpack.c.b16 %v4820, %v4816
    %v8665 = vpack.c.b16 %v4821, %v4817
    %v8666 = vpack.c.b16 %v4826, %v4822
    %v8667 = vpack.c.b16 %v4827, %v4823
    %v8668 = vpack.c.b16 %v4828, %v4824
    %v8669 = vpack.c.b16 %v4829, %v4825
    %v8670 = vpack.c.b16 %v4834, %v4830
    %v8671 = vpack.c.b16 %v4835, %v4831
    %v8672 = vpack.c.b16 %v4836, %v4832
    %v8673 = vpack.c.b16 %v4837, %v4833
    %v8674 = vpack.c.b16 %v4842, %v4838
    %v8675 = vpack.c.b16 %v4843, %v4839
    %v8676 = vpack.c.b16 %v4844, %v4840
    %v8677 = vpack.c.b16 %v4845, %v4841
    %v8678 = vpack.c.b16 %v4850, %v4846
    %v8679 = vpack.c.b16 %v4851, %v4847
    %v8680 = vpack.c.b16 %v4852, %v4848
    %v8681 = vpack.c.b16 %v4853, %v4849
    %v8682 = vpack.c.b16 %v4858, %v4854
    %v8683 = vpack.c.b16 %v4859, %v4855
    %v8684 = vpack.c.b16 %v4860, %v4856
    %v8685 = vpack.c.b16 %v4861, %v4857
    %v8686 = vpack.c.b16 %v4866, %v4862
    %v8687 = vpack.c.b16 %v4867, %v4863
    %v8688 = vpack.c.b16 %v4868, %v4864
    %v8689 = vpack.c.b16 %v4869, %v4865
    %v8690 = vpack.c.b16 %v4874, %v4870
    %v8691 = vpack.c.b16 %v4875, %v4871
    %v8692 = vpack.c.b16 %v4876, %v4872
    %v8693 = vpack.c.b16 %v4877, %v4873
    %v8694 = vpack.c.b16 %v4882, %v4878
    %v8695 = vpack.c.b16 %v4883, %v4879
    %v8696 = vpack.c.b16 %v4884, %v4880
    %v8697 = vpack.c.b16 %v4885, %v4881
    %v8698 = vpack.c.b16 %v4890, %v4886
    %v8699 = vpack.c.b16 %v4891, %v4887
    %v8700 = vpack.c.b16 %v4892, %v4888
    %v8701 = vpack.c.b16 %v4893, %v4889
    %v8702 = vpack.c.b16 %v4898, %v4894
    %v8703 = vpack.c.b16 %v4899, %v4895
    %v8704 = vpack.c.b16 %v4900, %v4896
    %v8705 = vpack.c.b16 %v4901, %v4897
    %v8706 = vpack.c.b16 %v4906, %v4902
    %v8707 = vpack.c.b16 %v4907, %v4903
    %v8708 = vpack.c.b16 %v4908, %v4904
    %v8709 = vpack.c.b16 %v4909, %v4905
    %v8710 = vpack.c.b16 %v4914, %v4910
    %v8711 = vpack.c.b16 %v4915, %v4911
    %v8712 = vpack.c.b16 %v4916, %v4912
    %v8713 = vpack.c.b16 %v4917, %v4913
    %v8714 = vpack.c.b16 %v4922, %v4918
    %v8715 = vpack.c.b16 %v4923, %v4919
    %v8716 = vpack.c.b16 %v4924, %v4920
    %v8717 = vpack.c.b16 %v4925, %v4921
    %v8718 = vpack.c.b16 %v4930, %v4926
    %v8719 = vpack.c.b16 %v4931, %v4927
    %v8720 = vpack.c.b16 %v4932, %v4928
    %v8721 = vpack.c.b16 %v4933, %v4929
    %v8722 = vpack.c.b16 %v4938, %v4934
    %v8723 = vpack.c.b16 %v4939, %v4935
    %v8724 = vpack.c.b16 %v4940, %v4936
    %v8725 = vpack.c.b16 %v4941, %v4937
    %v8726 = vpack.c.b16 %v4946, %v4942
    %v8727 = vpack.c.b16 %v4947, %v4943
    %v8728 = vpack.c.b16 %v4948, %v4944
    %v8729 = vpack.c.b16 %v4949, %v4945
    %v8730 = vpack.c.b16 %v4954, %v4950
    %v8731 = vpack.c.b16 %v4955, %v4951
    %v8732 = vpack.c.b16 %v4956, %v4952
    %v8733 = vpack.c.b16 %v4957, %v4953
    %v8734 = vpack.c.b16 %v4962, %v4958
    %v8735 = vpack.c.b16 %v4963, %v4959
    %v8736 = vpack.c.b16 %v4964, %v4960
    %v8737 = vpack.c.b16 %v4965, %v4961
    %v8738 = vpack.c.b16 %v4970, %v4966
    %v8739 = vpack.c.b16 %v4971, %v4967
    %v8740 = vpack.c.b16 %v4972, %v4968
    %v8741 = vpack.c.b16 %v4973, %v4969
    %v8742 = vpack.c.b16 %v4978, %v4974
    %v8743 = vpack.c.b16 %v4979, %v4975
    %v8744 = vpack.c.b16 %v4980, %v4976
    %v8745 = vpack.c.b16 %v4981, %v4977
    %v8746 = vpack.c.b16 %v4986, %v4982
    %v8747 = vpack.c.b16 %v4987, %v4983
    %v8748 = vpack.c.b16 %v4988, %v4984
    %v8749 = vpack.c.b16 %v4989, %v4985
    %v8750 = vpack.c.b16 %v4994, %v4990
    %v8751 = vpack.c.b16 %v4995, %v4991
    %v8752 = vpack.c.b16 %v4996, %v4992
    %v8753 = vpack.c.b16 %v4997, %v4993
    %v8754 = vpack.c.b16 %v5002, %v4998
    %v8755 = vpack.c.b16 %v5003, %v4999
    %v8756 = vpack.c.b16 %v5004, %v5000
    %v8757 = vpack.c.b16 %v5005, %v5001
    %v8758 = vpack.c.b16 %v5010, %v5006
    %v8759 = vpack.c.b16 %v5011, %v5007
    %v8760 = vpack.c.b16 %v5012, %v5008
    %v8761 = vpack.c.b16 %v5013, %v5009
    %v8762 = vpack.c.b16 %v5018, %v5014
    %v8763 = vpack.c.b16 %v5019, %v5015
    %v8764 = vpack.c.b16 %v5020, %v5016
    %v8765 = vpack.c.b16 %v5021, %v5017
    %v8766 = vpack.c.b16 %v5026, %v5022
    %v8767 = vpack.c.b16 %v5027, %v5023
    %v8768 = vpack.c.b16 %v5028, %v5024
    %v8769 = vpack.c.b16 %v5029, %v5025
    %v8770 = vpack.c.b16 %v5034, %v5030
    %v8771 = vpack.c.b16 %v5035, %v5031
    %v8772 = vpack.c.b16 %v5036, %v5032
    %v8773 = vpack.c.b16 %v5037, %v5033
    %v8774 = vpack.c.b16 %v5042, %v5038
    %v8775 = vpack.c.b16 %v5043, %v5039
    %v8776 = vpack.c.b16 %v5044, %v5040
    %v8777 = vpack.c.b16 %v5045, %v5041
    %v8778 = vpack.c.b16 %v5050, %v5046
    %v8779 = vpack.c.b16 %v5051, %v5047
    %v8780 = vpack.c.b16 %v5052, %v5048
    %v8781 = vpack.c.b16 %v5053, %v5049
    %v8782 = vpack.c.b16 %v5058, %v5054
    %v8783 = vpack.c.b16 %v5059, %v5055
    %v8784 = vpack.c.b16 %v5060, %v5056
    %v8785 = vpack.c.b16 %v5061, %v5057
    %v8786 = vpack.c.b16 %v5066, %v5062
    %v8787 = vpack.c.b16 %v5067, %v5063
    %v8788 = vpack.c.b16 %v5068, %v5064
    %v8789 = vpack.c.b16 %v5069, %v5065
    %v8790 = vpack.c.b16 %v5074, %v5070
    %v8791 = vpack.c.b16 %v5075, %v5071
    %v8792 = vpack.c.b16 %v5076, %v5072
    %v8793 = vpack.c.b16 %v5077, %v5073
    %v8794 = vpack.c.b16 %v5082, %v5078
    %v8795 = vpack.c.b16 %v5083, %v5079
    %v8796 = vpack.c.b16 %v5084, %v5080
    %v8797 = vpack.c.b16 %v5085, %v5081
    %v8798 = vpack.c.b16 %v5090, %v5086
    %v8799 = vpack.c.b16 %v5091, %v5087
    %v8800 = vpack.c.b16 %v5092, %v5088
    %v8801 = vpack.c.b16 %v5093, %v5089
    %v8802 = vpack.c.b16 %v5098, %v5094
    %v8803 = vpack.c.b16 %v5099, %v5095
    %v8804 = vpack.c.b16 %v5100, %v5096
    %v8805 = vpack.c.b16 %v5101, %v5097
    %v8806 = vpack.c.b16 %v5106, %v5102
    %v8807 = vpack.c.b16 %v5107, %v5103
    %v8808 = vpack.c.b16 %v5108, %v5104
    %v8809 = vpack.c.b16 %v5109, %v5105
    %v8810 = vpack.c.b16 %v5114, %v5110
    %v8811 = vpack.c.b16 %v5115, %v5111
    %v8812 = vpack.c.b16 %v5116, %v5112
    %v8813 = vpack.c.b16 %v5117, %v5113
    %v8814 = vpack.c.b16 %v5122, %v5118
    %v8815 = vpack.c.b16 %v5123, %v5119
    %v8816 = vpack.c.b16 %v5124, %v5120
    %v8817 = vpack.c.b16 %v5125, %v5121
    %v8818 = vpack.c.b16 %v5130, %v5126
    %v8819 = vpack.c.b16 %v5131, %v5127
    %v8820 = vpack.c.b16 %v5132, %v5128
    %v8821 = vpack.c.b16 %v5133, %v5129
    %v8822 = vpack.c.b16 %v5138, %v5134
    %v8823 = vpack.c.b16 %v5139, %v5135
    %v8824 = vpack.c.b16 %v5140, %v5136
    %v8825 = vpack.c.b16 %v5141, %v5137
    %v8826 = vpack.c.b16 %v5146, %v5142
    %v8827 = vpack.c.b16 %v5147, %v5143
    %v8828 = vpack.c.b16 %v5148, %v5144
    %v8829 = vpack.c.b16 %v5149, %v5145
    %v8830 = vpack.c.b16 %v5154, %v5150
    %v8831 = vpack.c.b16 %v5155, %v5151
    %v8832 = vpack.c.b16 %v5156, %v5152
    %v8833 = vpack.c.b16 %v5157, %v5153
    %v8834 = vpack.c.b16 %v5162, %v5158
    %v8835 = vpack.c.b16 %v5163, %v5159
    %v8836 = vpack.c.b16 %v5164, %v5160
    %v8837 = vpack.c.b16 %v5165, %v5161
    %v8838 = vpack.c.b16 %v5170, %v5166
    %v8839 = vpack.c.b16 %v5171, %v5167
    %v8840 = vpack.c.b16 %v5172, %v5168
    %v8841 = vpack.c.b16 %v5173, %v5169
    %v8842 = vpack.c.b16 %v5178, %v5174
    %v8843 = vpack.c.b16 %v5179, %v5175
    %v8844 = vpack.c.b16 %v5180, %v5176
    %v8845 = vpack.c.b16 %v5181, %v5177
    %v8846 = vpack.c.b16 %v5186, %v5182
    %v8847 = vpack.c.b16 %v5187, %v5183
    %v8848 = vpack.c.b16 %v5188, %v5184
    %v8849 = vpack.c.b16 %v5189, %v5185
    %v8850 = vpack.c.b16 %v5194, %v5190
    %v8851 = vpack.c.b16 %v5195, %v5191
    %v8852 = vpack.c.b16 %v5196, %v5192
    %v8853 = vpack.c.b16 %v5197, %v5193
    %v8854 = vpack.c.b16 %v5202, %v5198
    %v8855 = vpack.c.b16 %v5203, %v5199
    %v8856 = vpack.c.b16 %v5204, %v5200
    %v8857 = vpack.c.b16 %v5205, %v5201
    %v8858 = vpack.c.b16 %v5210, %v5206
    %v8859 = vpack.c.b16 %v5211, %v5207
    %v8860 = vpack.c.b16 %v5212, %v5208
    %v8861 = vpack.c.b16 %v5213, %v5209
    %v8862 = vpack.c.b16 %v5218, %v5214
    %v8863 = vpack.c.b16 %v5219, %v5215
    %v8864 = vpack.c.b16 %v5220, %v5216
    %v8865 = vpack.c.b16 %v5221, %v5217
    %v8866 = vpack.c.b16 %v5226, %v5222
    %v8867 = vpack.c.b16 %v5227, %v5223
    %v8868 = vpack.c.b16 %v5228, %v5224
    %v8869 = vpack.c.b16 %v5229, %v5225
    %v8870 = vpack.c.b16 %v5234, %v5230
    %v8871 = vpack.c.b16 %v5235, %v5231
    %v8872 = vpack.c.b16 %v5236, %v5232
    %v8873 = vpack.c.b16 %v5237, %v5233
    %v8874 = vpack.c.b16 %v5242, %v5238
    %v8875 = vpack.c.b16 %v5243, %v5239
    %v8876 = vpack.c.b16 %v5244, %v5240
    %v8877 = vpack.c.b16 %v5245, %v5241
    %v8878 = vpack.c.b16 %v5250, %v5246
    %v8879 = vpack.c.b16 %v5251, %v5247
    %v8880 = vpack.c.b16 %v5252, %v5248
    %v8881 = vpack.c.b16 %v5253, %v5249
    %v8882 = vpack.c.b16 %v5258, %v5254
    %v8883 = vpack.c.b16 %v5259, %v5255
    %v8884 = vpack.c.b16 %v5260, %v5256
    %v8885 = vpack.c.b16 %v5261, %v5257
    %v8886 = vpack.c.b16 %v5266, %v5262
    %v8887 = vpack.c.b16 %v5267, %v5263
    %v8888 = vpack.c.b16 %v5268, %v5264
    %v8889 = vpack.c.b16 %v5269, %v5265
    %v8890 = vpack.c.b16 %v5274, %v5270
    %v8891 = vpack.c.b16 %v5275, %v5271
    %v8892 = vpack.c.b16 %v5276, %v5272
    %v8893 = vpack.c.b16 %v5277, %v5273
    %v8894 = vpack.c.b16 %v5282, %v5278
    %v8895 = vpack.c.b16 %v5283, %v5279
    %v8896 = vpack.c.b16 %v5284, %v5280
    %v8897 = vpack.c.b16 %v5285, %v5281
    %v8898 = vpack.c.b16 %v5290, %v5286
    %v8899 = vpack.c.b16 %v5291, %v5287
    %v8900 = vpack.c.b16 %v5292, %v5288
    %v8901 = vpack.c.b16 %v5293, %v5289
    %v8902 = vpack.c.b16 %v5298, %v5294
    %v8903 = vpack.c.b16 %v5299, %v5295
    %v8904 = vpack.c.b16 %v5300, %v5296
    %v8905 = vpack.c.b16 %v5301, %v5297
    %v8906 = vpack.c.b16 %v5306, %v5302
    %v8907 = vpack.c.b16 %v5307, %v5303
    %v8908 = vpack.c.b16 %v5308, %v5304
    %v8909 = vpack.c.b16 %v5309, %v5305
    %v8910 = vpack.c.b16 %v5314, %v5310
    %v8911 = vpack.c.b16 %v5315, %v5311
    %v8912 = vpack.c.b16 %v5316, %v5312
    %v8913 = vpack.c.b16 %v5317, %v5313
    %v8914 = vpack.c.b16 %v5322, %v5318
    %v8915 = vpack.c.b16 %v5323, %v5319
    %v8916 = vpack.c.b16 %v5324, %v5320
    %v8917 = vpack.c.b16 %v5325, %v5321
    %v8918 = vpack.c.b16 %v5330, %v5326
    %v8919 = vpack.c.b16 %v5331, %v5327
    %v8920 = vpack.c.b16 %v5332, %v5328
    %v8921 = vpack.c.b16 %v5333, %v5329
    %v8922 = vpack.c.b16 %v5338, %v5334
    %v8923 = vpack.c.b16 %v5339, %v5335
    %v8924 = vpack.c.b16 %v5340, %v5336
    %v8925 = vpack.c.b16 %v5341, %v5337
    %v8926 = vpack.c.b16 %v5346, %v5342
    %v8927 = vpack.c.b16 %v5347, %v5343
    %v8928 = vpack.c.b16 %v5348, %v5344
    %v8929 = vpack.c.b16 %v5349, %v5345
    %v8930 = vpack.c.b16 %v5354, %v5350
    %v8931 = vpack.c.b16 %v5355, %v5351
    %v8932 = vpack.c.b16 %v5356, %v5352
    %v8933 = vpack.c.b16 %v5357, %v5353
    %v8934 = vpack.c.b16 %v5362, %v5358
    %v8935 = vpack.c.b16 %v5363, %v5359
    %v8936 = vpack.c.b16 %v5364, %v5360
    %v8937 = vpack.c.b16 %v5365, %v5361
    %v8938 = vpack.c.b16 %v5370, %v5366
    %v8939 = vpack.c.b16 %v5371, %v5367
    %v8940 = vpack.c.b16 %v5372, %v5368
    %v8941 = vpack.c.b16 %v5373, %v5369
    %v8942 = vpack.c.b16 %v5378, %v5374
    %v8943 = vpack.c.b16 %v5379, %v5375
    %v8944 = vpack.c.b16 %v5380, %v5376
    %v8945 = vpack.c.b16 %v5381, %v5377
    %v8946 = vpack.c.b16 %v5386, %v5382
    %v8947 = vpack.c.b16 %v5387, %v5383
    %v8948 = vpack.c.b16 %v5388, %v5384
    %v8949 = vpack.c.b16 %v5389, %v5385
    %v8950 = vpack.c.b16 %v5394, %v5390
    %v8951 = vpack.c.b16 %v5395, %v5391
    %v8952 = vpack.c.b16 %v5396, %v5392
    %v8953 = vpack.c.b16 %v5397, %v5393
    %v8954 = vpack.c.b16 %v5402, %v5398
    %v8955 = vpack.c.b16 %v5403, %v5399
    %v8956 = vpack.c.b16 %v5404, %v5400
    %v8957 = vpack.c.b16 %v5405, %v5401
    %v8958 = vpack.c.b16 %v5410, %v5406
    %v8959 = vpack.c.b16 %v5411, %v5407
    %v8960 = vpack.c.b16 %v5412, %v5408
    %v8961 = vpack.c.b16 %v5413, %v5409
    %v8962 = vpack.c.b16 %v5418, %v5414
    %v8963 = vpack.c.b16 %v5419, %v5415
    %v8964 = vpack.c.b16 %v5420, %v5416
    %v8965 = vpack.c.b16 %v5421, %v5417
    %v8966 = vpack.c.b16 %v5426, %v5422
    %v8967 = vpack.c.b16 %v5427, %v5423
    %v8968 = vpack.c.b16 %v5428, %v5424
    %v8969 = vpack.c.b16 %v5429, %v5425
    %v8970 = vpack.c.b16 %v5434, %v5430
    %v8971 = vpack.c.b16 %v5435, %v5431
    %v8972 = vpack.c.b16 %v5436, %v5432
    %v8973 = vpack.c.b16 %v5437, %v5433
    %v8974 = vpack.c.b16 %v5442, %v5438
    %v8975 = vpack.c.b16 %v5443, %v5439
    %v8976 = vpack.c.b16 %v5444, %v5440
    %v8977 = vpack.c.b16 %v5445, %v5441
    %v8978 = vpack.c.b16 %v5450, %v5446
    %v8979 = vpack.c.b16 %v5451, %v5447
    %v8980 = vpack.c.b16 %v5452, %v5448
    %v8981 = vpack.c.b16 %v5453, %v5449
    %v8982 = vpack.c.b16 %v5458, %v5454
    %v8983 = vpack.c.b16 %v5459, %v5455
    %v8984 = vpack.c.b16 %v5460, %v5456
    %v8985 = vpack.c.b16 %v5461, %v5457
    %v8986 = vpack.c.b16 %v5466, %v5462
    %v8987 = vpack.c.b16 %v5467, %v5463
    %v8988 = vpack.c.b16 %v5468, %v5464
    %v8989 = vpack.c.b16 %v5469, %v5465
    %v8990 = vpack.c.b16 %v5474, %v5470
    %v8991 = vpack.c.b16 %v5475, %v5471
    %v8992 = vpack.c.b16 %v5476, %v5472
    %v8993 = vpack.c.b16 %v5477, %v5473
    %v8994 = vpack.c.b16 %v5482, %v5478
    %v8995 = vpack.c.b16 %v5483, %v5479
    %v8996 = vpack.c.b16 %v5484, %v5480
    %v8997 = vpack.c.b16 %v5485, %v5481
    %v8998 = vpack.c.b16 %v5490, %v5486
    %v8999 = vpack.c.b16 %v5491, %v5487
    %v9000 = vpack.c.b16 %v5492, %v5488
    %v9001 = vpack.c.b16 %v5493, %v5489
    %v9002 = vpack.c.b16 %v5498, %v5494
    %v9003 = vpack.c.b16 %v5499, %v5495
    %v9004 = vpack.c.b16 %v5500, %v5496
    %v9005 = vpack.c.b16 %v5501, %v5497
    %v9006 = vpack.c.b16 %v5506, %v5502
    %v9007 = vpack.c.b16 %v5507, %v5503
    %v9008 = vpack.c.b16 %v5508, %v5504
    %v9009 = vpack.c.b16 %v5509, %v5505
    %v9010 = vpack.c.b16 %v5514, %v5510
    %v9011 = vpack.c.b16 %v5515, %v5511
    %v9012 = vpack.c.b16 %v5516, %v5512
    %v9013 = vpack.c.b16 %v5517, %v5513
    %v9014 = vpack.c.b16 %v5522, %v5518
    %v9015 = vpack.c.b16 %v5523, %v5519
    %v9016 = vpack.c.b16 %v5524, %v5520
    %v9017 = vpack.c.b16 %v5525, %v5521
    %v9018 = vpack.c.b16 %v5530, %v5526
    %v9019 = vpack.c.b16 %v5531, %v5527
    %v9020 = vpack.c.b16 %v5532, %v5528
    %v9021 = vpack.c.b16 %v5533, %v5529
    %v9022 = vpack.c.b16 %v5538, %v5534
    %v9023 = vpack.c.b16 %v5539, %v5535
    %v9024 = vpack.c.b16 %v5540, %v5536
    %v9025 = vpack.c.b16 %v5541, %v5537
    %v9026 = vpack.c.b16 %v5546, %v5542
    %v9027 = vpack.c.b16 %v5547, %v5543
    %v9028 = vpack.c.b16 %v5548, %v5544
    %v9029 = vpack.c.b16 %v5549, %v5545
    %v9030 = vpack.c.b16 %v5554, %v5550
    %v9031 = vpack.c.b16 %v5555, %v5551
    %v9032 = vpack.c.b16 %v5556, %v5552
    %v9033 = vpack.c.b16 %v5557, %v5553
    %v9034 = vpack.c.b16 %v5562, %v5558
    %v9035 = vpack.c.b16 %v5563, %v5559
    %v9036 = vpack.c.b16 %v5564, %v5560
    %v9037 = vpack.c.b16 %v5565, %v5561
    %v9038 = vpack.c.b16 %v5570, %v5566
    %v9039 = vpack.c.b16 %v5571, %v5567
    %v9040 = vpack.c.b16 %v5572, %v5568
    %v9041 = vpack.c.b16 %v5573, %v5569
    %v9042 = vpack.c.b16 %v5578, %v5574
    %v9043 = vpack.c.b16 %v5579, %v5575
    %v9044 = vpack.c.b16 %v5580, %v5576
    %v9045 = vpack.c.b16 %v5581, %v5577
    %v9046 = vpack.c.b16 %v5586, %v5582
    %v9047 = vpack.c.b16 %v5587, %v5583
    %v9048 = vpack.c.b16 %v5588, %v5584
    %v9049 = vpack.c.b16 %v5589, %v5585
    %v9050 = vpack.c.b16 %v5594, %v5590
    %v9051 = vpack.c.b16 %v5595, %v5591
    %v9052 = vpack.c.b16 %v5596, %v5592
    %v9053 = vpack.c.b16 %v5597, %v5593
    %v9054 = vpack.c.b16 %v5602, %v5598
    %v9055 = vpack.c.b16 %v5603, %v5599
    %v9056 = vpack.c.b16 %v5604, %v5600
    %v9057 = vpack.c.b16 %v5605, %v5601
    %v9058 = vpack.c.b16 %v5610, %v5606
    %v9059 = vpack.c.b16 %v5611, %v5607
    %v9060 = vpack.c.b16 %v5612, %v5608
    %v9061 = vpack.c.b16 %v5613, %v5609
    %v9062 = vpack.c.b16 %v5618, %v5614
    %v9063 = vpack.c.b16 %v5619, %v5615
    %v9064 = vpack.c.b16 %v5620, %v5616
    %v9065 = vpack.c.b16 %v5621, %v5617
    %v9066 = vpack.c.b16 %v5626, %v5622
    %v9067 = vpack.c.b16 %v5627, %v5623
    %v9068 = vpack.c.b16 %v5628, %v5624
    %v9069 = vpack.c.b16 %v5629, %v5625
    %v9070 = vpack.c.b16 %v5634, %v5630
    %v9071 = vpack.c.b16 %v5635, %v5631
    %v9072 = vpack.c.b16 %v5636, %v5632
    %v9073 = vpack.c.b16 %v5637, %v5633
    %v9074 = vpack.c.b16 %v5642, %v5638
    %v9075 = vpack.c.b16 %v5643, %v5639
    %v9076 = vpack.c.b16 %v5644, %v5640
    %v9077 = vpack.c.b16 %v5645, %v5641
    %v9078 = vpack.c.b16 %v5650, %v5646
    %v9079 = vpack.c.b16 %v5651, %v5647
    %v9080 = vpack.c.b16 %v5652, %v5648
    %v9081 = vpack.c.b16 %v5653, %v5649
    %v9082 = vpack.c.b16 %v5658, %v5654
    %v9083 = vpack.c.b16 %v5659, %v5655
    %v9084 = vpack.c.b16 %v5660, %v5656
    %v9085 = vpack.c.b16 %v5661, %v5657
    %v9086 = vpack.c.b16 %v5666, %v5662
    %v9087 = vpack.c.b16 %v5667, %v5663
    %v9088 = vpack.c.b16 %v5668, %v5664
    %v9089 = vpack.c.b16 %v5669, %v5665
    %v9090 = vpack.c.b16 %v5674, %v5670
    %v9091 = vpack.c.b16 %v5675, %v5671
    %v9092 = vpack.c.b16 %v5676, %v5672
    %v9093 = vpack.c.b16 %v5677, %v5673
    %v9094 = vpack.c.b16 %v5682, %v5678
    %v9095 = vpack.c.b16 %v5683, %v5679
    %v9096 = vpack.c.b16 %v5684, %v5680
    %v9097 = vpack.c.b16 %v5685, %v5681
    %v9098 = vpack.c.b16 %v5690, %v5686
    %v9099 = vpack.c.b16 %v5691, %v5687
    %v9100 = vpack.c.b16 %v5692, %v5688
    %v9101 = vpack.c.b16 %v5693, %v5689
    %v9102 = vpack.c.b16 %v5698, %v5694
    %v9103 = vpack.c.b16 %v5699, %v5695
    %v9104 = vpack.c.b16 %v5700, %v5696
    %v9105 = vpack.c.b16 %v5701, %v5697
    %v9106 = vpack.c.b16 %v5706, %v5702
    %v9107 = vpack.c.b16 %v5707, %v5703
    %v9108 = vpack.c.b16 %v5708, %v5704
    %v9109 = vpack.c.b16 %v5709, %v5705
    %v9110 = vpack.c.b16 %v5714, %v5710
    %v9111 = vpack.c.b16 %v5715, %v5711
    %v9112 = vpack.c.b16 %v5716, %v5712
    %v9113 = vpack.c.b16 %v5717, %v5713
    %v9114 = vpack.c.b16 %v5722, %v5718
    %v9115 = vpack.c.b16 %v5723, %v5719
    %v9116 = vpack.c.b16 %v5724, %v5720
    %v9117 = vpack.c.b16 %v5725, %v5721
    %v9118 = vpack.c.b16 %v5730, %v5726
    %v9119 = vpack.c.b16 %v5731, %v5727
    %v9120 = vpack.c.b16 %v5732, %v5728
    %v9121 = vpack.c.b16 %v5733, %v5729
    %v9122 = vpack.c.b16 %v5738, %v5734
    %v9123 = vpack.c.b16 %v5739, %v5735
    %v9124 = vpack.c.b16 %v5740, %v5736
    %v9125 = vpack.c.b16 %v5741, %v5737
    %v9126 = vpack.c.b16 %v5746, %v5742
    %v9127 = vpack.c.b16 %v5747, %v5743
    %v9128 = vpack.c.b16 %v5748, %v5744
    %v9129 = vpack.c.b16 %v5749, %v5745
    %v9130 = vpack.c.b16 %v5754, %v5750
    %v9131 = vpack.c.b16 %v5755, %v5751
    %v9132 = vpack.c.b16 %v5756, %v5752
    %v9133 = vpack.c.b16 %v5757, %v5753
    %v9134 = vpack.c.b16 %v5762, %v5758
    %v9135 = vpack.c.b16 %v5763, %v5759
    %v9136 = vpack.c.b16 %v5764, %v5760
    %v9137 = vpack.c.b16 %v5765, %v5761
    %v9138 = vpack.c.b16 %v5770, %v5766
    %v9139 = vpack.c.b16 %v5771, %v5767
    %v9140 = vpack.c.b16 %v5772, %v5768
    %v9141 = vpack.c.b16 %v5773, %v5769
    %v9142 = vpack.c.b16 %v5778, %v5774
    %v9143 = vpack.c.b16 %v5779, %v5775
    %v9144 = vpack.c.b16 %v5780, %v5776
    %v9145 = vpack.c.b16 %v5781, %v5777
    %v9146 = vpack.c.b16 %v5786, %v5782
    %v9147 = vpack.c.b16 %v5787, %v5783
    %v9148 = vpack.c.b16 %v5788, %v5784
    %v9149 = vpack.c.b16 %v5789, %v5785
    %v9150 = vpack.c.b16 %v5794, %v5790
    %v9151 = vpack.c.b16 %v5795, %v5791
    %v9152 = vpack.c.b16 %v5796, %v5792
    %v9153 = vpack.c.b16 %v5797, %v5793
    %v9154 = vpack.c.b16 %v5802, %v5798
    %v9155 = vpack.c.b16 %v5803, %v5799
    %v9156 = vpack.c.b16 %v5804, %v5800
    %v9157 = vpack.c.b16 %v5805, %v5801
    %v9158 = vpack.c.b16 %v5810, %v5806
    %v9159 = vpack.c.b16 %v5811, %v5807
    %v9160 = vpack.c.b16 %v5812, %v5808
    %v9161 = vpack.c.b16 %v5813, %v5809
    %v9162 = vpack.c.b16 %v5818, %v5814
    %v9163 = vpack.c.b16 %v5819, %v5815
    %v9164 = vpack.c.b16 %v5820, %v5816
    %v9165 = vpack.c.b16 %v5821, %v5817
    %v9166 = vpack.c.b16 %v5826, %v5822
    %v9167 = vpack.c.b16 %v5827, %v5823
    %v9168 = vpack.c.b16 %v5828, %v5824
    %v9169 = vpack.c.b16 %v5829, %v5825
    %v9170 = vpack.c.b16 %v5834, %v5830
    %v9171 = vpack.c.b16 %v5835, %v5831
    %v9172 = vpack.c.b16 %v5836, %v5832
    %v9173 = vpack.c.b16 %v5837, %v5833
    %v9174 = vpack.c.b16 %v5842, %v5838
    %v9175 = vpack.c.b16 %v5843, %v5839
    %v9176 = vpack.c.b16 %v5844, %v5840
    %v9177 = vpack.c.b16 %v5845, %v5841
    %v9178 = vpack.c.b16 %v5850, %v5846
    %v9179 = vpack.c.b16 %v5851, %v5847
    %v9180 = vpack.c.b16 %v5852, %v5848
    %v9181 = vpack.c.b16 %v5853, %v5849
    %v9182 = vpack.c.b16 %v5858, %v5854
    %v9183 = vpack.c.b16 %v5859, %v5855
    %v9184 = vpack.c.b16 %v5860, %v5856
    %v9185 = vpack.c.b16 %v5861, %v5857
    %v9186 = vpack.c.b16 %v5866, %v5862
    %v9187 = vpack.c.b16 %v5867, %v5863
    %v9188 = vpack.c.b16 %v5868, %v5864
    %v9189 = vpack.c.b16 %v5869, %v5865
    %v9190 = vpack.c.b16 %v5874, %v5870
    %v9191 = vpack.c.b16 %v5875, %v5871
    %v9192 = vpack.c.b16 %v5876, %v5872
    %v9193 = vpack.c.b16 %v5877, %v5873
    %v9194 = vpack.c.b16 %v5882, %v5878
    %v9195 = vpack.c.b16 %v5883, %v5879
    %v9196 = vpack.c.b16 %v5884, %v5880
    %v9197 = vpack.c.b16 %v5885, %v5881
    %v9198 = vpack.c.b16 %v5890, %v5886
    %v9199 = vpack.c.b16 %v5891, %v5887
    %v9200 = vpack.c.b16 %v5892, %v5888
    %v9201 = vpack.c.b16 %v5893, %v5889
    %v9202 = vpack.c.b16 %v5898, %v5894
    %v9203 = vpack.c.b16 %v5899, %v5895
    %v9204 = vpack.c.b16 %v5900, %v5896
    %v9205 = vpack.c.b16 %v5901, %v5897
    %v9206 = vpack.c.b16 %v5906, %v5902
    %v9207 = vpack.c.b16 %v5907, %v5903
    %v9208 = vpack.c.b16 %v5908, %v5904
    %v9209 = vpack.c.b16 %v5909, %v5905
    %v9210 = vpack.c.b16 %v5914, %v5910
    %v9211 = vpack.c.b16 %v5915, %v5911
    %v9212 = vpack.c.b16 %v5916, %v5912
    %v9213 = vpack.c.b16 %v5917, %v5913
    %v9214 = vpack.c.b16 %v5922, %v5918
    %v9215 = vpack.c.b16 %v5923, %v5919
    %v9216 = vpack.c.b16 %v5924, %v5920
    %v9217 = vpack.c.b16 %v5925, %v5921
    %v9218 = vpack.c.b16 %v5930, %v5926
    %v9219 = vpack.c.b16 %v5931, %v5927
    %v9220 = vpack.c.b16 %v5932, %v5928
    %v9221 = vpack.c.b16 %v5933, %v5929
    %v9222 = vpack.c.b16 %v5938, %v5934
    %v9223 = vpack.c.b16 %v5939, %v5935
    %v9224 = vpack.c.b16 %v5940, %v5936
    %v9225 = vpack.c.b16 %v5941, %v5937
    %v9226 = vpack.c.b16 %v5946, %v5942
    %v9227 = vpack.c.b16 %v5947, %v5943
    %v9228 = vpack.c.b16 %v5948, %v5944
    %v9229 = vpack.c.b16 %v5949, %v5945
    %v9230 = vpack.c.b16 %v5954, %v5950
    %v9231 = vpack.c.b16 %v5955, %v5951
    %v9232 = vpack.c.b16 %v5956, %v5952
    %v9233 = vpack.c.b16 %v5957, %v5953
    %v9234 = vpack.c.b16 %v5962, %v5958
    %v9235 = vpack.c.b16 %v5963, %v5959
    %v9236 = vpack.c.b16 %v5964, %v5960
    %v9237 = vpack.c.b16 %v5965, %v5961
    %v9238 = vpack.c.b16 %v5970, %v5966
    %v9239 = vpack.c.b16 %v5971, %v5967
    %v9240 = vpack.c.b16 %v5972, %v5968
    %v9241 = vpack.c.b16 %v5973, %v5969
    %v9242 = vpack.c.b16 %v5978, %v5974
    %v9243 = vpack.c.b16 %v5979, %v5975
    %v9244 = vpack.c.b16 %v5980, %v5976
    %v9245 = vpack.c.b16 %v5981, %v5977
    %v9246 = vpack.c.b16 %v5986, %v5982
    %v9247 = vpack.c.b16 %v5987, %v5983
    %v9248 = vpack.c.b16 %v5988, %v5984
    %v9249 = vpack.c.b16 %v5989, %v5985
    %v9250 = vpack.c.b16 %v5994, %v5990
    %v9251 = vpack.c.b16 %v5995, %v5991
    %v9252 = vpack.c.b16 %v5996, %v5992
    %v9253 = vpack.c.b16 %v5997, %v5993
    %v9254 = vpack.c.b16 %v6002, %v5998
    %v9255 = vpack.c.b16 %v6003, %v5999
    %v9256 = vpack.c.b16 %v6004, %v6000
    %v9257 = vpack.c.b16 %v6005, %v6001
    %v9258 = vpack.c.b16 %v6010, %v6006
    %v9259 = vpack.c.b16 %v6011, %v6007
    %v9260 = vpack.c.b16 %v6012, %v6008
    %v9261 = vpack.c.b16 %v6013, %v6009
    %v9262 = vpack.c.b16 %v6018, %v6014
    %v9263 = vpack.c.b16 %v6019, %v6015
    %v9264 = vpack.c.b16 %v6020, %v6016
    %v9265 = vpack.c.b16 %v6021, %v6017
    %v9266 = vpack.c.b16 %v6026, %v6022
    %v9267 = vpack.c.b16 %v6027, %v6023
    %v9268 = vpack.c.b16 %v6028, %v6024
    %v9269 = vpack.c.b16 %v6029, %v6025
    %v9270 = vpack.c.b16 %v6034, %v6030
    %v9271 = vpack.c.b16 %v6035, %v6031
    %v9272 = vpack.c.b16 %v6036, %v6032
    %v9273 = vpack.c.b16 %v6037, %v6033
    %v9274 = vpack.c.b16 %v6042, %v6038
    %v9275 = vpack.c.b16 %v6043, %v6039
    %v9276 = vpack.c.b16 %v6044, %v6040
    %v9277 = vpack.c.b16 %v6045, %v6041
    %v9278 = vpack.c.b16 %v6050, %v6046
    %v9279 = vpack.c.b16 %v6051, %v6047
    %v9280 = vpack.c.b16 %v6052, %v6048
    %v9281 = vpack.c.b16 %v6053, %v6049
    %v9282 = vpack.c.b16 %v6058, %v6054
    %v9283 = vpack.c.b16 %v6059, %v6055
    %v9284 = vpack.c.b16 %v6060, %v6056
    %v9285 = vpack.c.b16 %v6061, %v6057
    %v9286 = vpack.c.b16 %v6066, %v6062
    %v9287 = vpack.c.b16 %v6067, %v6063
    %v9288 = vpack.c.b16 %v6068, %v6064
    %v9289 = vpack.c.b16 %v6069, %v6065
    %v9290 = vpack.c.b16 %v6074, %v6070
    %v9291 = vpack.c.b16 %v6075, %v6071
    %v9292 = vpack.c.b16 %v6076, %v6072
    %v9293 = vpack.c.b16 %v6077, %v6073
    %v9294 = vpack.c.b16 %v6082, %v6078
    %v9295 = vpack.c.b16 %v6083, %v6079
    %v9296 = vpack.c.b16 %v6084, %v6080
    %v9297 = vpack.c.b16 %v6085, %v6081
    %v9298 = vpack.c.b16 %v6090, %v6086
    %v9299 = vpack.c.b16 %v6091, %v6087
    %v9300 = vpack.c.b16 %v6092, %v6088
    %v9301 = vpack.c.b16 %v6093, %v6089
    %v9302 = vpack.c.b16 %v6098, %v6094
    %v9303 = vpack.c.b16 %v6099, %v6095
    %v9304 = vpack.c.b16 %v6100, %v6096
    %v9305 = vpack.c.b16 %v6101, %v6097
    %v9306 = vpack.c.b16 %v6106, %v6102
    %v9307 = vpack.c.b16 %v6107, %v6103
    %v9308 = vpack.c.b16 %v6108, %v6104
    %v9309 = vpack.c.b16 %v6109, %v6105
    %v9310 = vpack.c.b16 %v6114, %v6110
    %v9311 = vpack.c.b16 %v6115, %v6111
    %v9312 = vpack.c.b16 %v6116, %v6112
    %v9313 = vpack.c.b16 %v6117, %v6113
    %v9314 = vpack.c.b16 %v6122, %v6118
    %v9315 = vpack.c.b16 %v6123, %v6119
    %v9316 = vpack.c.b16 %v6124, %v6120
    %v9317 = vpack.c.b16 %v6125, %v6121
    %v9318 = vpack.c.b16 %v6130, %v6126
    %v9319 = vpack.c.b16 %v6131, %v6127
    %v9320 = vpack.c.b16 %v6132, %v6128
    %v9321 = vpack.c.b16 %v6133, %v6129
    %v9322 = vpack.c.b16 %v6138, %v6134
    %v9323 = vpack.c.b16 %v6139, %v6135
    %v9324 = vpack.c.b16 %v6140, %v6136
    %v9325 = vpack.c.b16 %v6141, %v6137
    %v9326 = vpack.c.b16 %v6146, %v6142
    %v9327 = vpack.c.b16 %v6147, %v6143
    %v9328 = vpack.c.b16 %v6148, %v6144
    %v9329 = vpack.c.b16 %v6149, %v6145
    %v9330 = vpack.c.b16 %v6154, %v6150
    %v9331 = vpack.c.b16 %v6155, %v6151
    %v9332 = vpack.c.b16 %v6156, %v6152
    %v9333 = vpack.c.b16 %v6157, %v6153
    %v9334 = vpack.c.b16 %v6162, %v6158
    %v9335 = vpack.c.b16 %v6163, %v6159
    %v9336 = vpack.c.b16 %v6164, %v6160
    %v9337 = vpack.c.b16 %v6165, %v6161
    %v9338 = vpack.c.b16 %v6170, %v6166
    %v9339 = vpack.c.b16 %v6171, %v6167
    %v9340 = vpack.c.b16 %v6172, %v6168
    %v9341 = vpack.c.b16 %v6173, %v6169
    %v9342 = vpack.c.b16 %v6178, %v6174
    %v9343 = vpack.c.b16 %v6179, %v6175
    %v9344 = vpack.c.b16 %v6180, %v6176
    %v9345 = vpack.c.b16 %v6181, %v6177
    %v9346 = vpack.c.b16 %v6186, %v6182
    %v9347 = vpack.c.b16 %v6187, %v6183
    %v9348 = vpack.c.b16 %v6188, %v6184
    %v9349 = vpack.c.b16 %v6189, %v6185
    %v9350 = vpack.c.b16 %v6194, %v6190
    %v9351 = vpack.c.b16 %v6195, %v6191
    %v9352 = vpack.c.b16 %v6196, %v6192
    %v9353 = vpack.c.b16 %v6197, %v6193
    %v9354 = vpack.c.b16 %v6202, %v6198
    %v9355 = vpack.c.b16 %v6203, %v6199
    %v9356 = vpack.c.b16 %v6204, %v6200
    %v9357 = vpack.c.b16 %v6205, %v6201
    %v9358 = vpack.c.b16 %v6210, %v6206
    %v9359 = vpack.c.b16 %v6211, %v6207
    %v9360 = vpack.c.b16 %v6212, %v6208
    %v9361 = vpack.c.b16 %v6213, %v6209
    %v9362 = vpack.c.b16 %v6218, %v6214
    %v9363 = vpack.c.b16 %v6219, %v6215
    %v9364 = vpack.c.b16 %v6220, %v6216
    %v9365 = vpack.c.b16 %v6221, %v6217
    %v9366 = vpack.c.b16 %v6226, %v6222
    %v9367 = vpack.c.b16 %v6227, %v6223
    %v9368 = vpack.c.b16 %v6228, %v6224
    %v9369 = vpack.c.b16 %v6229, %v6225
    %v9370 = vpack.c.b16 %v6234, %v6230
    %v9371 = vpack.c.b16 %v6235, %v6231
    %v9372 = vpack.c.b16 %v6236, %v6232
    %v9373 = vpack.c.b16 %v6237, %v6233
    %v9374 = vpack.c.b16 %v6242, %v6238
    %v9375 = vpack.c.b16 %v6243, %v6239
    %v9376 = vpack.c.b16 %v6244, %v6240
    %v9377 = vpack.c.b16 %v6245, %v6241
    %v9378 = vpack.c.b16 %v6250, %v6246
    %v9379 = vpack.c.b16 %v6251, %v6247
    %v9380 = vpack.c.b16 %v6252, %v6248
    %v9381 = vpack.c.b16 %v6253, %v6249
    %v9382 = vpack.c.b16 %v6258, %v6254
    %v9383 = vpack.c.b16 %v6259, %v6255
    %v9384 = vpack.c.b16 %v6260, %v6256
    %v9385 = vpack.c.b16 %v6261, %v6257
    %v9386 = vpack.c.b16 %v6266, %v6262
    %v9387 = vpack.c.b16 %v6267, %v6263
    %v9388 = vpack.c.b16 %v6268, %v6264
    %v9389 = vpack.c.b16 %v6269, %v6265
    %v9390 = vpack.c.b16 %v6274, %v6270
    %v9391 = vpack.c.b16 %v6275, %v6271
    %v9392 = vpack.c.b16 %v6276, %v6272
    %v9393 = vpack.c.b16 %v6277, %v6273
    %v9394 = vpack.c.b16 %v6282, %v6278
    %v9395 = vpack.c.b16 %v6283, %v6279
    %v9396 = vpack.c.b16 %v6284, %v6280
    %v9397 = vpack.c.b16 %v6285, %v6281
    %v9398 = vpack.c.b16 %v6290, %v6286
    %v9399 = vpack.c.b16 %v6291, %v6287
    %v9400 = vpack.c.b16 %v6292, %v6288
    %v9401 = vpack.c.b16 %v6293, %v6289
    %v9402 = vpack.c.b16 %v6298, %v6294
    %v9403 = vpack.c.b16 %v6299, %v6295
    %v9404 = vpack.c.b16 %v6300, %v6296
    %v9405 = vpack.c.b16 %v6301, %v6297
    %v9406 = vpack.c.b16 %v6306, %v6302
    %v9407 = vpack.c.b16 %v6307, %v6303
    %v9408 = vpack.c.b16 %v6308, %v6304
    %v9409 = vpack.c.b16 %v6309, %v6305
    %v9410 = vpack.c.b16 %v6314, %v6310
    %v9411 = vpack.c.b16 %v6315, %v6311
    %v9412 = vpack.c.b16 %v6316, %v6312
    %v9413 = vpack.c.b16 %v6317, %v6313
    %v9414 = vpack.c.b16 %v6322, %v6318
    %v9415 = vpack.c.b16 %v6323, %v6319
    %v9416 = vpack.c.b16 %v6324, %v6320
    %v9417 = vpack.c.b16 %v6325, %v6321
    %v9418 = vpack.c.b16 %v6330, %v6326
    %v9419 = vpack.c.b16 %v6331, %v6327
    %v9420 = vpack.c.b16 %v6332, %v6328
    %v9421 = vpack.c.b16 %v6333, %v6329
    %v9422 = vpack.c.b16 %v6338, %v6334
    %v9423 = vpack.c.b16 %v6339, %v6335
    %v9424 = vpack.c.b16 %v6340, %v6336
    %v9425 = vpack.c.b16 %v6341, %v6337
    %v9426 = vpack.c.b16 %v6346, %v6342
    %v9427 = vpack.c.b16 %v6347, %v6343
    %v9428 = vpack.c.b16 %v6348, %v6344
    %v9429 = vpack.c.b16 %v6349, %v6345
    %v9430 = vpack.c.b16 %v6354, %v6350
    %v9431 = vpack.c.b16 %v6355, %v6351
    %v9432 = vpack.c.b16 %v6356, %v6352
    %v9433 = vpack.c.b16 %v6357, %v6353
    %v9434 = vpack.c.b16 %v6362, %v6358
    %v9435 = vpack.c.b16 %v6363, %v6359
    %v9436 = vpack.c.b16 %v6364, %v6360
    %v9437 = vpack.c.b16 %v6365, %v6361
    %v9438 = vpack.c.b16 %v6370, %v6366
    %v9439 = vpack.c.b16 %v6371, %v6367
    %v9440 = vpack.c.b16 %v6372, %v6368
    %v9441 = vpack.c.b16 %v6373, %v6369
    %v9442 = vpack.c.b16 %v6378, %v6374
    %v9443 = vpack.c.b16 %v6379, %v6375
    %v9444 = vpack.c.b16 %v6380, %v6376
    %v9445 = vpack.c.b16 %v6381, %v6377
    %v9446 = vpack.c.b16 %v6386, %v6382
    %v9447 = vpack.c.b16 %v6387, %v6383
    %v9448 = vpack.c.b16 %v6388, %v6384
    %v9449 = vpack.c.b16 %v6389, %v6385
    %v9450 = vpack.c.b16 %v6394, %v6390
    %v9451 = vpack.c.b16 %v6395, %v6391
    %v9452 = vpack.c.b16 %v6396, %v6392
    %v9453 = vpack.c.b16 %v6397, %v6393
    %v9454 = vpack.c.b16 %v6402, %v6398
    %v9455 = vpack.c.b16 %v6403, %v6399
    %v9456 = vpack.c.b16 %v6404, %v6400
    %v9457 = vpack.c.b16 %v6405, %v6401
    %v9458 = vpack.c.b16 %v6410, %v6406
    %v9459 = vpack.c.b16 %v6411, %v6407
    %v9460 = vpack.c.b16 %v6412, %v6408
    %v9461 = vpack.c.b16 %v6413, %v6409
    %v9462 = vpack.c.b16 %v6418, %v6414
    %v9463 = vpack.c.b16 %v6419, %v6415
    %v9464 = vpack.c.b16 %v6420, %v6416
    %v9465 = vpack.c.b16 %v6421, %v6417
    %v9466 = vpack.c.b16 %v6426, %v6422
    %v9467 = vpack.c.b16 %v6427, %v6423
    %v9468 = vpack.c.b16 %v6428, %v6424
    %v9469 = vpack.c.b16 %v6429, %v6425
    %v9470 = vpack.c.b16 %v6434, %v6430
    %v9471 = vpack.c.b16 %v6435, %v6431
    %v9472 = vpack.c.b16 %v6436, %v6432
    %v9473 = vpack.c.b16 %v6437, %v6433
    %v9474 = vpack.c.b16 %v6442, %v6438
    %v9475 = vpack.c.b16 %v6443, %v6439
    %v9476 = vpack.c.b16 %v6444, %v6440
    %v9477 = vpack.c.b16 %v6445, %v6441
    %v9478 = vpack.c.b16 %v6450, %v6446
    %v9479 = vpack.c.b16 %v6451, %v6447
    %v9480 = vpack.c.b16 %v6452, %v6448
    %v9481 = vpack.c.b16 %v6453, %v6449
    %v9482 = vpack.c.b16 %v6458, %v6454
    %v9483 = vpack.c.b16 %v6459, %v6455
    %v9484 = vpack.c.b16 %v6460, %v6456
    %v9485 = vpack.c.b16 %v6461, %v6457
    %v9486 = vpack.c.b16 %v6466, %v6462
    %v9487 = vpack.c.b16 %v6467, %v6463
    %v9488 = vpack.c.b16 %v6468, %v6464
    %v9489 = vpack.c.b16 %v6469, %v6465
    %v9490 = vpack.c.b16 %v6474, %v6470
    %v9491 = vpack.c.b16 %v6475, %v6471
    %v9492 = vpack.c.b16 %v6476, %v6472
    %v9493 = vpack.c.b16 %v6477, %v6473
    %v9494 = vpack.c.b16 %v6482, %v6478
    %v9495 = vpack.c.b16 %v6483, %v6479
    %v9496 = vpack.c.b16 %v6484, %v6480
    %v9497 = vpack.c.b16 %v6485, %v6481
    %v9498 = vpack.c.b16 %v6490, %v6486
    %v9499 = vpack.c.b16 %v6491, %v6487
    %v9500 = vpack.c.b16 %v6492, %v6488
    %v9501 = vpack.c.b16 %v6493, %v6489
    %v9502 = vpack.c.b16 %v6498, %v6494
    %v9503 = vpack.c.b16 %v6499, %v6495
    %v9504 = vpack.c.b16 %v6500, %v6496
    %v9505 = vpack.c.b16 %v6501, %v6497
    %v9506 = vpack.c.b16 %v6506, %v6502
    %v9507 = vpack.c.b16 %v6507, %v6503
    %v9508 = vpack.c.b16 %v6508, %v6504
    %v9509 = vpack.c.b16 %v6509, %v6505
    %v9510 = vpack.c.b16 %v6514, %v6510
    %v9511 = vpack.c.b16 %v6515, %v6511
    %v9512 = vpack.c.b16 %v6516, %v6512
    %v9513 = vpack.c.b16 %v6517, %v6513
    %v9514 = vpack.c.b16 %v6522, %v6518
    %v9515 = vpack.c.b16 %v6523, %v6519
    %v9516 = vpack.c.b16 %v6524, %v6520
    %v9517 = vpack.c.b16 %v6525, %v6521
    %v9518 = vpack.c.b16 %v6530, %v6526
    %v9519 = vpack.c.b16 %v6531, %v6527
    %v9520 = vpack.c.b16 %v6532, %v6528
    %v9521 = vpack.c.b16 %v6533, %v6529
    %v9522 = vpack.c.b16 %v6538, %v6534
    %v9523 = vpack.c.b16 %v6539, %v6535
    %v9524 = vpack.c.b16 %v6540, %v6536
    %v9525 = vpack.c.b16 %v6541, %v6537
    %v9526 = vpack.c.b16 %v6546, %v6542
    %v9527 = vpack.c.b16 %v6547, %v6543
    %v9528 = vpack.c.b16 %v6548, %v6544
    %v9529 = vpack.c.b16 %v6549, %v6545
    %v9530 = vpack.c.b16 %v6554, %v6550
    %v9531 = vpack.c.b16 %v6555, %v6551
    %v9532 = vpack.c.b16 %v6556, %v6552
    %v9533 = vpack.c.b16 %v6557, %v6553
    %v9534 = vpack.c.b16 %v6562, %v6558
    %v9535 = vpack.c.b16 %v6563, %v6559
    %v9536 = vpack.c.b16 %v6564, %v6560
    %v9537 = vpack.c.b16 %v6565, %v6561
    %v9538 = vpack.c.b16 %v6570, %v6566
    %v9539 = vpack.c.b16 %v6571, %v6567
    %v9540 = vpack.c.b16 %v6572, %v6568
    %v9541 = vpack.c.b16 %v6573, %v6569
    %v9542 = vpack.c.b16 %v6578, %v6574
    %v9543 = vpack.c.b16 %v6579, %v6575
    %v9544 = vpack.c.b16 %v6580, %v6576
    %v9545 = vpack.c.b16 %v6581, %v6577
    %v9546 = vpack.c.b16 %v6586, %v6582
    %v9547 = vpack.c.b16 %v6587, %v6583
    %v9548 = vpack.c.b16 %v6588, %v6584
    %v9549 = vpack.c.b16 %v6589, %v6585
    %v9550 = vpack.c.b16 %v6594, %v6590
    %v9551 = vpack.c.b16 %v6595, %v6591
    %v9552 = vpack.c.b16 %v6596, %v6592
    %v9553 = vpack.c.b16 %v6597, %v6593
    %v9554 = vpack.c.b16 %v6602, %v6598
    %v9555 = vpack.c.b16 %v6603, %v6599
    %v9556 = vpack.c.b16 %v6604, %v6600
    %v9557 = vpack.c.b16 %v6605, %v6601
    %v9558 = vpack.c.b16 %v6610, %v6606
    %v9559 = vpack.c.b16 %v6611, %v6607
    %v9560 = vpack.c.b16 %v6612, %v6608
    %v9561 = vpack.c.b16 %v6613, %v6609
    %v9562 = vpack.c.b16 %v6618, %v6614
    %v9563 = vpack.c.b16 %v6619, %v6615
    %v9564 = vpack.c.b16 %v6620, %v6616
    %v9565 = vpack.c.b16 %v6621, %v6617
    %v9566 = vpack.c.b16 %v6626, %v6622
    %v9567 = vpack.c.b16 %v6627, %v6623
    %v9568 = vpack.c.b16 %v6628, %v6624
    %v9569 = vpack.c.b16 %v6629, %v6625
    %v9570 = vpack.c.b16 %v6634, %v6630
    %v9571 = vpack.c.b16 %v6635, %v6631
    %v9572 = vpack.c.b16 %v6636, %v6632
    %v9573 = vpack.c.b16 %v6637, %v6633
    %v9574 = vpack.c.b16 %v6642, %v6638
    %v9575 = vpack.c.b16 %v6643, %v6639
    %v9576 = vpack.c.b16 %v6644, %v6640
    %v9577 = vpack.c.b16 %v6645, %v6641
    %v9578 = vpack.c.b16 %v6650, %v6646
    %v9579 = vpack.c.b16 %v6651, %v6647
    %v9580 = vpack.c.b16 %v6652, %v6648
    %v9581 = vpack.c.b16 %v6653, %v6649
    %v9582 = vpack.c.b16 %v6658, %v6654
    %v9583 = vpack.c.b16 %v6659, %v6655
    %v9584 = vpack.c.b16 %v6660, %v6656
    %v9585 = vpack.c.b16 %v6661, %v6657
    %v9586 = vpack.c.b16 %v6666, %v6662
    %v9587 = vpack.c.b16 %v6667, %v6663
    %v9588 = vpack.c.b16 %v6668, %v6664
    %v9589 = vpack.c.b16 %v6669, %v6665
    %v9590 = vpack.c.b16 %v6674, %v6670
    %v9591 = vpack.c.b16 %v6675, %v6671
    %v9592 = vpack.c.b16 %v6676, %v6672
    %v9593 = vpack.c.b16 %v6677, %v6673
    %v9594 = vpack.c.b16 %v6682, %v6678
    %v9595 = vpack.c.b16 %v6683, %v6679
    %v9596 = vpack.c.b16 %v6684, %v6680
    %v9597 = vpack.c.b16 %v6685, %v6681
    %v9598 = vpack.c.b16 %v6690, %v6686
    %v9599 = vpack.c.b16 %v6691, %v6687
    %v9600 = vpack.c.b16 %v6692, %v6688
    %v9601 = vpack.c.b16 %v6693, %v6689
    %v9602 = vpack.c.b16 %v6698, %v6694
    %v9603 = vpack.c.b16 %v6699, %v6695
    %v9604 = vpack.c.b16 %v6700, %v6696
    %v9605 = vpack.c.b16 %v6701, %v6697
    %v9606 = vpack.c.b16 %v6706, %v6702
    %v9607 = vpack.c.b16 %v6707, %v6703
    %v9608 = vpack.c.b16 %v6708, %v6704
    %v9609 = vpack.c.b16 %v6709, %v6705
    %v9610 = vpack.c.b16 %v6714, %v6710
    %v9611 = vpack.c.b16 %v6715, %v6711
    %v9612 = vpack.c.b16 %v6716, %v6712
    %v9613 = vpack.c.b16 %v6717, %v6713
    %v9614 = vpack.c.b16 %v6722, %v6718
    %v9615 = vpack.c.b16 %v6723, %v6719
    %v9616 = vpack.c.b16 %v6724, %v6720
    %v9617 = vpack.c.b16 %v6725, %v6721
    %v9618 = vpack.c.b16 %v6730, %v6726
    %v9619 = vpack.c.b16 %v6731, %v6727
    %v9620 = vpack.c.b16 %v6732, %v6728
    %v9621 = vpack.c.b16 %v6733, %v6729
    %v9622 = vpack.c.b16 %v6738, %v6734
    %v9623 = vpack.c.b16 %v6739, %v6735
    %v9624 = vpack.c.b16 %v6740, %v6736
    %v9625 = vpack.c.b16 %v6741, %v6737
    %v9626 = vpack.c.b16 %v6746, %v6742
    %v9627 = vpack.c.b16 %v6747, %v6743
    %v9628 = vpack.c.b16 %v6748, %v6744
    %v9629 = vpack.c.b16 %v6749, %v6745
    %v9630 = vpack.c.b16 %v6754, %v6750
    %v9631 = vpack.c.b16 %v6755, %v6751
    %v9632 = vpack.c.b16 %v6756, %v6752
    %v9633 = vpack.c.b16 %v6757, %v6753
    %v9634 = vpack.c.b16 %v6762, %v6758
    %v9635 = vpack.c.b16 %v6763, %v6759
    %v9636 = vpack.c.b16 %v6764, %v6760
    %v9637 = vpack.c.b16 %v6765, %v6761
    %v9638 = vpack.c.b16 %v6770, %v6766
    %v9639 = vpack.c.b16 %v6771, %v6767
    %v9640 = vpack.c.b16 %v6772, %v6768
    %v9641 = vpack.c.b16 %v6773, %v6769
    %v9642 = vpack.c.b16 %v6778, %v6774
    %v9643 = vpack.c.b16 %v6779, %v6775
    %v9644 = vpack.c.b16 %v6780, %v6776
    %v9645 = vpack.c.b16 %v6781, %v6777
    %v9646 = vpack.c.b16 %v6786, %v6782
    %v9647 = vpack.c.b16 %v6787, %v6783
    %v9648 = vpack.c.b16 %v6788, %v6784
    %v9649 = vpack.c.b16 %v6789, %v6785
    %v9650 = vpack.c.b16 %v6794, %v6790
    %v9651 = vpack.c.b16 %v6795, %v6791
    %v9652 = vpack.c.b16 %v6796, %v6792
    %v9653 = vpack.c.b16 %v6797, %v6793
    %v9654 = vpack.c.b16 %v6802, %v6798
    %v9655 = vpack.c.b16 %v6803, %v6799
    %v9656 = vpack.c.b16 %v6804, %v6800
    %v9657 = vpack.c.b16 %v6805, %v6801
    %v9658 = vpack.c.b16 %v6810, %v6806
    %v9659 = vpack.c.b16 %v6811, %v6807
    %v9660 = vpack.c.b16 %v6812, %v6808
    %v9661 = vpack.c.b16 %v6813, %v6809
    %v9662 = vpack.c.b16 %v6818, %v6814
    %v9663 = vpack.c.b16 %v6819, %v6815
    %v9664 = vpack.c.b16 %v6820, %v6816
    %v9665 = vpack.c.b16 %v6821, %v6817
    %v9666 = vpack.c.b16 %v6826, %v6822
    %v9667 = vpack.c.b16 %v6827, %v6823
    %v9668 = vpack.c.b16 %v6828, %v6824
    %v9669 = vpack.c.b16 %v6829, %v6825
    %v9670 = vpack.c.b16 %v6834, %v6830
    %v9671 = vpack.c.b16 %v6835, %v6831
    %v9672 = vpack.c.b16 %v6836, %v6832
    %v9673 = vpack.c.b16 %v6837, %v6833
    %v9674 = vpack.c.b16 %v6842, %v6838
    %v9675 = vpack.c.b16 %v6843, %v6839
    %v9676 = vpack.c.b16 %v6844, %v6840
    %v9677 = vpack.c.b16 %v6845, %v6841
    %v9678 = vpack.c.b16 %v6850, %v6846
    %v9679 = vpack.c.b16 %v6851, %v6847
    %v9680 = vpack.c.b16 %v6852, %v6848
    %v9681 = vpack.c.b16 %v6853, %v6849
    %v9682 = vpack.c.b16 %v6858, %v6854
    %v9683 = vpack.c.b16 %v6859, %v6855
    %v9684 = vpack.c.b16 %v6860, %v6856
    %v9685 = vpack.c.b16 %v6861, %v6857
    %v9686 = vpack.c.b16 %v6866, %v6862
    %v9687 = vpack.c.b16 %v6867, %v6863
    %v9688 = vpack.c.b16 %v6868, %v6864
    %v9689 = vpack.c.b16 %v6869, %v6865
    %v9690 = vpack.c.b16 %v6874, %v6870
    %v9691 = vpack.c.b16 %v6875, %v6871
    %v9692 = vpack.c.b16 %v6876, %v6872
    %v9693 = vpack.c.b16 %v6877, %v6873
    %v9694 = vpack.c.b16 %v6882, %v6878
    %v9695 = vpack.c.b16 %v6883, %v6879
    %v9696 = vpack.c.b16 %v6884, %v6880
    %v9697 = vpack.c.b16 %v6885, %v6881
    %v9698 = vpack.c.b16 %v6890, %v6886
    %v9699 = vpack.c.b16 %v6891, %v6887
    %v9700 = vpack.c.b16 %v6892, %v6888
    %v9701 = vpack.c.b16 %v6893, %v6889
    %v9702 = vpack.c.b16 %v6898, %v6894
    %v9703 = vpack.c.b16 %v6899, %v6895
    %v9704 = vpack.c.b16 %v6900, %v6896
    %v9705 = vpack.c.b16 %v6901, %v6897
    %v9706 = vpack.c.b16 %v6906, %v6902
    %v9707 = vpack.c.b16 %v6907, %v6903
    %v9708 = vpack.c.b16 %v6908, %v6904
    %v9709 = vpack.c.b16 %v6909, %v6905
    %v9710 = vpack.c.b16 %v6914, %v6910
    %v9711 = vpack.c.b16 %v6915, %v6911
    %v9712 = vpack.c.b16 %v6916, %v6912
    %v9713 = vpack.c.b16 %v6917, %v6913
    %v9714 = vpack.c.b16 %v6922, %v6918
    %v9715 = vpack.c.b16 %v6923, %v6919
    %v9716 = vpack.c.b16 %v6924, %v6920
    %v9717 = vpack.c.b16 %v6925, %v6921
    %v9718 = vpack.c.b16 %v6930, %v6926
    %v9719 = vpack.c.b16 %v6931, %v6927
    %v9720 = vpack.c.b16 %v6932, %v6928
    %v9721 = vpack.c.b16 %v6933, %v6929
    %v9722 = vpack.c.b16 %v6938, %v6934
    %v9723 = vpack.c.b16 %v6939, %v6935
    %v9724 = vpack.c.b16 %v6940, %v6936
    %v9725 = vpack.c.b16 %v6941, %v6937
    %v9726 = vpack.c.b16 %v6946, %v6942
    %v9727 = vpack.c.b16 %v6947, %v6943
    %v9728 = vpack.c.b16 %v6948, %v6944
    %v9729 = vpack.c.b16 %v6949, %v6945
    %v9730 = vpack.c.b16 %v6954, %v6950
    %v9731 = vpack.c.b16 %v6955, %v6951
    %v9732 = vpack.c.b16 %v6956, %v6952
    %v9733 = vpack.c.b16 %v6957, %v6953
    %v9734 = vpack.c.b16 %v6962, %v6958
    %v9735 = vpack.c.b16 %v6963, %v6959
    %v9736 = vpack.c.b16 %v6964, %v6960
    %v9737 = vpack.c.b16 %v6965, %v6961
    %v9738 = vpack.c.b16 %v6970, %v6966
    %v9739 = vpack.c.b16 %v6971, %v6967
    %v9740 = vpack.c.b16 %v6972, %v6968
    %v9741 = vpack.c.b16 %v6973, %v6969
    %v9742 = vpack.c.b16 %v6978, %v6974
    %v9743 = vpack.c.b16 %v6979, %v6975
    %v9744 = vpack.c.b16 %v6980, %v6976
    %v9745 = vpack.c.b16 %v6981, %v6977
    %v9746 = vpack.c.b16 %v6986, %v6982
    %v9747 = vpack.c.b16 %v6987, %v6983
    %v9748 = vpack.c.b16 %v6988, %v6984
    %v9749 = vpack.c.b16 %v6989, %v6985
    %v9750 = vpack.c.b16 %v6994, %v6990
    %v9751 = vpack.c.b16 %v6995, %v6991
    %v9752 = vpack.c.b16 %v6996, %v6992
    %v9753 = vpack.c.b16 %v6997, %v6993
    %v9754 = vpack.c.b16 %v7002, %v6998
    %v9755 = vpack.c.b16 %v7003, %v6999
    %v9756 = vpack.c.b16 %v7004, %v7000
    %v9757 = vpack.c.b16 %v7005, %v7001
    %v9758 = vpack.c.b16 %v7010, %v7006
    %v9759 = vpack.c.b16 %v7011, %v7007
    %v9760 = vpack.c.b16 %v7012, %v7008
    %v9761 = vpack.c.b16 %v7013, %v7009
    %v9762 = vpack.c.b16 %v7018, %v7014
    %v9763 = vpack.c.b16 %v7019, %v7015
    %v9764 = vpack.c.b16 %v7020, %v7016
    %v9765 = vpack.c.b16 %v7021, %v7017
    %v9766 = vpack.c.b16 %v7026, %v7022
    %v9767 = vpack.c.b16 %v7027, %v7023
    %v9768 = vpack.c.b16 %v7028, %v7024
    %v9769 = vpack.c.b16 %v7029, %v7025
    %v9770 = vpack.c.b16 %v7034, %v7030
    %v9771 = vpack.c.b16 %v7035, %v7031
    %v9772 = vpack.c.b16 %v7036, %v7032
    %v9773 = vpack.c.b16 %v7037, %v7033
    %v9774 = vpack.c.b16 %v7042, %v7038
    %v9775 = vpack.c.b16 %v7043, %v7039
    %v9776 = vpack.c.b16 %v7044, %v7040
    %v9777 = vpack.c.b16 %v7045, %v7041
    %v9778 = vpack.c.b16 %v7050, %v7046
    %v9779 = vpack.c.b16 %v7051, %v7047
    %v9780 = vpack.c.b16 %v7052, %v7048
    %v9781 = vpack.c.b16 %v7053, %v7049
    %v9782 = vpack.c.b16 %v7058, %v7054
    %v9783 = vpack.c.b16 %v7059, %v7055
    %v9784 = vpack.c.b16 %v7060, %v7056
    %v9785 = vpack.c.b16 %v7061, %v7057
    %v9786 = vpack.c.b16 %v7066, %v7062
    %v9787 = vpack.c.b16 %v7067, %v7063
    %v9788 = vpack.c.b16 %v7068, %v7064
    %v9789 = vpack.c.b16 %v7069, %v7065
    %v9790 = vpack.c.b16 %v7074, %v7070
    %v9791 = vpack.c.b16 %v7075, %v7071
    %v9792 = vpack.c.b16 %v7076, %v7072
    %v9793 = vpack.c.b16 %v7077, %v7073
    %v9794 = vpack.c.b16 %v7082, %v7078
    %v9795 = vpack.c.b16 %v7083, %v7079
    %v9796 = vpack.c.b16 %v7084, %v7080
    %v9797 = vpack.c.b16 %v7085, %v7081
    %v9798 = vpack.c.b16 %v7090, %v7086
    %v9799 = vpack.c.b16 %v7091, %v7087
    %v9800 = vpack.c.b16 %v7092, %v7088
    %v9801 = vpack.c.b16 %v7093, %v7089
    %v9802 = vpack.c.b16 %v7098, %v7094
    %v9803 = vpack.c.b16 %v7099, %v7095
    %v9804 = vpack.c.b16 %v7100, %v7096
    %v9805 = vpack.c.b16 %v7101, %v7097
    %v9806 = vpack.c.b16 %v7106, %v7102
    %v9807 = vpack.c.b16 %v7107, %v7103
    %v9808 = vpack.c.b16 %v7108, %v7104
    %v9809 = vpack.c.b16 %v7109, %v7105
    %v9810 = vpack.c.b16 %v7114, %v7110
    %v9811 = vpack.c.b16 %v7115, %v7111
    %v9812 = vpack.c.b16 %v7116, %v7112
    %v9813 = vpack.c.b16 %v7117, %v7113
    %v9814 = vpack.c.b16 %v7122, %v7118
    %v9815 = vpack.c.b16 %v7123, %v7119
    %v9816 = vpack.c.b16 %v7124, %v7120
    %v9817 = vpack.c.b16 %v7125, %v7121
    %v9818 = vpack.c.b16 %v7130, %v7126
    %v9819 = vpack.c.b16 %v7131, %v7127
    %v9820 = vpack.c.b16 %v7132, %v7128
    %v9821 = vpack.c.b16 %v7133, %v7129
    %v9822 = vpack.c.b16 %v7138, %v7134
    %v9823 = vpack.c.b16 %v7139, %v7135
    %v9824 = vpack.c.b16 %v7140, %v7136
    %v9825 = vpack.c.b16 %v7141, %v7137
    %v9826 = vpack.c.b16 %v7146, %v7142
    %v9827 = vpack.c.b16 %v7147, %v7143
    %v9828 = vpack.c.b16 %v7148, %v7144
    %v9829 = vpack.c.b16 %v7149, %v7145
    %v9830 = vpack.c.b16 %v7154, %v7150
    %v9831 = vpack.c.b16 %v7155, %v7151
    %v9832 = vpack.c.b16 %v7156, %v7152
    %v9833 = vpack.c.b16 %v7157, %v7153
    %v9834 = vpack.c.b16 %v7162, %v7158
    %v9835 = vpack.c.b16 %v7163, %v7159
    %v9836 = vpack.c.b16 %v7164, %v7160
    %v9837 = vpack.c.b16 %v7165, %v7161
    %v9838 = vpack.c.b16 %v7170, %v7166
    %v9839 = vpack.c.b16 %v7171, %v7167
    %v9840 = vpack.c.b16 %v7172, %v7168
    %v9841 = vpack.c.b16 %v7173, %v7169
    %v9842 = vpack.c.b16 %v7178, %v7174
    %v9843 = vpack.c.b16 %v7179, %v7175
    %v9844 = vpack.c.b16 %v7180, %v7176
    %v9845 = vpack.c.b16 %v7181, %v7177
    %v9846 = vpack.c.b16 %v7186, %v7182
    %v9847 = vpack.c.b16 %v7187, %v7183
    %v9848 = vpack.c.b16 %v7188, %v7184
    %v9849 = vpack.c.b16 %v7189, %v7185
    %v9850 = vpack.c.b16 %v7194, %v7190
    %v9851 = vpack.c.b16 %v7195, %v7191
    %v9852 = vpack.c.b16 %v7196, %v7192
    %v9853 = vpack.c.b16 %v7197, %v7193
    %v9854 = vpack.c.b16 %v7202, %v7198
    %v9855 = vpack.c.b16 %v7203, %v7199
    %v9856 = vpack.c.b16 %v7204, %v7200
    %v9857 = vpack.c.b16 %v7205, %v7201
    %v9858 = vpack.c.b16 %v7210, %v7206
    %v9859 = vpack.c.b16 %v7211, %v7207
    %v9860 = vpack.c.b16 %v7212, %v7208
    %v9861 = vpack.c.b16 %v7213, %v7209
    %v9862 = vpack.c.b16 %v7218, %v7214
    %v9863 = vpack.c.b16 %v7219, %v7215
    %v9864 = vpack.c.b16 %v7220, %v7216
    %v9865 = vpack.c.b16 %v7221, %v7217
    %v9866 = vpack.c.b16 %v7226, %v7222
    %v9867 = vpack.c.b16 %v7227, %v7223
    %v9868 = vpack.c.b16 %v7228, %v7224
    %v9869 = vpack.c.b16 %v7229, %v7225
    %v9870 = vpack.c.b16 %v7234, %v7230
    %v9871 = vpack.c.b16 %v7235, %v7231
    %v9872 = vpack.c.b16 %v7236, %v7232
    %v9873 = vpack.c.b16 %v7237, %v7233
    %v9874 = vpack.c.b16 %v7242, %v7238
    %v9875 = vpack.c.b16 %v7243, %v7239
    %v9876 = vpack.c.b16 %v7244, %v7240
    %v9877 = vpack.c.b16 %v7245, %v7241
    %v9878 = vpack.c.b16 %v7250, %v7246
    %v9879 = vpack.c.b16 %v7251, %v7247
    %v9880 = vpack.c.b16 %v7252, %v7248
    %v9881 = vpack.c.b16 %v7253, %v7249
    %v9882 = vpack.c.b16 %v7258, %v7254
    %v9883 = vpack.c.b16 %v7259, %v7255
    %v9884 = vpack.c.b16 %v7260, %v7256
    %v9885 = vpack.c.b16 %v7261, %v7257
    %v9886 = vpack.c.b16 %v7266, %v7262
    %v9887 = vpack.c.b16 %v7267, %v7263
    %v9888 = vpack.c.b16 %v7268, %v7264
    %v9889 = vpack.c.b16 %v7269, %v7265
    %v9890 = vpack.c.b16 %v7274, %v7270
    %v9891 = vpack.c.b16 %v7275, %v7271
    %v9892 = vpack.c.b16 %v7276, %v7272
    %v9893 = vpack.c.b16 %v7277, %v7273
    %v9894 = vpack.c.b16 %v7282, %v7278
    %v9895 = vpack.c.b16 %v7283, %v7279
    %v9896 = vpack.c.b16 %v7284, %v7280
    %v9897 = vpack.c.b16 %v7285, %v7281
    %v9898 = vpack.c.b16 %v7290, %v7286
    %v9899 = vpack.c.b16 %v7291, %v7287
    %v9900 = vpack.c.b16 %v7292, %v7288
    %v9901 = vpack.c.b16 %v7293, %v7289
    %v9902 = vpack.c.b16 %v7298, %v7294
    %v9903 = vpack.c.b16 %v7299, %v7295
    %v9904 = vpack.c.b16 %v7300, %v7296
    %v9905 = vpack.c.b16 %v7301, %v7297
    %v9906 = vpack.c.b16 %v7306, %v7302
    %v9907 = vpack.c.b16 %v7307, %v7303
    %v9908 = vpack.c.b16 %v7308, %v7304
    %v9909 = vpack.c.b16 %v7309, %v7305
    %v9910 = vpack.c.b16 %v7314, %v7310
    %v9911 = vpack.c.b16 %v7315, %v7311
    %v9912 = vpack.c.b16 %v7316, %v7312
    %v9913 = vpack.c.b16 %v7317, %v7313
    %v9914 = vpack.c.b16 %v7322, %v7318
    %v9915 = vpack.c.b16 %v7323, %v7319
    %v9916 = vpack.c.b16 %v7324, %v7320
    %v9917 = vpack.c.b16 %v7325, %v7321
    %v9918 = vpack.c.b16 %v7330, %v7326
    %v9919 = vpack.c.b16 %v7331, %v7327
    %v9920 = vpack.c.b16 %v7332, %v7328
    %v9921 = vpack.c.b16 %v7333, %v7329
    %v9922 = vpack.c.b16 %v7338, %v7334
    %v9923 = vpack.c.b16 %v7339, %v7335
    %v9924 = vpack.c.b16 %v7340, %v7336
    %v9925 = vpack.c.b16 %v7341, %v7337
    %v9926 = vpack.c.b16 %v7346, %v7342
    %v9927 = vpack.c.b16 %v7347, %v7343
    %v9928 = vpack.c.b16 %v7348, %v7344
    %v9929 = vpack.c.b16 %v7349, %v7345
    %v9930 = vpack.c.b16 %v7354, %v7350
    %v9931 = vpack.c.b16 %v7355, %v7351
    %v9932 = vpack.c.b16 %v7356, %v7352
    %v9933 = vpack.c.b16 %v7357, %v7353
    %v9934 = vpack.c.b16 %v7362, %v7358
    %v9935 = vpack.c.b16 %v7363, %v7359
    %v9936 = vpack.c.b16 %v7364, %v7360
    %v9937 = vpack.c.b16 %v7365, %v7361
    %v9938 = vpack.c.b16 %v7370, %v7366
    %v9939 = vpack.c.b16 %v7371, %v7367
    %v9940 = vpack.c.b16 %v7372, %v7368
    %v9941 = vpack.c.b16 %v7373, %v7369
    %v9942 = vpack.c.b16 %v7378, %v7374
    %v9943 = vpack.c.b16 %v7379, %v7375
    %v9944 = vpack.c.b16 %v7380, %v7376
    %v9945 = vpack.c.b16 %v7381, %v7377
    %v9946 = vpack.c.b16 %v7386, %v7382
    %v9947 = vpack.c.b16 %v7387, %v7383
    %v9948 = vpack.c.b16 %v7388, %v7384
    %v9949 = vpack.c.b16 %v7389, %v7385
    %v9950 = vpack.c.b16 %v7394, %v7390
    %v9951 = vpack.c.b16 %v7395, %v7391
    %v9952 = vpack.c.b16 %v7396, %v7392
    %v9953 = vpack.c.b16 %v7397, %v7393
    %v9954 = vpack.c.b16 %v7402, %v7398
    %v9955 = vpack.c.b16 %v7403, %v7399
    %v9956 = vpack.c.b16 %v7404, %v7400
    %v9957 = vpack.c.b16 %v7405, %v7401
    %v9958 = vpack.c.b16 %v7410, %v7406
    %v9959 = vpack.c.b16 %v7411, %v7407
    %v9960 = vpack.c.b16 %v7412, %v7408
    %v9961 = vpack.c.b16 %v7413, %v7409
    %v9962 = vpack.c.b16 %v7418, %v7414
    %v9963 = vpack.c.b16 %v7419, %v7415
    %v9964 = vpack.c.b16 %v7420, %v7416
    %v9965 = vpack.c.b16 %v7421, %v7417
    %v9966 = vpack.c.b16 %v7426, %v7422
    %v9967 = vpack.c.b16 %v7427, %v7423
    %v9968 = vpack.c.b16 %v7428, %v7424
    %v9969 = vpack.c.b16 %v7429, %v7425
    %v9970 = vpack.c.b16 %v7434, %v7430
    %v9971 = vpack.c.b16 %v7435, %v7431
    %v9972 = vpack.c.b16 %v7436, %v7432
    %v9973 = vpack.c.b16 %v7437, %v7433
    %v9974 = vpack.c.b16 %v7442, %v7438
    %v9975 = vpack.c.b16 %v7443, %v7439
    %v9976 = vpack.c.b16 %v7444, %v7440
    %v9977 = vpack.c.b16 %v7445, %v7441
    %v9978 = vpack.c.b16 %v7450, %v7446
    %v9979 = vpack.c.b16 %v7451, %v7447
    %v9980 = vpack.c.b16 %v7452, %v7448
    %v9981 = vpack.c.b16 %v7453, %v7449
    %v9982 = vpack.c.b16 %v7458, %v7454
    %v9983 = vpack.c.b16 %v7459, %v7455
    %v9984 = vpack.c.b16 %v7460, %v7456
    %v9985 = vpack.c.b16 %v7461, %v7457
    %v9986 = vpack.c.b16 %v7466, %v7462
    %v9987 = vpack.c.b16 %v7467, %v7463
    %v9988 = vpack.c.b16 %v7468, %v7464
    %v9989 = vpack.c.b16 %v7469, %v7465
    %v9990 = vpack.c.b16 %v7474, %v7470
    %v9991 = vpack.c.b16 %v7475, %v7471
    %v9992 = vpack.c.b16 %v7476, %v7472
    %v9993 = vpack.c.b16 %v7477, %v7473
    %v9994 = vpack.c.b16 %v7482, %v7478
    %v9995 = vpack.c.b16 %v7483, %v7479
    %v9996 = vpack.c.b16 %v7484, %v7480
    %v9997 = vpack.c.b16 %v7485, %v7481
    %v9998 = vpack.c.b16 %v7490, %v7486
    %v9999 = vpack.c.b16 %v7491, %v7487
    %v10000 = vpack.c.b16 %v7492, %v7488
    %v10001 = vpack.c.b16 %v7493, %v7489
    %v10002 = vpack.c.b16 %v7498, %v7494
    %v10003 = vpack.c.b16 %v7499, %v7495
    %v10004 = vpack.c.b16 %v7500, %v7496
    %v10005 = vpack.c.b16 %v7501, %v7497
    %v10006 = vpack.c.b16 %v7506, %v7502
    %v10007 = vpack.c.b16 %v7507, %v7503
    %v10008 = vpack.c.b16 %v7508, %v7504
    %v10009 = vpack.c.b16 %v7509, %v7505
    %v10010 = vpack.c.b16 %v7514, %v7510
    %v10011 = vpack.c.b16 %v7515, %v7511
    %v10012 = vpack.c.b16 %v7516, %v7512
    %v10013 = vpack.c.b16 %v7517, %v7513
    %v10014 = vpack.c.b16 %v7522, %v7518
    %v10015 = vpack.c.b16 %v7523, %v7519
    %v10016 = vpack.c.b16 %v7524, %v7520
    %v10017 = vpack.c.b16 %v7525, %v7521
    %v10018 = vpack.c.b16 %v7530, %v7526
    %v10019 = vpack.c.b16 %v7531, %v7527
    %v10020 = vpack.c.b16 %v7532, %v7528
    %v10021 = vpack.c.b16 %v7533, %v7529
    %v10022 = vpack.c.b16 %v7538, %v7534
    %v10023 = vpack.c.b16 %v7539, %v7535
    %v10024 = vpack.c.b16 %v7540, %v7536
    %v10025 = vpack.c.b16 %v7541, %v7537
    %v10026 = vpack.c.b16 %v7546, %v7542
    %v10027 = vpack.c.b16 %v7547, %v7543
    %v10028 = vpack.c.b16 %v7548, %v7544
    %v10029 = vpack.c.b16 %v7549, %v7545
    %v10030 = vpack.c.b16 %v7554, %v7550
    %v10031 = vpack.c.b16 %v7555, %v7551
    %v10032 = vpack.c.b16 %v7556, %v7552
    %v10033 = vpack.c.b16 %v7557, %v7553
    %v10034 = vpack.c.b16 %v7562, %v7558
    %v10035 = vpack.c.b16 %v7563, %v7559
    %v10036 = vpack.c.b16 %v7564, %v7560
    %v10037 = vpack.c.b16 %v7565, %v7561
    %v10038 = vpack.c.b16 %v7570, %v7566
    %v10039 = vpack.c.b16 %v7571, %v7567
    %v10040 = vpack.c.b16 %v7572, %v7568
    %v10041 = vpack.c.b16 %v7573, %v7569
    %v10042 = vpack.c.b16 %v7578, %v7574
    %v10043 = vpack.c.b16 %v7579, %v7575
    %v10044 = vpack.c.b16 %v7580, %v7576
    %v10045 = vpack.c.b16 %v7581, %v7577
    %v10046 = vpack.c.b16 %v7586, %v7582
    %v10047 = vpack.c.b16 %v7587, %v7583
    %v10048 = vpack.c.b16 %v7588, %v7584
    %v10049 = vpack.c.b16 %v7589, %v7585
    %v10050 = vpack.c.b16 %v7594, %v7590
    %v10051 = vpack.c.b16 %v7595, %v7591
    %v10052 = vpack.c.b16 %v7596, %v7592
    %v10053 = vpack.c.b16 %v7597, %v7593
    %v10054 = vpack.c.b16 %v7602, %v7598
    %v10055 = vpack.c.b16 %v7603, %v7599
    %v10056 = vpack.c.b16 %v7604, %v7600
    %v10057 = vpack.c.b16 %v7605, %v7601
    %v10058 = vpack.c.b16 %v7610, %v7606
    %v10059 = vpack.c.b16 %v7611, %v7607
    %v10060 = vpack.c.b16 %v7612, %v7608
    %v10061 = vpack.c.b16 %v7613, %v7609
    %v10062 = vpack.c.b16 %v7618, %v7614
    %v10063 = vpack.c.b16 %v7619, %v7615
    %v10064 = vpack.c.b16 %v7620, %v7616
    %v10065 = vpack.c.b16 %v7621, %v7617
    %v10066 = vpack.c.b16 %v7626, %v7622
    %v10067 = vpack.c.b16 %v7627, %v7623
    %v10068 = vpack.c.b16 %v7628, %v7624
    %v10069 = vpack.c.b16 %v7629, %v7625
    %v10070 = vpack.c.b16 %v7634, %v7630
    %v10071 = vpack.c.b16 %v7635, %v7631
    %v10072 = vpack.c.b16 %v7636, %v7632
    %v10073 = vpack.c.b16 %v7637, %v7633
    %v10074 = vpack.c.b16 %v7642, %v7638
    %v10075 = vpack.c.b16 %v7643, %v7639
    %v10076 = vpack.c.b16 %v7644, %v7640
    %v10077 = vpack.c.b16 %v7645, %v7641
    %v10078 = vpack.c.b16 %v7650, %v7646
    %v10079 = vpack.c.b16 %v7651, %v7647
    %v10080 = vpack.c.b16 %v7652, %v7648
    %v10081 = vpack.c.b16 %v7653, %v7649
    %v10082 = vpack.c.b16 %v7658, %v7654
    %v10083 = vpack.c.b16 %v7659, %v7655
    %v10084 = vpack.c.b16 %v7660, %v7656
    %v10085 = vpack.c.b16 %v7661, %v7657
    %v10086 = vpack.c.b16 %v7666, %v7662
    %v10087 = vpack.c.b16 %v7667, %v7663
    %v10088 = vpack.c.b16 %v7668, %v7664
    %v10089 = vpack.c.b16 %v7669, %v7665
    %v10090 = vpack.c.b16 %v7674, %v7670
    %v10091 = vpack.c.b16 %v7675, %v7671
    %v10092 = vpack.c.b16 %v7676, %v7672
    %v10093 = vpack.c.b16 %v7677, %v7673
    %v10094 = vpack.c.b16 %v7682, %v7678
    %v10095 = vpack.c.b16 %v7683, %v7679
    %v10096 = vpack.c.b16 %v7684, %v7680
    %v10097 = vpack.c.b16 %v7685, %v7681
    %v10098 = vpack.c.b16 %v7690, %v7686
    %v10099 = vpack.c.b16 %v7691, %v7687
    %v10100 = vpack.c.b16 %v7692, %v7688
    %v10101 = vpack.c.b16 %v7693, %v7689
    %v10102 = vpack.c.b16 %v7698, %v7694
    %v10103 = vpack.c.b16 %v7699, %v7695
    %v10104 = vpack.c.b16 %v7700, %v7696
    %v10105 = vpack.c.b16 %v7701, %v7697
    %v10106 = vpack.c.b16 %v7706, %v7702
    %v10107 = vpack.c.b16 %v7707, %v7703
    %v10108 = vpack.c.b16 %v7708, %v7704
    %v10109 = vpack.c.b16 %v7709, %v7705
    %v10110 = vpack.c.b16 %v7714, %v7710
    %v10111 = vpack.c.b16 %v7715, %v7711
    %v10112 = vpack.c.b16 %v7716, %v7712
    %v10113 = vpack.c.b16 %v7717, %v7713
    %v10114 = vpack.c.b16 %v7722, %v7718
    %v10115 = vpack.c.b16 %v7723, %v7719
    %v10116 = vpack.c.b16 %v7724, %v7720
    %v10117 = vpack.c.b16 %v7725, %v7721
    %v10118 = vpack.c.b16 %v7730, %v7726
    %v10119 = vpack.c.b16 %v7731, %v7727
    %v10120 = vpack.c.b16 %v7732, %v7728
    %v10121 = vpack.c.b16 %v7733, %v7729
    %v10122 = vpack.c.b16 %v7738, %v7734
    %v10123 = vpack.c.b16 %v7739, %v7735
    %v10124 = vpack.c.b16 %v7740, %v7736
    %v10125 = vpack.c.b16 %v7741, %v7737
    %v10126 = vpack.c.b16 %v7746, %v7742
    %v10127 = vpack.c.b16 %v7747, %v7743
    %v10128 = vpack.c.b16 %v7748, %v7744
    %v10129 = vpack.c.b16 %v7749, %v7745
    %v10130 = vpack.c.b16 %v7754, %v7750
    %v10131 = vpack.c.b16 %v7755, %v7751
    %v10132 = vpack.c.b16 %v7756, %v7752
    %v10133 = vpack.c.b16 %v7757, %v7753
    %v10134 = vpack.c.b16 %v7762, %v7758
    %v10135 = vpack.c.b16 %v7763, %v7759
    %v10136 = vpack.c.b16 %v7764, %v7760
    %v10137 = vpack.c.b16 %v7765, %v7761
    %v10138 = vpack.c.b16 %v7770, %v7766
    %v10139 = vpack.c.b16 %v7771, %v7767
    %v10140 = vpack.c.b16 %v7772, %v7768
    %v10141 = vpack.c.b16 %v7773, %v7769
    %v10142 = vpack.c.b16 %v7778, %v7774
    %v10143 = vpack.c.b16 %v7779, %v7775
    %v10144 = vpack.c.b16 %v7780, %v7776
    %v10145 = vpack.c.b16 %v7781, %v7777
    %v10146 = vpack.c.b16 %v7786, %v7782
    %v10147 = vpack.c.b16 %v7787, %v7783
    %v10148 = vpack.c.b16 %v7788, %v7784
    %v10149 = vpack.c.b16 %v7789, %v7785
    %v10150 = vpack.c.b16 %v7794, %v7790
    %v10151 = vpack.c.b16 %v7795, %v7791
    %v10152 = vpack.c.b16 %v7796, %v7792
    %v10153 = vpack.c.b16 %v7797, %v7793
    %v10154 = vpack.c.b16 %v7802, %v7798
    %v10155 = vpack.c.b16 %v7803, %v7799
    %v10156 = vpack.c.b16 %v7804, %v7800
    %v10157 = vpack.c.b16 %v7805, %v7801
    %v10158 = vpack.c.b16 %v7810, %v7806
    %v10159 = vpack.c.b16 %v7811, %v7807
    %v10160 = vpack.c.b16 %v7812, %v7808
    %v10161 = vpack.c.b16 %v7813, %v7809
    %v10162 = vpack.c.b16 %v7818, %v7814
    %v10163 = vpack.c.b16 %v7819, %v7815
    %v10164 = vpack.c.b16 %v7820, %v7816
    %v10165 = vpack.c.b16 %v7821, %v7817
    %v10166 = vpack.c.b16 %v7826, %v7822
    %v10167 = vpack.c.b16 %v7827, %v7823
    %v10168 = vpack.c.b16 %v7828, %v7824
    %v10169 = vpack.c.b16 %v7829, %v7825
    %v10170 = vpack.c.b16 %v7834, %v7830
    %v10171 = vpack.c.b16 %v7835, %v7831
    %v10172 = vpack.c.b16 %v7836, %v7832
    %v10173 = vpack.c.b16 %v7837, %v7833
    %v10174 = vpack.c.b16 %v7842, %v7838
    %v10175 = vpack.c.b16 %v7843, %v7839
    %v10176 = vpack.c.b16 %v7844, %v7840
    %v10177 = vpack.c.b16 %v7845, %v7841
    %v10178 = vpack.c.b16 %v7850, %v7846
    %v10179 = vpack.c.b16 %v7851, %v7847
    %v10180 = vpack.c.b16 %v7852, %v7848
    %v10181 = vpack.c.b16 %v7853, %v7849
    %v10182 = vpack.c.b16 %v7858, %v7854
    %v10183 = vpack.c.b16 %v7859, %v7855
    %v10184 = vpack.c.b16 %v7860, %v7856
    %v10185 = vpack.c.b16 %v7861, %v7857
    %v10186 = vpack.c.b16 %v7866, %v7862
    %v10187 = vpack.c.b16 %v7867, %v7863
    %v10188 = vpack.c.b16 %v7868, %v7864
    %v10189 = vpack.c.b16 %v7869, %v7865
    %v10190 = vpack.c.b16 %v7874, %v7870
    %v10191 = vpack.c.b16 %v7875, %v7871
    %v10192 = vpack.c.b16 %v7876, %v7872
    %v10193 = vpack.c.b16 %v7877, %v7873
    %v10194 = vpack.c.b16 %v7882, %v7878
    %v10195 = vpack.c.b16 %v7883, %v7879
    %v10196 = vpack.c.b16 %v7884, %v7880
    %v10197 = vpack.c.b16 %v7885, %v7881
    %v10198 = vpack.c.b16 %v7890, %v7886
    %v10199 = vpack.c.b16 %v7891, %v7887
    %v10200 = vpack.c.b16 %v7892, %v7888
    %v10201 = vpack.c.b16 %v7893, %v7889
    %v10202 = vpack.c.b16 %v7898, %v7894
    %v10203 = vpack.c.b16 %v7899, %v7895
    %v10204 = vpack.c.b16 %v7900, %v7896
    %v10205 = vpack.c.b16 %v7901, %v7897
    %v10206 = vpack.c.b16 %v7906, %v7902
    %v10207 = vpack.c.b16 %v7907, %v7903
    %v10208 = vpack.c.b16 %v7908, %v7904
    %v10209 = vpack.c.b16 %v7909, %v7905
    %v10210 = vpack.c.b16 %v7914, %v7910
    %v10211 = vpack.c.b16 %v7915, %v7911
    %v10212 = vpack.c.b16 %v7916, %v7912
    %v10213 = vpack.c.b16 %v7917, %v7913
    %v10214 = vpack.c.b16 %v7922, %v7918
    %v10215 = vpack.c.b16 %v7923, %v7919
    %v10216 = vpack.c.b16 %v7924, %v7920
    %v10217 = vpack.c.b16 %v7925, %v7921
    %v10218 = vpack.c.b16 %v7930, %v7926
    %v10219 = vpack.c.b16 %v7931, %v7927
    %v10220 = vpack.c.b16 %v7932, %v7928
    %v10221 = vpack.c.b16 %v7933, %v7929
    %v10222 = vpack.c.b16 %v7938, %v7934
    %v10223 = vpack.c.b16 %v7939, %v7935
    %v10224 = vpack.c.b16 %v7940, %v7936
    %v10225 = vpack.c.b16 %v7941, %v7937
    %v10226 = vpack.c.b16 %v7946, %v7942
    %v10227 = vpack.c.b16 %v7947, %v7943
    %v10228 = vpack.c.b16 %v7948, %v7944
    %v10229 = vpack.c.b16 %v7949, %v7945
    %v10230 = vpack.c.b16 %v7954, %v7950
    %v10231 = vpack.c.b16 %v7955, %v7951
    %v10232 = vpack.c.b16 %v7956, %v7952
    %v10233 = vpack.c.b16 %v7957, %v7953
    %v10234 = vpack.c.b16 %v7962, %v7958
    %v10235 = vpack.c.b16 %v7963, %v7959
    %v10236 = vpack.c.b16 %v7964, %v7960
    %v10237 = vpack.c.b16 %v7965, %v7961
    %v10238 = vpack.c.b16 %v7970, %v7966
    %v10239 = vpack.c.b16 %v7971, %v7967
    %v10240 = vpack.c.b16 %v7972, %v7968
    %v10241 = vpack.c.b16 %v7973, %v7969
    %v10242 = vpack.c.b16 %v7978, %v7974
    %v10243 = vpack.c.b16 %v7979, %v7975
    %v10244 = vpack.c.b16 %v7980, %v7976
    %v10245 = vpack.c.b16 %v7981, %v7977
    %v10246 = vpack.c.b16 %v7986, %v7982
    %v10247 = vpack.c.b16 %v7987, %v7983
    %v10248 = vpack.c.b16 %v7988, %v7984
    %v10249 = vpack.c.b16 %v7989, %v7985
    %v10250 = vpack.c.b16 %v7994, %v7990
    %v10251 = vpack.c.b16 %v7995, %v7991
    %v10252 = vpack.c.b16 %v7996, %v7992
    %v10253 = vpack.c.b16 %v7997, %v7993
    %v10254 = vpack.c.b16 %v8002, %v7998
    %v10255 = vpack.c.b16 %v8003, %v7999
    %v10256 = vpack.c.b16 %v8004, %v8000
    %v10257 = vpack.c.b16 %v8005, %v8001
    %v10258 = vpack.c.b16 %v8010, %v8006
    %v10259 = vpack.c.b16 %v8011, %v8007
    %v10260 = vpack.c.b16 %v8012, %v8008
    %v10261 = vpack.c.b16 %v8013, %v8009
    %v10262 = vpack.c.b16 %v8018, %v8014
    %v10263 = vpack.c.b16 %v8019, %v8015
    %v10264 = vpack.c.b16 %v8020, %v8016
    %v10265 = vpack.c.b16 %v8021, %v8017
    %v10266 = vpack.c.b16 %v8026, %v8022
    %v10267 = vpack.c.b16 %v8027, %v8023
    %v10268 = vpack.c.b16 %v8028, %v8024
    %v10269 = vpack.c.b16 %v8029, %v8025
    %v10270 = vpack.c.b16 %v8034, %v8030
    %v10271 = vpack.c.b16 %v8035, %v8031
    %v10272 = vpack.c.b16 %v8036, %v8032
    %v10273 = vpack.c.b16 %v8037, %v8033
    %v10274 = vpack.c.b16 %v8042, %v8038
    %v10275 = vpack.c.b16 %v8043, %v8039
    %v10276 = vpack.c.b16 %v8044, %v8040
    %v10277 = vpack.c.b16 %v8045, %v8041
    %v10278 = vpack.c.b16 %v8050, %v8046
    %v10279 = vpack.c.b16 %v8051, %v8047
    %v10280 = vpack.c.b16 %v8052, %v8048
    %v10281 = vpack.c.b16 %v8053, %v8049
    %v10282 = vpack.c.b16 %v8058, %v8054
    %v10283 = vpack.c.b16 %v8059, %v8055
    %v10284 = vpack.c.b16 %v8060, %v8056
    %v10285 = vpack.c.b16 %v8061, %v8057
    %v10286 = vpack.c.b16 %v8066, %v8062
    %v10287 = vpack.c.b16 %v8067, %v8063
    %v10288 = vpack.c.b16 %v8068, %v8064
    %v10289 = vpack.c.b16 %v8069, %v8065
    %v10290 = vpack.c.b16 %v8074, %v8070
    %v10291 = vpack.c.b16 %v8075, %v8071
    %v10292 = vpack.c.b16 %v8076, %v8072
    %v10293 = vpack.c.b16 %v8077, %v8073
    %v10294 = vpack.c.b16 %v8082, %v8078
    %v10295 = vpack.c.b16 %v8083, %v8079
    %v10296 = vpack.c.b16 %v8084, %v8080
    %v10297 = vpack.c.b16 %v8085, %v8081
    %v10298 = vpack.c.b16 %v8090, %v8086
    %v10299 = vpack.c.b16 %v8091, %v8087
    %v10300 = vpack.c.b16 %v8092, %v8088
    %v10301 = vpack.c.b16 %v8093, %v8089
    %v10302 = vpack.c.b16 %v8098, %v8094
    %v10303 = vpack.c.b16 %v8099, %v8095
    %v10304 = vpack.c.b16 %v8100, %v8096
    %v10305 = vpack.c.b16 %v8101, %v8097
    %v10306 = vpack.c.b16 %v8106, %v8102
    %v10307 = vpack.c.b16 %v8107, %v8103
    %v10308 = vpack.c.b16 %v8108, %v8104
    %v10309 = vpack.c.b16 %v8109, %v8105
    %v10310 = vpack.c.b16 %v8114, %v8110
    %v10311 = vpack.c.b16 %v8115, %v8111
    %v10312 = vpack.c.b16 %v8116, %v8112
    %v10313 = vpack.c.b16 %v8117, %v8113
    %v10314 = vpack.c.b16 %v8122, %v8118
    %v10315 = vpack.c.b16 %v8123, %v8119
    %v10316 = vpack.c.b16 %v8124, %v8120
    %v10317 = vpack.c.b16 %v8125, %v8121
    %v10318 = vpack.c.b16 %v8130, %v8126
    %v10319 = vpack.c.b16 %v8131, %v8127
    %v10320 = vpack.c.b16 %v8132, %v8128
    %v10321 = vpack.c.b16 %v8133, %v8129
    %v10322 = vpack.c.b16 %v8138, %v8134
    %v10323 = vpack.c.b16 %v8139, %v8135
    %v10324 = vpack.c.b16 %v8140, %v8136
    %v10325 = vpack.c.b16 %v8141, %v8137
    %v10326 = vpack.c.b16 %v8146, %v8142
    %v10327 = vpack.c.b16 %v8147, %v8143
    %v10328 = vpack.c.b16 %v8148, %v8144
    %v10329 = vpack.c.b16 %v8149, %v8145
    %v10330 = vpack.c.b16 %v8154, %v8150
    %v10331 = vpack.c.b16 %v8155, %v8151
    %v10332 = vpack.c.b16 %v8156, %v8152
    %v10333 = vpack.c.b16 %v8157, %v8153
    %v10334 = vpack.c.b16 %v8162, %v8158
    %v10335 = vpack.c.b16 %v8163, %v8159
    %v10336 = vpack.c.b16 %v8164, %v8160
    %v10337 = vpack.c.b16 %v8165, %v8161
    %v10338 = vpack.c.b16 %v8170, %v8166
    %v10339 = vpack.c.b16 %v8171, %v8167
    %v10340 = vpack.c.b16 %v8172, %v8168
    %v10341 = vpack.c.b16 %v8173, %v8169
    %v10342 = vpack.c.b16 %v8178, %v8174
    %v10343 = vpack.c.b16 %v8179, %v8175
    %v10344 = vpack.c.b16 %v8180, %v8176
    %v10345 = vpack.c.b16 %v8181, %v8177
    %v10346 = vpack.c.b16 %v8186, %v8182
    %v10347 = vpack.c.b16 %v8187, %v8183
    %v10348 = vpack.c.b16 %v8188, %v8184
    %v10349 = vpack.c.b16 %v8189, %v8185
    %v10350 = vpack.c.b16 %v8194, %v8190
    %v10351 = vpack.c.b16 %v8195, %v8191
    %v10352 = vpack.c.b16 %v8196, %v8192
    %v10353 = vpack.c.b16 %v8197, %v8193
    %v10354 = vpack.c.b16 %v8202, %v8198
    %v10355 = vpack.c.b16 %v8203, %v8199
    %v10356 = vpack.c.b16 %v8204, %v8200
    %v10357 = vpack.c.b16 %v8205, %v8201
    %v10358 = vpack.c.b16 %v8210, %v8206
    %v10359 = vpack.c.b16 %v8211, %v8207
    %v10360 = vpack.c.b16 %v8212, %v8208
    %v10361 = vpack.c.b16 %v8213, %v8209
    %v10362 = vpack.c.b16 %v8218, %v8214
    %v10363 = vpack.c.b16 %v8219, %v8215
    %v10364 = vpack.c.b16 %v8220, %v8216
    %v10365 = vpack.c.b16 %v8221, %v8217
    %v10366 = vpack.c.b16 %v8226, %v8222
    %v10367 = vpack.c.b16 %v8227, %v8223
    %v10368 = vpack.c.b16 %v8228, %v8224
    %v10369 = vpack.c.b16 %v8229, %v8225
    %v10370 = vpack.c.b16 %v8234, %v8230
    %v10371 = vpack.c.b16 %v8235, %v8231
    %v10372 = vpack.c.b16 %v8236, %v8232
    %v10373 = vpack.c.b16 %v8237, %v8233
    %v10374 = vpack.c.b16 %v8242, %v8238
    %v10375 = vpack.c.b16 %v8243, %v8239
    %v10376 = vpack.c.b16 %v8244, %v8240
    %v10377 = vpack.c.b16 %v8245, %v8241
    %v10378 = vpack.c.b16 %v8250, %v8246
    %v10379 = vpack.c.b16 %v8251, %v8247
    %v10380 = vpack.c.b16 %v8252, %v8248
    %v10381 = vpack.c.b16 %v8253, %v8249
    %v10382 = vpack.c.b16 %v8258, %v8254
    %v10383 = vpack.c.b16 %v8259, %v8255
    %v10384 = vpack.c.b16 %v8260, %v8256
    %v10385 = vpack.c.b16 %v8261, %v8257
    %v10386 = vpack.c.b16 %v8266, %v8262
    %v10387 = vpack.c.b16 %v8267, %v8263
    %v10388 = vpack.c.b16 %v8268, %v8264
    %v10389 = vpack.c.b16 %v8269, %v8265
    %v10390 = vpack.c.b16 %v8274, %v8270
    %v10391 = vpack.c.b16 %v8275, %v8271
    %v10392 = vpack.c.b16 %v8276, %v8272
    %v10393 = vpack.c.b16 %v8277, %v8273
    %v10394 = vpack.c.b16 %v8282, %v8278
    %v10395 = vpack.c.b16 %v8283, %v8279
    %v10396 = vpack.c.b16 %v8284, %v8280
    %v10397 = vpack.c.b16 %v8285, %v8281
    %v10398 = vpack.c.b16 %v8290, %v8286
    %v10399 = vpack.c.b16 %v8291, %v8287
    %v10400 = vpack.c.b16 %v8292, %v8288
    %v10401 = vpack.c.b16 %v8293, %v8289
    %v10402 = vpack.c.b16 %v8298, %v8294
    %v10403 = vpack.c.b16 %v8299, %v8295
    %v10404 = vpack.c.b16 %v8300, %v8296
    %v10405 = vpack.c.b16 %v8301, %v8297
    %v10406 = vpack.c.b16 %v8306, %v8302
    %v10407 = vpack.c.b16 %v8307, %v8303
    %v10408 = vpack.c.b16 %v8308, %v8304
    %v10409 = vpack.c.b16 %v8309, %v8305
    %v10410 = vpack.c.b16 %v8314, %v8310
    %v10411 = vpack.c.b16 %v8315, %v8311
    %v10412 = vpack.c.b16 %v8316, %v8312
    %v10413 = vpack.c.b16 %v8317, %v8313
    %v10414 = vpack.c.b16 %v8322, %v8318
    %v10415 = vpack.c.b16 %v8323, %v8319
    %v10416 = vpack.c.b16 %v8324, %v8320
    %v10417 = vpack.c.b16 %v8325, %v8321
    %v10418 = vpack.c.b16 %v8330, %v8326
    %v10419 = vpack.c.b16 %v8331, %v8327
    %v10420 = vpack.c.b16 %v8332, %v8328
    %v10421 = vpack.c.b16 %v8333, %v8329
    %v10422 = vpack.c.b16 %v8338, %v8334
    %v10423 = vpack.c.b16 %v8339, %v8335
    %v10424 = vpack.c.b16 %v8340, %v8336
    %v10425 = vpack.c.b16 %v8341, %v8337
    %v10426 = vpack.c.b16 %v8346, %v8342
    %v10427 = vpack.c.b16 %v8347, %v8343
    %v10428 = vpack.c.b16 %v8348, %v8344
    %v10429 = vpack.c.b16 %v8349, %v8345
    %v10430 = vpack.c.b16 %v8354, %v8350
    %v10431 = vpack.c.b16 %v8355, %v8351
    %v10432 = vpack.c.b16 %v8356, %v8352
    %v10433 = vpack.c.b16 %v8357, %v8353
    %v10434 = vpack.c.b16 %v8362, %v8358
    %v10435 = vpack.c.b16 %v8363, %v8359
    %v10436 = vpack.c.b16 %v8364, %v8360
    %v10437 = vpack.c.b16 %v8365, %v8361
    %v10438 = vpack.c.b16 %v8370, %v8366
    %v10439 = vpack.c.b16 %v8371, %v8367
    %v10440 = vpack.c.b16 %v8372, %v8368
    %v10441 = vpack.c.b16 %v8373, %v8369
    %v10442 = vpack.c.b16 %v8378, %v8374
    %v10443 = vpack.c.b16 %v8379, %v8375
    %v10444 = vpack.c.b16 %v8380, %v8376
    %v10445 = vpack.c.b16 %v8381, %v8377
    %v10446 = vpack.c.b16 %v8386, %v8382
    %v10447 = vpack.c.b16 %v8387, %v8383
    %v10448 = vpack.c.b16 %v8388, %v8384
    %v10449 = vpack.c.b16 %v8389, %v8385
    %v10450 = vpack.c.b16 %v8394, %v8390
    %v10451 = vpack.c.b16 %v8395, %v8391
    %v10452 = vpack.c.b16 %v8396, %v8392
    %v10453 = vpack.c.b16 %v8397, %v8393
    %v10454 = vpack.c.b16 %v8402, %v8398
    %v10455 = vpack.c.b16 %v8403, %v8399
    %v10456 = vpack.c.b16 %v8404, %v8400
    %v10457 = vpack.c.b16 %v8405, %v8401
    %v10458 = vpack.c.b16 %v8410, %v8406
    %v10459 = vpack.c.b16 %v8411, %v8407
    %v10460 = vpack.c.b16 %v8412, %v8408
    %v10461 = vpack.c.b16 %v8413, %v8409
    %12510 = vmatprep.subr.bf16.mxu0 %v8443
    %12511 = vmatpush1.bf16.msra.mxu0 %v8442
    %12512 = vmatprep.subr.bf16.mxu0 %v8439
    %12513 = vmatpush1.bf16.msra.mxu0 %v8438
    %12514 = vmatprep.subr.bf16.mxu0 %v8435
    %12515 = vmatpush1.bf16.msra.mxu0 %v8434
    %12516 = vmatprep.subr.bf16.mxu0 %v8431
    %12517 = vmatpush1.bf16.msra.mxu0 %v8430
    %12518 = vmatprep.subr.bf16.mxu0 %v8427
    %12519 = vmatpush1.bf16.msra.mxu0 %v8426
    %12520 = vmatprep.subr.bf16.mxu0 %v8423
    %12521 = vmatpush1.bf16.msra.mxu0 %v8422
    %12522 = vmatprep.subr.bf16.mxu0 %v8419
    %12523 = vmatpush1.bf16.msra.mxu0 %v8418
    %12524 = vmatprep.subr.bf16.mxu0 %v8415
    %12525 = vmatpush1.bf16.msra.mxu0 %v8414
    %12526 = vmatprep.subr.bf16.mxu0 %v8475
    %12527 = vmatpush2.bf16.msra.mxu0 %v8474
    %12528 = vmatprep.subr.bf16.mxu0 %v8471
    %12529 = vmatpush2.bf16.msra.mxu0 %v8470
    %12530 = vmatprep.subr.bf16.mxu0 %v8467
    %12531 = vmatpush2.bf16.msra.mxu0 %v8466
    %12532 = vmatprep.subr.bf16.mxu0 %v8463
    %12533 = vmatpush2.bf16.msra.mxu0 %v8462
    %12534 = vmatprep.subr.bf16.mxu0 %v8459
    %12535 = vmatpush2.bf16.msra.mxu0 %v8458
    %12536 = vmatprep.subr.bf16.mxu0 %v8455
    %12537 = vmatpush2.bf16.msra.mxu0 %v8454
    %12538 = vmatprep.subr.bf16.mxu0 %v8451
    %12539 = vmatpush2.bf16.msra.mxu0 %v8450
    %12540 = vmatprep.subr.bf16.mxu0 %v8447
    %12541 = vmatpush2.bf16.msra.mxu0 %v8446
    %12542 = vmatprep.mubr.bf16.mxu0 %v137
    %12543 = vmatmul.mubr.bf16.gmra.mxu0 %v136
    %v12544 = vpop.f32.mrf.mxu0
    %v12545 = vadd.f32 %v2253, %v12544
    %v12546 = vpop.f32.mrf.mxu0
    %v12547 = vadd.f32 %v2257, %v12546
    %v12548 = vpop.f32.mrf.mxu0
    %v12549 = vpop.f32.mrf.mxu0
    %12550 = vdwg.mxu0
    %12551 = vmatprep.subr.bf16.mxu0 %v8507
    %12552 = vmatpush1.bf16.msra.mxu0 %v8506
    %12553 = vmatprep.subr.bf16.mxu0 %v8503
    %12554 = vmatpush1.bf16.msra.mxu0 %v8502
    %12555 = vmatprep.subr.bf16.mxu0 %v8499
    %12556 = vmatpush1.bf16.msra.mxu0 %v8498
    %12557 = vmatprep.subr.bf16.mxu0 %v8495
    %12558 = vmatpush1.bf16.msra.mxu0 %v8494
    %12559 = vmatprep.subr.bf16.mxu0 %v8491
    %12560 = vmatpush1.bf16.msra.mxu0 %v8490
    %12561 = vmatprep.subr.bf16.mxu0 %v8487
    %12562 = vmatpush1.bf16.msra.mxu0 %v8486
    %12563 = vmatprep.subr.bf16.mxu0 %v8483
    %12564 = vmatpush1.bf16.msra.mxu0 %v8482
    %12565 = vmatprep.subr.bf16.mxu0 %v8479
    %12566 = vmatpush1.bf16.msra.mxu0 %v8478
    %12567 = vmatprep.subr.bf16.mxu0 %v8539
    %12568 = vmatpush2.bf16.msra.mxu0 %v8538
    %12569 = vmatprep.subr.bf16.mxu0 %v8535
    %12570 = vmatpush2.bf16.msra.mxu0 %v8534
    %12571 = vmatprep.subr.bf16.mxu0 %v8531
    %12572 = vmatpush2.bf16.msra.mxu0 %v8530
    %12573 = vmatprep.subr.bf16.mxu0 %v8527
    %12574 = vmatpush2.bf16.msra.mxu0 %v8526
    %12575 = vmatprep.subr.bf16.mxu0 %v8523
    %12576 = vmatpush2.bf16.msra.mxu0 %v8522
    %12577 = vmatprep.subr.bf16.mxu0 %v8519
    %12578 = vmatpush2.bf16.msra.mxu0 %v8518
    %12579 = vmatprep.subr.bf16.mxu0 %v8515
    %12580 = vmatpush2.bf16.msra.mxu0 %v8514
    %12581 = vmatprep.subr.bf16.mxu0 %v8511
    %12582 = vmatpush2.bf16.msra.mxu0 %v8510
    %12583 = vmatprep.mubr.bf16.mxu0 %v139
    %12584 = vmatmul.mubr.bf16.gmra.mxu0 %v138
    %v12585 = vpop.f32.mrf.mxu0
    %v12586 = vadd.f32 %v12545, %v12585
    %v12587 = vpop.f32.mrf.mxu0
    %v12588 = vadd.f32 %v12547, %v12587
    %v12589 = vpop.f32.mrf.mxu0
    %v12590 = vpop.f32.mrf.mxu0
    %12591 = vdwg.mxu0
    %12592 = vmatprep.subr.bf16.mxu0 %v8571
    %12593 = vmatpush1.bf16.msra.mxu0 %v8570
    %12594 = vmatprep.subr.bf16.mxu0 %v8567
    %12595 = vmatpush1.bf16.msra.mxu0 %v8566
    %12596 = vmatprep.subr.bf16.mxu0 %v8563
    %12597 = vmatpush1.bf16.msra.mxu0 %v8562
    %12598 = vmatprep.subr.bf16.mxu0 %v8559
    %12599 = vmatpush1.bf16.msra.mxu0 %v8558
    %12600 = vmatprep.subr.bf16.mxu0 %v8555
    %12601 = vmatpush1.bf16.msra.mxu0 %v8554
    %12602 = vmatprep.subr.bf16.mxu0 %v8551
    %12603 = vmatpush1.bf16.msra.mxu0 %v8550
    %12604 = vmatprep.subr.bf16.mxu0 %v8547
    %12605 = vmatpush1.bf16.msra.mxu0 %v8546
    %12606 = vmatprep.subr.bf16.mxu0 %v8543
    %12607 = vmatpush1.bf16.msra.mxu0 %v8542
    %12608 = vmatprep.subr.bf16.mxu0 %v8603
    %12609 = vmatpush2.bf16.msra.mxu0 %v8602
    %12610 = vmatprep.subr.bf16.mxu0 %v8599
    %12611 = vmatpush2.bf16.msra.mxu0 %v8598
    %12612 = vmatprep.subr.bf16.mxu0 %v8595
    %12613 = vmatpush2.bf16.msra.mxu0 %v8594
    %12614 = vmatprep.subr.bf16.mxu0 %v8591
    %12615 = vmatpush2.bf16.msra.mxu0 %v8590
    %12616 = vmatprep.subr.bf16.mxu0 %v8587
    %12617 = vmatpush2.bf16.msra.mxu0 %v8586
    %12618 = vmatprep.subr.bf16.mxu0 %v8583
    %12619 = vmatpush2.bf16.msra.mxu0 %v8582
    %12620 = vmatprep.subr.bf16.mxu0 %v8579
    %12621 = vmatpush2.bf16.msra.mxu0 %v8578
    %12622 = vmatprep.subr.bf16.mxu0 %v8575
    %12623 = vmatpush2.bf16.msra.mxu0 %v8574
    %12624 = vmatprep.mubr.bf16.mxu0 %v141
    %12625 = vmatmul.mubr.bf16.gmra.mxu0 %v140
    %v12626 = vpop.f32.mrf.mxu0
    %v12627 = vadd.f32 %v12586, %v12626
    %v12628 = vpop.f32.mrf.mxu0
    %v12629 = vadd.f32 %v12588, %v12628
    %v12630 = vpop.f32.mrf.mxu0
    %v12631 = vpop.f32.mrf.mxu0
    %12632 = vdwg.mxu0
    %12633 = vmatprep.subr.bf16.mxu0 %v8635
    %12634 = vmatpush1.bf16.msra.mxu0 %v8634
    %12635 = vmatprep.subr.bf16.mxu0 %v8631
    %12636 = vmatpush1.bf16.msra.mxu0 %v8630
    %12637 = vmatprep.subr.bf16.mxu0 %v8627
    %12638 = vmatpush1.bf16.msra.mxu0 %v8626
    %12639 = vmatprep.subr.bf16.mxu0 %v8623
    %12640 = vmatpush1.bf16.msra.mxu0 %v8622
    %12641 = vmatprep.subr.bf16.mxu0 %v8619
    %12642 = vmatpush1.bf16.msra.mxu0 %v8618
    %12643 = vmatprep.subr.bf16.mxu0 %v8615
    %12644 = vmatpush1.bf16.msra.mxu0 %v8614
    %12645 = vmatprep.subr.bf16.mxu0 %v8611
    %12646 = vmatpush1.bf16.msra.mxu0 %v8610
    %12647 = vmatprep.subr.bf16.mxu0 %v8607
    %12648 = vmatpush1.bf16.msra.mxu0 %v8606
    %12649 = vmatprep.subr.bf16.mxu0 %v8667
    %12650 = vmatpush2.bf16.msra.mxu0 %v8666
    %12651 = vmatprep.subr.bf16.mxu0 %v8663
    %12652 = vmatpush2.bf16.msra.mxu0 %v8662
    %12653 = vmatprep.subr.bf16.mxu0 %v8659
    %12654 = vmatpush2.bf16.msra.mxu0 %v8658
    %12655 = vmatprep.subr.bf16.mxu0 %v8655
    %12656 = vmatpush2.bf16.msra.mxu0 %v8654
    %12657 = vmatprep.subr.bf16.mxu0 %v8651
    %12658 = vmatpush2.bf16.msra.mxu0 %v8650
    %12659 = vmatprep.subr.bf16.mxu0 %v8647
    %12660 = vmatpush2.bf16.msra.mxu0 %v8646
    %12661 = vmatprep.subr.bf16.mxu0 %v8643
    %12662 = vmatpush2.bf16.msra.mxu0 %v8642
    %12663 = vmatprep.subr.bf16.mxu0 %v8639
    %12664 = vmatpush2.bf16.msra.mxu0 %v8638
    %12665 = vmatprep.mubr.bf16.mxu0 %v143
    %12666 = vmatmul.mubr.bf16.gmra.mxu0 %v142
    %v12667 = vpop.f32.mrf.mxu0
    %v12668 = vadd.f32 %v12627, %v12667
    %v12669 = vpop.f32.mrf.mxu0
    %v12670 = vadd.f32 %v12629, %v12669
    %v12671 = vpop.f32.mrf.mxu0
    %v12672 = vpop.f32.mrf.mxu0
    %12673 = vdwg.mxu0
    %12674 = vmatprep.subr.bf16.mxu0 %v8699
    %12675 = vmatpush1.bf16.msra.mxu0 %v8698
    %12676 = vmatprep.subr.bf16.mxu0 %v8695
    %12677 = vmatpush1.bf16.msra.mxu0 %v8694
    %12678 = vmatprep.subr.bf16.mxu0 %v8691
    %12679 = vmatpush1.bf16.msra.mxu0 %v8690
    %12680 = vmatprep.subr.bf16.mxu0 %v8687
    %12681 = vmatpush1.bf16.msra.mxu0 %v8686
    %12682 = vmatprep.subr.bf16.mxu0 %v8683
    %12683 = vmatpush1.bf16.msra.mxu0 %v8682
    %12684 = vmatprep.subr.bf16.mxu0 %v8679
    %12685 = vmatpush1.bf16.msra.mxu0 %v8678
    %12686 = vmatprep.subr.bf16.mxu0 %v8675
    %12687 = vmatpush1.bf16.msra.mxu0 %v8674
    %12688 = vmatprep.subr.bf16.mxu0 %v8671
    %12689 = vmatpush1.bf16.msra.mxu0 %v8670
    %12690 = vmatprep.subr.bf16.mxu0 %v8731
    %12691 = vmatpush2.bf16.msra.mxu0 %v8730
    %12692 = vmatprep.subr.bf16.mxu0 %v8727
    %12693 = vmatpush2.bf16.msra.mxu0 %v8726
    %12694 = vmatprep.subr.bf16.mxu0 %v8723
    %12695 = vmatpush2.bf16.msra.mxu0 %v8722
    %12696 = vmatprep.subr.bf16.mxu0 %v8719
    %12697 = vmatpush2.bf16.msra.mxu0 %v8718
    %12698 = vmatprep.subr.bf16.mxu0 %v8715
    %12699 = vmatpush2.bf16.msra.mxu0 %v8714
    %12700 = vmatprep.subr.bf16.mxu0 %v8711
    %12701 = vmatpush2.bf16.msra.mxu0 %v8710
    %12702 = vmatprep.subr.bf16.mxu0 %v8707
    %12703 = vmatpush2.bf16.msra.mxu0 %v8706
    %12704 = vmatprep.subr.bf16.mxu0 %v8703
    %12705 = vmatpush2.bf16.msra.mxu0 %v8702
    %12706 = vmatprep.mubr.bf16.mxu0 %v145
    %12707 = vmatmul.mubr.bf16.gmra.mxu0 %v144
    %v12708 = vpop.f32.mrf.mxu0
    %v12709 = vadd.f32 %v12668, %v12708
    %v12710 = vpop.f32.mrf.mxu0
    %v12711 = vadd.f32 %v12670, %v12710
    %v12712 = vpop.f32.mrf.mxu0
    %v12713 = vpop.f32.mrf.mxu0
    %12714 = vdwg.mxu0
    %12715 = vmatprep.subr.bf16.mxu0 %v8763
    %12716 = vmatpush1.bf16.msra.mxu0 %v8762
    %12717 = vmatprep.subr.bf16.mxu0 %v8759
    %12718 = vmatpush1.bf16.msra.mxu0 %v8758
    %12719 = vmatprep.subr.bf16.mxu0 %v8755
    %12720 = vmatpush1.bf16.msra.mxu0 %v8754
    %12721 = vmatprep.subr.bf16.mxu0 %v8751
    %12722 = vmatpush1.bf16.msra.mxu0 %v8750
    %12723 = vmatprep.subr.bf16.mxu0 %v8747
    %12724 = vmatpush1.bf16.msra.mxu0 %v8746
    %12725 = vmatprep.subr.bf16.mxu0 %v8743
    %12726 = vmatpush1.bf16.msra.mxu0 %v8742
    %12727 = vmatprep.subr.bf16.mxu0 %v8739
    %12728 = vmatpush1.bf16.msra.mxu0 %v8738
    %12729 = vmatprep.subr.bf16.mxu0 %v8735
    %12730 = vmatpush1.bf16.msra.mxu0 %v8734
    %12731 = vmatprep.subr.bf16.mxu0 %v8795
    %12732 = vmatpush2.bf16.msra.mxu0 %v8794
    %12733 = vmatprep.subr.bf16.mxu0 %v8791
    %12734 = vmatpush2.bf16.msra.mxu0 %v8790
    %12735 = vmatprep.subr.bf16.mxu0 %v8787
    %12736 = vmatpush2.bf16.msra.mxu0 %v8786
    %12737 = vmatprep.subr.bf16.mxu0 %v8783
    %12738 = vmatpush2.bf16.msra.mxu0 %v8782
    %12739 = vmatprep.subr.bf16.mxu0 %v8779
    %12740 = vmatpush2.bf16.msra.mxu0 %v8778
    %12741 = vmatprep.subr.bf16.mxu0 %v8775
    %12742 = vmatpush2.bf16.msra.mxu0 %v8774
    %12743 = vmatprep.subr.bf16.mxu0 %v8771
    %12744 = vmatpush2.bf16.msra.mxu0 %v8770
    %12745 = vmatprep.subr.bf16.mxu0 %v8767
    %12746 = vmatpush2.bf16.msra.mxu0 %v8766
    %12747 = vmatprep.mubr.bf16.mxu0 %v147
    %12748 = vmatmul.mubr.bf16.gmra.mxu0 %v146
    %v12749 = vpop.f32.mrf.mxu0
    %v12750 = vadd.f32 %v12709, %v12749
    %v12751 = vpop.f32.mrf.mxu0
    %v12752 = vadd.f32 %v12711, %v12751
    %v12753 = vpop.f32.mrf.mxu0
    %v12754 = vpop.f32.mrf.mxu0
    %12755 = vdwg.mxu0
    %12756 = vmatprep.subr.bf16.mxu0 %v8827
    %12757 = vmatpush1.bf16.msra.mxu0 %v8826
    %12758 = vmatprep.subr.bf16.mxu0 %v8823
    %12759 = vmatpush1.bf16.msra.mxu0 %v8822
    %12760 = vmatprep.subr.bf16.mxu0 %v8819
    %12761 = vmatpush1.bf16.msra.mxu0 %v8818
    %12762 = vmatprep.subr.bf16.mxu0 %v8815
    %12763 = vmatpush1.bf16.msra.mxu0 %v8814
    %12764 = vmatprep.subr.bf16.mxu0 %v8811
    %12765 = vmatpush1.bf16.msra.mxu0 %v8810
    %12766 = vmatprep.subr.bf16.mxu0 %v8807
    %12767 = vmatpush1.bf16.msra.mxu0 %v8806
    %12768 = vmatprep.subr.bf16.mxu0 %v8803
    %12769 = vmatpush1.bf16.msra.mxu0 %v8802
    %12770 = vmatprep.subr.bf16.mxu0 %v8799
    %12771 = vmatpush1.bf16.msra.mxu0 %v8798
    %12772 = vmatprep.subr.bf16.mxu0 %v8859
    %12773 = vmatpush2.bf16.msra.mxu0 %v8858
    %12774 = vmatprep.subr.bf16.mxu0 %v8855
    %12775 = vmatpush2.bf16.msra.mxu0 %v8854
    %12776 = vmatprep.subr.bf16.mxu0 %v8851
    %12777 = vmatpush2.bf16.msra.mxu0 %v8850
    %12778 = vmatprep.subr.bf16.mxu0 %v8847
    %12779 = vmatpush2.bf16.msra.mxu0 %v8846
    %12780 = vmatprep.subr.bf16.mxu0 %v8843
    %12781 = vmatpush2.bf16.msra.mxu0 %v8842
    %12782 = vmatprep.subr.bf16.mxu0 %v8839
    %12783 = vmatpush2.bf16.msra.mxu0 %v8838
    %12784 = vmatprep.subr.bf16.mxu0 %v8835
    %12785 = vmatpush2.bf16.msra.mxu0 %v8834
    %12786 = vmatprep.subr.bf16.mxu0 %v8831
    %12787 = vmatpush2.bf16.msra.mxu0 %v8830
    %12788 = vmatprep.mubr.bf16.mxu0 %v149
    %12789 = vmatmul.mubr.bf16.gmra.mxu0 %v148
    %v12790 = vpop.f32.mrf.mxu0
    %v12791 = vadd.f32 %v12750, %v12790
    %v12792 = vpop.f32.mrf.mxu0
    %v12793 = vadd.f32 %v12752, %v12792
    %v12794 = vpop.f32.mrf.mxu0
    %v12795 = vpop.f32.mrf.mxu0
    %12796 = vdwg.mxu0
    %12797 = vmatprep.subr.bf16.mxu0 %v8891
    %12798 = vmatpush1.bf16.msra.mxu0 %v8890
    %12799 = vmatprep.subr.bf16.mxu0 %v8887
    %12800 = vmatpush1.bf16.msra.mxu0 %v8886
    %12801 = vmatprep.subr.bf16.mxu0 %v8883
    %12802 = vmatpush1.bf16.msra.mxu0 %v8882
    %12803 = vmatprep.subr.bf16.mxu0 %v8879
    %12804 = vmatpush1.bf16.msra.mxu0 %v8878
    %12805 = vmatprep.subr.bf16.mxu0 %v8875
    %12806 = vmatpush1.bf16.msra.mxu0 %v8874
    %12807 = vmatprep.subr.bf16.mxu0 %v8871
    %12808 = vmatpush1.bf16.msra.mxu0 %v8870
    %12809 = vmatprep.subr.bf16.mxu0 %v8867
    %12810 = vmatpush1.bf16.msra.mxu0 %v8866
    %12811 = vmatprep.subr.bf16.mxu0 %v8863
    %12812 = vmatpush1.bf16.msra.mxu0 %v8862
    %12813 = vmatprep.subr.bf16.mxu0 %v8923
    %12814 = vmatpush2.bf16.msra.mxu0 %v8922
    %12815 = vmatprep.subr.bf16.mxu0 %v8919
    %12816 = vmatpush2.bf16.msra.mxu0 %v8918
    %12817 = vmatprep.subr.bf16.mxu0 %v8915
    %12818 = vmatpush2.bf16.msra.mxu0 %v8914
    %12819 = vmatprep.subr.bf16.mxu0 %v8911
    %12820 = vmatpush2.bf16.msra.mxu0 %v8910
    %12821 = vmatprep.subr.bf16.mxu0 %v8907
    %12822 = vmatpush2.bf16.msra.mxu0 %v8906
    %12823 = vmatprep.subr.bf16.mxu0 %v8903
    %12824 = vmatpush2.bf16.msra.mxu0 %v8902
    %12825 = vmatprep.subr.bf16.mxu0 %v8899
    %12826 = vmatpush2.bf16.msra.mxu0 %v8898
    %12827 = vmatprep.subr.bf16.mxu0 %v8895
    %12828 = vmatpush2.bf16.msra.mxu0 %v8894
    %12829 = vmatprep.mubr.bf16.mxu0 %v151
    %12830 = vmatmul.mubr.bf16.gmra.mxu0 %v150
    %v12831 = vpop.f32.mrf.mxu0
    %v12832 = vadd.f32 %v12791, %v12831
    %v12833 = vpop.f32.mrf.mxu0
    %v12834 = vadd.f32 %v12793, %v12833
    %v12835 = vpop.f32.mrf.mxu0
    %v12836 = vpop.f32.mrf.mxu0
    %12837 = vdwg.mxu0
    %12838 = vmatprep.subr.bf16.mxu0 %v8955
    %12839 = vmatpush1.bf16.msra.mxu0 %v8954
    %12840 = vmatprep.subr.bf16.mxu0 %v8951
    %12841 = vmatpush1.bf16.msra.mxu0 %v8950
    %12842 = vmatprep.subr.bf16.mxu0 %v8947
    %12843 = vmatpush1.bf16.msra.mxu0 %v8946
    %12844 = vmatprep.subr.bf16.mxu0 %v8943
    %12845 = vmatpush1.bf16.msra.mxu0 %v8942
    %12846 = vmatprep.subr.bf16.mxu0 %v8939
    %12847 = vmatpush1.bf16.msra.mxu0 %v8938
    %12848 = vmatprep.subr.bf16.mxu0 %v8935
    %12849 = vmatpush1.bf16.msra.mxu0 %v8934
    %12850 = vmatprep.subr.bf16.mxu0 %v8931
    %12851 = vmatpush1.bf16.msra.mxu0 %v8930
    %12852 = vmatprep.subr.bf16.mxu0 %v8927
    %12853 = vmatpush1.bf16.msra.mxu0 %v8926
    %12854 = vmatprep.subr.bf16.mxu0 %v8987
    %12855 = vmatpush2.bf16.msra.mxu0 %v8986
    %12856 = vmatprep.subr.bf16.mxu0 %v8983
    %12857 = vmatpush2.bf16.msra.mxu0 %v8982
    %12858 = vmatprep.subr.bf16.mxu0 %v8979
    %12859 = vmatpush2.bf16.msra.mxu0 %v8978
    %12860 = vmatprep.subr.bf16.mxu0 %v8975
    %12861 = vmatpush2.bf16.msra.mxu0 %v8974
    %12862 = vmatprep.subr.bf16.mxu0 %v8971
    %12863 = vmatpush2.bf16.msra.mxu0 %v8970
    %12864 = vmatprep.subr.bf16.mxu0 %v8967
    %12865 = vmatpush2.bf16.msra.mxu0 %v8966
    %12866 = vmatprep.subr.bf16.mxu0 %v8963
    %12867 = vmatpush2.bf16.msra.mxu0 %v8962
    %12868 = vmatprep.subr.bf16.mxu0 %v8959
    %12869 = vmatpush2.bf16.msra.mxu0 %v8958
    %12870 = vmatprep.mubr.bf16.mxu0 %v153
    %12871 = vmatmul.mubr.bf16.gmra.mxu0 %v152
    %v12872 = vpop.f32.mrf.mxu0
    %v12873 = vadd.f32 %v12832, %v12872
    %v12874 = vpop.f32.mrf.mxu0
    %v12875 = vadd.f32 %v12834, %v12874
    %v12876 = vpop.f32.mrf.mxu0
    %v12877 = vpop.f32.mrf.mxu0
    %12878 = vdwg.mxu0
    %12879 = vmatprep.subr.bf16.mxu0 %v9019
    %12880 = vmatpush1.bf16.msra.mxu0 %v9018
    %12881 = vmatprep.subr.bf16.mxu0 %v9015
    %12882 = vmatpush1.bf16.msra.mxu0 %v9014
    %12883 = vmatprep.subr.bf16.mxu0 %v9011
    %12884 = vmatpush1.bf16.msra.mxu0 %v9010
    %12885 = vmatprep.subr.bf16.mxu0 %v9007
    %12886 = vmatpush1.bf16.msra.mxu0 %v9006
    %12887 = vmatprep.subr.bf16.mxu0 %v9003
    %12888 = vmatpush1.bf16.msra.mxu0 %v9002
    %12889 = vmatprep.subr.bf16.mxu0 %v8999
    %12890 = vmatpush1.bf16.msra.mxu0 %v8998
    %12891 = vmatprep.subr.bf16.mxu0 %v8995
    %12892 = vmatpush1.bf16.msra.mxu0 %v8994
    %12893 = vmatprep.subr.bf16.mxu0 %v8991
    %12894 = vmatpush1.bf16.msra.mxu0 %v8990
    %12895 = vmatprep.subr.bf16.mxu0 %v9051
    %12896 = vmatpush2.bf16.msra.mxu0 %v9050
    %12897 = vmatprep.subr.bf16.mxu0 %v9047
    %12898 = vmatpush2.bf16.msra.mxu0 %v9046
    %12899 = vmatprep.subr.bf16.mxu0 %v9043
    %12900 = vmatpush2.bf16.msra.mxu0 %v9042
    %12901 = vmatprep.subr.bf16.mxu0 %v9039
    %12902 = vmatpush2.bf16.msra.mxu0 %v9038
    %12903 = vmatprep.subr.bf16.mxu0 %v9035
    %12904 = vmatpush2.bf16.msra.mxu0 %v9034
    %12905 = vmatprep.subr.bf16.mxu0 %v9031
    %12906 = vmatpush2.bf16.msra.mxu0 %v9030
    %12907 = vmatprep.subr.bf16.mxu0 %v9027
    %12908 = vmatpush2.bf16.msra.mxu0 %v9026
    %12909 = vmatprep.subr.bf16.mxu0 %v9023
    %12910 = vmatpush2.bf16.msra.mxu0 %v9022
    %12911 = vmatprep.mubr.bf16.mxu0 %v155
    %12912 = vmatmul.mubr.bf16.gmra.mxu0 %v154
    %v12913 = vpop.f32.mrf.mxu0
    %v12914 = vadd.f32 %v12873, %v12913
    %v12915 = vpop.f32.mrf.mxu0
    %v12916 = vadd.f32 %v12875, %v12915
    %v12917 = vpop.f32.mrf.mxu0
    %v12918 = vpop.f32.mrf.mxu0
    %12919 = vdwg.mxu0
    %12920 = vmatprep.subr.bf16.mxu0 %v9083
    %12921 = vmatpush1.bf16.msra.mxu0 %v9082
    %12922 = vmatprep.subr.bf16.mxu0 %v9079
    %12923 = vmatpush1.bf16.msra.mxu0 %v9078
    %12924 = vmatprep.subr.bf16.mxu0 %v9075
    %12925 = vmatpush1.bf16.msra.mxu0 %v9074
    %12926 = vmatprep.subr.bf16.mxu0 %v9071
    %12927 = vmatpush1.bf16.msra.mxu0 %v9070
    %12928 = vmatprep.subr.bf16.mxu0 %v9067
    %12929 = vmatpush1.bf16.msra.mxu0 %v9066
    %12930 = vmatprep.subr.bf16.mxu0 %v9063
    %12931 = vmatpush1.bf16.msra.mxu0 %v9062
    %12932 = vmatprep.subr.bf16.mxu0 %v9059
    %12933 = vmatpush1.bf16.msra.mxu0 %v9058
    %12934 = vmatprep.subr.bf16.mxu0 %v9055
    %12935 = vmatpush1.bf16.msra.mxu0 %v9054
    %12936 = vmatprep.subr.bf16.mxu0 %v9115
    %12937 = vmatpush2.bf16.msra.mxu0 %v9114
    %12938 = vmatprep.subr.bf16.mxu0 %v9111
    %12939 = vmatpush2.bf16.msra.mxu0 %v9110
    %12940 = vmatprep.subr.bf16.mxu0 %v9107
    %12941 = vmatpush2.bf16.msra.mxu0 %v9106
    %12942 = vmatprep.subr.bf16.mxu0 %v9103
    %12943 = vmatpush2.bf16.msra.mxu0 %v9102
    %12944 = vmatprep.subr.bf16.mxu0 %v9099
    %12945 = vmatpush2.bf16.msra.mxu0 %v9098
    %12946 = vmatprep.subr.bf16.mxu0 %v9095
    %12947 = vmatpush2.bf16.msra.mxu0 %v9094
    %12948 = vmatprep.subr.bf16.mxu0 %v9091
    %12949 = vmatpush2.bf16.msra.mxu0 %v9090
    %12950 = vmatprep.subr.bf16.mxu0 %v9087
    %12951 = vmatpush2.bf16.msra.mxu0 %v9086
    %12952 = vmatprep.mubr.bf16.mxu0 %v157
    %12953 = vmatmul.mubr.bf16.gmra.mxu0 %v156
    %v12954 = vpop.f32.mrf.mxu0
    %v12955 = vadd.f32 %v12914, %v12954
    %v12956 = vpop.f32.mrf.mxu0
    %v12957 = vadd.f32 %v12916, %v12956
    %v12958 = vpop.f32.mrf.mxu0
    %v12959 = vpop.f32.mrf.mxu0
    %12960 = vdwg.mxu0
    %12961 = vmatprep.subr.bf16.mxu0 %v9147
    %12962 = vmatpush1.bf16.msra.mxu0 %v9146
    %12963 = vmatprep.subr.bf16.mxu0 %v9143
    %12964 = vmatpush1.bf16.msra.mxu0 %v9142
    %12965 = vmatprep.subr.bf16.mxu0 %v9139
    %12966 = vmatpush1.bf16.msra.mxu0 %v9138
    %12967 = vmatprep.subr.bf16.mxu0 %v9135
    %12968 = vmatpush1.bf16.msra.mxu0 %v9134
    %12969 = vmatprep.subr.bf16.mxu0 %v9131
    %12970 = vmatpush1.bf16.msra.mxu0 %v9130
    %12971 = vmatprep.subr.bf16.mxu0 %v9127
    %12972 = vmatpush1.bf16.msra.mxu0 %v9126
    %12973 = vmatprep.subr.bf16.mxu0 %v9123
    %12974 = vmatpush1.bf16.msra.mxu0 %v9122
    %12975 = vmatprep.subr.bf16.mxu0 %v9119
    %12976 = vmatpush1.bf16.msra.mxu0 %v9118
    %12977 = vmatprep.subr.bf16.mxu0 %v9179
    %12978 = vmatpush2.bf16.msra.mxu0 %v9178
    %12979 = vmatprep.subr.bf16.mxu0 %v9175
    %12980 = vmatpush2.bf16.msra.mxu0 %v9174
    %12981 = vmatprep.subr.bf16.mxu0 %v9171
    %12982 = vmatpush2.bf16.msra.mxu0 %v9170
    %12983 = vmatprep.subr.bf16.mxu0 %v9167
    %12984 = vmatpush2.bf16.msra.mxu0 %v9166
    %12985 = vmatprep.subr.bf16.mxu0 %v9163
    %12986 = vmatpush2.bf16.msra.mxu0 %v9162
    %12987 = vmatprep.subr.bf16.mxu0 %v9159
    %12988 = vmatpush2.bf16.msra.mxu0 %v9158
    %12989 = vmatprep.subr.bf16.mxu0 %v9155
    %12990 = vmatpush2.bf16.msra.mxu0 %v9154
    %12991 = vmatprep.subr.bf16.mxu0 %v9151
    %12992 = vmatpush2.bf16.msra.mxu0 %v9150
    %12993 = vmatprep.mubr.bf16.mxu0 %v159
    %12994 = vmatmul.mubr.bf16.gmra.mxu0 %v158
    %v12995 = vpop.f32.mrf.mxu0
    %v12996 = vadd.f32 %v12955, %v12995
    %v12997 = vpop.f32.mrf.mxu0
    %v12998 = vadd.f32 %v12957, %v12997
    %v12999 = vpop.f32.mrf.mxu0
    %v13000 = vpop.f32.mrf.mxu0
    %13001 = vdwg.mxu0
    %13002 = vmatprep.subr.bf16.mxu0 %v9211
    %13003 = vmatpush1.bf16.msra.mxu0 %v9210
    %13004 = vmatprep.subr.bf16.mxu0 %v9207
    %13005 = vmatpush1.bf16.msra.mxu0 %v9206
    %13006 = vmatprep.subr.bf16.mxu0 %v9203
    %13007 = vmatpush1.bf16.msra.mxu0 %v9202
    %13008 = vmatprep.subr.bf16.mxu0 %v9199
    %13009 = vmatpush1.bf16.msra.mxu0 %v9198
    %13010 = vmatprep.subr.bf16.mxu0 %v9195
    %13011 = vmatpush1.bf16.msra.mxu0 %v9194
    %13012 = vmatprep.subr.bf16.mxu0 %v9191
    %13013 = vmatpush1.bf16.msra.mxu0 %v9190
    %13014 = vmatprep.subr.bf16.mxu0 %v9187
    %13015 = vmatpush1.bf16.msra.mxu0 %v9186
    %13016 = vmatprep.subr.bf16.mxu0 %v9183
    %13017 = vmatpush1.bf16.msra.mxu0 %v9182
    %13018 = vmatprep.subr.bf16.mxu0 %v9243
    %13019 = vmatpush2.bf16.msra.mxu0 %v9242
    %13020 = vmatprep.subr.bf16.mxu0 %v9239
    %13021 = vmatpush2.bf16.msra.mxu0 %v9238
    %13022 = vmatprep.subr.bf16.mxu0 %v9235
    %13023 = vmatpush2.bf16.msra.mxu0 %v9234
    %13024 = vmatprep.subr.bf16.mxu0 %v9231
    %13025 = vmatpush2.bf16.msra.mxu0 %v9230
    %13026 = vmatprep.subr.bf16.mxu0 %v9227
    %13027 = vmatpush2.bf16.msra.mxu0 %v9226
    %13028 = vmatprep.subr.bf16.mxu0 %v9223
    %13029 = vmatpush2.bf16.msra.mxu0 %v9222
    %13030 = vmatprep.subr.bf16.mxu0 %v9219
    %13031 = vmatpush2.bf16.msra.mxu0 %v9218
    %13032 = vmatprep.subr.bf16.mxu0 %v9215
    %13033 = vmatpush2.bf16.msra.mxu0 %v9214
    %13034 = vmatprep.mubr.bf16.mxu0 %v161
    %13035 = vmatmul.mubr.bf16.gmra.mxu0 %v160
    %v13036 = vpop.f32.mrf.mxu0
    %v13037 = vadd.f32 %v12996, %v13036
    %v13038 = vpop.f32.mrf.mxu0
    %v13039 = vadd.f32 %v12998, %v13038
    %v13040 = vpop.f32.mrf.mxu0
    %v13041 = vpop.f32.mrf.mxu0
    %13042 = vdwg.mxu0
    %13043 = vmatprep.subr.bf16.mxu0 %v9275
    %13044 = vmatpush1.bf16.msra.mxu0 %v9274
    %13045 = vmatprep.subr.bf16.mxu0 %v9271
    %13046 = vmatpush1.bf16.msra.mxu0 %v9270
    %13047 = vmatprep.subr.bf16.mxu0 %v9267
    %13048 = vmatpush1.bf16.msra.mxu0 %v9266
    %13049 = vmatprep.subr.bf16.mxu0 %v9263
    %13050 = vmatpush1.bf16.msra.mxu0 %v9262
    %13051 = vmatprep.subr.bf16.mxu0 %v9259
    %13052 = vmatpush1.bf16.msra.mxu0 %v9258
    %13053 = vmatprep.subr.bf16.mxu0 %v9255
    %13054 = vmatpush1.bf16.msra.mxu0 %v9254
    %13055 = vmatprep.subr.bf16.mxu0 %v9251
    %13056 = vmatpush1.bf16.msra.mxu0 %v9250
    %13057 = vmatprep.subr.bf16.mxu0 %v9247
    %13058 = vmatpush1.bf16.msra.mxu0 %v9246
    %13059 = vmatprep.subr.bf16.mxu0 %v9307
    %13060 = vmatpush2.bf16.msra.mxu0 %v9306
    %13061 = vmatprep.subr.bf16.mxu0 %v9303
    %13062 = vmatpush2.bf16.msra.mxu0 %v9302
    %13063 = vmatprep.subr.bf16.mxu0 %v9299
    %13064 = vmatpush2.bf16.msra.mxu0 %v9298
    %13065 = vmatprep.subr.bf16.mxu0 %v9295
    %13066 = vmatpush2.bf16.msra.mxu0 %v9294
    %13067 = vmatprep.subr.bf16.mxu0 %v9291
    %13068 = vmatpush2.bf16.msra.mxu0 %v9290
    %13069 = vmatprep.subr.bf16.mxu0 %v9287
    %13070 = vmatpush2.bf16.msra.mxu0 %v9286
    %13071 = vmatprep.subr.bf16.mxu0 %v9283
    %13072 = vmatpush2.bf16.msra.mxu0 %v9282
    %13073 = vmatprep.subr.bf16.mxu0 %v9279
    %13074 = vmatpush2.bf16.msra.mxu0 %v9278
    %13075 = vmatprep.mubr.bf16.mxu0 %v163
    %13076 = vmatmul.mubr.bf16.gmra.mxu0 %v162
    %v13077 = vpop.f32.mrf.mxu0
    %v13078 = vadd.f32 %v13037, %v13077
    %v13079 = vpop.f32.mrf.mxu0
    %v13080 = vadd.f32 %v13039, %v13079
    %v13081 = vpop.f32.mrf.mxu0
    %v13082 = vpop.f32.mrf.mxu0
    %13083 = vdwg.mxu0
    %13084 = vmatprep.subr.bf16.mxu0 %v9339
    %13085 = vmatpush1.bf16.msra.mxu0 %v9338
    %13086 = vmatprep.subr.bf16.mxu0 %v9335
    %13087 = vmatpush1.bf16.msra.mxu0 %v9334
    %13088 = vmatprep.subr.bf16.mxu0 %v9331
    %13089 = vmatpush1.bf16.msra.mxu0 %v9330
    %13090 = vmatprep.subr.bf16.mxu0 %v9327
    %13091 = vmatpush1.bf16.msra.mxu0 %v9326
    %13092 = vmatprep.subr.bf16.mxu0 %v9323
    %13093 = vmatpush1.bf16.msra.mxu0 %v9322
    %13094 = vmatprep.subr.bf16.mxu0 %v9319
    %13095 = vmatpush1.bf16.msra.mxu0 %v9318
    %13096 = vmatprep.subr.bf16.mxu0 %v9315
    %13097 = vmatpush1.bf16.msra.mxu0 %v9314
    %13098 = vmatprep.subr.bf16.mxu0 %v9311
    %13099 = vmatpush1.bf16.msra.mxu0 %v9310
    %13100 = vmatprep.subr.bf16.mxu0 %v9371
    %13101 = vmatpush2.bf16.msra.mxu0 %v9370
    %13102 = vmatprep.subr.bf16.mxu0 %v9367
    %13103 = vmatpush2.bf16.msra.mxu0 %v9366
    %13104 = vmatprep.subr.bf16.mxu0 %v9363
    %13105 = vmatpush2.bf16.msra.mxu0 %v9362
    %13106 = vmatprep.subr.bf16.mxu0 %v9359
    %13107 = vmatpush2.bf16.msra.mxu0 %v9358
    %13108 = vmatprep.subr.bf16.mxu0 %v9355
    %13109 = vmatpush2.bf16.msra.mxu0 %v9354
    %13110 = vmatprep.subr.bf16.mxu0 %v9351
    %13111 = vmatpush2.bf16.msra.mxu0 %v9350
    %13112 = vmatprep.subr.bf16.mxu0 %v9347
    %13113 = vmatpush2.bf16.msra.mxu0 %v9346
    %13114 = vmatprep.subr.bf16.mxu0 %v9343
    %13115 = vmatpush2.bf16.msra.mxu0 %v9342
    %13116 = vmatprep.mubr.bf16.mxu0 %v165
    %13117 = vmatmul.mubr.bf16.gmra.mxu0 %v164
    %v13118 = vpop.f32.mrf.mxu0
    %v13119 = vadd.f32 %v13078, %v13118
    %v13120 = vpop.f32.mrf.mxu0
    %v13121 = vadd.f32 %v13080, %v13120
    %v13122 = vpop.f32.mrf.mxu0
    %v13123 = vpop.f32.mrf.mxu0
    %13124 = vdwg.mxu0
    %13125 = vmatprep.subr.bf16.mxu0 %v9403
    %13126 = vmatpush1.bf16.msra.mxu0 %v9402
    %13127 = vmatprep.subr.bf16.mxu0 %v9399
    %13128 = vmatpush1.bf16.msra.mxu0 %v9398
    %13129 = vmatprep.subr.bf16.mxu0 %v9395
    %13130 = vmatpush1.bf16.msra.mxu0 %v9394
    %13131 = vmatprep.subr.bf16.mxu0 %v9391
    %13132 = vmatpush1.bf16.msra.mxu0 %v9390
    %13133 = vmatprep.subr.bf16.mxu0 %v9387
    %13134 = vmatpush1.bf16.msra.mxu0 %v9386
    %13135 = vmatprep.subr.bf16.mxu0 %v9383
    %13136 = vmatpush1.bf16.msra.mxu0 %v9382
    %13137 = vmatprep.subr.bf16.mxu0 %v9379
    %13138 = vmatpush1.bf16.msra.mxu0 %v9378
    %13139 = vmatprep.subr.bf16.mxu0 %v9375
    %13140 = vmatpush1.bf16.msra.mxu0 %v9374
    %13141 = vmatprep.subr.bf16.mxu0 %v9435
    %13142 = vmatpush2.bf16.msra.mxu0 %v9434
    %13143 = vmatprep.subr.bf16.mxu0 %v9431
    %13144 = vmatpush2.bf16.msra.mxu0 %v9430
    %13145 = vmatprep.subr.bf16.mxu0 %v9427
    %13146 = vmatpush2.bf16.msra.mxu0 %v9426
    %13147 = vmatprep.subr.bf16.mxu0 %v9423
    %13148 = vmatpush2.bf16.msra.mxu0 %v9422
    %13149 = vmatprep.subr.bf16.mxu0 %v9419
    %13150 = vmatpush2.bf16.msra.mxu0 %v9418
    %13151 = vmatprep.subr.bf16.mxu0 %v9415
    %13152 = vmatpush2.bf16.msra.mxu0 %v9414
    %13153 = vmatprep.subr.bf16.mxu0 %v9411
    %13154 = vmatpush2.bf16.msra.mxu0 %v9410
    %13155 = vmatprep.subr.bf16.mxu0 %v9407
    %13156 = vmatpush2.bf16.msra.mxu0 %v9406
    %13157 = vmatprep.mubr.bf16.mxu0 %v167
    %13158 = vmatmul.mubr.bf16.gmra.mxu0 %v166
    %v13159 = vpop.f32.mrf.mxu0
    %v13160 = vadd.f32 %v13119, %v13159
    %v13161 = vpop.f32.mrf.mxu0
    %v13162 = vadd.f32 %v13121, %v13161
    %v13163 = vpop.f32.mrf.mxu0
    %v13164 = vpop.f32.mrf.mxu0
    %13165 = vdwg.mxu0
    %13166 = vmatprep.subr.bf16.mxu0 %v9467
    %13167 = vmatpush1.bf16.msra.mxu0 %v9466
    %13168 = vmatprep.subr.bf16.mxu0 %v9463
    %13169 = vmatpush1.bf16.msra.mxu0 %v9462
    %13170 = vmatprep.subr.bf16.mxu0 %v9459
    %13171 = vmatpush1.bf16.msra.mxu0 %v9458
    %13172 = vmatprep.subr.bf16.mxu0 %v9455
    %13173 = vmatpush1.bf16.msra.mxu0 %v9454
    %13174 = vmatprep.subr.bf16.mxu0 %v9451
    %13175 = vmatpush1.bf16.msra.mxu0 %v9450
    %13176 = vmatprep.subr.bf16.mxu0 %v9447
    %13177 = vmatpush1.bf16.msra.mxu0 %v9446
    %13178 = vmatprep.subr.bf16.mxu0 %v9443
    %13179 = vmatpush1.bf16.msra.mxu0 %v9442
    %13180 = vmatprep.subr.bf16.mxu0 %v9439
    %13181 = vmatpush1.bf16.msra.mxu0 %v9438
    %13182 = vmatprep.subr.bf16.mxu0 %v9499
    %13183 = vmatpush2.bf16.msra.mxu0 %v9498
    %13184 = vmatprep.subr.bf16.mxu0 %v9495
    %13185 = vmatpush2.bf16.msra.mxu0 %v9494
    %13186 = vmatprep.subr.bf16.mxu0 %v9491
    %13187 = vmatpush2.bf16.msra.mxu0 %v9490
    %13188 = vmatprep.subr.bf16.mxu0 %v9487
    %13189 = vmatpush2.bf16.msra.mxu0 %v9486
    %13190 = vmatprep.subr.bf16.mxu0 %v9483
    %13191 = vmatpush2.bf16.msra.mxu0 %v9482
    %13192 = vmatprep.subr.bf16.mxu0 %v9479
    %13193 = vmatpush2.bf16.msra.mxu0 %v9478
    %13194 = vmatprep.subr.bf16.mxu0 %v9475
    %13195 = vmatpush2.bf16.msra.mxu0 %v9474
    %13196 = vmatprep.subr.bf16.mxu0 %v9471
    %13197 = vmatpush2.bf16.msra.mxu0 %v9470
    %13198 = vmatprep.mubr.bf16.mxu0 %v169
    %13199 = vmatmul.mubr.bf16.gmra.mxu0 %v168
    %v13200 = vpop.f32.mrf.mxu0
    %v13201 = vadd.f32 %v13160, %v13200
    %v13202 = vpop.f32.mrf.mxu0
    %v13203 = vadd.f32 %v13162, %v13202
    %v13204 = vpop.f32.mrf.mxu0
    %v13205 = vpop.f32.mrf.mxu0
    %13206 = vdwg.mxu0
    %13207 = vmatprep.subr.bf16.mxu0 %v9531
    %13208 = vmatpush1.bf16.msra.mxu0 %v9530
    %13209 = vmatprep.subr.bf16.mxu0 %v9527
    %13210 = vmatpush1.bf16.msra.mxu0 %v9526
    %13211 = vmatprep.subr.bf16.mxu0 %v9523
    %13212 = vmatpush1.bf16.msra.mxu0 %v9522
    %13213 = vmatprep.subr.bf16.mxu0 %v9519
    %13214 = vmatpush1.bf16.msra.mxu0 %v9518
    %13215 = vmatprep.subr.bf16.mxu0 %v9515
    %13216 = vmatpush1.bf16.msra.mxu0 %v9514
    %13217 = vmatprep.subr.bf16.mxu0 %v9511
    %13218 = vmatpush1.bf16.msra.mxu0 %v9510
    %13219 = vmatprep.subr.bf16.mxu0 %v9507
    %13220 = vmatpush1.bf16.msra.mxu0 %v9506
    %13221 = vmatprep.subr.bf16.mxu0 %v9503
    %13222 = vmatpush1.bf16.msra.mxu0 %v9502
    %13223 = vmatprep.subr.bf16.mxu0 %v9563
    %13224 = vmatpush2.bf16.msra.mxu0 %v9562
    %13225 = vmatprep.subr.bf16.mxu0 %v9559
    %13226 = vmatpush2.bf16.msra.mxu0 %v9558
    %13227 = vmatprep.subr.bf16.mxu0 %v9555
    %13228 = vmatpush2.bf16.msra.mxu0 %v9554
    %13229 = vmatprep.subr.bf16.mxu0 %v9551
    %13230 = vmatpush2.bf16.msra.mxu0 %v9550
    %13231 = vmatprep.subr.bf16.mxu0 %v9547
    %13232 = vmatpush2.bf16.msra.mxu0 %v9546
    %13233 = vmatprep.subr.bf16.mxu0 %v9543
    %13234 = vmatpush2.bf16.msra.mxu0 %v9542
    %13235 = vmatprep.subr.bf16.mxu0 %v9539
    %13236 = vmatpush2.bf16.msra.mxu0 %v9538
    %13237 = vmatprep.subr.bf16.mxu0 %v9535
    %13238 = vmatpush2.bf16.msra.mxu0 %v9534
    %13239 = vmatprep.mubr.bf16.mxu0 %v171
    %13240 = vmatmul.mubr.bf16.gmra.mxu0 %v170
    %v13241 = vpop.f32.mrf.mxu0
    %v13242 = vadd.f32 %v13201, %v13241
    %v13243 = vpop.f32.mrf.mxu0
    %v13244 = vadd.f32 %v13203, %v13243
    %v13245 = vpop.f32.mrf.mxu0
    %v13246 = vpop.f32.mrf.mxu0
    %13247 = vdwg.mxu0
    %13248 = vmatprep.subr.bf16.mxu0 %v9595
    %13249 = vmatpush1.bf16.msra.mxu0 %v9594
    %13250 = vmatprep.subr.bf16.mxu0 %v9591
    %13251 = vmatpush1.bf16.msra.mxu0 %v9590
    %13252 = vmatprep.subr.bf16.mxu0 %v9587
    %13253 = vmatpush1.bf16.msra.mxu0 %v9586
    %13254 = vmatprep.subr.bf16.mxu0 %v9583
    %13255 = vmatpush1.bf16.msra.mxu0 %v9582
    %13256 = vmatprep.subr.bf16.mxu0 %v9579
    %13257 = vmatpush1.bf16.msra.mxu0 %v9578
    %13258 = vmatprep.subr.bf16.mxu0 %v9575
    %13259 = vmatpush1.bf16.msra.mxu0 %v9574
    %13260 = vmatprep.subr.bf16.mxu0 %v9571
    %13261 = vmatpush1.bf16.msra.mxu0 %v9570
    %13262 = vmatprep.subr.bf16.mxu0 %v9567
    %13263 = vmatpush1.bf16.msra.mxu0 %v9566
    %13264 = vmatprep.subr.bf16.mxu0 %v9627
    %13265 = vmatpush2.bf16.msra.mxu0 %v9626
    %13266 = vmatprep.subr.bf16.mxu0 %v9623
    %13267 = vmatpush2.bf16.msra.mxu0 %v9622
    %13268 = vmatprep.subr.bf16.mxu0 %v9619
    %13269 = vmatpush2.bf16.msra.mxu0 %v9618
    %13270 = vmatprep.subr.bf16.mxu0 %v9615
    %13271 = vmatpush2.bf16.msra.mxu0 %v9614
    %13272 = vmatprep.subr.bf16.mxu0 %v9611
    %13273 = vmatpush2.bf16.msra.mxu0 %v9610
    %13274 = vmatprep.subr.bf16.mxu0 %v9607
    %13275 = vmatpush2.bf16.msra.mxu0 %v9606
    %13276 = vmatprep.subr.bf16.mxu0 %v9603
    %13277 = vmatpush2.bf16.msra.mxu0 %v9602
    %13278 = vmatprep.subr.bf16.mxu0 %v9599
    %13279 = vmatpush2.bf16.msra.mxu0 %v9598
    %13280 = vmatprep.mubr.bf16.mxu0 %v173
    %13281 = vmatmul.mubr.bf16.gmra.mxu0 %v172
    %v13282 = vpop.f32.mrf.mxu0
    %v13283 = vadd.f32 %v13242, %v13282
    %v13284 = vpop.f32.mrf.mxu0
    %v13285 = vadd.f32 %v13244, %v13284
    %v13286 = vpop.f32.mrf.mxu0
    %v13287 = vpop.f32.mrf.mxu0
    %13288 = vdwg.mxu0
    %13289 = vmatprep.subr.bf16.mxu0 %v9659
    %13290 = vmatpush1.bf16.msra.mxu0 %v9658
    %13291 = vmatprep.subr.bf16.mxu0 %v9655
    %13292 = vmatpush1.bf16.msra.mxu0 %v9654
    %13293 = vmatprep.subr.bf16.mxu0 %v9651
    %13294 = vmatpush1.bf16.msra.mxu0 %v9650
    %13295 = vmatprep.subr.bf16.mxu0 %v9647
    %13296 = vmatpush1.bf16.msra.mxu0 %v9646
    %13297 = vmatprep.subr.bf16.mxu0 %v9643
    %13298 = vmatpush1.bf16.msra.mxu0 %v9642
    %13299 = vmatprep.subr.bf16.mxu0 %v9639
    %13300 = vmatpush1.bf16.msra.mxu0 %v9638
    %13301 = vmatprep.subr.bf16.mxu0 %v9635
    %13302 = vmatpush1.bf16.msra.mxu0 %v9634
    %13303 = vmatprep.subr.bf16.mxu0 %v9631
    %13304 = vmatpush1.bf16.msra.mxu0 %v9630
    %13305 = vmatprep.subr.bf16.mxu0 %v9691
    %13306 = vmatpush2.bf16.msra.mxu0 %v9690
    %13307 = vmatprep.subr.bf16.mxu0 %v9687
    %13308 = vmatpush2.bf16.msra.mxu0 %v9686
    %13309 = vmatprep.subr.bf16.mxu0 %v9683
    %13310 = vmatpush2.bf16.msra.mxu0 %v9682
    %13311 = vmatprep.subr.bf16.mxu0 %v9679
    %13312 = vmatpush2.bf16.msra.mxu0 %v9678
    %13313 = vmatprep.subr.bf16.mxu0 %v9675
    %13314 = vmatpush2.bf16.msra.mxu0 %v9674
    %13315 = vmatprep.subr.bf16.mxu0 %v9671
    %13316 = vmatpush2.bf16.msra.mxu0 %v9670
    %13317 = vmatprep.subr.bf16.mxu0 %v9667
    %13318 = vmatpush2.bf16.msra.mxu0 %v9666
    %13319 = vmatprep.subr.bf16.mxu0 %v9663
    %13320 = vmatpush2.bf16.msra.mxu0 %v9662
    %13321 = vmatprep.mubr.bf16.mxu0 %v175
    %13322 = vmatmul.mubr.bf16.gmra.mxu0 %v174
    %v13323 = vpop.f32.mrf.mxu0
    %v13324 = vadd.f32 %v13283, %v13323
    %v13325 = vpop.f32.mrf.mxu0
    %v13326 = vadd.f32 %v13285, %v13325
    %v13327 = vpop.f32.mrf.mxu0
    %v13328 = vpop.f32.mrf.mxu0
    %13329 = vdwg.mxu0
    %13330 = vmatprep.subr.bf16.mxu0 %v9723
    %13331 = vmatpush1.bf16.msra.mxu0 %v9722
    %13332 = vmatprep.subr.bf16.mxu0 %v9719
    %13333 = vmatpush1.bf16.msra.mxu0 %v9718
    %13334 = vmatprep.subr.bf16.mxu0 %v9715
    %13335 = vmatpush1.bf16.msra.mxu0 %v9714
    %13336 = vmatprep.subr.bf16.mxu0 %v9711
    %13337 = vmatpush1.bf16.msra.mxu0 %v9710
    %13338 = vmatprep.subr.bf16.mxu0 %v9707
    %13339 = vmatpush1.bf16.msra.mxu0 %v9706
    %13340 = vmatprep.subr.bf16.mxu0 %v9703
    %13341 = vmatpush1.bf16.msra.mxu0 %v9702
    %13342 = vmatprep.subr.bf16.mxu0 %v9699
    %13343 = vmatpush1.bf16.msra.mxu0 %v9698
    %13344 = vmatprep.subr.bf16.mxu0 %v9695
    %13345 = vmatpush1.bf16.msra.mxu0 %v9694
    %13346 = vmatprep.subr.bf16.mxu0 %v9755
    %13347 = vmatpush2.bf16.msra.mxu0 %v9754
    %13348 = vmatprep.subr.bf16.mxu0 %v9751
    %13349 = vmatpush2.bf16.msra.mxu0 %v9750
    %13350 = vmatprep.subr.bf16.mxu0 %v9747
    %13351 = vmatpush2.bf16.msra.mxu0 %v9746
    %13352 = vmatprep.subr.bf16.mxu0 %v9743
    %13353 = vmatpush2.bf16.msra.mxu0 %v9742
    %13354 = vmatprep.subr.bf16.mxu0 %v9739
    %13355 = vmatpush2.bf16.msra.mxu0 %v9738
    %13356 = vmatprep.subr.bf16.mxu0 %v9735
    %13357 = vmatpush2.bf16.msra.mxu0 %v9734
    %13358 = vmatprep.subr.bf16.mxu0 %v9731
    %13359 = vmatpush2.bf16.msra.mxu0 %v9730
    %13360 = vmatprep.subr.bf16.mxu0 %v9727
    %13361 = vmatpush2.bf16.msra.mxu0 %v9726
    %13362 = vmatprep.mubr.bf16.mxu0 %v177
    %13363 = vmatmul.mubr.bf16.gmra.mxu0 %v176
    %v13364 = vpop.f32.mrf.mxu0
    %v13365 = vadd.f32 %v13324, %v13364
    %v13366 = vpop.f32.mrf.mxu0
    %v13367 = vadd.f32 %v13326, %v13366
    %v13368 = vpop.f32.mrf.mxu0
    %v13369 = vpop.f32.mrf.mxu0
    %13370 = vdwg.mxu0
    %13371 = vmatprep.subr.bf16.mxu0 %v9787
    %13372 = vmatpush1.bf16.msra.mxu0 %v9786
    %13373 = vmatprep.subr.bf16.mxu0 %v9783
    %13374 = vmatpush1.bf16.msra.mxu0 %v9782
    %13375 = vmatprep.subr.bf16.mxu0 %v9779
    %13376 = vmatpush1.bf16.msra.mxu0 %v9778
    %13377 = vmatprep.subr.bf16.mxu0 %v9775
    %13378 = vmatpush1.bf16.msra.mxu0 %v9774
    %13379 = vmatprep.subr.bf16.mxu0 %v9771
    %13380 = vmatpush1.bf16.msra.mxu0 %v9770
    %13381 = vmatprep.subr.bf16.mxu0 %v9767
    %13382 = vmatpush1.bf16.msra.mxu0 %v9766
    %13383 = vmatprep.subr.bf16.mxu0 %v9763
    %13384 = vmatpush1.bf16.msra.mxu0 %v9762
    %13385 = vmatprep.subr.bf16.mxu0 %v9759
    %13386 = vmatpush1.bf16.msra.mxu0 %v9758
    %13387 = vmatprep.subr.bf16.mxu0 %v9819
    %13388 = vmatpush2.bf16.msra.mxu0 %v9818
    %13389 = vmatprep.subr.bf16.mxu0 %v9815
    %13390 = vmatpush2.bf16.msra.mxu0 %v9814
    %13391 = vmatprep.subr.bf16.mxu0 %v9811
    %13392 = vmatpush2.bf16.msra.mxu0 %v9810
    %13393 = vmatprep.subr.bf16.mxu0 %v9807
    %13394 = vmatpush2.bf16.msra.mxu0 %v9806
    %13395 = vmatprep.subr.bf16.mxu0 %v9803
    %13396 = vmatpush2.bf16.msra.mxu0 %v9802
    %13397 = vmatprep.subr.bf16.mxu0 %v9799
    %13398 = vmatpush2.bf16.msra.mxu0 %v9798
    %13399 = vmatprep.subr.bf16.mxu0 %v9795
    %13400 = vmatpush2.bf16.msra.mxu0 %v9794
    %13401 = vmatprep.subr.bf16.mxu0 %v9791
    %13402 = vmatpush2.bf16.msra.mxu0 %v9790
    %13403 = vmatprep.mubr.bf16.mxu0 %v179
    %13404 = vmatmul.mubr.bf16.gmra.mxu0 %v178
    %v13405 = vpop.f32.mrf.mxu0
    %v13406 = vadd.f32 %v13365, %v13405
    %v13407 = vpop.f32.mrf.mxu0
    %v13408 = vadd.f32 %v13367, %v13407
    %v13409 = vpop.f32.mrf.mxu0
    %v13410 = vpop.f32.mrf.mxu0
    %13411 = vdwg.mxu0
    %13412 = vmatprep.subr.bf16.mxu0 %v9851
    %13413 = vmatpush1.bf16.msra.mxu0 %v9850
    %13414 = vmatprep.subr.bf16.mxu0 %v9847
    %13415 = vmatpush1.bf16.msra.mxu0 %v9846
    %13416 = vmatprep.subr.bf16.mxu0 %v9843
    %13417 = vmatpush1.bf16.msra.mxu0 %v9842
    %13418 = vmatprep.subr.bf16.mxu0 %v9839
    %13419 = vmatpush1.bf16.msra.mxu0 %v9838
    %13420 = vmatprep.subr.bf16.mxu0 %v9835
    %13421 = vmatpush1.bf16.msra.mxu0 %v9834
    %13422 = vmatprep.subr.bf16.mxu0 %v9831
    %13423 = vmatpush1.bf16.msra.mxu0 %v9830
    %13424 = vmatprep.subr.bf16.mxu0 %v9827
    %13425 = vmatpush1.bf16.msra.mxu0 %v9826
    %13426 = vmatprep.subr.bf16.mxu0 %v9823
    %13427 = vmatpush1.bf16.msra.mxu0 %v9822
    %13428 = vmatprep.subr.bf16.mxu0 %v9883
    %13429 = vmatpush2.bf16.msra.mxu0 %v9882
    %13430 = vmatprep.subr.bf16.mxu0 %v9879
    %13431 = vmatpush2.bf16.msra.mxu0 %v9878
    %13432 = vmatprep.subr.bf16.mxu0 %v9875
    %13433 = vmatpush2.bf16.msra.mxu0 %v9874
    %13434 = vmatprep.subr.bf16.mxu0 %v9871
    %13435 = vmatpush2.bf16.msra.mxu0 %v9870
    %13436 = vmatprep.subr.bf16.mxu0 %v9867
    %13437 = vmatpush2.bf16.msra.mxu0 %v9866
    %13438 = vmatprep.subr.bf16.mxu0 %v9863
    %13439 = vmatpush2.bf16.msra.mxu0 %v9862
    %13440 = vmatprep.subr.bf16.mxu0 %v9859
    %13441 = vmatpush2.bf16.msra.mxu0 %v9858
    %13442 = vmatprep.subr.bf16.mxu0 %v9855
    %13443 = vmatpush2.bf16.msra.mxu0 %v9854
    %13444 = vmatprep.mubr.bf16.mxu0 %v181
    %13445 = vmatmul.mubr.bf16.gmra.mxu0 %v180
    %v13446 = vpop.f32.mrf.mxu0
    %v13447 = vadd.f32 %v13406, %v13446
    %v13448 = vpop.f32.mrf.mxu0
    %v13449 = vadd.f32 %v13408, %v13448
    %v13450 = vpop.f32.mrf.mxu0
    %v13451 = vpop.f32.mrf.mxu0
    %13452 = vdwg.mxu0
    %13453 = vmatprep.subr.bf16.mxu0 %v9915
    %13454 = vmatpush1.bf16.msra.mxu0 %v9914
    %13455 = vmatprep.subr.bf16.mxu0 %v9911
    %13456 = vmatpush1.bf16.msra.mxu0 %v9910
    %13457 = vmatprep.subr.bf16.mxu0 %v9907
    %13458 = vmatpush1.bf16.msra.mxu0 %v9906
    %13459 = vmatprep.subr.bf16.mxu0 %v9903
    %13460 = vmatpush1.bf16.msra.mxu0 %v9902
    %13461 = vmatprep.subr.bf16.mxu0 %v9899
    %13462 = vmatpush1.bf16.msra.mxu0 %v9898
    %13463 = vmatprep.subr.bf16.mxu0 %v9895
    %13464 = vmatpush1.bf16.msra.mxu0 %v9894
    %13465 = vmatprep.subr.bf16.mxu0 %v9891
    %13466 = vmatpush1.bf16.msra.mxu0 %v9890
    %13467 = vmatprep.subr.bf16.mxu0 %v9887
    %13468 = vmatpush1.bf16.msra.mxu0 %v9886
    %13469 = vmatprep.subr.bf16.mxu0 %v9947
    %13470 = vmatpush2.bf16.msra.mxu0 %v9946
    %13471 = vmatprep.subr.bf16.mxu0 %v9943
    %13472 = vmatpush2.bf16.msra.mxu0 %v9942
    %13473 = vmatprep.subr.bf16.mxu0 %v9939
    %13474 = vmatpush2.bf16.msra.mxu0 %v9938
    %13475 = vmatprep.subr.bf16.mxu0 %v9935
    %13476 = vmatpush2.bf16.msra.mxu0 %v9934
    %13477 = vmatprep.subr.bf16.mxu0 %v9931
    %13478 = vmatpush2.bf16.msra.mxu0 %v9930
    %13479 = vmatprep.subr.bf16.mxu0 %v9927
    %13480 = vmatpush2.bf16.msra.mxu0 %v9926
    %13481 = vmatprep.subr.bf16.mxu0 %v9923
    %13482 = vmatpush2.bf16.msra.mxu0 %v9922
    %13483 = vmatprep.subr.bf16.mxu0 %v9919
    %13484 = vmatpush2.bf16.msra.mxu0 %v9918
    %13485 = vmatprep.mubr.bf16.mxu0 %v183
    %13486 = vmatmul.mubr.bf16.gmra.mxu0 %v182
    %v13487 = vpop.f32.mrf.mxu0
    %v13488 = vadd.f32 %v13447, %v13487
    %v13489 = vpop.f32.mrf.mxu0
    %v13490 = vadd.f32 %v13449, %v13489
    %v13491 = vpop.f32.mrf.mxu0
    %v13492 = vpop.f32.mrf.mxu0
    %13493 = vdwg.mxu0
    %13494 = vmatprep.subr.bf16.mxu0 %v9979
    %13495 = vmatpush1.bf16.msra.mxu0 %v9978
    %13496 = vmatprep.subr.bf16.mxu0 %v9975
    %13497 = vmatpush1.bf16.msra.mxu0 %v9974
    %13498 = vmatprep.subr.bf16.mxu0 %v9971
    %13499 = vmatpush1.bf16.msra.mxu0 %v9970
    %13500 = vmatprep.subr.bf16.mxu0 %v9967
    %13501 = vmatpush1.bf16.msra.mxu0 %v9966
    %13502 = vmatprep.subr.bf16.mxu0 %v9963
    %13503 = vmatpush1.bf16.msra.mxu0 %v9962
    %13504 = vmatprep.subr.bf16.mxu0 %v9959
    %13505 = vmatpush1.bf16.msra.mxu0 %v9958
    %13506 = vmatprep.subr.bf16.mxu0 %v9955
    %13507 = vmatpush1.bf16.msra.mxu0 %v9954
    %13508 = vmatprep.subr.bf16.mxu0 %v9951
    %13509 = vmatpush1.bf16.msra.mxu0 %v9950
    %13510 = vmatprep.subr.bf16.mxu0 %v10011
    %13511 = vmatpush2.bf16.msra.mxu0 %v10010
    %13512 = vmatprep.subr.bf16.mxu0 %v10007
    %13513 = vmatpush2.bf16.msra.mxu0 %v10006
    %13514 = vmatprep.subr.bf16.mxu0 %v10003
    %13515 = vmatpush2.bf16.msra.mxu0 %v10002
    %13516 = vmatprep.subr.bf16.mxu0 %v9999
    %13517 = vmatpush2.bf16.msra.mxu0 %v9998
    %13518 = vmatprep.subr.bf16.mxu0 %v9995
    %13519 = vmatpush2.bf16.msra.mxu0 %v9994
    %13520 = vmatprep.subr.bf16.mxu0 %v9991
    %13521 = vmatpush2.bf16.msra.mxu0 %v9990
    %13522 = vmatprep.subr.bf16.mxu0 %v9987
    %13523 = vmatpush2.bf16.msra.mxu0 %v9986
    %13524 = vmatprep.subr.bf16.mxu0 %v9983
    %13525 = vmatpush2.bf16.msra.mxu0 %v9982
    %13526 = vmatprep.mubr.bf16.mxu0 %v185
    %13527 = vmatmul.mubr.bf16.gmra.mxu0 %v184
    %v13528 = vpop.f32.mrf.mxu0
    %v13529 = vadd.f32 %v13488, %v13528
    %v13530 = vpop.f32.mrf.mxu0
    %v13531 = vadd.f32 %v13490, %v13530
    %v13532 = vpop.f32.mrf.mxu0
    %v13533 = vpop.f32.mrf.mxu0
    %13534 = vdwg.mxu0
    %13535 = vmatprep.subr.bf16.mxu0 %v10043
    %13536 = vmatpush1.bf16.msra.mxu0 %v10042
    %13537 = vmatprep.subr.bf16.mxu0 %v10039
    %13538 = vmatpush1.bf16.msra.mxu0 %v10038
    %13539 = vmatprep.subr.bf16.mxu0 %v10035
    %13540 = vmatpush1.bf16.msra.mxu0 %v10034
    %13541 = vmatprep.subr.bf16.mxu0 %v10031
    %13542 = vmatpush1.bf16.msra.mxu0 %v10030
    %13543 = vmatprep.subr.bf16.mxu0 %v10027
    %13544 = vmatpush1.bf16.msra.mxu0 %v10026
    %13545 = vmatprep.subr.bf16.mxu0 %v10023
    %13546 = vmatpush1.bf16.msra.mxu0 %v10022
    %13547 = vmatprep.subr.bf16.mxu0 %v10019
    %13548 = vmatpush1.bf16.msra.mxu0 %v10018
    %13549 = vmatprep.subr.bf16.mxu0 %v10015
    %13550 = vmatpush1.bf16.msra.mxu0 %v10014
    %13551 = vmatprep.subr.bf16.mxu0 %v10075
    %13552 = vmatpush2.bf16.msra.mxu0 %v10074
    %13553 = vmatprep.subr.bf16.mxu0 %v10071
    %13554 = vmatpush2.bf16.msra.mxu0 %v10070
    %13555 = vmatprep.subr.bf16.mxu0 %v10067
    %13556 = vmatpush2.bf16.msra.mxu0 %v10066
    %13557 = vmatprep.subr.bf16.mxu0 %v10063
    %13558 = vmatpush2.bf16.msra.mxu0 %v10062
    %13559 = vmatprep.subr.bf16.mxu0 %v10059
    %13560 = vmatpush2.bf16.msra.mxu0 %v10058
    %13561 = vmatprep.subr.bf16.mxu0 %v10055
    %13562 = vmatpush2.bf16.msra.mxu0 %v10054
    %13563 = vmatprep.subr.bf16.mxu0 %v10051
    %13564 = vmatpush2.bf16.msra.mxu0 %v10050
    %13565 = vmatprep.subr.bf16.mxu0 %v10047
    %13566 = vmatpush2.bf16.msra.mxu0 %v10046
    %13567 = vmatprep.mubr.bf16.mxu0 %v187
    %13568 = vmatmul.mubr.bf16.gmra.mxu0 %v186
    %v13569 = vpop.f32.mrf.mxu0
    %v13570 = vadd.f32 %v13529, %v13569
    %v13571 = vpop.f32.mrf.mxu0
    %v13572 = vadd.f32 %v13531, %v13571
    %v13573 = vpop.f32.mrf.mxu0
    %v13574 = vpop.f32.mrf.mxu0
    %13575 = vdwg.mxu0
    %13576 = vmatprep.subr.bf16.mxu0 %v10107
    %13577 = vmatpush1.bf16.msra.mxu0 %v10106
    %13578 = vmatprep.subr.bf16.mxu0 %v10103
    %13579 = vmatpush1.bf16.msra.mxu0 %v10102
    %13580 = vmatprep.subr.bf16.mxu0 %v10099
    %13581 = vmatpush1.bf16.msra.mxu0 %v10098
    %13582 = vmatprep.subr.bf16.mxu0 %v10095
    %13583 = vmatpush1.bf16.msra.mxu0 %v10094
    %13584 = vmatprep.subr.bf16.mxu0 %v10091
    %13585 = vmatpush1.bf16.msra.mxu0 %v10090
    %13586 = vmatprep.subr.bf16.mxu0 %v10087
    %13587 = vmatpush1.bf16.msra.mxu0 %v10086
    %13588 = vmatprep.subr.bf16.mxu0 %v10083
    %13589 = vmatpush1.bf16.msra.mxu0 %v10082
    %13590 = vmatprep.subr.bf16.mxu0 %v10079
    %13591 = vmatpush1.bf16.msra.mxu0 %v10078
    %13592 = vmatprep.subr.bf16.mxu0 %v10139
    %13593 = vmatpush2.bf16.msra.mxu0 %v10138
    %13594 = vmatprep.subr.bf16.mxu0 %v10135
    %13595 = vmatpush2.bf16.msra.mxu0 %v10134
    %13596 = vmatprep.subr.bf16.mxu0 %v10131
    %13597 = vmatpush2.bf16.msra.mxu0 %v10130
    %13598 = vmatprep.subr.bf16.mxu0 %v10127
    %13599 = vmatpush2.bf16.msra.mxu0 %v10126
    %13600 = vmatprep.subr.bf16.mxu0 %v10123
    %13601 = vmatpush2.bf16.msra.mxu0 %v10122
    %13602 = vmatprep.subr.bf16.mxu0 %v10119
    %13603 = vmatpush2.bf16.msra.mxu0 %v10118
    %13604 = vmatprep.subr.bf16.mxu0 %v10115
    %13605 = vmatpush2.bf16.msra.mxu0 %v10114
    %13606 = vmatprep.subr.bf16.mxu0 %v10111
    %13607 = vmatpush2.bf16.msra.mxu0 %v10110
    %13608 = vmatprep.mubr.bf16.mxu0 %v189
    %13609 = vmatmul.mubr.bf16.gmra.mxu0 %v188
    %v13610 = vpop.f32.mrf.mxu0
    %v13611 = vadd.f32 %v13570, %v13610
    %v13612 = vpop.f32.mrf.mxu0
    %v13613 = vadd.f32 %v13572, %v13612
    %v13614 = vpop.f32.mrf.mxu0
    %v13615 = vpop.f32.mrf.mxu0
    %13616 = vdwg.mxu0
    %13617 = vmatprep.subr.bf16.mxu0 %v10171
    %13618 = vmatpush1.bf16.msra.mxu0 %v10170
    %13619 = vmatprep.subr.bf16.mxu0 %v10167
    %13620 = vmatpush1.bf16.msra.mxu0 %v10166
    %13621 = vmatprep.subr.bf16.mxu0 %v10163
    %13622 = vmatpush1.bf16.msra.mxu0 %v10162
    %13623 = vmatprep.subr.bf16.mxu0 %v10159
    %13624 = vmatpush1.bf16.msra.mxu0 %v10158
    %13625 = vmatprep.subr.bf16.mxu0 %v10155
    %13626 = vmatpush1.bf16.msra.mxu0 %v10154
    %13627 = vmatprep.subr.bf16.mxu0 %v10151
    %13628 = vmatpush1.bf16.msra.mxu0 %v10150
    %13629 = vmatprep.subr.bf16.mxu0 %v10147
    %13630 = vmatpush1.bf16.msra.mxu0 %v10146
    %13631 = vmatprep.subr.bf16.mxu0 %v10143
    %13632 = vmatpush1.bf16.msra.mxu0 %v10142
    %13633 = vmatprep.subr.bf16.mxu0 %v10203
    %13634 = vmatpush2.bf16.msra.mxu0 %v10202
    %13635 = vmatprep.subr.bf16.mxu0 %v10199
    %13636 = vmatpush2.bf16.msra.mxu0 %v10198
    %13637 = vmatprep.subr.bf16.mxu0 %v10195
    %13638 = vmatpush2.bf16.msra.mxu0 %v10194
    %13639 = vmatprep.subr.bf16.mxu0 %v10191
    %13640 = vmatpush2.bf16.msra.mxu0 %v10190
    %13641 = vmatprep.subr.bf16.mxu0 %v10187
    %13642 = vmatpush2.bf16.msra.mxu0 %v10186
    %13643 = vmatprep.subr.bf16.mxu0 %v10183
    %13644 = vmatpush2.bf16.msra.mxu0 %v10182
    %13645 = vmatprep.subr.bf16.mxu0 %v10179
    %13646 = vmatpush2.bf16.msra.mxu0 %v10178
    %13647 = vmatprep.subr.bf16.mxu0 %v10175
    %13648 = vmatpush2.bf16.msra.mxu0 %v10174
    %13649 = vmatprep.mubr.bf16.mxu0 %v191
    %13650 = vmatmul.mubr.bf16.gmra.mxu0 %v190
    %v13651 = vpop.f32.mrf.mxu0
    %v13652 = vadd.f32 %v13611, %v13651
    %v13653 = vpop.f32.mrf.mxu0
    %v13654 = vadd.f32 %v13613, %v13653
    %v13655 = vpop.f32.mrf.mxu0
    %v13656 = vpop.f32.mrf.mxu0
    %13657 = vdwg.mxu0
    %13658 = vmatprep.subr.bf16.mxu0 %v10235
    %13659 = vmatpush1.bf16.msra.mxu0 %v10234
    %13660 = vmatprep.subr.bf16.mxu0 %v10231
    %13661 = vmatpush1.bf16.msra.mxu0 %v10230
    %13662 = vmatprep.subr.bf16.mxu0 %v10227
    %13663 = vmatpush1.bf16.msra.mxu0 %v10226
    %13664 = vmatprep.subr.bf16.mxu0 %v10223
    %13665 = vmatpush1.bf16.msra.mxu0 %v10222
    %13666 = vmatprep.subr.bf16.mxu0 %v10219
    %13667 = vmatpush1.bf16.msra.mxu0 %v10218
    %13668 = vmatprep.subr.bf16.mxu0 %v10215
    %13669 = vmatpush1.bf16.msra.mxu0 %v10214
    %13670 = vmatprep.subr.bf16.mxu0 %v10211
    %13671 = vmatpush1.bf16.msra.mxu0 %v10210
    %13672 = vmatprep.subr.bf16.mxu0 %v10207
    %13673 = vmatpush1.bf16.msra.mxu0 %v10206
    %13674 = vmatprep.subr.bf16.mxu0 %v10267
    %13675 = vmatpush2.bf16.msra.mxu0 %v10266
    %13676 = vmatprep.subr.bf16.mxu0 %v10263
    %13677 = vmatpush2.bf16.msra.mxu0 %v10262
    %13678 = vmatprep.subr.bf16.mxu0 %v10259
    %13679 = vmatpush2.bf16.msra.mxu0 %v10258
    %13680 = vmatprep.subr.bf16.mxu0 %v10255
    %13681 = vmatpush2.bf16.msra.mxu0 %v10254
    %13682 = vmatprep.subr.bf16.mxu0 %v10251
    %13683 = vmatpush2.bf16.msra.mxu0 %v10250
    %13684 = vmatprep.subr.bf16.mxu0 %v10247
    %13685 = vmatpush2.bf16.msra.mxu0 %v10246
    %13686 = vmatprep.subr.bf16.mxu0 %v10243
    %13687 = vmatpush2.bf16.msra.mxu0 %v10242
    %13688 = vmatprep.subr.bf16.mxu0 %v10239
    %13689 = vmatpush2.bf16.msra.mxu0 %v10238
    %13690 = vmatprep.mubr.bf16.mxu0 %v193
    %13691 = vmatmul.mubr.bf16.gmra.mxu0 %v192
    %v13692 = vpop.f32.mrf.mxu0
    %v13693 = vadd.f32 %v13652, %v13692
    %v13694 = vpop.f32.mrf.mxu0
    %v13695 = vadd.f32 %v13654, %v13694
    %v13696 = vpop.f32.mrf.mxu0
    %v13697 = vpop.f32.mrf.mxu0
    %13698 = vdwg.mxu0
    %13699 = vmatprep.subr.bf16.mxu0 %v10299
    %13700 = vmatpush1.bf16.msra.mxu0 %v10298
    %13701 = vmatprep.subr.bf16.mxu0 %v10295
    %13702 = vmatpush1.bf16.msra.mxu0 %v10294
    %13703 = vmatprep.subr.bf16.mxu0 %v10291
    %13704 = vmatpush1.bf16.msra.mxu0 %v10290
    %13705 = vmatprep.subr.bf16.mxu0 %v10287
    %13706 = vmatpush1.bf16.msra.mxu0 %v10286
    %13707 = vmatprep.subr.bf16.mxu0 %v10283
    %13708 = vmatpush1.bf16.msra.mxu0 %v10282
    %13709 = vmatprep.subr.bf16.mxu0 %v10279
    %13710 = vmatpush1.bf16.msra.mxu0 %v10278
    %13711 = vmatprep.subr.bf16.mxu0 %v10275
    %13712 = vmatpush1.bf16.msra.mxu0 %v10274
    %13713 = vmatprep.subr.bf16.mxu0 %v10271
    %13714 = vmatpush1.bf16.msra.mxu0 %v10270
    %13715 = vmatprep.subr.bf16.mxu0 %v10331
    %13716 = vmatpush2.bf16.msra.mxu0 %v10330
    %13717 = vmatprep.subr.bf16.mxu0 %v10327
    %13718 = vmatpush2.bf16.msra.mxu0 %v10326
    %13719 = vmatprep.subr.bf16.mxu0 %v10323
    %13720 = vmatpush2.bf16.msra.mxu0 %v10322
    %13721 = vmatprep.subr.bf16.mxu0 %v10319
    %13722 = vmatpush2.bf16.msra.mxu0 %v10318
    %13723 = vmatprep.subr.bf16.mxu0 %v10315
    %13724 = vmatpush2.bf16.msra.mxu0 %v10314
    %13725 = vmatprep.subr.bf16.mxu0 %v10311
    %13726 = vmatpush2.bf16.msra.mxu0 %v10310
    %13727 = vmatprep.subr.bf16.mxu0 %v10307
    %13728 = vmatpush2.bf16.msra.mxu0 %v10306
    %13729 = vmatprep.subr.bf16.mxu0 %v10303
    %13730 = vmatpush2.bf16.msra.mxu0 %v10302
    %13731 = vmatprep.mubr.bf16.mxu0 %v195
    %13732 = vmatmul.mubr.bf16.gmra.mxu0 %v194
    %v13733 = vpop.f32.mrf.mxu0
    %v13734 = vadd.f32 %v13693, %v13733
    %v13735 = vpop.f32.mrf.mxu0
    %v13736 = vadd.f32 %v13695, %v13735
    %v13737 = vpop.f32.mrf.mxu0
    %v13738 = vpop.f32.mrf.mxu0
    %13739 = vdwg.mxu0
    %13740 = vmatprep.subr.bf16.mxu0 %v10363
    %13741 = vmatpush1.bf16.msra.mxu0 %v10362
    %13742 = vmatprep.subr.bf16.mxu0 %v10359
    %13743 = vmatpush1.bf16.msra.mxu0 %v10358
    %13744 = vmatprep.subr.bf16.mxu0 %v10355
    %13745 = vmatpush1.bf16.msra.mxu0 %v10354
    %13746 = vmatprep.subr.bf16.mxu0 %v10351
    %13747 = vmatpush1.bf16.msra.mxu0 %v10350
    %13748 = vmatprep.subr.bf16.mxu0 %v10347
    %13749 = vmatpush1.bf16.msra.mxu0 %v10346
    %13750 = vmatprep.subr.bf16.mxu0 %v10343
    %13751 = vmatpush1.bf16.msra.mxu0 %v10342
    %13752 = vmatprep.subr.bf16.mxu0 %v10339
    %13753 = vmatpush1.bf16.msra.mxu0 %v10338
    %13754 = vmatprep.subr.bf16.mxu0 %v10335
    %13755 = vmatpush1.bf16.msra.mxu0 %v10334
    %13756 = vmatprep.subr.bf16.mxu0 %v10395
    %13757 = vmatpush2.bf16.msra.mxu0 %v10394
    %13758 = vmatprep.subr.bf16.mxu0 %v10391
    %13759 = vmatpush2.bf16.msra.mxu0 %v10390
    %13760 = vmatprep.subr.bf16.mxu0 %v10387
    %13761 = vmatpush2.bf16.msra.mxu0 %v10386
    %13762 = vmatprep.subr.bf16.mxu0 %v10383
    %13763 = vmatpush2.bf16.msra.mxu0 %v10382
    %13764 = vmatprep.subr.bf16.mxu0 %v10379
    %13765 = vmatpush2.bf16.msra.mxu0 %v10378
    %13766 = vmatprep.subr.bf16.mxu0 %v10375
    %13767 = vmatpush2.bf16.msra.mxu0 %v10374
    %13768 = vmatprep.subr.bf16.mxu0 %v10371
    %13769 = vmatpush2.bf16.msra.mxu0 %v10370
    %13770 = vmatprep.subr.bf16.mxu0 %v10367
    %13771 = vmatpush2.bf16.msra.mxu0 %v10366
    %13772 = vmatprep.mubr.bf16.mxu0 %v197
    %13773 = vmatmul.mubr.bf16.gmra.mxu0 %v196
    %v13774 = vpop.f32.mrf.mxu0
    %v13775 = vadd.f32 %v13734, %v13774
    %v13776 = vpop.f32.mrf.mxu0
    %v13777 = vadd.f32 %v13736, %v13776
    %v13778 = vpop.f32.mrf.mxu0
    %v13779 = vpop.f32.mrf.mxu0
    %13780 = vdwg.mxu0
    %13781 = vmatprep.subr.bf16.mxu0 %v10427
    %13782 = vmatpush1.bf16.msra.mxu0 %v10426
    %13783 = vmatprep.subr.bf16.mxu0 %v10423
    %13784 = vmatpush1.bf16.msra.mxu0 %v10422
    %13785 = vmatprep.subr.bf16.mxu0 %v10419
    %13786 = vmatpush1.bf16.msra.mxu0 %v10418
    %13787 = vmatprep.subr.bf16.mxu0 %v10415
    %13788 = vmatpush1.bf16.msra.mxu0 %v10414
    %13789 = vmatprep.subr.bf16.mxu0 %v10411
    %13790 = vmatpush1.bf16.msra.mxu0 %v10410
    %13791 = vmatprep.subr.bf16.mxu0 %v10407
    %13792 = vmatpush1.bf16.msra.mxu0 %v10406
    %13793 = vmatprep.subr.bf16.mxu0 %v10403
    %13794 = vmatpush1.bf16.msra.mxu0 %v10402
    %13795 = vmatprep.subr.bf16.mxu0 %v10399
    %13796 = vmatpush1.bf16.msra.mxu0 %v10398
    %13797 = vmatprep.subr.bf16.mxu0 %v10459
    %13798 = vmatpush2.bf16.msra.mxu0 %v10458
    %13799 = vmatprep.subr.bf16.mxu0 %v10455
    %13800 = vmatpush2.bf16.msra.mxu0 %v10454
    %13801 = vmatprep.subr.bf16.mxu0 %v10451
    %13802 = vmatpush2.bf16.msra.mxu0 %v10450
    %13803 = vmatprep.subr.bf16.mxu0 %v10447
    %13804 = vmatpush2.bf16.msra.mxu0 %v10446
    %13805 = vmatprep.subr.bf16.mxu0 %v10443
    %13806 = vmatpush2.bf16.msra.mxu0 %v10442
    %13807 = vmatprep.subr.bf16.mxu0 %v10439
    %13808 = vmatpush2.bf16.msra.mxu0 %v10438
    %13809 = vmatprep.subr.bf16.mxu0 %v10435
    %13810 = vmatpush2.bf16.msra.mxu0 %v10434
    %13811 = vmatprep.subr.bf16.mxu0 %v10431
    %13812 = vmatpush2.bf16.msra.mxu0 %v10430
    %13813 = vmatprep.mubr.bf16.mxu0 %v199
    %13814 = vmatmul.mubr.bf16.gmra.mxu0 %v198
    %v13815 = vpop.f32.mrf.mxu0
    %v13816 = vadd.f32 %v13775, %v13815
    %v13817 = vpop.f32.mrf.mxu0
    %v13818 = vadd.f32 %v13777, %v13817
    %v13819 = vpop.f32.mrf.mxu0
    %v13820 = vpop.f32.mrf.mxu0
    %13821 = vdwg.mxu0
    %13822 = vmatprep.subr.bf16.mxu0 %v8445
    %13823 = vmatpush1.bf16.msra.mxu0 %v8444
    %13824 = vmatprep.subr.bf16.mxu0 %v8441
    %13825 = vmatpush1.bf16.msra.mxu0 %v8440
    %13826 = vmatprep.subr.bf16.mxu0 %v8437
    %13827 = vmatpush1.bf16.msra.mxu0 %v8436
    %13828 = vmatprep.subr.bf16.mxu0 %v8433
    %13829 = vmatpush1.bf16.msra.mxu0 %v8432
    %13830 = vmatprep.subr.bf16.mxu0 %v8429
    %13831 = vmatpush1.bf16.msra.mxu0 %v8428
    %13832 = vmatprep.subr.bf16.mxu0 %v8425
    %13833 = vmatpush1.bf16.msra.mxu0 %v8424
    %13834 = vmatprep.subr.bf16.mxu0 %v8421
    %13835 = vmatpush1.bf16.msra.mxu0 %v8420
    %13836 = vmatprep.subr.bf16.mxu0 %v8417
    %13837 = vmatpush1.bf16.msra.mxu0 %v8416
    %13838 = vmatprep.subr.bf16.mxu0 %v8477
    %13839 = vmatpush2.bf16.msra.mxu0 %v8476
    %13840 = vmatprep.subr.bf16.mxu0 %v8473
    %13841 = vmatpush2.bf16.msra.mxu0 %v8472
    %13842 = vmatprep.subr.bf16.mxu0 %v8469
    %13843 = vmatpush2.bf16.msra.mxu0 %v8468
    %13844 = vmatprep.subr.bf16.mxu0 %v8465
    %13845 = vmatpush2.bf16.msra.mxu0 %v8464
    %13846 = vmatprep.subr.bf16.mxu0 %v8461
    %13847 = vmatpush2.bf16.msra.mxu0 %v8460
    %13848 = vmatprep.subr.bf16.mxu0 %v8457
    %13849 = vmatpush2.bf16.msra.mxu0 %v8456
    %13850 = vmatprep.subr.bf16.mxu0 %v8453
    %13851 = vmatpush2.bf16.msra.mxu0 %v8452
    %13852 = vmatprep.subr.bf16.mxu0 %v8449
    %13853 = vmatpush2.bf16.msra.mxu0 %v8448
    %13854 = vmatprep.mubr.bf16.mxu0 %v137
    %13855 = vmatmul.mubr.bf16.gmra.mxu0 %v136
    %v13856 = vpop.f32.mrf.mxu0
    %v13857 = vadd.f32 %v2261, %v13856
    %v13858 = vpop.f32.mrf.mxu0
    %v13859 = vadd.f32 %v2265, %v13858
    %v13860 = vpop.f32.mrf.mxu0
    %v13861 = vpop.f32.mrf.mxu0
    %13862 = vdwg.mxu0
    %13863 = vmatprep.subr.bf16.mxu0 %v8509
    %13864 = vmatpush1.bf16.msra.mxu0 %v8508
    %13865 = vmatprep.subr.bf16.mxu0 %v8505
    %13866 = vmatpush1.bf16.msra.mxu0 %v8504
    %13867 = vmatprep.subr.bf16.mxu0 %v8501
    %13868 = vmatpush1.bf16.msra.mxu0 %v8500
    %13869 = vmatprep.subr.bf16.mxu0 %v8497
    %13870 = vmatpush1.bf16.msra.mxu0 %v8496
    %13871 = vmatprep.subr.bf16.mxu0 %v8493
    %13872 = vmatpush1.bf16.msra.mxu0 %v8492
    %13873 = vmatprep.subr.bf16.mxu0 %v8489
    %13874 = vmatpush1.bf16.msra.mxu0 %v8488
    %13875 = vmatprep.subr.bf16.mxu0 %v8485
    %13876 = vmatpush1.bf16.msra.mxu0 %v8484
    %13877 = vmatprep.subr.bf16.mxu0 %v8481
    %13878 = vmatpush1.bf16.msra.mxu0 %v8480
    %13879 = vmatprep.subr.bf16.mxu0 %v8541
    %13880 = vmatpush2.bf16.msra.mxu0 %v8540
    %13881 = vmatprep.subr.bf16.mxu0 %v8537
    %13882 = vmatpush2.bf16.msra.mxu0 %v8536
    %13883 = vmatprep.subr.bf16.mxu0 %v8533
    %13884 = vmatpush2.bf16.msra.mxu0 %v8532
    %13885 = vmatprep.subr.bf16.mxu0 %v8529
    %13886 = vmatpush2.bf16.msra.mxu0 %v8528
    %13887 = vmatprep.subr.bf16.mxu0 %v8525
    %13888 = vmatpush2.bf16.msra.mxu0 %v8524
    %13889 = vmatprep.subr.bf16.mxu0 %v8521
    %13890 = vmatpush2.bf16.msra.mxu0 %v8520
    %13891 = vmatprep.subr.bf16.mxu0 %v8517
    %13892 = vmatpush2.bf16.msra.mxu0 %v8516
    %13893 = vmatprep.subr.bf16.mxu0 %v8513
    %13894 = vmatpush2.bf16.msra.mxu0 %v8512
    %13895 = vmatprep.mubr.bf16.mxu0 %v139
    %13896 = vmatmul.mubr.bf16.gmra.mxu0 %v138
    %v13897 = vpop.f32.mrf.mxu0
    %v13898 = vadd.f32 %v13857, %v13897
    %v13899 = vpop.f32.mrf.mxu0
    %v13900 = vadd.f32 %v13859, %v13899
    %v13901 = vpop.f32.mrf.mxu0
    %v13902 = vpop.f32.mrf.mxu0
    %13903 = vdwg.mxu0
    %13904 = vmatprep.subr.bf16.mxu0 %v8573
    %13905 = vmatpush1.bf16.msra.mxu0 %v8572
    %13906 = vmatprep.subr.bf16.mxu0 %v8569
    %13907 = vmatpush1.bf16.msra.mxu0 %v8568
    %13908 = vmatprep.subr.bf16.mxu0 %v8565
    %13909 = vmatpush1.bf16.msra.mxu0 %v8564
    %13910 = vmatprep.subr.bf16.mxu0 %v8561
    %13911 = vmatpush1.bf16.msra.mxu0 %v8560
    %13912 = vmatprep.subr.bf16.mxu0 %v8557
    %13913 = vmatpush1.bf16.msra.mxu0 %v8556
    %13914 = vmatprep.subr.bf16.mxu0 %v8553
    %13915 = vmatpush1.bf16.msra.mxu0 %v8552
    %13916 = vmatprep.subr.bf16.mxu0 %v8549
    %13917 = vmatpush1.bf16.msra.mxu0 %v8548
    %13918 = vmatprep.subr.bf16.mxu0 %v8545
    %13919 = vmatpush1.bf16.msra.mxu0 %v8544
    %13920 = vmatprep.subr.bf16.mxu0 %v8605
    %13921 = vmatpush2.bf16.msra.mxu0 %v8604
    %13922 = vmatprep.subr.bf16.mxu0 %v8601
    %13923 = vmatpush2.bf16.msra.mxu0 %v8600
    %13924 = vmatprep.subr.bf16.mxu0 %v8597
    %13925 = vmatpush2.bf16.msra.mxu0 %v8596
    %13926 = vmatprep.subr.bf16.mxu0 %v8593
    %13927 = vmatpush2.bf16.msra.mxu0 %v8592
    %13928 = vmatprep.subr.bf16.mxu0 %v8589
    %13929 = vmatpush2.bf16.msra.mxu0 %v8588
    %13930 = vmatprep.subr.bf16.mxu0 %v8585
    %13931 = vmatpush2.bf16.msra.mxu0 %v8584
    %13932 = vmatprep.subr.bf16.mxu0 %v8581
    %13933 = vmatpush2.bf16.msra.mxu0 %v8580
    %13934 = vmatprep.subr.bf16.mxu0 %v8577
    %13935 = vmatpush2.bf16.msra.mxu0 %v8576
    %13936 = vmatprep.mubr.bf16.mxu0 %v141
    %13937 = vmatmul.mubr.bf16.gmra.mxu0 %v140
    %v13938 = vpop.f32.mrf.mxu0
    %v13939 = vadd.f32 %v13898, %v13938
    %v13940 = vpop.f32.mrf.mxu0
    %v13941 = vadd.f32 %v13900, %v13940
    %v13942 = vpop.f32.mrf.mxu0
    %v13943 = vpop.f32.mrf.mxu0
    %13944 = vdwg.mxu0
    %13945 = vmatprep.subr.bf16.mxu0 %v8637
    %13946 = vmatpush1.bf16.msra.mxu0 %v8636
    %13947 = vmatprep.subr.bf16.mxu0 %v8633
    %13948 = vmatpush1.bf16.msra.mxu0 %v8632
    %13949 = vmatprep.subr.bf16.mxu0 %v8629
    %13950 = vmatpush1.bf16.msra.mxu0 %v8628
    %13951 = vmatprep.subr.bf16.mxu0 %v8625
    %13952 = vmatpush1.bf16.msra.mxu0 %v8624
    %13953 = vmatprep.subr.bf16.mxu0 %v8621
    %13954 = vmatpush1.bf16.msra.mxu0 %v8620
    %13955 = vmatprep.subr.bf16.mxu0 %v8617
    %13956 = vmatpush1.bf16.msra.mxu0 %v8616
    %13957 = vmatprep.subr.bf16.mxu0 %v8613
    %13958 = vmatpush1.bf16.msra.mxu0 %v8612
    %13959 = vmatprep.subr.bf16.mxu0 %v8609
    %13960 = vmatpush1.bf16.msra.mxu0 %v8608
    %13961 = vmatprep.subr.bf16.mxu0 %v8669
    %13962 = vmatpush2.bf16.msra.mxu0 %v8668
    %13963 = vmatprep.subr.bf16.mxu0 %v8665
    %13964 = vmatpush2.bf16.msra.mxu0 %v8664
    %13965 = vmatprep.subr.bf16.mxu0 %v8661
    %13966 = vmatpush2.bf16.msra.mxu0 %v8660
    %13967 = vmatprep.subr.bf16.mxu0 %v8657
    %13968 = vmatpush2.bf16.msra.mxu0 %v8656
    %13969 = vmatprep.subr.bf16.mxu0 %v8653
    %13970 = vmatpush2.bf16.msra.mxu0 %v8652
    %13971 = vmatprep.subr.bf16.mxu0 %v8649
    %13972 = vmatpush2.bf16.msra.mxu0 %v8648
    %13973 = vmatprep.subr.bf16.mxu0 %v8645
    %13974 = vmatpush2.bf16.msra.mxu0 %v8644
    %13975 = vmatprep.subr.bf16.mxu0 %v8641
    %13976 = vmatpush2.bf16.msra.mxu0 %v8640
    %13977 = vmatprep.mubr.bf16.mxu0 %v143
    %13978 = vmatmul.mubr.bf16.gmra.mxu0 %v142
    %v13979 = vpop.f32.mrf.mxu0
    %v13980 = vadd.f32 %v13939, %v13979
    %v13981 = vpop.f32.mrf.mxu0
    %v13982 = vadd.f32 %v13941, %v13981
    %v13983 = vpop.f32.mrf.mxu0
    %v13984 = vpop.f32.mrf.mxu0
    %13985 = vdwg.mxu0
    %13986 = vmatprep.subr.bf16.mxu0 %v8701
    %13987 = vmatpush1.bf16.msra.mxu0 %v8700
    %13988 = vmatprep.subr.bf16.mxu0 %v8697
    %13989 = vmatpush1.bf16.msra.mxu0 %v8696
    %13990 = vmatprep.subr.bf16.mxu0 %v8693
    %13991 = vmatpush1.bf16.msra.mxu0 %v8692
    %13992 = vmatprep.subr.bf16.mxu0 %v8689
    %13993 = vmatpush1.bf16.msra.mxu0 %v8688
    %13994 = vmatprep.subr.bf16.mxu0 %v8685
    %13995 = vmatpush1.bf16.msra.mxu0 %v8684
    %13996 = vmatprep.subr.bf16.mxu0 %v8681
    %13997 = vmatpush1.bf16.msra.mxu0 %v8680
    %13998 = vmatprep.subr.bf16.mxu0 %v8677
    %13999 = vmatpush1.bf16.msra.mxu0 %v8676
    %14000 = vmatprep.subr.bf16.mxu0 %v8673
    %14001 = vmatpush1.bf16.msra.mxu0 %v8672
    %14002 = vmatprep.subr.bf16.mxu0 %v8733
    %14003 = vmatpush2.bf16.msra.mxu0 %v8732
    %14004 = vmatprep.subr.bf16.mxu0 %v8729
    %14005 = vmatpush2.bf16.msra.mxu0 %v8728
    %14006 = vmatprep.subr.bf16.mxu0 %v8725
    %14007 = vmatpush2.bf16.msra.mxu0 %v8724
    %14008 = vmatprep.subr.bf16.mxu0 %v8721
    %14009 = vmatpush2.bf16.msra.mxu0 %v8720
    %14010 = vmatprep.subr.bf16.mxu0 %v8717
    %14011 = vmatpush2.bf16.msra.mxu0 %v8716
    %14012 = vmatprep.subr.bf16.mxu0 %v8713
    %14013 = vmatpush2.bf16.msra.mxu0 %v8712
    %14014 = vmatprep.subr.bf16.mxu0 %v8709
    %14015 = vmatpush2.bf16.msra.mxu0 %v8708
    %14016 = vmatprep.subr.bf16.mxu0 %v8705
    %14017 = vmatpush2.bf16.msra.mxu0 %v8704
    %14018 = vmatprep.mubr.bf16.mxu0 %v145
    %14019 = vmatmul.mubr.bf16.gmra.mxu0 %v144
    %v14020 = vpop.f32.mrf.mxu0
    %v14021 = vadd.f32 %v13980, %v14020
    %v14022 = vpop.f32.mrf.mxu0
    %v14023 = vadd.f32 %v13982, %v14022
    %v14024 = vpop.f32.mrf.mxu0
    %v14025 = vpop.f32.mrf.mxu0
    %14026 = vdwg.mxu0
    %14027 = vmatprep.subr.bf16.mxu0 %v8765
    %14028 = vmatpush1.bf16.msra.mxu0 %v8764
    %14029 = vmatprep.subr.bf16.mxu0 %v8761
    %14030 = vmatpush1.bf16.msra.mxu0 %v8760
    %14031 = vmatprep.subr.bf16.mxu0 %v8757
    %14032 = vmatpush1.bf16.msra.mxu0 %v8756
    %14033 = vmatprep.subr.bf16.mxu0 %v8753
    %14034 = vmatpush1.bf16.msra.mxu0 %v8752
    %14035 = vmatprep.subr.bf16.mxu0 %v8749
    %14036 = vmatpush1.bf16.msra.mxu0 %v8748
    %14037 = vmatprep.subr.bf16.mxu0 %v8745
    %14038 = vmatpush1.bf16.msra.mxu0 %v8744
    %14039 = vmatprep.subr.bf16.mxu0 %v8741
    %14040 = vmatpush1.bf16.msra.mxu0 %v8740
    %14041 = vmatprep.subr.bf16.mxu0 %v8737
    %14042 = vmatpush1.bf16.msra.mxu0 %v8736
    %14043 = vmatprep.subr.bf16.mxu0 %v8797
    %14044 = vmatpush2.bf16.msra.mxu0 %v8796
    %14045 = vmatprep.subr.bf16.mxu0 %v8793
    %14046 = vmatpush2.bf16.msra.mxu0 %v8792
    %14047 = vmatprep.subr.bf16.mxu0 %v8789
    %14048 = vmatpush2.bf16.msra.mxu0 %v8788
    %14049 = vmatprep.subr.bf16.mxu0 %v8785
    %14050 = vmatpush2.bf16.msra.mxu0 %v8784
    %14051 = vmatprep.subr.bf16.mxu0 %v8781
    %14052 = vmatpush2.bf16.msra.mxu0 %v8780
    %14053 = vmatprep.subr.bf16.mxu0 %v8777
    %14054 = vmatpush2.bf16.msra.mxu0 %v8776
    %14055 = vmatprep.subr.bf16.mxu0 %v8773
    %14056 = vmatpush2.bf16.msra.mxu0 %v8772
    %14057 = vmatprep.subr.bf16.mxu0 %v8769
    %14058 = vmatpush2.bf16.msra.mxu0 %v8768
    %14059 = vmatprep.mubr.bf16.mxu0 %v147
    %14060 = vmatmul.mubr.bf16.gmra.mxu0 %v146
    %v14061 = vpop.f32.mrf.mxu0
    %v14062 = vadd.f32 %v14021, %v14061
    %v14063 = vpop.f32.mrf.mxu0
    %v14064 = vadd.f32 %v14023, %v14063
    %v14065 = vpop.f32.mrf.mxu0
    %v14066 = vpop.f32.mrf.mxu0
    %14067 = vdwg.mxu0
    %14068 = vmatprep.subr.bf16.mxu0 %v8829
    %14069 = vmatpush1.bf16.msra.mxu0 %v8828
    %14070 = vmatprep.subr.bf16.mxu0 %v8825
    %14071 = vmatpush1.bf16.msra.mxu0 %v8824
    %14072 = vmatprep.subr.bf16.mxu0 %v8821
    %14073 = vmatpush1.bf16.msra.mxu0 %v8820
    %14074 = vmatprep.subr.bf16.mxu0 %v8817
    %14075 = vmatpush1.bf16.msra.mxu0 %v8816
    %14076 = vmatprep.subr.bf16.mxu0 %v8813
    %14077 = vmatpush1.bf16.msra.mxu0 %v8812
    %14078 = vmatprep.subr.bf16.mxu0 %v8809
    %14079 = vmatpush1.bf16.msra.mxu0 %v8808
    %14080 = vmatprep.subr.bf16.mxu0 %v8805
    %14081 = vmatpush1.bf16.msra.mxu0 %v8804
    %14082 = vmatprep.subr.bf16.mxu0 %v8801
    %14083 = vmatpush1.bf16.msra.mxu0 %v8800
    %14084 = vmatprep.subr.bf16.mxu0 %v8861
    %14085 = vmatpush2.bf16.msra.mxu0 %v8860
    %14086 = vmatprep.subr.bf16.mxu0 %v8857
    %14087 = vmatpush2.bf16.msra.mxu0 %v8856
    %14088 = vmatprep.subr.bf16.mxu0 %v8853
    %14089 = vmatpush2.bf16.msra.mxu0 %v8852
    %14090 = vmatprep.subr.bf16.mxu0 %v8849
    %14091 = vmatpush2.bf16.msra.mxu0 %v8848
    %14092 = vmatprep.subr.bf16.mxu0 %v8845
    %14093 = vmatpush2.bf16.msra.mxu0 %v8844
    %14094 = vmatprep.subr.bf16.mxu0 %v8841
    %14095 = vmatpush2.bf16.msra.mxu0 %v8840
    %14096 = vmatprep.subr.bf16.mxu0 %v8837
    %14097 = vmatpush2.bf16.msra.mxu0 %v8836
    %14098 = vmatprep.subr.bf16.mxu0 %v8833
    %14099 = vmatpush2.bf16.msra.mxu0 %v8832
    %14100 = vmatprep.mubr.bf16.mxu0 %v149
    %14101 = vmatmul.mubr.bf16.gmra.mxu0 %v148
    %v14102 = vpop.f32.mrf.mxu0
    %v14103 = vadd.f32 %v14062, %v14102
    %v14104 = vpop.f32.mrf.mxu0
    %v14105 = vadd.f32 %v14064, %v14104
    %v14106 = vpop.f32.mrf.mxu0
    %v14107 = vpop.f32.mrf.mxu0
    %14108 = vdwg.mxu0
    %14109 = vmatprep.subr.bf16.mxu0 %v8893
    %14110 = vmatpush1.bf16.msra.mxu0 %v8892
    %14111 = vmatprep.subr.bf16.mxu0 %v8889
    %14112 = vmatpush1.bf16.msra.mxu0 %v8888
    %14113 = vmatprep.subr.bf16.mxu0 %v8885
    %14114 = vmatpush1.bf16.msra.mxu0 %v8884
    %14115 = vmatprep.subr.bf16.mxu0 %v8881
    %14116 = vmatpush1.bf16.msra.mxu0 %v8880
    %14117 = vmatprep.subr.bf16.mxu0 %v8877
    %14118 = vmatpush1.bf16.msra.mxu0 %v8876
    %14119 = vmatprep.subr.bf16.mxu0 %v8873
    %14120 = vmatpush1.bf16.msra.mxu0 %v8872
    %14121 = vmatprep.subr.bf16.mxu0 %v8869
    %14122 = vmatpush1.bf16.msra.mxu0 %v8868
    %14123 = vmatprep.subr.bf16.mxu0 %v8865
    %14124 = vmatpush1.bf16.msra.mxu0 %v8864
    %14125 = vmatprep.subr.bf16.mxu0 %v8925
    %14126 = vmatpush2.bf16.msra.mxu0 %v8924
    %14127 = vmatprep.subr.bf16.mxu0 %v8921
    %14128 = vmatpush2.bf16.msra.mxu0 %v8920
    %14129 = vmatprep.subr.bf16.mxu0 %v8917
    %14130 = vmatpush2.bf16.msra.mxu0 %v8916
    %14131 = vmatprep.subr.bf16.mxu0 %v8913
    %14132 = vmatpush2.bf16.msra.mxu0 %v8912
    %14133 = vmatprep.subr.bf16.mxu0 %v8909
    %14134 = vmatpush2.bf16.msra.mxu0 %v8908
    %14135 = vmatprep.subr.bf16.mxu0 %v8905
    %14136 = vmatpush2.bf16.msra.mxu0 %v8904
    %14137 = vmatprep.subr.bf16.mxu0 %v8901
    %14138 = vmatpush2.bf16.msra.mxu0 %v8900
    %14139 = vmatprep.subr.bf16.mxu0 %v8897
    %14140 = vmatpush2.bf16.msra.mxu0 %v8896
    %14141 = vmatprep.mubr.bf16.mxu0 %v151
    %14142 = vmatmul.mubr.bf16.gmra.mxu0 %v150
    %v14143 = vpop.f32.mrf.mxu0
    %v14144 = vadd.f32 %v14103, %v14143
    %v14145 = vpop.f32.mrf.mxu0
    %v14146 = vadd.f32 %v14105, %v14145
    %v14147 = vpop.f32.mrf.mxu0
    %v14148 = vpop.f32.mrf.mxu0
    %14149 = vdwg.mxu0
    %14150 = vmatprep.subr.bf16.mxu0 %v8957
    %14151 = vmatpush1.bf16.msra.mxu0 %v8956
    %14152 = vmatprep.subr.bf16.mxu0 %v8953
    %14153 = vmatpush1.bf16.msra.mxu0 %v8952
    %14154 = vmatprep.subr.bf16.mxu0 %v8949
    %14155 = vmatpush1.bf16.msra.mxu0 %v8948
    %14156 = vmatprep.subr.bf16.mxu0 %v8945
    %14157 = vmatpush1.bf16.msra.mxu0 %v8944
    %14158 = vmatprep.subr.bf16.mxu0 %v8941
    %14159 = vmatpush1.bf16.msra.mxu0 %v8940
    %14160 = vmatprep.subr.bf16.mxu0 %v8937
    %14161 = vmatpush1.bf16.msra.mxu0 %v8936
    %14162 = vmatprep.subr.bf16.mxu0 %v8933
    %14163 = vmatpush1.bf16.msra.mxu0 %v8932
    %14164 = vmatprep.subr.bf16.mxu0 %v8929
    %14165 = vmatpush1.bf16.msra.mxu0 %v8928
    %14166 = vmatprep.subr.bf16.mxu0 %v8989
    %14167 = vmatpush2.bf16.msra.mxu0 %v8988
    %14168 = vmatprep.subr.bf16.mxu0 %v8985
    %14169 = vmatpush2.bf16.msra.mxu0 %v8984
    %14170 = vmatprep.subr.bf16.mxu0 %v8981
    %14171 = vmatpush2.bf16.msra.mxu0 %v8980
    %14172 = vmatprep.subr.bf16.mxu0 %v8977
    %14173 = vmatpush2.bf16.msra.mxu0 %v8976
    %14174 = vmatprep.subr.bf16.mxu0 %v8973
    %14175 = vmatpush2.bf16.msra.mxu0 %v8972
    %14176 = vmatprep.subr.bf16.mxu0 %v8969
    %14177 = vmatpush2.bf16.msra.mxu0 %v8968
    %14178 = vmatprep.subr.bf16.mxu0 %v8965
    %14179 = vmatpush2.bf16.msra.mxu0 %v8964
    %14180 = vmatprep.subr.bf16.mxu0 %v8961
    %14181 = vmatpush2.bf16.msra.mxu0 %v8960
    %14182 = vmatprep.mubr.bf16.mxu0 %v153
    %14183 = vmatmul.mubr.bf16.gmra.mxu0 %v152
    %v14184 = vpop.f32.mrf.mxu0
    %v14185 = vadd.f32 %v14144, %v14184
    %v14186 = vpop.f32.mrf.mxu0
    %v14187 = vadd.f32 %v14146, %v14186
    %v14188 = vpop.f32.mrf.mxu0
    %v14189 = vpop.f32.mrf.mxu0
    %14190 = vdwg.mxu0
    %14191 = vmatprep.subr.bf16.mxu0 %v9021
    %14192 = vmatpush1.bf16.msra.mxu0 %v9020
    %14193 = vmatprep.subr.bf16.mxu0 %v9017
    %14194 = vmatpush1.bf16.msra.mxu0 %v9016
    %14195 = vmatprep.subr.bf16.mxu0 %v9013
    %14196 = vmatpush1.bf16.msra.mxu0 %v9012
    %14197 = vmatprep.subr.bf16.mxu0 %v9009
    %14198 = vmatpush1.bf16.msra.mxu0 %v9008
    %14199 = vmatprep.subr.bf16.mxu0 %v9005
    %14200 = vmatpush1.bf16.msra.mxu0 %v9004
    %14201 = vmatprep.subr.bf16.mxu0 %v9001
    %14202 = vmatpush1.bf16.msra.mxu0 %v9000
    %14203 = vmatprep.subr.bf16.mxu0 %v8997
    %14204 = vmatpush1.bf16.msra.mxu0 %v8996
    %14205 = vmatprep.subr.bf16.mxu0 %v8993
    %14206 = vmatpush1.bf16.msra.mxu0 %v8992
    %14207 = vmatprep.subr.bf16.mxu0 %v9053
    %14208 = vmatpush2.bf16.msra.mxu0 %v9052
    %14209 = vmatprep.subr.bf16.mxu0 %v9049
    %14210 = vmatpush2.bf16.msra.mxu0 %v9048
    %14211 = vmatprep.subr.bf16.mxu0 %v9045
    %14212 = vmatpush2.bf16.msra.mxu0 %v9044
    %14213 = vmatprep.subr.bf16.mxu0 %v9041
    %14214 = vmatpush2.bf16.msra.mxu0 %v9040
    %14215 = vmatprep.subr.bf16.mxu0 %v9037
    %14216 = vmatpush2.bf16.msra.mxu0 %v9036
    %14217 = vmatprep.subr.bf16.mxu0 %v9033
    %14218 = vmatpush2.bf16.msra.mxu0 %v9032
    %14219 = vmatprep.subr.bf16.mxu0 %v9029
    %14220 = vmatpush2.bf16.msra.mxu0 %v9028
    %14221 = vmatprep.subr.bf16.mxu0 %v9025
    %14222 = vmatpush2.bf16.msra.mxu0 %v9024
    %14223 = vmatprep.mubr.bf16.mxu0 %v155
    %14224 = vmatmul.mubr.bf16.gmra.mxu0 %v154
    %v14225 = vpop.f32.mrf.mxu0
    %v14226 = vadd.f32 %v14185, %v14225
    %v14227 = vpop.f32.mrf.mxu0
    %v14228 = vadd.f32 %v14187, %v14227
    %v14229 = vpop.f32.mrf.mxu0
    %v14230 = vpop.f32.mrf.mxu0
    %14231 = vdwg.mxu0
    %14232 = vmatprep.subr.bf16.mxu0 %v9085
    %14233 = vmatpush1.bf16.msra.mxu0 %v9084
    %14234 = vmatprep.subr.bf16.mxu0 %v9081
    %14235 = vmatpush1.bf16.msra.mxu0 %v9080
    %14236 = vmatprep.subr.bf16.mxu0 %v9077
    %14237 = vmatpush1.bf16.msra.mxu0 %v9076
    %14238 = vmatprep.subr.bf16.mxu0 %v9073
    %14239 = vmatpush1.bf16.msra.mxu0 %v9072
    %14240 = vmatprep.subr.bf16.mxu0 %v9069
    %14241 = vmatpush1.bf16.msra.mxu0 %v9068
    %14242 = vmatprep.subr.bf16.mxu0 %v9065
    %14243 = vmatpush1.bf16.msra.mxu0 %v9064
    %14244 = vmatprep.subr.bf16.mxu0 %v9061
    %14245 = vmatpush1.bf16.msra.mxu0 %v9060
    %14246 = vmatprep.subr.bf16.mxu0 %v9057
    %14247 = vmatpush1.bf16.msra.mxu0 %v9056
    %14248 = vmatprep.subr.bf16.mxu0 %v9117
    %14249 = vmatpush2.bf16.msra.mxu0 %v9116
    %14250 = vmatprep.subr.bf16.mxu0 %v9113
    %14251 = vmatpush2.bf16.msra.mxu0 %v9112
    %14252 = vmatprep.subr.bf16.mxu0 %v9109
    %14253 = vmatpush2.bf16.msra.mxu0 %v9108
    %14254 = vmatprep.subr.bf16.mxu0 %v9105
    %14255 = vmatpush2.bf16.msra.mxu0 %v9104
    %14256 = vmatprep.subr.bf16.mxu0 %v9101
    %14257 = vmatpush2.bf16.msra.mxu0 %v9100
    %14258 = vmatprep.subr.bf16.mxu0 %v9097
    %14259 = vmatpush2.bf16.msra.mxu0 %v9096
    %14260 = vmatprep.subr.bf16.mxu0 %v9093
    %14261 = vmatpush2.bf16.msra.mxu0 %v9092
    %14262 = vmatprep.subr.bf16.mxu0 %v9089
    %14263 = vmatpush2.bf16.msra.mxu0 %v9088
    %14264 = vmatprep.mubr.bf16.mxu0 %v157
    %14265 = vmatmul.mubr.bf16.gmra.mxu0 %v156
    %v14266 = vpop.f32.mrf.mxu0
    %v14267 = vadd.f32 %v14226, %v14266
    %v14268 = vpop.f32.mrf.mxu0
    %v14269 = vadd.f32 %v14228, %v14268
    %v14270 = vpop.f32.mrf.mxu0
    %v14271 = vpop.f32.mrf.mxu0
    %14272 = vdwg.mxu0
    %14273 = vmatprep.subr.bf16.mxu0 %v9149
    %14274 = vmatpush1.bf16.msra.mxu0 %v9148
    %14275 = vmatprep.subr.bf16.mxu0 %v9145
    %14276 = vmatpush1.bf16.msra.mxu0 %v9144
    %14277 = vmatprep.subr.bf16.mxu0 %v9141
    %14278 = vmatpush1.bf16.msra.mxu0 %v9140
    %14279 = vmatprep.subr.bf16.mxu0 %v9137
    %14280 = vmatpush1.bf16.msra.mxu0 %v9136
    %14281 = vmatprep.subr.bf16.mxu0 %v9133
    %14282 = vmatpush1.bf16.msra.mxu0 %v9132
    %14283 = vmatprep.subr.bf16.mxu0 %v9129
    %14284 = vmatpush1.bf16.msra.mxu0 %v9128
    %14285 = vmatprep.subr.bf16.mxu0 %v9125
    %14286 = vmatpush1.bf16.msra.mxu0 %v9124
    %14287 = vmatprep.subr.bf16.mxu0 %v9121
    %14288 = vmatpush1.bf16.msra.mxu0 %v9120
    %14289 = vmatprep.subr.bf16.mxu0 %v9181
    %14290 = vmatpush2.bf16.msra.mxu0 %v9180
    %14291 = vmatprep.subr.bf16.mxu0 %v9177
    %14292 = vmatpush2.bf16.msra.mxu0 %v9176
    %14293 = vmatprep.subr.bf16.mxu0 %v9173
    %14294 = vmatpush2.bf16.msra.mxu0 %v9172
    %14295 = vmatprep.subr.bf16.mxu0 %v9169
    %14296 = vmatpush2.bf16.msra.mxu0 %v9168
    %14297 = vmatprep.subr.bf16.mxu0 %v9165
    %14298 = vmatpush2.bf16.msra.mxu0 %v9164
    %14299 = vmatprep.subr.bf16.mxu0 %v9161
    %14300 = vmatpush2.bf16.msra.mxu0 %v9160
    %14301 = vmatprep.subr.bf16.mxu0 %v9157
    %14302 = vmatpush2.bf16.msra.mxu0 %v9156
    %14303 = vmatprep.subr.bf16.mxu0 %v9153
    %14304 = vmatpush2.bf16.msra.mxu0 %v9152
    %14305 = vmatprep.mubr.bf16.mxu0 %v159
    %14306 = vmatmul.mubr.bf16.gmra.mxu0 %v158
    %v14307 = vpop.f32.mrf.mxu0
    %v14308 = vadd.f32 %v14267, %v14307
    %v14309 = vpop.f32.mrf.mxu0
    %v14310 = vadd.f32 %v14269, %v14309
    %v14311 = vpop.f32.mrf.mxu0
    %v14312 = vpop.f32.mrf.mxu0
    %14313 = vdwg.mxu0
    %14314 = vmatprep.subr.bf16.mxu0 %v9213
    %14315 = vmatpush1.bf16.msra.mxu0 %v9212
    %14316 = vmatprep.subr.bf16.mxu0 %v9209
    %14317 = vmatpush1.bf16.msra.mxu0 %v9208
    %14318 = vmatprep.subr.bf16.mxu0 %v9205
    %14319 = vmatpush1.bf16.msra.mxu0 %v9204
    %14320 = vmatprep.subr.bf16.mxu0 %v9201
    %14321 = vmatpush1.bf16.msra.mxu0 %v9200
    %14322 = vmatprep.subr.bf16.mxu0 %v9197
    %14323 = vmatpush1.bf16.msra.mxu0 %v9196
    %14324 = vmatprep.subr.bf16.mxu0 %v9193
    %14325 = vmatpush1.bf16.msra.mxu0 %v9192
    %14326 = vmatprep.subr.bf16.mxu0 %v9189
    %14327 = vmatpush1.bf16.msra.mxu0 %v9188
    %14328 = vmatprep.subr.bf16.mxu0 %v9185
    %14329 = vmatpush1.bf16.msra.mxu0 %v9184
    %14330 = vmatprep.subr.bf16.mxu0 %v9245
    %14331 = vmatpush2.bf16.msra.mxu0 %v9244
    %14332 = vmatprep.subr.bf16.mxu0 %v9241
    %14333 = vmatpush2.bf16.msra.mxu0 %v9240
    %14334 = vmatprep.subr.bf16.mxu0 %v9237
    %14335 = vmatpush2.bf16.msra.mxu0 %v9236
    %14336 = vmatprep.subr.bf16.mxu0 %v9233
    %14337 = vmatpush2.bf16.msra.mxu0 %v9232
    %14338 = vmatprep.subr.bf16.mxu0 %v9229
    %14339 = vmatpush2.bf16.msra.mxu0 %v9228
    %14340 = vmatprep.subr.bf16.mxu0 %v9225
    %14341 = vmatpush2.bf16.msra.mxu0 %v9224
    %14342 = vmatprep.subr.bf16.mxu0 %v9221
    %14343 = vmatpush2.bf16.msra.mxu0 %v9220
    %14344 = vmatprep.subr.bf16.mxu0 %v9217
    %14345 = vmatpush2.bf16.msra.mxu0 %v9216
    %14346 = vmatprep.mubr.bf16.mxu0 %v161
    %14347 = vmatmul.mubr.bf16.gmra.mxu0 %v160
    %v14348 = vpop.f32.mrf.mxu0
    %v14349 = vadd.f32 %v14308, %v14348
    %v14350 = vpop.f32.mrf.mxu0
    %v14351 = vadd.f32 %v14310, %v14350
    %v14352 = vpop.f32.mrf.mxu0
    %v14353 = vpop.f32.mrf.mxu0
    %14354 = vdwg.mxu0
    %14355 = vmatprep.subr.bf16.mxu0 %v9277
    %14356 = vmatpush1.bf16.msra.mxu0 %v9276
    %14357 = vmatprep.subr.bf16.mxu0 %v9273
    %14358 = vmatpush1.bf16.msra.mxu0 %v9272
    %14359 = vmatprep.subr.bf16.mxu0 %v9269
    %14360 = vmatpush1.bf16.msra.mxu0 %v9268
    %14361 = vmatprep.subr.bf16.mxu0 %v9265
    %14362 = vmatpush1.bf16.msra.mxu0 %v9264
    %14363 = vmatprep.subr.bf16.mxu0 %v9261
    %14364 = vmatpush1.bf16.msra.mxu0 %v9260
    %14365 = vmatprep.subr.bf16.mxu0 %v9257
    %14366 = vmatpush1.bf16.msra.mxu0 %v9256
    %14367 = vmatprep.subr.bf16.mxu0 %v9253
    %14368 = vmatpush1.bf16.msra.mxu0 %v9252
    %14369 = vmatprep.subr.bf16.mxu0 %v9249
    %14370 = vmatpush1.bf16.msra.mxu0 %v9248
    %14371 = vmatprep.subr.bf16.mxu0 %v9309
    %14372 = vmatpush2.bf16.msra.mxu0 %v9308
    %14373 = vmatprep.subr.bf16.mxu0 %v9305
    %14374 = vmatpush2.bf16.msra.mxu0 %v9304
    %14375 = vmatprep.subr.bf16.mxu0 %v9301
    %14376 = vmatpush2.bf16.msra.mxu0 %v9300
    %14377 = vmatprep.subr.bf16.mxu0 %v9297
    %14378 = vmatpush2.bf16.msra.mxu0 %v9296
    %14379 = vmatprep.subr.bf16.mxu0 %v9293
    %14380 = vmatpush2.bf16.msra.mxu0 %v9292
    %14381 = vmatprep.subr.bf16.mxu0 %v9289
    %14382 = vmatpush2.bf16.msra.mxu0 %v9288
    %14383 = vmatprep.subr.bf16.mxu0 %v9285
    %14384 = vmatpush2.bf16.msra.mxu0 %v9284
    %14385 = vmatprep.subr.bf16.mxu0 %v9281
    %14386 = vmatpush2.bf16.msra.mxu0 %v9280
    %14387 = vmatprep.mubr.bf16.mxu0 %v163
    %14388 = vmatmul.mubr.bf16.gmra.mxu0 %v162
    %v14389 = vpop.f32.mrf.mxu0
    %v14390 = vadd.f32 %v14349, %v14389
    %v14391 = vpop.f32.mrf.mxu0
    %v14392 = vadd.f32 %v14351, %v14391
    %v14393 = vpop.f32.mrf.mxu0
    %v14394 = vpop.f32.mrf.mxu0
    %14395 = vdwg.mxu0
    %14396 = vmatprep.subr.bf16.mxu0 %v9341
    %14397 = vmatpush1.bf16.msra.mxu0 %v9340
    %14398 = vmatprep.subr.bf16.mxu0 %v9337
    %14399 = vmatpush1.bf16.msra.mxu0 %v9336
    %14400 = vmatprep.subr.bf16.mxu0 %v9333
    %14401 = vmatpush1.bf16.msra.mxu0 %v9332
    %14402 = vmatprep.subr.bf16.mxu0 %v9329
    %14403 = vmatpush1.bf16.msra.mxu0 %v9328
    %14404 = vmatprep.subr.bf16.mxu0 %v9325
    %14405 = vmatpush1.bf16.msra.mxu0 %v9324
    %14406 = vmatprep.subr.bf16.mxu0 %v9321
    %14407 = vmatpush1.bf16.msra.mxu0 %v9320
    %14408 = vmatprep.subr.bf16.mxu0 %v9317
    %14409 = vmatpush1.bf16.msra.mxu0 %v9316
    %14410 = vmatprep.subr.bf16.mxu0 %v9313
    %14411 = vmatpush1.bf16.msra.mxu0 %v9312
    %14412 = vmatprep.subr.bf16.mxu0 %v9373
    %14413 = vmatpush2.bf16.msra.mxu0 %v9372
    %14414 = vmatprep.subr.bf16.mxu0 %v9369
    %14415 = vmatpush2.bf16.msra.mxu0 %v9368
    %14416 = vmatprep.subr.bf16.mxu0 %v9365
    %14417 = vmatpush2.bf16.msra.mxu0 %v9364
    %14418 = vmatprep.subr.bf16.mxu0 %v9361
    %14419 = vmatpush2.bf16.msra.mxu0 %v9360
    %14420 = vmatprep.subr.bf16.mxu0 %v9357
    %14421 = vmatpush2.bf16.msra.mxu0 %v9356
    %14422 = vmatprep.subr.bf16.mxu0 %v9353
    %14423 = vmatpush2.bf16.msra.mxu0 %v9352
    %14424 = vmatprep.subr.bf16.mxu0 %v9349
    %14425 = vmatpush2.bf16.msra.mxu0 %v9348
    %14426 = vmatprep.subr.bf16.mxu0 %v9345
    %14427 = vmatpush2.bf16.msra.mxu0 %v9344
    %14428 = vmatprep.mubr.bf16.mxu0 %v165
    %14429 = vmatmul.mubr.bf16.gmra.mxu0 %v164
    %v14430 = vpop.f32.mrf.mxu0
    %v14431 = vadd.f32 %v14390, %v14430
    %v14432 = vpop.f32.mrf.mxu0
    %v14433 = vadd.f32 %v14392, %v14432
    %v14434 = vpop.f32.mrf.mxu0
    %v14435 = vpop.f32.mrf.mxu0
    %14436 = vdwg.mxu0
    %14437 = vmatprep.subr.bf16.mxu0 %v9405
    %14438 = vmatpush1.bf16.msra.mxu0 %v9404
    %14439 = vmatprep.subr.bf16.mxu0 %v9401
    %14440 = vmatpush1.bf16.msra.mxu0 %v9400
    %14441 = vmatprep.subr.bf16.mxu0 %v9397
    %14442 = vmatpush1.bf16.msra.mxu0 %v9396
    %14443 = vmatprep.subr.bf16.mxu0 %v9393
    %14444 = vmatpush1.bf16.msra.mxu0 %v9392
    %14445 = vmatprep.subr.bf16.mxu0 %v9389
    %14446 = vmatpush1.bf16.msra.mxu0 %v9388
    %14447 = vmatprep.subr.bf16.mxu0 %v9385
    %14448 = vmatpush1.bf16.msra.mxu0 %v9384
    %14449 = vmatprep.subr.bf16.mxu0 %v9381
    %14450 = vmatpush1.bf16.msra.mxu0 %v9380
    %14451 = vmatprep.subr.bf16.mxu0 %v9377
    %14452 = vmatpush1.bf16.msra.mxu0 %v9376
    %14453 = vmatprep.subr.bf16.mxu0 %v9437
    %14454 = vmatpush2.bf16.msra.mxu0 %v9436
    %14455 = vmatprep.subr.bf16.mxu0 %v9433
    %14456 = vmatpush2.bf16.msra.mxu0 %v9432
    %14457 = vmatprep.subr.bf16.mxu0 %v9429
    %14458 = vmatpush2.bf16.msra.mxu0 %v9428
    %14459 = vmatprep.subr.bf16.mxu0 %v9425
    %14460 = vmatpush2.bf16.msra.mxu0 %v9424
    %14461 = vmatprep.subr.bf16.mxu0 %v9421
    %14462 = vmatpush2.bf16.msra.mxu0 %v9420
    %14463 = vmatprep.subr.bf16.mxu0 %v9417
    %14464 = vmatpush2.bf16.msra.mxu0 %v9416
    %14465 = vmatprep.subr.bf16.mxu0 %v9413
    %14466 = vmatpush2.bf16.msra.mxu0 %v9412
    %14467 = vmatprep.subr.bf16.mxu0 %v9409
    %14468 = vmatpush2.bf16.msra.mxu0 %v9408
    %14469 = vmatprep.mubr.bf16.mxu0 %v167
    %14470 = vmatmul.mubr.bf16.gmra.mxu0 %v166
    %v14471 = vpop.f32.mrf.mxu0
    %v14472 = vadd.f32 %v14431, %v14471
    %v14473 = vpop.f32.mrf.mxu0
    %v14474 = vadd.f32 %v14433, %v14473
    %v14475 = vpop.f32.mrf.mxu0
    %v14476 = vpop.f32.mrf.mxu0
    %14477 = vdwg.mxu0
    %14478 = vmatprep.subr.bf16.mxu0 %v9469
    %14479 = vmatpush1.bf16.msra.mxu0 %v9468
    %14480 = vmatprep.subr.bf16.mxu0 %v9465
    %14481 = vmatpush1.bf16.msra.mxu0 %v9464
    %14482 = vmatprep.subr.bf16.mxu0 %v9461
    %14483 = vmatpush1.bf16.msra.mxu0 %v9460
    %14484 = vmatprep.subr.bf16.mxu0 %v9457
    %14485 = vmatpush1.bf16.msra.mxu0 %v9456
    %14486 = vmatprep.subr.bf16.mxu0 %v9453
    %14487 = vmatpush1.bf16.msra.mxu0 %v9452
    %14488 = vmatprep.subr.bf16.mxu0 %v9449
    %14489 = vmatpush1.bf16.msra.mxu0 %v9448
    %14490 = vmatprep.subr.bf16.mxu0 %v9445
    %14491 = vmatpush1.bf16.msra.mxu0 %v9444
    %14492 = vmatprep.subr.bf16.mxu0 %v9441
    %14493 = vmatpush1.bf16.msra.mxu0 %v9440
    %14494 = vmatprep.subr.bf16.mxu0 %v9501
    %14495 = vmatpush2.bf16.msra.mxu0 %v9500
    %14496 = vmatprep.subr.bf16.mxu0 %v9497
    %14497 = vmatpush2.bf16.msra.mxu0 %v9496
    %14498 = vmatprep.subr.bf16.mxu0 %v9493
    %14499 = vmatpush2.bf16.msra.mxu0 %v9492
    %14500 = vmatprep.subr.bf16.mxu0 %v9489
    %14501 = vmatpush2.bf16.msra.mxu0 %v9488
    %14502 = vmatprep.subr.bf16.mxu0 %v9485
    %14503 = vmatpush2.bf16.msra.mxu0 %v9484
    %14504 = vmatprep.subr.bf16.mxu0 %v9481
    %14505 = vmatpush2.bf16.msra.mxu0 %v9480
    %14506 = vmatprep.subr.bf16.mxu0 %v9477
    %14507 = vmatpush2.bf16.msra.mxu0 %v9476
    %14508 = vmatprep.subr.bf16.mxu0 %v9473
    %14509 = vmatpush2.bf16.msra.mxu0 %v9472
    %14510 = vmatprep.mubr.bf16.mxu0 %v169
    %14511 = vmatmul.mubr.bf16.gmra.mxu0 %v168
    %v14512 = vpop.f32.mrf.mxu0
    %v14513 = vadd.f32 %v14472, %v14512
    %v14514 = vpop.f32.mrf.mxu0
    %v14515 = vadd.f32 %v14474, %v14514
    %v14516 = vpop.f32.mrf.mxu0
    %v14517 = vpop.f32.mrf.mxu0
    %14518 = vdwg.mxu0
    %14519 = vmatprep.subr.bf16.mxu0 %v9533
    %14520 = vmatpush1.bf16.msra.mxu0 %v9532
    %14521 = vmatprep.subr.bf16.mxu0 %v9529
    %14522 = vmatpush1.bf16.msra.mxu0 %v9528
    %14523 = vmatprep.subr.bf16.mxu0 %v9525
    %14524 = vmatpush1.bf16.msra.mxu0 %v9524
    %14525 = vmatprep.subr.bf16.mxu0 %v9521
    %14526 = vmatpush1.bf16.msra.mxu0 %v9520
    %14527 = vmatprep.subr.bf16.mxu0 %v9517
    %14528 = vmatpush1.bf16.msra.mxu0 %v9516
    %14529 = vmatprep.subr.bf16.mxu0 %v9513
    %14530 = vmatpush1.bf16.msra.mxu0 %v9512
    %14531 = vmatprep.subr.bf16.mxu0 %v9509
    %14532 = vmatpush1.bf16.msra.mxu0 %v9508
    %14533 = vmatprep.subr.bf16.mxu0 %v9505
    %14534 = vmatpush1.bf16.msra.mxu0 %v9504
    %14535 = vmatprep.subr.bf16.mxu0 %v9565
    %14536 = vmatpush2.bf16.msra.mxu0 %v9564
    %14537 = vmatprep.subr.bf16.mxu0 %v9561
    %14538 = vmatpush2.bf16.msra.mxu0 %v9560
    %14539 = vmatprep.subr.bf16.mxu0 %v9557
    %14540 = vmatpush2.bf16.msra.mxu0 %v9556
    %14541 = vmatprep.subr.bf16.mxu0 %v9553
    %14542 = vmatpush2.bf16.msra.mxu0 %v9552
    %14543 = vmatprep.subr.bf16.mxu0 %v9549
    %14544 = vmatpush2.bf16.msra.mxu0 %v9548
    %14545 = vmatprep.subr.bf16.mxu0 %v9545
    %14546 = vmatpush2.bf16.msra.mxu0 %v9544
    %14547 = vmatprep.subr.bf16.mxu0 %v9541
    %14548 = vmatpush2.bf16.msra.mxu0 %v9540
    %14549 = vmatprep.subr.bf16.mxu0 %v9537
    %14550 = vmatpush2.bf16.msra.mxu0 %v9536
    %14551 = vmatprep.mubr.bf16.mxu0 %v171
    %14552 = vmatmul.mubr.bf16.gmra.mxu0 %v170
    %v14553 = vpop.f32.mrf.mxu0
    %v14554 = vadd.f32 %v14513, %v14553
    %v14555 = vpop.f32.mrf.mxu0
    %v14556 = vadd.f32 %v14515, %v14555
    %v14557 = vpop.f32.mrf.mxu0
    %v14558 = vpop.f32.mrf.mxu0
    %14559 = vdwg.mxu0
    %14560 = vmatprep.subr.bf16.mxu0 %v9597
    %14561 = vmatpush1.bf16.msra.mxu0 %v9596
    %14562 = vmatprep.subr.bf16.mxu0 %v9593
    %14563 = vmatpush1.bf16.msra.mxu0 %v9592
    %14564 = vmatprep.subr.bf16.mxu0 %v9589
    %14565 = vmatpush1.bf16.msra.mxu0 %v9588
    %14566 = vmatprep.subr.bf16.mxu0 %v9585
    %14567 = vmatpush1.bf16.msra.mxu0 %v9584
    %14568 = vmatprep.subr.bf16.mxu0 %v9581
    %14569 = vmatpush1.bf16.msra.mxu0 %v9580
    %14570 = vmatprep.subr.bf16.mxu0 %v9577
    %14571 = vmatpush1.bf16.msra.mxu0 %v9576
    %14572 = vmatprep.subr.bf16.mxu0 %v9573
    %14573 = vmatpush1.bf16.msra.mxu0 %v9572
    %14574 = vmatprep.subr.bf16.mxu0 %v9569
    %14575 = vmatpush1.bf16.msra.mxu0 %v9568
    %14576 = vmatprep.subr.bf16.mxu0 %v9629
    %14577 = vmatpush2.bf16.msra.mxu0 %v9628
    %14578 = vmatprep.subr.bf16.mxu0 %v9625
    %14579 = vmatpush2.bf16.msra.mxu0 %v9624
    %14580 = vmatprep.subr.bf16.mxu0 %v9621
    %14581 = vmatpush2.bf16.msra.mxu0 %v9620
    %14582 = vmatprep.subr.bf16.mxu0 %v9617
    %14583 = vmatpush2.bf16.msra.mxu0 %v9616
    %14584 = vmatprep.subr.bf16.mxu0 %v9613
    %14585 = vmatpush2.bf16.msra.mxu0 %v9612
    %14586 = vmatprep.subr.bf16.mxu0 %v9609
    %14587 = vmatpush2.bf16.msra.mxu0 %v9608
    %14588 = vmatprep.subr.bf16.mxu0 %v9605
    %14589 = vmatpush2.bf16.msra.mxu0 %v9604
    %14590 = vmatprep.subr.bf16.mxu0 %v9601
    %14591 = vmatpush2.bf16.msra.mxu0 %v9600
    %14592 = vmatprep.mubr.bf16.mxu0 %v173
    %14593 = vmatmul.mubr.bf16.gmra.mxu0 %v172
    %v14594 = vpop.f32.mrf.mxu0
    %v14595 = vadd.f32 %v14554, %v14594
    %v14596 = vpop.f32.mrf.mxu0
    %v14597 = vadd.f32 %v14556, %v14596
    %v14598 = vpop.f32.mrf.mxu0
    %v14599 = vpop.f32.mrf.mxu0
    %14600 = vdwg.mxu0
    %14601 = vmatprep.subr.bf16.mxu0 %v9661
    %14602 = vmatpush1.bf16.msra.mxu0 %v9660
    %14603 = vmatprep.subr.bf16.mxu0 %v9657
    %14604 = vmatpush1.bf16.msra.mxu0 %v9656
    %14605 = vmatprep.subr.bf16.mxu0 %v9653
    %14606 = vmatpush1.bf16.msra.mxu0 %v9652
    %14607 = vmatprep.subr.bf16.mxu0 %v9649
    %14608 = vmatpush1.bf16.msra.mxu0 %v9648
    %14609 = vmatprep.subr.bf16.mxu0 %v9645
    %14610 = vmatpush1.bf16.msra.mxu0 %v9644
    %14611 = vmatprep.subr.bf16.mxu0 %v9641
    %14612 = vmatpush1.bf16.msra.mxu0 %v9640
    %14613 = vmatprep.subr.bf16.mxu0 %v9637
    %14614 = vmatpush1.bf16.msra.mxu0 %v9636
    %14615 = vmatprep.subr.bf16.mxu0 %v9633
    %14616 = vmatpush1.bf16.msra.mxu0 %v9632
    %14617 = vmatprep.subr.bf16.mxu0 %v9693
    %14618 = vmatpush2.bf16.msra.mxu0 %v9692
    %14619 = vmatprep.subr.bf16.mxu0 %v9689
    %14620 = vmatpush2.bf16.msra.mxu0 %v9688
    %14621 = vmatprep.subr.bf16.mxu0 %v9685
    %14622 = vmatpush2.bf16.msra.mxu0 %v9684
    %14623 = vmatprep.subr.bf16.mxu0 %v9681
    %14624 = vmatpush2.bf16.msra.mxu0 %v9680
    %14625 = vmatprep.subr.bf16.mxu0 %v9677
    %14626 = vmatpush2.bf16.msra.mxu0 %v9676
    %14627 = vmatprep.subr.bf16.mxu0 %v9673
    %14628 = vmatpush2.bf16.msra.mxu0 %v9672
    %14629 = vmatprep.subr.bf16.mxu0 %v9669
    %14630 = vmatpush2.bf16.msra.mxu0 %v9668
    %14631 = vmatprep.subr.bf16.mxu0 %v9665
    %14632 = vmatpush2.bf16.msra.mxu0 %v9664
    %14633 = vmatprep.mubr.bf16.mxu0 %v175
    %14634 = vmatmul.mubr.bf16.gmra.mxu0 %v174
    %v14635 = vpop.f32.mrf.mxu0
    %v14636 = vadd.f32 %v14595, %v14635
    %v14637 = vpop.f32.mrf.mxu0
    %v14638 = vadd.f32 %v14597, %v14637
    %v14639 = vpop.f32.mrf.mxu0
    %v14640 = vpop.f32.mrf.mxu0
    %14641 = vdwg.mxu0
    %14642 = vmatprep.subr.bf16.mxu0 %v9725
    %14643 = vmatpush1.bf16.msra.mxu0 %v9724
    %14644 = vmatprep.subr.bf16.mxu0 %v9721
    %14645 = vmatpush1.bf16.msra.mxu0 %v9720
    %14646 = vmatprep.subr.bf16.mxu0 %v9717
    %14647 = vmatpush1.bf16.msra.mxu0 %v9716
    %14648 = vmatprep.subr.bf16.mxu0 %v9713
    %14649 = vmatpush1.bf16.msra.mxu0 %v9712
    %14650 = vmatprep.subr.bf16.mxu0 %v9709
    %14651 = vmatpush1.bf16.msra.mxu0 %v9708
    %14652 = vmatprep.subr.bf16.mxu0 %v9705
    %14653 = vmatpush1.bf16.msra.mxu0 %v9704
    %14654 = vmatprep.subr.bf16.mxu0 %v9701
    %14655 = vmatpush1.bf16.msra.mxu0 %v9700
    %14656 = vmatprep.subr.bf16.mxu0 %v9697
    %14657 = vmatpush1.bf16.msra.mxu0 %v9696
    %14658 = vmatprep.subr.bf16.mxu0 %v9757
    %14659 = vmatpush2.bf16.msra.mxu0 %v9756
    %14660 = vmatprep.subr.bf16.mxu0 %v9753
    %14661 = vmatpush2.bf16.msra.mxu0 %v9752
    %14662 = vmatprep.subr.bf16.mxu0 %v9749
    %14663 = vmatpush2.bf16.msra.mxu0 %v9748
    %14664 = vmatprep.subr.bf16.mxu0 %v9745
    %14665 = vmatpush2.bf16.msra.mxu0 %v9744
    %14666 = vmatprep.subr.bf16.mxu0 %v9741
    %14667 = vmatpush2.bf16.msra.mxu0 %v9740
    %14668 = vmatprep.subr.bf16.mxu0 %v9737
    %14669 = vmatpush2.bf16.msra.mxu0 %v9736
    %14670 = vmatprep.subr.bf16.mxu0 %v9733
    %14671 = vmatpush2.bf16.msra.mxu0 %v9732
    %14672 = vmatprep.subr.bf16.mxu0 %v9729
    %14673 = vmatpush2.bf16.msra.mxu0 %v9728
    %14674 = vmatprep.mubr.bf16.mxu0 %v177
    %14675 = vmatmul.mubr.bf16.gmra.mxu0 %v176
    %v14676 = vpop.f32.mrf.mxu0
    %v14677 = vadd.f32 %v14636, %v14676
    %v14678 = vpop.f32.mrf.mxu0
    %v14679 = vadd.f32 %v14638, %v14678
    %v14680 = vpop.f32.mrf.mxu0
    %v14681 = vpop.f32.mrf.mxu0
    %14682 = vdwg.mxu0
    %14683 = vmatprep.subr.bf16.mxu0 %v9789
    %14684 = vmatpush1.bf16.msra.mxu0 %v9788
    %14685 = vmatprep.subr.bf16.mxu0 %v9785
    %14686 = vmatpush1.bf16.msra.mxu0 %v9784
    %14687 = vmatprep.subr.bf16.mxu0 %v9781
    %14688 = vmatpush1.bf16.msra.mxu0 %v9780
    %14689 = vmatprep.subr.bf16.mxu0 %v9777
    %14690 = vmatpush1.bf16.msra.mxu0 %v9776
    %14691 = vmatprep.subr.bf16.mxu0 %v9773
    %14692 = vmatpush1.bf16.msra.mxu0 %v9772
    %14693 = vmatprep.subr.bf16.mxu0 %v9769
    %14694 = vmatpush1.bf16.msra.mxu0 %v9768
    %14695 = vmatprep.subr.bf16.mxu0 %v9765
    %14696 = vmatpush1.bf16.msra.mxu0 %v9764
    %14697 = vmatprep.subr.bf16.mxu0 %v9761
    %14698 = vmatpush1.bf16.msra.mxu0 %v9760
    %14699 = vmatprep.subr.bf16.mxu0 %v9821
    %14700 = vmatpush2.bf16.msra.mxu0 %v9820
    %14701 = vmatprep.subr.bf16.mxu0 %v9817
    %14702 = vmatpush2.bf16.msra.mxu0 %v9816
    %14703 = vmatprep.subr.bf16.mxu0 %v9813
    %14704 = vmatpush2.bf16.msra.mxu0 %v9812
    %14705 = vmatprep.subr.bf16.mxu0 %v9809
    %14706 = vmatpush2.bf16.msra.mxu0 %v9808
    %14707 = vmatprep.subr.bf16.mxu0 %v9805
    %14708 = vmatpush2.bf16.msra.mxu0 %v9804
    %14709 = vmatprep.subr.bf16.mxu0 %v9801
    %14710 = vmatpush2.bf16.msra.mxu0 %v9800
    %14711 = vmatprep.subr.bf16.mxu0 %v9797
    %14712 = vmatpush2.bf16.msra.mxu0 %v9796
    %14713 = vmatprep.subr.bf16.mxu0 %v9793
    %14714 = vmatpush2.bf16.msra.mxu0 %v9792
    %14715 = vmatprep.mubr.bf16.mxu0 %v179
    %14716 = vmatmul.mubr.bf16.gmra.mxu0 %v178
    %v14717 = vpop.f32.mrf.mxu0
    %v14718 = vadd.f32 %v14677, %v14717
    %v14719 = vpop.f32.mrf.mxu0
    %v14720 = vadd.f32 %v14679, %v14719
    %v14721 = vpop.f32.mrf.mxu0
    %v14722 = vpop.f32.mrf.mxu0
    %14723 = vdwg.mxu0
    %14724 = vmatprep.subr.bf16.mxu0 %v9853
    %14725 = vmatpush1.bf16.msra.mxu0 %v9852
    %14726 = vmatprep.subr.bf16.mxu0 %v9849
    %14727 = vmatpush1.bf16.msra.mxu0 %v9848
    %14728 = vmatprep.subr.bf16.mxu0 %v9845
    %14729 = vmatpush1.bf16.msra.mxu0 %v9844
    %14730 = vmatprep.subr.bf16.mxu0 %v9841
    %14731 = vmatpush1.bf16.msra.mxu0 %v9840
    %14732 = vmatprep.subr.bf16.mxu0 %v9837
    %14733 = vmatpush1.bf16.msra.mxu0 %v9836
    %14734 = vmatprep.subr.bf16.mxu0 %v9833
    %14735 = vmatpush1.bf16.msra.mxu0 %v9832
    %14736 = vmatprep.subr.bf16.mxu0 %v9829
    %14737 = vmatpush1.bf16.msra.mxu0 %v9828
    %14738 = vmatprep.subr.bf16.mxu0 %v9825
    %14739 = vmatpush1.bf16.msra.mxu0 %v9824
    %14740 = vmatprep.subr.bf16.mxu0 %v9885
    %14741 = vmatpush2.bf16.msra.mxu0 %v9884
    %14742 = vmatprep.subr.bf16.mxu0 %v9881
    %14743 = vmatpush2.bf16.msra.mxu0 %v9880
    %14744 = vmatprep.subr.bf16.mxu0 %v9877
    %14745 = vmatpush2.bf16.msra.mxu0 %v9876
    %14746 = vmatprep.subr.bf16.mxu0 %v9873
    %14747 = vmatpush2.bf16.msra.mxu0 %v9872
    %14748 = vmatprep.subr.bf16.mxu0 %v9869
    %14749 = vmatpush2.bf16.msra.mxu0 %v9868
    %14750 = vmatprep.subr.bf16.mxu0 %v9865
    %14751 = vmatpush2.bf16.msra.mxu0 %v9864
    %14752 = vmatprep.subr.bf16.mxu0 %v9861
    %14753 = vmatpush2.bf16.msra.mxu0 %v9860
    %14754 = vmatprep.subr.bf16.mxu0 %v9857
    %14755 = vmatpush2.bf16.msra.mxu0 %v9856
    %14756 = vmatprep.mubr.bf16.mxu0 %v181
    %14757 = vmatmul.mubr.bf16.gmra.mxu0 %v180
    %v14758 = vpop.f32.mrf.mxu0
    %v14759 = vadd.f32 %v14718, %v14758
    %v14760 = vpop.f32.mrf.mxu0
    %v14761 = vadd.f32 %v14720, %v14760
    %v14762 = vpop.f32.mrf.mxu0
    %v14763 = vpop.f32.mrf.mxu0
    %14764 = vdwg.mxu0
    %14765 = vmatprep.subr.bf16.mxu0 %v9917
    %14766 = vmatpush1.bf16.msra.mxu0 %v9916
    %14767 = vmatprep.subr.bf16.mxu0 %v9913
    %14768 = vmatpush1.bf16.msra.mxu0 %v9912
    %14769 = vmatprep.subr.bf16.mxu0 %v9909
    %14770 = vmatpush1.bf16.msra.mxu0 %v9908
    %14771 = vmatprep.subr.bf16.mxu0 %v9905
    %14772 = vmatpush1.bf16.msra.mxu0 %v9904
    %14773 = vmatprep.subr.bf16.mxu0 %v9901
    %14774 = vmatpush1.bf16.msra.mxu0 %v9900
    %14775 = vmatprep.subr.bf16.mxu0 %v9897
    %14776 = vmatpush1.bf16.msra.mxu0 %v9896
    %14777 = vmatprep.subr.bf16.mxu0 %v9893
    %14778 = vmatpush1.bf16.msra.mxu0 %v9892
    %14779 = vmatprep.subr.bf16.mxu0 %v9889
    %14780 = vmatpush1.bf16.msra.mxu0 %v9888
    %14781 = vmatprep.subr.bf16.mxu0 %v9949
    %14782 = vmatpush2.bf16.msra.mxu0 %v9948
    %14783 = vmatprep.subr.bf16.mxu0 %v9945
    %14784 = vmatpush2.bf16.msra.mxu0 %v9944
    %14785 = vmatprep.subr.bf16.mxu0 %v9941
    %14786 = vmatpush2.bf16.msra.mxu0 %v9940
    %14787 = vmatprep.subr.bf16.mxu0 %v9937
    %14788 = vmatpush2.bf16.msra.mxu0 %v9936
    %14789 = vmatprep.subr.bf16.mxu0 %v9933
    %14790 = vmatpush2.bf16.msra.mxu0 %v9932
    %14791 = vmatprep.subr.bf16.mxu0 %v9929
    %14792 = vmatpush2.bf16.msra.mxu0 %v9928
    %14793 = vmatprep.subr.bf16.mxu0 %v9925
    %14794 = vmatpush2.bf16.msra.mxu0 %v9924
    %14795 = vmatprep.subr.bf16.mxu0 %v9921
    %14796 = vmatpush2.bf16.msra.mxu0 %v9920
    %14797 = vmatprep.mubr.bf16.mxu0 %v183
    %14798 = vmatmul.mubr.bf16.gmra.mxu0 %v182
    %v14799 = vpop.f32.mrf.mxu0
    %v14800 = vadd.f32 %v14759, %v14799
    %v14801 = vpop.f32.mrf.mxu0
    %v14802 = vadd.f32 %v14761, %v14801
    %v14803 = vpop.f32.mrf.mxu0
    %v14804 = vpop.f32.mrf.mxu0
    %14805 = vdwg.mxu0
    %14806 = vmatprep.subr.bf16.mxu0 %v9981
    %14807 = vmatpush1.bf16.msra.mxu0 %v9980
    %14808 = vmatprep.subr.bf16.mxu0 %v9977
    %14809 = vmatpush1.bf16.msra.mxu0 %v9976
    %14810 = vmatprep.subr.bf16.mxu0 %v9973
    %14811 = vmatpush1.bf16.msra.mxu0 %v9972
    %14812 = vmatprep.subr.bf16.mxu0 %v9969
    %14813 = vmatpush1.bf16.msra.mxu0 %v9968
    %14814 = vmatprep.subr.bf16.mxu0 %v9965
    %14815 = vmatpush1.bf16.msra.mxu0 %v9964
    %14816 = vmatprep.subr.bf16.mxu0 %v9961
    %14817 = vmatpush1.bf16.msra.mxu0 %v9960
    %14818 = vmatprep.subr.bf16.mxu0 %v9957
    %14819 = vmatpush1.bf16.msra.mxu0 %v9956
    %14820 = vmatprep.subr.bf16.mxu0 %v9953
    %14821 = vmatpush1.bf16.msra.mxu0 %v9952
    %14822 = vmatprep.subr.bf16.mxu0 %v10013
    %14823 = vmatpush2.bf16.msra.mxu0 %v10012
    %14824 = vmatprep.subr.bf16.mxu0 %v10009
    %14825 = vmatpush2.bf16.msra.mxu0 %v10008
    %14826 = vmatprep.subr.bf16.mxu0 %v10005
    %14827 = vmatpush2.bf16.msra.mxu0 %v10004
    %14828 = vmatprep.subr.bf16.mxu0 %v10001
    %14829 = vmatpush2.bf16.msra.mxu0 %v10000
    %14830 = vmatprep.subr.bf16.mxu0 %v9997
    %14831 = vmatpush2.bf16.msra.mxu0 %v9996
    %14832 = vmatprep.subr.bf16.mxu0 %v9993
    %14833 = vmatpush2.bf16.msra.mxu0 %v9992
    %14834 = vmatprep.subr.bf16.mxu0 %v9989
    %14835 = vmatpush2.bf16.msra.mxu0 %v9988
    %14836 = vmatprep.subr.bf16.mxu0 %v9985
    %14837 = vmatpush2.bf16.msra.mxu0 %v9984
    %14838 = vmatprep.mubr.bf16.mxu0 %v185
    %14839 = vmatmul.mubr.bf16.gmra.mxu0 %v184
    %v14840 = vpop.f32.mrf.mxu0
    %v14841 = vadd.f32 %v14800, %v14840
    %v14842 = vpop.f32.mrf.mxu0
    %v14843 = vadd.f32 %v14802, %v14842
    %v14844 = vpop.f32.mrf.mxu0
    %v14845 = vpop.f32.mrf.mxu0
    %14846 = vdwg.mxu0
    %14847 = vmatprep.subr.bf16.mxu0 %v10045
    %14848 = vmatpush1.bf16.msra.mxu0 %v10044
    %14849 = vmatprep.subr.bf16.mxu0 %v10041
    %14850 = vmatpush1.bf16.msra.mxu0 %v10040
    %14851 = vmatprep.subr.bf16.mxu0 %v10037
    %14852 = vmatpush1.bf16.msra.mxu0 %v10036
    %14853 = vmatprep.subr.bf16.mxu0 %v10033
    %14854 = vmatpush1.bf16.msra.mxu0 %v10032
    %14855 = vmatprep.subr.bf16.mxu0 %v10029
    %14856 = vmatpush1.bf16.msra.mxu0 %v10028
    %14857 = vmatprep.subr.bf16.mxu0 %v10025
    %14858 = vmatpush1.bf16.msra.mxu0 %v10024
    %14859 = vmatprep.subr.bf16.mxu0 %v10021
    %14860 = vmatpush1.bf16.msra.mxu0 %v10020
    %14861 = vmatprep.subr.bf16.mxu0 %v10017
    %14862 = vmatpush1.bf16.msra.mxu0 %v10016
    %14863 = vmatprep.subr.bf16.mxu0 %v10077
    %14864 = vmatpush2.bf16.msra.mxu0 %v10076
    %14865 = vmatprep.subr.bf16.mxu0 %v10073
    %14866 = vmatpush2.bf16.msra.mxu0 %v10072
    %14867 = vmatprep.subr.bf16.mxu0 %v10069
    %14868 = vmatpush2.bf16.msra.mxu0 %v10068
    %14869 = vmatprep.subr.bf16.mxu0 %v10065
    %14870 = vmatpush2.bf16.msra.mxu0 %v10064
    %14871 = vmatprep.subr.bf16.mxu0 %v10061
    %14872 = vmatpush2.bf16.msra.mxu0 %v10060
    %14873 = vmatprep.subr.bf16.mxu0 %v10057
    %14874 = vmatpush2.bf16.msra.mxu0 %v10056
    %14875 = vmatprep.subr.bf16.mxu0 %v10053
    %14876 = vmatpush2.bf16.msra.mxu0 %v10052
    %14877 = vmatprep.subr.bf16.mxu0 %v10049
    %14878 = vmatpush2.bf16.msra.mxu0 %v10048
    %14879 = vmatprep.mubr.bf16.mxu0 %v187
    %14880 = vmatmul.mubr.bf16.gmra.mxu0 %v186
    %v14881 = vpop.f32.mrf.mxu0
    %v14882 = vadd.f32 %v14841, %v14881
    %v14883 = vpop.f32.mrf.mxu0
    %v14884 = vadd.f32 %v14843, %v14883
    %v14885 = vpop.f32.mrf.mxu0
    %v14886 = vpop.f32.mrf.mxu0
    %14887 = vdwg.mxu0
    %14888 = vmatprep.subr.bf16.mxu0 %v10109
    %14889 = vmatpush1.bf16.msra.mxu0 %v10108
    %14890 = vmatprep.subr.bf16.mxu0 %v10105
    %14891 = vmatpush1.bf16.msra.mxu0 %v10104
    %14892 = vmatprep.subr.bf16.mxu0 %v10101
    %14893 = vmatpush1.bf16.msra.mxu0 %v10100
    %14894 = vmatprep.subr.bf16.mxu0 %v10097
    %14895 = vmatpush1.bf16.msra.mxu0 %v10096
    %14896 = vmatprep.subr.bf16.mxu0 %v10093
    %14897 = vmatpush1.bf16.msra.mxu0 %v10092
    %14898 = vmatprep.subr.bf16.mxu0 %v10089
    %14899 = vmatpush1.bf16.msra.mxu0 %v10088
    %14900 = vmatprep.subr.bf16.mxu0 %v10085
    %14901 = vmatpush1.bf16.msra.mxu0 %v10084
    %14902 = vmatprep.subr.bf16.mxu0 %v10081
    %14903 = vmatpush1.bf16.msra.mxu0 %v10080
    %14904 = vmatprep.subr.bf16.mxu0 %v10141
    %14905 = vmatpush2.bf16.msra.mxu0 %v10140
    %14906 = vmatprep.subr.bf16.mxu0 %v10137
    %14907 = vmatpush2.bf16.msra.mxu0 %v10136
    %14908 = vmatprep.subr.bf16.mxu0 %v10133
    %14909 = vmatpush2.bf16.msra.mxu0 %v10132
    %14910 = vmatprep.subr.bf16.mxu0 %v10129
    %14911 = vmatpush2.bf16.msra.mxu0 %v10128
    %14912 = vmatprep.subr.bf16.mxu0 %v10125
    %14913 = vmatpush2.bf16.msra.mxu0 %v10124
    %14914 = vmatprep.subr.bf16.mxu0 %v10121
    %14915 = vmatpush2.bf16.msra.mxu0 %v10120
    %14916 = vmatprep.subr.bf16.mxu0 %v10117
    %14917 = vmatpush2.bf16.msra.mxu0 %v10116
    %14918 = vmatprep.subr.bf16.mxu0 %v10113
    %14919 = vmatpush2.bf16.msra.mxu0 %v10112
    %14920 = vmatprep.mubr.bf16.mxu0 %v189
    %14921 = vmatmul.mubr.bf16.gmra.mxu0 %v188
    %v14922 = vpop.f32.mrf.mxu0
    %v14923 = vadd.f32 %v14882, %v14922
    %v14924 = vpop.f32.mrf.mxu0
    %v14925 = vadd.f32 %v14884, %v14924
    %v14926 = vpop.f32.mrf.mxu0
    %v14927 = vpop.f32.mrf.mxu0
    %14928 = vdwg.mxu0
    %14929 = vmatprep.subr.bf16.mxu0 %v10173
    %14930 = vmatpush1.bf16.msra.mxu0 %v10172
    %14931 = vmatprep.subr.bf16.mxu0 %v10169
    %14932 = vmatpush1.bf16.msra.mxu0 %v10168
    %14933 = vmatprep.subr.bf16.mxu0 %v10165
    %14934 = vmatpush1.bf16.msra.mxu0 %v10164
    %14935 = vmatprep.subr.bf16.mxu0 %v10161
    %14936 = vmatpush1.bf16.msra.mxu0 %v10160
    %14937 = vmatprep.subr.bf16.mxu0 %v10157
    %14938 = vmatpush1.bf16.msra.mxu0 %v10156
    %14939 = vmatprep.subr.bf16.mxu0 %v10153
    %14940 = vmatpush1.bf16.msra.mxu0 %v10152
    %14941 = vmatprep.subr.bf16.mxu0 %v10149
    %14942 = vmatpush1.bf16.msra.mxu0 %v10148
    %14943 = vmatprep.subr.bf16.mxu0 %v10145
    %14944 = vmatpush1.bf16.msra.mxu0 %v10144
    %14945 = vmatprep.subr.bf16.mxu0 %v10205
    %14946 = vmatpush2.bf16.msra.mxu0 %v10204
    %14947 = vmatprep.subr.bf16.mxu0 %v10201
    %14948 = vmatpush2.bf16.msra.mxu0 %v10200
    %14949 = vmatprep.subr.bf16.mxu0 %v10197
    %14950 = vmatpush2.bf16.msra.mxu0 %v10196
    %14951 = vmatprep.subr.bf16.mxu0 %v10193
    %14952 = vmatpush2.bf16.msra.mxu0 %v10192
    %14953 = vmatprep.subr.bf16.mxu0 %v10189
    %14954 = vmatpush2.bf16.msra.mxu0 %v10188
    %14955 = vmatprep.subr.bf16.mxu0 %v10185
    %14956 = vmatpush2.bf16.msra.mxu0 %v10184
    %14957 = vmatprep.subr.bf16.mxu0 %v10181
    %14958 = vmatpush2.bf16.msra.mxu0 %v10180
    %14959 = vmatprep.subr.bf16.mxu0 %v10177
    %14960 = vmatpush2.bf16.msra.mxu0 %v10176
    %14961 = vmatprep.mubr.bf16.mxu0 %v191
    %14962 = vmatmul.mubr.bf16.gmra.mxu0 %v190
    %v14963 = vpop.f32.mrf.mxu0
    %v14964 = vadd.f32 %v14923, %v14963
    %v14965 = vpop.f32.mrf.mxu0
    %v14966 = vadd.f32 %v14925, %v14965
    %v14967 = vpop.f32.mrf.mxu0
    %v14968 = vpop.f32.mrf.mxu0
    %14969 = vdwg.mxu0
    %14970 = vmatprep.subr.bf16.mxu0 %v10237
    %14971 = vmatpush1.bf16.msra.mxu0 %v10236
    %14972 = vmatprep.subr.bf16.mxu0 %v10233
    %14973 = vmatpush1.bf16.msra.mxu0 %v10232
    %14974 = vmatprep.subr.bf16.mxu0 %v10229
    %14975 = vmatpush1.bf16.msra.mxu0 %v10228
    %14976 = vmatprep.subr.bf16.mxu0 %v10225
    %14977 = vmatpush1.bf16.msra.mxu0 %v10224
    %14978 = vmatprep.subr.bf16.mxu0 %v10221
    %14979 = vmatpush1.bf16.msra.mxu0 %v10220
    %14980 = vmatprep.subr.bf16.mxu0 %v10217
    %14981 = vmatpush1.bf16.msra.mxu0 %v10216
    %14982 = vmatprep.subr.bf16.mxu0 %v10213
    %14983 = vmatpush1.bf16.msra.mxu0 %v10212
    %14984 = vmatprep.subr.bf16.mxu0 %v10209
    %14985 = vmatpush1.bf16.msra.mxu0 %v10208
    %14986 = vmatprep.subr.bf16.mxu0 %v10269
    %14987 = vmatpush2.bf16.msra.mxu0 %v10268
    %14988 = vmatprep.subr.bf16.mxu0 %v10265
    %14989 = vmatpush2.bf16.msra.mxu0 %v10264
    %14990 = vmatprep.subr.bf16.mxu0 %v10261
    %14991 = vmatpush2.bf16.msra.mxu0 %v10260
    %14992 = vmatprep.subr.bf16.mxu0 %v10257
    %14993 = vmatpush2.bf16.msra.mxu0 %v10256
    %14994 = vmatprep.subr.bf16.mxu0 %v10253
    %14995 = vmatpush2.bf16.msra.mxu0 %v10252
    %14996 = vmatprep.subr.bf16.mxu0 %v10249
    %14997 = vmatpush2.bf16.msra.mxu0 %v10248
    %14998 = vmatprep.subr.bf16.mxu0 %v10245
    %14999 = vmatpush2.bf16.msra.mxu0 %v10244
    %15000 = vmatprep.subr.bf16.mxu0 %v10241
    %15001 = vmatpush2.bf16.msra.mxu0 %v10240
    %15002 = vmatprep.mubr.bf16.mxu0 %v193
    %15003 = vmatmul.mubr.bf16.gmra.mxu0 %v192
    %v15004 = vpop.f32.mrf.mxu0
    %v15005 = vadd.f32 %v14964, %v15004
    %v15006 = vpop.f32.mrf.mxu0
    %v15007 = vadd.f32 %v14966, %v15006
    %v15008 = vpop.f32.mrf.mxu0
    %v15009 = vpop.f32.mrf.mxu0
    %15010 = vdwg.mxu0
    %15011 = vmatprep.subr.bf16.mxu0 %v10301
    %15012 = vmatpush1.bf16.msra.mxu0 %v10300
    %15013 = vmatprep.subr.bf16.mxu0 %v10297
    %15014 = vmatpush1.bf16.msra.mxu0 %v10296
    %15015 = vmatprep.subr.bf16.mxu0 %v10293
    %15016 = vmatpush1.bf16.msra.mxu0 %v10292
    %15017 = vmatprep.subr.bf16.mxu0 %v10289
    %15018 = vmatpush1.bf16.msra.mxu0 %v10288
    %15019 = vmatprep.subr.bf16.mxu0 %v10285
    %15020 = vmatpush1.bf16.msra.mxu0 %v10284
    %15021 = vmatprep.subr.bf16.mxu0 %v10281
    %15022 = vmatpush1.bf16.msra.mxu0 %v10280
    %15023 = vmatprep.subr.bf16.mxu0 %v10277
    %15024 = vmatpush1.bf16.msra.mxu0 %v10276
    %15025 = vmatprep.subr.bf16.mxu0 %v10273
    %15026 = vmatpush1.bf16.msra.mxu0 %v10272
    %15027 = vmatprep.subr.bf16.mxu0 %v10333
    %15028 = vmatpush2.bf16.msra.mxu0 %v10332
    %15029 = vmatprep.subr.bf16.mxu0 %v10329
    %15030 = vmatpush2.bf16.msra.mxu0 %v10328
    %15031 = vmatprep.subr.bf16.mxu0 %v10325
    %15032 = vmatpush2.bf16.msra.mxu0 %v10324
    %15033 = vmatprep.subr.bf16.mxu0 %v10321
    %15034 = vmatpush2.bf16.msra.mxu0 %v10320
    %15035 = vmatprep.subr.bf16.mxu0 %v10317
    %15036 = vmatpush2.bf16.msra.mxu0 %v10316
    %15037 = vmatprep.subr.bf16.mxu0 %v10313
    %15038 = vmatpush2.bf16.msra.mxu0 %v10312
    %15039 = vmatprep.subr.bf16.mxu0 %v10309
    %15040 = vmatpush2.bf16.msra.mxu0 %v10308
    %15041 = vmatprep.subr.bf16.mxu0 %v10305
    %15042 = vmatpush2.bf16.msra.mxu0 %v10304
    %15043 = vmatprep.mubr.bf16.mxu0 %v195
    %15044 = vmatmul.mubr.bf16.gmra.mxu0 %v194
    %v15045 = vpop.f32.mrf.mxu0
    %v15046 = vadd.f32 %v15005, %v15045
    %v15047 = vpop.f32.mrf.mxu0
    %v15048 = vadd.f32 %v15007, %v15047
    %v15049 = vpop.f32.mrf.mxu0
    %v15050 = vpop.f32.mrf.mxu0
    %15051 = vdwg.mxu0
    %15052 = vmatprep.subr.bf16.mxu0 %v10365
    %15053 = vmatpush1.bf16.msra.mxu0 %v10364
    %15054 = vmatprep.subr.bf16.mxu0 %v10361
    %15055 = vmatpush1.bf16.msra.mxu0 %v10360
    %15056 = vmatprep.subr.bf16.mxu0 %v10357
    %15057 = vmatpush1.bf16.msra.mxu0 %v10356
    %15058 = vmatprep.subr.bf16.mxu0 %v10353
    %15059 = vmatpush1.bf16.msra.mxu0 %v10352
    %15060 = vmatprep.subr.bf16.mxu0 %v10349
    %15061 = vmatpush1.bf16.msra.mxu0 %v10348
    %15062 = vmatprep.subr.bf16.mxu0 %v10345
    %15063 = vmatpush1.bf16.msra.mxu0 %v10344
    %15064 = vmatprep.subr.bf16.mxu0 %v10341
    %15065 = vmatpush1.bf16.msra.mxu0 %v10340
    %15066 = vmatprep.subr.bf16.mxu0 %v10337
    %15067 = vmatpush1.bf16.msra.mxu0 %v10336
    %15068 = vmatprep.subr.bf16.mxu0 %v10397
    %15069 = vmatpush2.bf16.msra.mxu0 %v10396
    %15070 = vmatprep.subr.bf16.mxu0 %v10393
    %15071 = vmatpush2.bf16.msra.mxu0 %v10392
    %15072 = vmatprep.subr.bf16.mxu0 %v10389
    %15073 = vmatpush2.bf16.msra.mxu0 %v10388
    %15074 = vmatprep.subr.bf16.mxu0 %v10385
    %15075 = vmatpush2.bf16.msra.mxu0 %v10384
    %15076 = vmatprep.subr.bf16.mxu0 %v10381
    %15077 = vmatpush2.bf16.msra.mxu0 %v10380
    %15078 = vmatprep.subr.bf16.mxu0 %v10377
    %15079 = vmatpush2.bf16.msra.mxu0 %v10376
    %15080 = vmatprep.subr.bf16.mxu0 %v10373
    %15081 = vmatpush2.bf16.msra.mxu0 %v10372
    %15082 = vmatprep.subr.bf16.mxu0 %v10369
    %15083 = vmatpush2.bf16.msra.mxu0 %v10368
    %15084 = vmatprep.mubr.bf16.mxu0 %v197
    %15085 = vmatmul.mubr.bf16.gmra.mxu0 %v196
    %v15086 = vpop.f32.mrf.mxu0
    %v15087 = vadd.f32 %v15046, %v15086
    %v15088 = vpop.f32.mrf.mxu0
    %v15089 = vadd.f32 %v15048, %v15088
    %v15090 = vpop.f32.mrf.mxu0
    %v15091 = vpop.f32.mrf.mxu0
    %15092 = vdwg.mxu0
    %15093 = vmatprep.subr.bf16.mxu0 %v10429
    %15094 = vmatpush1.bf16.msra.mxu0 %v10428
    %15095 = vmatprep.subr.bf16.mxu0 %v10425
    %15096 = vmatpush1.bf16.msra.mxu0 %v10424
    %15097 = vmatprep.subr.bf16.mxu0 %v10421
    %15098 = vmatpush1.bf16.msra.mxu0 %v10420
    %15099 = vmatprep.subr.bf16.mxu0 %v10417
    %15100 = vmatpush1.bf16.msra.mxu0 %v10416
    %15101 = vmatprep.subr.bf16.mxu0 %v10413
    %15102 = vmatpush1.bf16.msra.mxu0 %v10412
    %15103 = vmatprep.subr.bf16.mxu0 %v10409
    %15104 = vmatpush1.bf16.msra.mxu0 %v10408
    %15105 = vmatprep.subr.bf16.mxu0 %v10405
    %15106 = vmatpush1.bf16.msra.mxu0 %v10404
    %15107 = vmatprep.subr.bf16.mxu0 %v10401
    %15108 = vmatpush1.bf16.msra.mxu0 %v10400
    %15109 = vmatprep.subr.bf16.mxu0 %v10461
    %15110 = vmatpush2.bf16.msra.mxu0 %v10460
    %15111 = vmatprep.subr.bf16.mxu0 %v10457
    %15112 = vmatpush2.bf16.msra.mxu0 %v10456
    %15113 = vmatprep.subr.bf16.mxu0 %v10453
    %15114 = vmatpush2.bf16.msra.mxu0 %v10452
    %15115 = vmatprep.subr.bf16.mxu0 %v10449
    %15116 = vmatpush2.bf16.msra.mxu0 %v10448
    %15117 = vmatprep.subr.bf16.mxu0 %v10445
    %15118 = vmatpush2.bf16.msra.mxu0 %v10444
    %15119 = vmatprep.subr.bf16.mxu0 %v10441
    %15120 = vmatpush2.bf16.msra.mxu0 %v10440
    %15121 = vmatprep.subr.bf16.mxu0 %v10437
    %15122 = vmatpush2.bf16.msra.mxu0 %v10436
    %15123 = vmatprep.subr.bf16.mxu0 %v10433
    %15124 = vmatpush2.bf16.msra.mxu0 %v10432
    %15125 = vmatprep.mubr.bf16.mxu0 %v199
    %15126 = vmatmul.mubr.bf16.gmra.mxu0 %v198
    %v15127 = vpop.f32.mrf.mxu0
    %v15128 = vadd.f32 %v15087, %v15127
    %v15129 = vpop.f32.mrf.mxu0
    %v15130 = vadd.f32 %v15089, %v15129
    %v15131 = vpop.f32.mrf.mxu0
    %v15132 = vpop.f32.mrf.mxu0
    %15133 = vdwg.mxu0
    %v15134 = vmax.f32 %v13816, 0.0
    %v15135 = vmax.f32 %v13818, 0.0
    %v15136 = vmax.f32 %v15128, 0.0
    %v15137 = vmax.f32 %v15130, 0.0
    %v15138 = vpack.c.bf16 %v15134, %v15134
    %v15139 = vpack.c.bf16 %v15135, %v15135
    %v15140 = vpack.c.bf16 %v15136, %v15136
    %v15141 = vpack.c.bf16 %v15137, %v15137
    %v15142 = vld [vmem:[#allocation6] sm:$0xf]
    %v15143 = vld [vmem:[#allocation6 + $0x4] sm:$0xf]
    %v15144 = vld [vmem:[#allocation6 + $0x8] sm:$0xf]
    %v15145 = vld [vmem:[#allocation6 + $0xc] sm:$0xf]
    %v15146 = vld [vmem:[#allocation6 + $0x10] sm:$0xf]
    %v15147 = vld [vmem:[#allocation6 + $0x14] sm:$0xf]
    %v15148 = vld [vmem:[#allocation6 + $0x18] sm:$0xf]
    %v15149 = vld [vmem:[#allocation6 + $0x1c] sm:$0xf]
    %v15150 = vld [vmem:[#allocation6 + $0x20] sm:$0xf]
    %v15151 = vld [vmem:[#allocation6 + $0x24] sm:$0xf]
    %v15152 = vld [vmem:[#allocation6 + $0x28] sm:$0xf]
    %v15153 = vld [vmem:[#allocation6 + $0x2c] sm:$0xf]
    %v15154 = vld [vmem:[#allocation6 + $0x30] sm:$0xf]
    %v15155 = vld [vmem:[#allocation6 + $0x34] sm:$0xf]
    %v15156 = vld [vmem:[#allocation6 + $0x38] sm:$0xf]
    %v15157 = vld [vmem:[#allocation6 + $0x3c] sm:$0xf]
    %v15158 = vld [vmem:[#allocation6 + $0x40] sm:$0xf]
    %v15159 = vld [vmem:[#allocation6 + $0x44] sm:$0xf]
    %v15160 = vld [vmem:[#allocation6 + $0x48] sm:$0xf]
    %v15161 = vld [vmem:[#allocation6 + $0x4c] sm:$0xf]
    %v15162 = vld [vmem:[#allocation6 + $0x50] sm:$0xf]
    %v15163 = vld [vmem:[#allocation6 + $0x54] sm:$0xf]
    %v15164 = vld [vmem:[#allocation6 + $0x58] sm:$0xf]
    %v15165 = vld [vmem:[#allocation6 + $0x5c] sm:$0xf]
    %v15166 = vld [vmem:[#allocation6 + $0x60] sm:$0xf]
    %v15167 = vld [vmem:[#allocation6 + $0x64] sm:$0xf]
    %v15168 = vld [vmem:[#allocation6 + $0x68] sm:$0xf]
    %v15169 = vld [vmem:[#allocation6 + $0x6c] sm:$0xf]
    %v15170 = vld [vmem:[#allocation6 + $0x70] sm:$0xf]
    %v15171 = vld [vmem:[#allocation6 + $0x74] sm:$0xf]
    %v15172 = vld [vmem:[#allocation6 + $0x78] sm:$0xf]
    %v15173 = vld [vmem:[#allocation6 + $0x7c] sm:$0xf]
    %v15174 = vld [vmem:[#allocation6 + $0x80] sm:$0xf]
    %v15175 = vld [vmem:[#allocation6 + $0x84] sm:$0xf]
    %v15176 = vld [vmem:[#allocation6 + $0x88] sm:$0xf]
    %v15177 = vld [vmem:[#allocation6 + $0x8c] sm:$0xf]
    %v15178 = vld [vmem:[#allocation6 + $0x90] sm:$0xf]
    %v15179 = vld [vmem:[#allocation6 + $0x94] sm:$0xf]
    %v15180 = vld [vmem:[#allocation6 + $0x98] sm:$0xf]
    %v15181 = vld [vmem:[#allocation6 + $0x9c] sm:$0xf]
    %v15182 = vld [vmem:[#allocation6 + $0xa0] sm:$0xf]
    %v15183 = vld [vmem:[#allocation6 + $0xa4] sm:$0xf]
    %v15184 = vld [vmem:[#allocation6 + $0xa8] sm:$0xf]
    %v15185 = vld [vmem:[#allocation6 + $0xac] sm:$0xf]
    %v15186 = vld [vmem:[#allocation6 + $0xb0] sm:$0xf]
    %v15187 = vld [vmem:[#allocation6 + $0xb4] sm:$0xf]
    %v15188 = vld [vmem:[#allocation6 + $0xb8] sm:$0xf]
    %v15189 = vld [vmem:[#allocation6 + $0xbc] sm:$0xf]
    %v15190 = vld [vmem:[#allocation6 + $0xc0] sm:$0xf]
    %v15191 = vld [vmem:[#allocation6 + $0xc4] sm:$0xf]
    %v15192 = vld [vmem:[#allocation6 + $0xc8] sm:$0xf]
    %v15193 = vld [vmem:[#allocation6 + $0xcc] sm:$0xf]
    %v15194 = vld [vmem:[#allocation6 + $0xd0] sm:$0xf]
    %v15195 = vld [vmem:[#allocation6 + $0xd4] sm:$0xf]
    %v15196 = vld [vmem:[#allocation6 + $0xd8] sm:$0xf]
    %v15197 = vld [vmem:[#allocation6 + $0xdc] sm:$0xf]
    %v15198 = vld [vmem:[#allocation6 + $0xe0] sm:$0xf]
    %v15199 = vld [vmem:[#allocation6 + $0xe4] sm:$0xf]
    %v15200 = vld [vmem:[#allocation6 + $0xe8] sm:$0xf]
    %v15201 = vld [vmem:[#allocation6 + $0xec] sm:$0xf]
    %v15202 = vld [vmem:[#allocation6 + $0xf0] sm:$0xf]
    %v15203 = vld [vmem:[#allocation6 + $0xf4] sm:$0xf]
    %v15204 = vld [vmem:[#allocation6 + $0xf8] sm:$0xf]
    %v15205 = vld [vmem:[#allocation6 + $0xfc] sm:$0xf]
    %v15206 = vld [vmem:[#allocation7] sm:$0x1]
    %v15208 = vlaneseq
    %v15209 = vshrl.u32 %v15208, 7
    %v15210 = vsub.s32 0, %v15209
    %v15211 = vrot.slane %v15206, %v15210
    %v15277 = vunpack.c.l.b16 %v15142
    %v15278 = vunpack.c.l.b16 %v15143
    %v15279 = vunpack.c.l.b16 %v15144
    %v15280 = vunpack.c.l.b16 %v15145
    %v15281 = vunpack.c.l.b16 %v15146
    %v15282 = vunpack.c.l.b16 %v15147
    %v15283 = vunpack.c.l.b16 %v15148
    %v15284 = vunpack.c.l.b16 %v15149
    %v15285 = vunpack.c.l.b16 %v15150
    %v15286 = vunpack.c.l.b16 %v15151
    %v15287 = vunpack.c.l.b16 %v15152
    %v15288 = vunpack.c.l.b16 %v15153
    %v15289 = vunpack.c.l.b16 %v15154
    %v15290 = vunpack.c.l.b16 %v15155
    %v15291 = vunpack.c.l.b16 %v15156
    %v15292 = vunpack.c.l.b16 %v15157
    %v15293 = vunpack.c.l.b16 %v15158
    %v15294 = vunpack.c.l.b16 %v15159
    %v15295 = vunpack.c.l.b16 %v15160
    %v15296 = vunpack.c.l.b16 %v15161
    %v15297 = vunpack.c.l.b16 %v15162
    %v15298 = vunpack.c.l.b16 %v15163
    %v15299 = vunpack.c.l.b16 %v15164
    %v15300 = vunpack.c.l.b16 %v15165
    %v15301 = vunpack.c.l.b16 %v15166
    %v15302 = vunpack.c.l.b16 %v15167
    %v15303 = vunpack.c.l.b16 %v15168
    %v15304 = vunpack.c.l.b16 %v15169
    %v15305 = vunpack.c.l.b16 %v15170
    %v15306 = vunpack.c.l.b16 %v15171
    %v15307 = vunpack.c.l.b16 %v15172
    %v15308 = vunpack.c.l.b16 %v15173
    %v15309 = vunpack.c.l.b16 %v15174
    %v15310 = vunpack.c.l.b16 %v15175
    %v15311 = vunpack.c.l.b16 %v15176
    %v15312 = vunpack.c.l.b16 %v15177
    %v15313 = vunpack.c.l.b16 %v15178
    %v15314 = vunpack.c.l.b16 %v15179
    %v15315 = vunpack.c.l.b16 %v15180
    %v15316 = vunpack.c.l.b16 %v15181
    %v15317 = vunpack.c.l.b16 %v15182
    %v15318 = vunpack.c.l.b16 %v15183
    %v15319 = vunpack.c.l.b16 %v15184
    %v15320 = vunpack.c.l.b16 %v15185
    %v15321 = vunpack.c.l.b16 %v15186
    %v15322 = vunpack.c.l.b16 %v15187
    %v15323 = vunpack.c.l.b16 %v15188
    %v15324 = vunpack.c.l.b16 %v15189
    %v15325 = vunpack.c.l.b16 %v15190
    %v15326 = vunpack.c.l.b16 %v15191
    %v15327 = vunpack.c.l.b16 %v15192
    %v15328 = vunpack.c.l.b16 %v15193
    %v15329 = vunpack.c.l.b16 %v15194
    %v15330 = vunpack.c.l.b16 %v15195
    %v15331 = vunpack.c.l.b16 %v15196
    %v15332 = vunpack.c.l.b16 %v15197
    %v15333 = vunpack.c.l.b16 %v15198
    %v15334 = vunpack.c.l.b16 %v15199
    %v15335 = vunpack.c.l.b16 %v15200
    %v15336 = vunpack.c.l.b16 %v15201
    %v15337 = vunpack.c.l.b16 %v15202
    %v15338 = vunpack.c.l.b16 %v15203
    %v15339 = vunpack.c.l.b16 %v15204
    %v15340 = vunpack.c.l.b16 %v15205
    %v15341 = vpack.c.b16 %v15278, %v15277
    %v15342 = vpack.c.b16 %v15280, %v15279
    %v15343 = vpack.c.b16 %v15282, %v15281
    %v15344 = vpack.c.b16 %v15284, %v15283
    %v15345 = vpack.c.b16 %v15286, %v15285
    %v15346 = vpack.c.b16 %v15288, %v15287
    %v15347 = vpack.c.b16 %v15290, %v15289
    %v15348 = vpack.c.b16 %v15292, %v15291
    %v15349 = vpack.c.b16 %v15294, %v15293
    %v15350 = vpack.c.b16 %v15296, %v15295
    %v15351 = vpack.c.b16 %v15298, %v15297
    %v15352 = vpack.c.b16 %v15300, %v15299
    %v15353 = vpack.c.b16 %v15302, %v15301
    %v15354 = vpack.c.b16 %v15304, %v15303
    %v15355 = vpack.c.b16 %v15306, %v15305
    %v15356 = vpack.c.b16 %v15308, %v15307
    %v15357 = vpack.c.b16 %v15310, %v15309
    %v15358 = vpack.c.b16 %v15312, %v15311
    %v15359 = vpack.c.b16 %v15314, %v15313
    %v15360 = vpack.c.b16 %v15316, %v15315
    %v15361 = vpack.c.b16 %v15318, %v15317
    %v15362 = vpack.c.b16 %v15320, %v15319
    %v15363 = vpack.c.b16 %v15322, %v15321
    %v15364 = vpack.c.b16 %v15324, %v15323
    %v15365 = vpack.c.b16 %v15326, %v15325
    %v15366 = vpack.c.b16 %v15328, %v15327
    %v15367 = vpack.c.b16 %v15330, %v15329
    %v15368 = vpack.c.b16 %v15332, %v15331
    %v15369 = vpack.c.b16 %v15334, %v15333
    %v15370 = vpack.c.b16 %v15336, %v15335
    %v15371 = vpack.c.b16 %v15338, %v15337
    %v15372 = vpack.c.b16 %v15340, %v15339
    %15405 = vmatprep.subr.bf16.mxu0 0
    %15406 = vmatpush1.bf16.msra.mxu0 %v15348
    %15407 = vmatprep.subr.bf16.mxu0 0
    %15408 = vmatpush1.bf16.msra.mxu0 %v15347
    %15409 = vmatprep.subr.bf16.mxu0 0
    %15410 = vmatpush1.bf16.msra.mxu0 %v15346
    %15411 = vmatprep.subr.bf16.mxu0 0
    %15412 = vmatpush1.bf16.msra.mxu0 %v15345
    %15413 = vmatprep.subr.bf16.mxu0 0
    %15414 = vmatpush1.bf16.msra.mxu0 %v15344
    %15415 = vmatprep.subr.bf16.mxu0 0
    %15416 = vmatpush1.bf16.msra.mxu0 %v15343
    %15417 = vmatprep.subr.bf16.mxu0 0
    %15418 = vmatpush1.bf16.msra.mxu0 %v15342
    %15419 = vmatprep.subr.bf16.mxu0 0
    %15420 = vmatpush1.bf16.msra.mxu0 %v15341
    %15421 = vmatprep.subr.bf16.mxu0 0
    %15422 = vmatpush2.bf16.msra.mxu0 %v15356
    %15423 = vmatprep.subr.bf16.mxu0 0
    %15424 = vmatpush2.bf16.msra.mxu0 %v15355
    %15425 = vmatprep.subr.bf16.mxu0 0
    %15426 = vmatpush2.bf16.msra.mxu0 %v15354
    %15427 = vmatprep.subr.bf16.mxu0 0
    %15428 = vmatpush2.bf16.msra.mxu0 %v15353
    %15429 = vmatprep.subr.bf16.mxu0 0
    %15430 = vmatpush2.bf16.msra.mxu0 %v15352
    %15431 = vmatprep.subr.bf16.mxu0 0
    %15432 = vmatpush2.bf16.msra.mxu0 %v15351
    %15433 = vmatprep.subr.bf16.mxu0 0
    %15434 = vmatpush2.bf16.msra.mxu0 %v15350
    %15435 = vmatprep.subr.bf16.mxu0 0
    %15436 = vmatpush2.bf16.msra.mxu0 %v15349
    %15437 = vmatprep.mubr.bf16.mxu0 %v15139
    %15438 = vmatmul.mubr.bf16.gmra.mxu0 %v15138
    %v15439 = vpop.f32.mrf.mxu0
    %v15440 = vadd.f32 %v15211, %v15439
    %v15441 = vpop.f32.mrf.mxu0
    %v15442 = vpop.f32.mrf.mxu0
    %v15443 = vpop.f32.mrf.mxu0
    %15444 = vdwg.mxu0
    %15445 = vmatprep.subr.bf16.mxu0 0
    %15446 = vmatpush1.bf16.msra.mxu0 %v15364
    %15447 = vmatprep.subr.bf16.mxu0 0
    %15448 = vmatpush1.bf16.msra.mxu0 %v15363
    %15449 = vmatprep.subr.bf16.mxu0 0
    %15450 = vmatpush1.bf16.msra.mxu0 %v15362
    %15451 = vmatprep.subr.bf16.mxu0 0
    %15452 = vmatpush1.bf16.msra.mxu0 %v15361
    %15453 = vmatprep.subr.bf16.mxu0 0
    %15454 = vmatpush1.bf16.msra.mxu0 %v15360
    %15455 = vmatprep.subr.bf16.mxu0 0
    %15456 = vmatpush1.bf16.msra.mxu0 %v15359
    %15457 = vmatprep.subr.bf16.mxu0 0
    %15458 = vmatpush1.bf16.msra.mxu0 %v15358
    %15459 = vmatprep.subr.bf16.mxu0 0
    %15460 = vmatpush1.bf16.msra.mxu0 %v15357
    %15461 = vmatprep.subr.bf16.mxu0 0
    %15462 = vmatpush2.bf16.msra.mxu0 %v15372
    %15463 = vmatprep.subr.bf16.mxu0 0
    %15464 = vmatpush2.bf16.msra.mxu0 %v15371
    %15465 = vmatprep.subr.bf16.mxu0 0
    %15466 = vmatpush2.bf16.msra.mxu0 %v15370
    %15467 = vmatprep.subr.bf16.mxu0 0
    %15468 = vmatpush2.bf16.msra.mxu0 %v15369
    %15469 = vmatprep.subr.bf16.mxu0 0
    %15470 = vmatpush2.bf16.msra.mxu0 %v15368
    %15471 = vmatprep.subr.bf16.mxu0 0
    %15472 = vmatpush2.bf16.msra.mxu0 %v15367
    %15473 = vmatprep.subr.bf16.mxu0 0
    %15474 = vmatpush2.bf16.msra.mxu0 %v15366
    %15475 = vmatprep.subr.bf16.mxu0 0
    %15476 = vmatpush2.bf16.msra.mxu0 %v15365
    %15477 = vmatprep.mubr.bf16.mxu0 %v15141
    %15478 = vmatmul.mubr.bf16.gmra.mxu0 %v15140
    %v15479 = vpop.f32.mrf.mxu0
    %v15480 = vadd.f32 %v15440, %v15479
    %v15481 = vpop.f32.mrf.mxu0
    %v15482 = vpop.f32.mrf.mxu0
    %v15483 = vpop.f32.mrf.mxu0
    %15484 = vdwg.mxu0
    %15485 = vst [vmem:[%s5] sm:$0xff] %v15480
    // Predicated region
    $region38: #{pedestrian_classifier.1} parent=1 // pred_check
      _
    $region39: #{pedestrian_classifier.1} parent=1 // pred_check_branch
      %15487 = sbr.rel (0) target = $region41
    $region40: #{pedestrian_classifier.1} parent=1 // pred_region
      _
    $region41: #{pedestrian_classifier.1} parent=1 // pred_fallthru
      _
    // Predicated region
    $region42: #{pedestrian_classifier.1} parent=1 // pred_check
      _
    $region43: #{pedestrian_classifier.1} parent=1 // pred_check_branch
      %15489 = sbr.rel (0) target = $region45
    $region44: #{pedestrian_classifier.1} parent=1 // pred_region
      _
    $region45: #{pedestrian_classifier.1} parent=1 // pred_fallthru
      _
    %15490 = vsyncpa [#allocation3], 1
    %15491 = vsyncpa [#allocation5], 1
    %15492 = vsyncpa [#allocation8], 1

</llo_original>
